<compile_context>
chip_gen: v6e
topology: v6e:2x2x1
jax: 0.10.0
libtpu: 0.0.40
codegen_flags: <defaults>
</compile_context>

<pallas_src>
import functools

import jax
import jax.numpy as jnp
from jax import lax
from jax.experimental import pallas as pl
from jax.experimental.pallas import tpu as pltpu


# ----------------------------- Pallas kernel --------------------------------


def _mha_kernel(x_ref, wq_ref, wkv_ref, wp_ref, bp_ref, o_ref, acc_ref, *,
                num_heads, head_size, q_tile):
    """One (batch, query-tile) step: fused multi-head causal attn + out proj.

    x_ref   : (1, T, C)   f32  input block (full sequence, needed for K/V)
    wq_ref  : (C, C)      bf16 fused per-head Q weights (softmax scale folded)
    wkv_ref : (C, 2C)     bf16 fused per-head [K | V] weights
    wp_ref  : (C, C)      bf16 output projection weight (in, out layout)
    bp_ref  : (1, C)      f32  output projection bias
    o_ref   : (1, TQ, C)  bf16 output block (lane-dense store)
    acc_ref : (TQ, C)     f32  VMEM scratch accumulator (out-proj folded in)
    """
    T = x_ref.shape[1]
    C = x_ref.shape[2]
    TQ = q_tile

    row0 = pl.multiple_of(pl.program_id(1) * TQ, TQ)

    # K/V need the full sequence; Q only needs this tile's rows.
    x = x_ref[0].astype(jnp.bfloat16)                               # (T, C)
    xq = x_ref[0, pl.ds(row0, TQ), :].astype(jnp.bfloat16)          # (TQ, C)

    kv = jnp.dot(x, wkv_ref[...],
                 preferred_element_type=jnp.float32).astype(jnp.bfloat16)     # (T, 2C)
    q_all = jnp.dot(xq, wq_ref[...],
                    preferred_element_type=jnp.float32).astype(jnp.bfloat16)  # (TQ, C)

    # Causal mask for this query tile (global row = local row + row0).
    row = lax.broadcasted_iota(jnp.int32, (TQ, T), 0) + row0
    col = lax.broadcasted_iota(jnp.int32, (TQ, T), 1)
    causal = col <= row
    neg_big = jnp.float32(-1e30)  # finite: robust even if a row were fully masked

    acc_ref[...] = jnp.zeros_like(acc_ref)

    for h in range(num_heads):                        # static loop, H small
        lo = h * head_size
        hi = lo + head_size
        q = q_all[:, lo:hi]                           # (TQ, hs), scale folded in
        k = kv[:, lo:hi]                              # (T, hs)
        v = kv[:, C + lo:C + hi]                      # (T, hs)

        # scores = q @ k^T (contraction on last dims; no explicit transpose)
        s = lax.dot_general(q, k, (((1,), (1,)), ((), ())),
                            preferred_element_type=jnp.float32)     # (TQ, T) f32
        s = jnp.where(causal, s, neg_big)

        # softmax over keys (f32 throughout; denom on the EUP slot)
        s = s - jnp.max(s, axis=-1, keepdims=True)
        p = jnp.exp(s)
        p = p * pl.reciprocal(jnp.sum(p, axis=-1, keepdims=True), approx=True)
        # TODO(synk): attention-weight dropout omitted (eval-mode identity).

        attn = jnp.dot(p.astype(jnp.bfloat16), v,
                       preferred_element_type=jnp.float32)          # (TQ, hs) f32

        # Output projection folded into the head loop: lane-dense N=C output,
        # no head concat / relayout.  wp row slices start at 64-row offsets
        # (sublane-aligned, cheap).
        acc_ref[...] += jnp.dot(attn.astype(jnp.bfloat16), wp_ref[lo:hi, :],
                                preferred_element_type=jnp.float32)  # (TQ, C)

    # Bias add in f32, then bf16 store (halves HBM writeback).
    o_ref[0] = (acc_ref[...] + bp_ref[...]).astype(o_ref.dtype)
    # TODO(synk): residual-path dropout omitted (eval-mode identity).


# ------------------------------ host wrapper ---------------------------------


def multi_head_attention(x, wq, wk, wv, wp, bp):
    """x: (B, T, C) f32; wq/wk/wv: (H, C, hs); wp: (C, C); bp: (C,) -> (B, T, C) bf16."""
    B, T, C = x.shape
    H, _, hs = wq.shape
    assert H * hs == C
    # The module's tril buffer is block_size x block_size (=256) and this kernel
    # fully materializes (TQ, T) scores; use a flash-style tiled softmax beyond that.
    assert T <= 256, "use a flash-style kernel for T > block_size (256)"
    assert T % 8 == 0

    tq = 64 if (T % 64 == 0) else T       # query-row tile (second parallel grid axis)
    assert T % tq == 0 and tq % 8 == 0

    scale = float(C) ** -0.5  # module scales by n_embed**-0.5 (= x.shape[-1])

    # Fuse per-head weights into lane-dense slabs; fold the softmax scale into
    # the q block; cast weights to bf16 (f32 accumulation inside the kernel).
    wq_all = (jnp.transpose(wq, (1, 0, 2)).reshape(C, C) * scale).astype(jnp.bfloat16)
    wk_all = jnp.transpose(wk, (1, 0, 2)).reshape(C, C)
    wv_all = jnp.transpose(wv, (1, 0, 2)).reshape(C, C)
    wkv = jnp.concatenate([wk_all, wv_all], axis=1).astype(jnp.bfloat16)   # (C, 2C)
    wp_b = wp.astype(jnp.bfloat16)
    bp2 = bp.reshape(1, C).astype(jnp.float32)

    return pl.pallas_call(
        functools.partial(_mha_kernel, num_heads=H, head_size=hs, q_tile=tq),
        out_shape=jax.ShapeDtypeStruct((B, T, C), jnp.bfloat16),
        grid_spec=pltpu.PrefetchScalarGridSpec(
            num_scalar_prefetch=0,
            grid=(B, T // tq),
            in_specs=[
                pl.BlockSpec((1, T, C), lambda b, t: (b, 0, 0)),   # x (full seq)
                pl.BlockSpec((C, C), lambda b, t: (0, 0)),         # fused wq (scaled)
                pl.BlockSpec((C, 2 * C), lambda b, t: (0, 0)),     # fused [wk|wv]
                pl.BlockSpec((C, C), lambda b, t: (0, 0)),         # wp
                pl.BlockSpec((1, C), lambda b, t: (0, 0)),         # bias
            ],
            out_specs=pl.BlockSpec((1, tq, C), lambda b, t: (b, t, 0)),
            scratch_shapes=[pltpu.VMEM((tq, C), jnp.float32)],     # out-proj accumulator
        ),
        compiler_params=pltpu.CompilerParams(
            dimension_semantics=("parallel", "parallel"),
        ),
    )(x, wq_all, wkv, wp_b, bp2)


# --------------------------- pure-JAX reference ------------------------------


def reference(x, wq, wk, wv, wp, bp):
    B, T, C = x.shape
    H, _, hs = wq.shape
    scale = float(C) ** -0.5
    outs = []
    for h in range(H):
        q = x @ wq[h]
        k = x @ wk[h]
        v = x @ wv[h]
        wei = (q @ jnp.swapaxes(k, -2, -1)) * scale
        mask = jnp.tril(jnp.ones((T, T), dtype=bool))
        wei = jnp.where(mask, wei, -jnp.inf)
        wei = jax.nn.softmax(wei, axis=-1)
        outs.append(wei @ v)
    cat = jnp.concatenate(outs, axis=-1)
    return cat @ wp + bp


# ----------------------------------- main ------------------------------------

if __name__ == "__main__":
    # Shapes consistent with the module: n_embed = 384, T <= block_size (256).
    B, T = 2, 128
    num_heads, head_size = 6, 64
    n_embed = num_heads * head_size  # 384

    key = jax.random.PRNGKey(0)
    kx, kq, kk, kv, kp, kb = jax.random.split(key, 6)

    x = jax.random.normal(kx, (B, T, n_embed), dtype=jnp.float32)

    # Per-head projection weights stored as (H, in=C, out=head_size)
    # (torch Linear weight (head_size, n_embed), transposed).
    init = 1.0 / jnp.sqrt(jnp.float32(n_embed))
    wq = jax.random.uniform(kq, (num_heads, n_embed, head_size), jnp.float32, -init, init)
    wk = jax.random.uniform(kk, (num_heads, n_embed, head_size), jnp.float32, -init, init)
    wv = jax.random.uniform(kv, (num_heads, n_embed, head_size), jnp.float32, -init, init)
    wp = jax.random.uniform(kp, (n_embed, n_embed), jnp.float32, -init, init)
    bp = jax.random.uniform(kb, (n_embed,), jnp.float32, -init, init)

    out = multi_head_attention(x, wq, wk, wv, wp, bp)
    out = jax.block_until_ready(out)

    ref = reference(x, wq, wk, wv, wp, bp)
    assert out.shape == (B, T, n_embed)
    assert out.dtype == jnp.bfloat16
    # bf16 MXU inputs + bf16 output store (f32 accumulation) + approx
    # reciprocal -> relaxed tolerance.
    assert jnp.allclose(out.astype(jnp.float32), ref, atol=3e-2, rtol=3e-2), \
        "mismatch vs reference"

    print("KERNEL_OK")
</pallas_src>

<mosaic_0001>
module attributes {stable_mosaic.version = 11 : i64} {
  func.func @_mha_kernel(%arg0: i32, %arg1: i32, %arg2: memref<1x128x384xf32, #tpu.memory_space<vmem>>, %arg3: memref<384x384xbf16, #tpu.memory_space<vmem>>, %arg4: memref<384x768xbf16, #tpu.memory_space<vmem>>, %arg5: memref<384x384xbf16, #tpu.memory_space<vmem>>, %arg6: memref<1x384xf32, #tpu.memory_space<vmem>>, %arg7: memref<1x64x384xbf16, #tpu.memory_space<vmem>>, %arg8: memref<64x384xf32, #tpu.memory_space<vmem>>) attributes {dimension_semantics = [#tpu.dimension_semantics<parallel>, #tpu.dimension_semantics<parallel>], iteration_bounds = array<i64: 2, 2>, scalar_prefetch = 0 : i64, scratch_operands = 1 : i64, tpu.core_type = #tpu.core_type<tc>, window_params = [{transform_indices = @transform_0, window_bounds = array<i64: 1, 128, 384>}, {pipeline_mode = #tpu.pipeline_mode<synchronous>, transform_indices = @transform_1, window_bounds = array<i64: 384, 384>}, {pipeline_mode = #tpu.pipeline_mode<synchronous>, transform_indices = @transform_2, window_bounds = array<i64: 384, 768>}, {pipeline_mode = #tpu.pipeline_mode<synchronous>, transform_indices = @transform_3, window_bounds = array<i64: 384, 384>}, {pipeline_mode = #tpu.pipeline_mode<synchronous>, transform_indices = @transform_4, window_bounds = array<i64: 1, 384>}, {transform_indices = @transform_5, window_bounds = array<i64: 1, 64, 384>}]} {
    %c64_i32 = arith.constant 64 : i32
    %0 = arith.muli %arg1, %c64_i32 : i32
    %1 = tpu.assume_multiple %0, 64 : i32
    %c0 = arith.constant 0 : index
    %c0_0 = arith.constant 0 : index
    %c0_1 = arith.constant 0 : index
    %2 = vector.load %arg2[%c0, %c0_0, %c0_1] : memref<1x128x384xf32, #tpu.memory_space<vmem>>, vector<1x128x384xf32>
    %3 = vector.shape_cast %2 : vector<1x128x384xf32> to vector<128x384xf32>
    %4 = arith.truncf %3 : vector<128x384xf32> to vector<128x384xbf16>
    %c0_2 = arith.constant 0 : index
    %5 = arith.index_cast %1 : i32 to index
    %c0_3 = arith.constant 0 : index
    %6 = vector.load %arg2[%c0_2, %5, %c0_3] : memref<1x128x384xf32, #tpu.memory_space<vmem>>, vector<1x64x384xf32>
    %7 = vector.shape_cast %6 : vector<1x64x384xf32> to vector<64x384xf32>
    %8 = arith.truncf %7 : vector<64x384xf32> to vector<64x384xbf16>
    %c0_4 = arith.constant 0 : index
    %c0_5 = arith.constant 0 : index
    %9 = vector.load %arg4[%c0_4, %c0_5] : memref<384x768xbf16, #tpu.memory_space<vmem>>, vector<384x768xbf16>
    %cst = arith.constant dense<0.000000e+00> : vector<128x768xf32>
    %10 = tpu.matmul %4, %9, %cst {dimension_numbers = #tpu.dot_dimension_numbers<[1], [0], [0], [1], [0, 0, 1, 1], [], []>} : vector<128x384xbf16>, vector<384x768xbf16>, vector<128x768xf32> -> vector<128x768xf32>
    %11 = arith.truncf %10 : vector<128x768xf32> to vector<128x768xbf16>
    %c0_6 = arith.constant 0 : index
    %c0_7 = arith.constant 0 : index
    %12 = vector.load %arg3[%c0_6, %c0_7] : memref<384x384xbf16, #tpu.memory_space<vmem>>, vector<384x384xbf16>
    %cst_8 = arith.constant dense<0.000000e+00> : vector<64x384xf32>
    %13 = tpu.matmul %8, %12, %cst_8 {dimension_numbers = #tpu.dot_dimension_numbers<[1], [0], [0], [1], [0, 0, 1, 1], [], []>} : vector<64x384xbf16>, vector<384x384xbf16>, vector<64x384xf32> -> vector<64x384xf32>
    %14 = arith.truncf %13 : vector<64x384xf32> to vector<64x384xbf16>
    %15 = tpu.iota {dimensions = array<i32: 0>} : vector<64x128xi32>
    %16 = vector.broadcast %1 : i32 to vector<64x128xi32>
    %17 = arith.addi %15, %16 : vector<64x128xi32>
    %18 = tpu.iota {dimensions = array<i32: 1>} : vector<64x128xi32>
    %19 = arith.cmpi sle, %18, %17 : vector<64x128xi32>
    %cst_9 = arith.constant 0.000000e+00 : f32
    %20 = vector.broadcast %cst_9 : f32 to vector<64x384xf32>
    %c0_10 = arith.constant 0 : index
    %c0_11 = arith.constant 0 : index
    %21 = vector.load %arg8[%c0_10, %c0_11] : memref<64x384xf32, #tpu.memory_space<vmem>>, vector<64x384xf32>
    tpu.vector_store %arg8[%c0_10, %c0_11], %20 {strides = array<i32>} : memref<64x384xf32, #tpu.memory_space<vmem>>, vector<64x384xf32>,
    %22 = vector.extract_strided_slice %14 {offsets = [0, 0], sizes = [64, 64], strides = [1, 1]} : vector<64x384xbf16> to vector<64x64xbf16>
    %23 = vector.extract_strided_slice %11 {offsets = [0, 0], sizes = [128, 64], strides = [1, 1]} : vector<128x768xbf16> to vector<128x64xbf16>
    %24 = vector.extract_strided_slice %11 {offsets = [0, 384], sizes = [128, 64], strides = [1, 1]} : vector<128x768xbf16> to vector<128x64xbf16>
    %cst_12 = arith.constant dense<0.000000e+00> : vector<64x128xf32>
    %25 = tpu.matmul %22, %23, %cst_12 {dimension_numbers = #tpu.dot_dimension_numbers<[1], [1], [0], [0], [0, 0, 1, 0], [], []>} : vector<64x64xbf16>, vector<128x64xbf16>, vector<64x128xf32> -> vector<64x128xf32>
    %cst_13 = arith.constant -1.000000e+30 : f32
    %26 = vector.broadcast %cst_13 : f32 to vector<64x128xf32>
    %27 = arith.select %19, %25, %26 : vector<64x128xi1>, vector<64x128xf32>
    %cst_14 = arith.constant dense<0xFF800000> : vector<64xf32>
    %28 = vector.multi_reduction <maximumf>, %27, %cst_14 [1] : vector<64x128xf32> to vector<64xf32>
    %29 = vector.shape_cast %28 : vector<64xf32> to vector<64x1xf32>
    %30 = vector.broadcast %29 : vector<64x1xf32> to vector<64x128xf32>
    %31 = arith.subf %27, %30 : vector<64x128xf32>
    %32 = math.exp %31 : vector<64x128xf32>
    %cst_15 = arith.constant dense<0.000000e+00> : vector<64xf32>
    %33 = vector.multi_reduction <add>, %32, %cst_15 [1] : vector<64x128xf32> to vector<64xf32>
    %34 = vector.shape_cast %33 : vector<64xf32> to vector<64x1xf32>
    %35 = tpu.reciprocal %34 {approx = true} : vector<64x1xf32> -> vector<64x1xf32>
    %36 = vector.broadcast %35 : vector<64x1xf32> to vector<64x128xf32>
    %37 = arith.mulf %32, %36 : vector<64x128xf32>
    %38 = arith.truncf %37 : vector<64x128xf32> to vector<64x128xbf16>
    %cst_16 = arith.constant dense<0.000000e+00> : vector<64x64xf32>
    %39 = tpu.matmul %38, %24, %cst_16 {dimension_numbers = #tpu.dot_dimension_numbers<[1], [0], [0], [1], [0, 0, 1, 1], [], []>} : vector<64x128xbf16>, vector<128x64xbf16>, vector<64x64xf32> -> vector<64x64xf32>
    %c0_17 = arith.constant 0 : index
    %c0_18 = arith.constant 0 : index
    %40 = vector.load %arg8[%c0_17, %c0_18] : memref<64x384xf32, #tpu.memory_space<vmem>>, vector<64x384xf32>
    %41 = arith.truncf %39 : vector<64x64xf32> to vector<64x64xbf16>
    %c0_19 = arith.constant 0 : index
    %c0_20 = arith.constant 0 : index
    %42 = vector.load %arg5[%c0_19, %c0_20] : memref<384x384xbf16, #tpu.memory_space<vmem>>, vector<64x384xbf16>
    %cst_21 = arith.constant dense<0.000000e+00> : vector<64x384xf32>
    %43 = tpu.matmul %41, %42, %cst_21 {dimension_numbers = #tpu.dot_dimension_numbers<[1], [0], [0], [1], [0, 0, 1, 1], [], []>} : vector<64x64xbf16>, vector<64x384xbf16>, vector<64x384xf32> -> vector<64x384xf32>
    %44 = arith.addf %40, %43 : vector<64x384xf32>
    %c0_22 = arith.constant 0 : index
    %c0_23 = arith.constant 0 : index
    %45 = vector.load %arg8[%c0_22, %c0_23] : memref<64x384xf32, #tpu.memory_space<vmem>>, vector<64x384xf32>
    tpu.vector_store %arg8[%c0_22, %c0_23], %44 {strides = array<i32>} : memref<64x384xf32, #tpu.memory_space<vmem>>, vector<64x384xf32>,
    %46 = vector.extract_strided_slice %14 {offsets = [0, 64], sizes = [64, 64], strides = [1, 1]} : vector<64x384xbf16> to vector<64x64xbf16>
    %47 = vector.extract_strided_slice %11 {offsets = [0, 64], sizes = [128, 64], strides = [1, 1]} : vector<128x768xbf16> to vector<128x64xbf16>
    %48 = vector.extract_strided_slice %11 {offsets = [0, 448], sizes = [128, 64], strides = [1, 1]} : vector<128x768xbf16> to vector<128x64xbf16>
    %cst_24 = arith.constant dense<0.000000e+00> : vector<64x128xf32>
    %49 = tpu.matmul %46, %47, %cst_24 {dimension_numbers = #tpu.dot_dimension_numbers<[1], [1], [0], [0], [0, 0, 1, 0], [], []>} : vector<64x64xbf16>, vector<128x64xbf16>, vector<64x128xf32> -> vector<64x128xf32>
    %cst_25 = arith.constant -1.000000e+30 : f32
    %50 = vector.broadcast %cst_25 : f32 to vector<64x128xf32>
    %51 = arith.select %19, %49, %50 : vector<64x128xi1>, vector<64x128xf32>
    %cst_26 = arith.constant dense<0xFF800000> : vector<64xf32>
    %52 = vector.multi_reduction <maximumf>, %51, %cst_26 [1] : vector<64x128xf32> to vector<64xf32>
    %53 = vector.shape_cast %52 : vector<64xf32> to vector<64x1xf32>
    %54 = vector.broadcast %53 : vector<64x1xf32> to vector<64x128xf32>
    %55 = arith.subf %51, %54 : vector<64x128xf32>
    %56 = math.exp %55 : vector<64x128xf32>
    %cst_27 = arith.constant dense<0.000000e+00> : vector<64xf32>
    %57 = vector.multi_reduction <add>, %56, %cst_27 [1] : vector<64x128xf32> to vector<64xf32>
    %58 = vector.shape_cast %57 : vector<64xf32> to vector<64x1xf32>
    %59 = tpu.reciprocal %58 {approx = true} : vector<64x1xf32> -> vector<64x1xf32>
    %60 = vector.broadcast %59 : vector<64x1xf32> to vector<64x128xf32>
    %61 = arith.mulf %56, %60 : vector<64x128xf32>
    %62 = arith.truncf %61 : vector<64x128xf32> to vector<64x128xbf16>
    %cst_28 = arith.constant dense<0.000000e+00> : vector<64x64xf32>
    %63 = tpu.matmul %62, %48, %cst_28 {dimension_numbers = #tpu.dot_dimension_numbers<[1], [0], [0], [1], [0, 0, 1, 1], [], []>} : vector<64x128xbf16>, vector<128x64xbf16>, vector<64x64xf32> -> vector<64x64xf32>
    %c0_29 = arith.constant 0 : index
    %c0_30 = arith.constant 0 : index
    %64 = vector.load %arg8[%c0_29, %c0_30] : memref<64x384xf32, #tpu.memory_space<vmem>>, vector<64x384xf32>
    %65 = arith.truncf %63 : vector<64x64xf32> to vector<64x64xbf16>
    %c64 = arith.constant 64 : index
    %c0_31 = arith.constant 0 : index
    %66 = vector.load %arg5[%c64, %c0_31] : memref<384x384xbf16, #tpu.memory_space<vmem>>, vector<64x384xbf16>
    %cst_32 = arith.constant dense<0.000000e+00> : vector<64x384xf32>
    %67 = tpu.matmul %65, %66, %cst_32 {dimension_numbers = #tpu.dot_dimension_numbers<[1], [0], [0], [1], [0, 0, 1, 1], [], []>} : vector<64x64xbf16>, vector<64x384xbf16>, vector<64x384xf32> -> vector<64x384xf32>
    %68 = arith.addf %64, %67 : vector<64x384xf32>
    %c0_33 = arith.constant 0 : index
    %c0_34 = arith.constant 0 : index
    %69 = vector.load %arg8[%c0_33, %c0_34] : memref<64x384xf32, #tpu.memory_space<vmem>>, vector<64x384xf32>
    tpu.vector_store %arg8[%c0_33, %c0_34], %68 {strides = array<i32>} : memref<64x384xf32, #tpu.memory_space<vmem>>, vector<64x384xf32>,
    %70 = vector.extract_strided_slice %14 {offsets = [0, 128], sizes = [64, 64], strides = [1, 1]} : vector<64x384xbf16> to vector<64x64xbf16>
    %71 = vector.extract_strided_slice %11 {offsets = [0, 128], sizes = [128, 64], strides = [1, 1]} : vector<128x768xbf16> to vector<128x64xbf16>
    %72 = vector.extract_strided_slice %11 {offsets = [0, 512], sizes = [128, 64], strides = [1, 1]} : vector<128x768xbf16> to vector<128x64xbf16>
    %cst_35 = arith.constant dense<0.000000e+00> : vector<64x128xf32>
    %73 = tpu.matmul %70, %71, %cst_35 {dimension_numbers = #tpu.dot_dimension_numbers<[1], [1], [0], [0], [0, 0, 1, 0], [], []>} : vector<64x64xbf16>, vector<128x64xbf16>, vector<64x128xf32> -> vector<64x128xf32>
    %cst_36 = arith.constant -1.000000e+30 : f32
    %74 = vector.broadcast %cst_36 : f32 to vector<64x128xf32>
    %75 = arith.select %19, %73, %74 : vector<64x128xi1>, vector<64x128xf32>
    %cst_37 = arith.constant dense<0xFF800000> : vector<64xf32>
    %76 = vector.multi_reduction <maximumf>, %75, %cst_37 [1] : vector<64x128xf32> to vector<64xf32>
    %77 = vector.shape_cast %76 : vector<64xf32> to vector<64x1xf32>
    %78 = vector.broadcast %77 : vector<64x1xf32> to vector<64x128xf32>
    %79 = arith.subf %75, %78 : vector<64x128xf32>
    %80 = math.exp %79 : vector<64x128xf32>
    %cst_38 = arith.constant dense<0.000000e+00> : vector<64xf32>
    %81 = vector.multi_reduction <add>, %80, %cst_38 [1] : vector<64x128xf32> to vector<64xf32>
    %82 = vector.shape_cast %81 : vector<64xf32> to vector<64x1xf32>
    %83 = tpu.reciprocal %82 {approx = true} : vector<64x1xf32> -> vector<64x1xf32>
    %84 = vector.broadcast %83 : vector<64x1xf32> to vector<64x128xf32>
    %85 = arith.mulf %80, %84 : vector<64x128xf32>
    %86 = arith.truncf %85 : vector<64x128xf32> to vector<64x128xbf16>
    %cst_39 = arith.constant dense<0.000000e+00> : vector<64x64xf32>
    %87 = tpu.matmul %86, %72, %cst_39 {dimension_numbers = #tpu.dot_dimension_numbers<[1], [0], [0], [1], [0, 0, 1, 1], [], []>} : vector<64x128xbf16>, vector<128x64xbf16>, vector<64x64xf32> -> vector<64x64xf32>
    %c0_40 = arith.constant 0 : index
    %c0_41 = arith.constant 0 : index
    %88 = vector.load %arg8[%c0_40, %c0_41] : memref<64x384xf32, #tpu.memory_space<vmem>>, vector<64x384xf32>
    %89 = arith.truncf %87 : vector<64x64xf32> to vector<64x64xbf16>
    %c128 = arith.constant 128 : index
    %c0_42 = arith.constant 0 : index
    %90 = vector.load %arg5[%c128, %c0_42] : memref<384x384xbf16, #tpu.memory_space<vmem>>, vector<64x384xbf16>
    %cst_43 = arith.constant dense<0.000000e+00> : vector<64x384xf32>
    %91 = tpu.matmul %89, %90, %cst_43 {dimension_numbers = #tpu.dot_dimension_numbers<[1], [0], [0], [1], [0, 0, 1, 1], [], []>} : vector<64x64xbf16>, vector<64x384xbf16>, vector<64x384xf32> -> vector<64x384xf32>
    %92 = arith.addf %88, %91 : vector<64x384xf32>
    %c0_44 = arith.constant 0 : index
    %c0_45 = arith.constant 0 : index
    %93 = vector.load %arg8[%c0_44, %c0_45] : memref<64x384xf32, #tpu.memory_space<vmem>>, vector<64x384xf32>
    tpu.vector_store %arg8[%c0_44, %c0_45], %92 {strides = array<i32>} : memref<64x384xf32, #tpu.memory_space<vmem>>, vector<64x384xf32>,
    %94 = vector.extract_strided_slice %14 {offsets = [0, 192], sizes = [64, 64], strides = [1, 1]} : vector<64x384xbf16> to vector<64x64xbf16>
    %95 = vector.extract_strided_slice %11 {offsets = [0, 192], sizes = [128, 64], strides = [1, 1]} : vector<128x768xbf16> to vector<128x64xbf16>
    %96 = vector.extract_strided_slice %11 {offsets = [0, 576], sizes = [128, 64], strides = [1, 1]} : vector<128x768xbf16> to vector<128x64xbf16>
    %cst_46 = arith.constant dense<0.000000e+00> : vector<64x128xf32>
    %97 = tpu.matmul %94, %95, %cst_46 {dimension_numbers = #tpu.dot_dimension_numbers<[1], [1], [0], [0], [0, 0, 1, 0], [], []>} : vector<64x64xbf16>, vector<128x64xbf16>, vector<64x128xf32> -> vector<64x128xf32>
    %cst_47 = arith.constant -1.000000e+30 : f32
    %98 = vector.broadcast %cst_47 : f32 to vector<64x128xf32>
    %99 = arith.select %19, %97, %98 : vector<64x128xi1>, vector<64x128xf32>
    %cst_48 = arith.constant dense<0xFF800000> : vector<64xf32>
    %100 = vector.multi_reduction <maximumf>, %99, %cst_48 [1] : vector<64x128xf32> to vector<64xf32>
    %101 = vector.shape_cast %100 : vector<64xf32> to vector<64x1xf32>
    %102 = vector.broadcast %101 : vector<64x1xf32> to vector<64x128xf32>
    %103 = arith.subf %99, %102 : vector<64x128xf32>
    %104 = math.exp %103 : vector<64x128xf32>
    %cst_49 = arith.constant dense<0.000000e+00> : vector<64xf32>
    %105 = vector.multi_reduction <add>, %104, %cst_49 [1] : vector<64x128xf32> to vector<64xf32>
    %106 = vector.shape_cast %105 : vector<64xf32> to vector<64x1xf32>
    %107 = tpu.reciprocal %106 {approx = true} : vector<64x1xf32> -> vector<64x1xf32>
    %108 = vector.broadcast %107 : vector<64x1xf32> to vector<64x128xf32>
    %109 = arith.mulf %104, %108 : vector<64x128xf32>
    %110 = arith.truncf %109 : vector<64x128xf32> to vector<64x128xbf16>
    %cst_50 = arith.constant dense<0.000000e+00> : vector<64x64xf32>
    %111 = tpu.matmul %110, %96, %cst_50 {dimension_numbers = #tpu.dot_dimension_numbers<[1], [0], [0], [1], [0, 0, 1, 1], [], []>} : vector<64x128xbf16>, vector<128x64xbf16>, vector<64x64xf32> -> vector<64x64xf32>
    %c0_51 = arith.constant 0 : index
    %c0_52 = arith.constant 0 : index
    %112 = vector.load %arg8[%c0_51, %c0_52] : memref<64x384xf32, #tpu.memory_space<vmem>>, vector<64x384xf32>
    %113 = arith.truncf %111 : vector<64x64xf32> to vector<64x64xbf16>
    %c192 = arith.constant 192 : index
    %c0_53 = arith.constant 0 : index
    %114 = vector.load %arg5[%c192, %c0_53] : memref<384x384xbf16, #tpu.memory_space<vmem>>, vector<64x384xbf16>
    %cst_54 = arith.constant dense<0.000000e+00> : vector<64x384xf32>
    %115 = tpu.matmul %113, %114, %cst_54 {dimension_numbers = #tpu.dot_dimension_numbers<[1], [0], [0], [1], [0, 0, 1, 1], [], []>} : vector<64x64xbf16>, vector<64x384xbf16>, vector<64x384xf32> -> vector<64x384xf32>
    %116 = arith.addf %112, %115 : vector<64x384xf32>
    %c0_55 = arith.constant 0 : index
    %c0_56 = arith.constant 0 : index
    %117 = vector.load %arg8[%c0_55, %c0_56] : memref<64x384xf32, #tpu.memory_space<vmem>>, vector<64x384xf32>
    tpu.vector_store %arg8[%c0_55, %c0_56], %116 {strides = array<i32>} : memref<64x384xf32, #tpu.memory_space<vmem>>, vector<64x384xf32>,
    %118 = vector.extract_strided_slice %14 {offsets = [0, 256], sizes = [64, 64], strides = [1, 1]} : vector<64x384xbf16> to vector<64x64xbf16>
    %119 = vector.extract_strided_slice %11 {offsets = [0, 256], sizes = [128, 64], strides = [1, 1]} : vector<128x768xbf16> to vector<128x64xbf16>
    %120 = vector.extract_strided_slice %11 {offsets = [0, 640], sizes = [128, 64], strides = [1, 1]} : vector<128x768xbf16> to vector<128x64xbf16>
    %cst_57 = arith.constant dense<0.000000e+00> : vector<64x128xf32>
    %121 = tpu.matmul %118, %119, %cst_57 {dimension_numbers = #tpu.dot_dimension_numbers<[1], [1], [0], [0], [0, 0, 1, 0], [], []>} : vector<64x64xbf16>, vector<128x64xbf16>, vector<64x128xf32> -> vector<64x128xf32>
    %cst_58 = arith.constant -1.000000e+30 : f32
    %122 = vector.broadcast %cst_58 : f32 to vector<64x128xf32>
    %123 = arith.select %19, %121, %122 : vector<64x128xi1>, vector<64x128xf32>
    %cst_59 = arith.constant dense<0xFF800000> : vector<64xf32>
    %124 = vector.multi_reduction <maximumf>, %123, %cst_59 [1] : vector<64x128xf32> to vector<64xf32>
    %125 = vector.shape_cast %124 : vector<64xf32> to vector<64x1xf32>
    %126 = vector.broadcast %125 : vector<64x1xf32> to vector<64x128xf32>
    %127 = arith.subf %123, %126 : vector<64x128xf32>
    %128 = math.exp %127 : vector<64x128xf32>
    %cst_60 = arith.constant dense<0.000000e+00> : vector<64xf32>
    %129 = vector.multi_reduction <add>, %128, %cst_60 [1] : vector<64x128xf32> to vector<64xf32>
    %130 = vector.shape_cast %129 : vector<64xf32> to vector<64x1xf32>
    %131 = tpu.reciprocal %130 {approx = true} : vector<64x1xf32> -> vector<64x1xf32>
    %132 = vector.broadcast %131 : vector<64x1xf32> to vector<64x128xf32>
    %133 = arith.mulf %128, %132 : vector<64x128xf32>
    %134 = arith.truncf %133 : vector<64x128xf32> to vector<64x128xbf16>
    %cst_61 = arith.constant dense<0.000000e+00> : vector<64x64xf32>
    %135 = tpu.matmul %134, %120, %cst_61 {dimension_numbers = #tpu.dot_dimension_numbers<[1], [0], [0], [1], [0, 0, 1, 1], [], []>} : vector<64x128xbf16>, vector<128x64xbf16>, vector<64x64xf32> -> vector<64x64xf32>
    %c0_62 = arith.constant 0 : index
    %c0_63 = arith.constant 0 : index
    %136 = vector.load %arg8[%c0_62, %c0_63] : memref<64x384xf32, #tpu.memory_space<vmem>>, vector<64x384xf32>
    %137 = arith.truncf %135 : vector<64x64xf32> to vector<64x64xbf16>
    %c256 = arith.constant 256 : index
    %c0_64 = arith.constant 0 : index
    %138 = vector.load %arg5[%c256, %c0_64] : memref<384x384xbf16, #tpu.memory_space<vmem>>, vector<64x384xbf16>
    %cst_65 = arith.constant dense<0.000000e+00> : vector<64x384xf32>
    %139 = tpu.matmul %137, %138, %cst_65 {dimension_numbers = #tpu.dot_dimension_numbers<[1], [0], [0], [1], [0, 0, 1, 1], [], []>} : vector<64x64xbf16>, vector<64x384xbf16>, vector<64x384xf32> -> vector<64x384xf32>
    %140 = arith.addf %136, %139 : vector<64x384xf32>
    %c0_66 = arith.constant 0 : index
    %c0_67 = arith.constant 0 : index
    %141 = vector.load %arg8[%c0_66, %c0_67] : memref<64x384xf32, #tpu.memory_space<vmem>>, vector<64x384xf32>
    tpu.vector_store %arg8[%c0_66, %c0_67], %140 {strides = array<i32>} : memref<64x384xf32, #tpu.memory_space<vmem>>, vector<64x384xf32>,
    %142 = vector.extract_strided_slice %14 {offsets = [0, 320], sizes = [64, 64], strides = [1, 1]} : vector<64x384xbf16> to vector<64x64xbf16>
    %143 = vector.extract_strided_slice %11 {offsets = [0, 320], sizes = [128, 64], strides = [1, 1]} : vector<128x768xbf16> to vector<128x64xbf16>
    %144 = vector.extract_strided_slice %11 {offsets = [0, 704], sizes = [128, 64], strides = [1, 1]} : vector<128x768xbf16> to vector<128x64xbf16>
    %cst_68 = arith.constant dense<0.000000e+00> : vector<64x128xf32>
    %145 = tpu.matmul %142, %143, %cst_68 {dimension_numbers = #tpu.dot_dimension_numbers<[1], [1], [0], [0], [0, 0, 1, 0], [], []>} : vector<64x64xbf16>, vector<128x64xbf16>, vector<64x128xf32> -> vector<64x128xf32>
    %cst_69 = arith.constant -1.000000e+30 : f32
    %146 = vector.broadcast %cst_69 : f32 to vector<64x128xf32>
    %147 = arith.select %19, %145, %146 : vector<64x128xi1>, vector<64x128xf32>
    %cst_70 = arith.constant dense<0xFF800000> : vector<64xf32>
    %148 = vector.multi_reduction <maximumf>, %147, %cst_70 [1] : vector<64x128xf32> to vector<64xf32>
    %149 = vector.shape_cast %148 : vector<64xf32> to vector<64x1xf32>
    %150 = vector.broadcast %149 : vector<64x1xf32> to vector<64x128xf32>
    %151 = arith.subf %147, %150 : vector<64x128xf32>
    %152 = math.exp %151 : vector<64x128xf32>
    %cst_71 = arith.constant dense<0.000000e+00> : vector<64xf32>
    %153 = vector.multi_reduction <add>, %152, %cst_71 [1] : vector<64x128xf32> to vector<64xf32>
    %154 = vector.shape_cast %153 : vector<64xf32> to vector<64x1xf32>
    %155 = tpu.reciprocal %154 {approx = true} : vector<64x1xf32> -> vector<64x1xf32>
    %156 = vector.broadcast %155 : vector<64x1xf32> to vector<64x128xf32>
    %157 = arith.mulf %152, %156 : vector<64x128xf32>
    %158 = arith.truncf %157 : vector<64x128xf32> to vector<64x128xbf16>
    %cst_72 = arith.constant dense<0.000000e+00> : vector<64x64xf32>
    %159 = tpu.matmul %158, %144, %cst_72 {dimension_numbers = #tpu.dot_dimension_numbers<[1], [0], [0], [1], [0, 0, 1, 1], [], []>} : vector<64x128xbf16>, vector<128x64xbf16>, vector<64x64xf32> -> vector<64x64xf32>
    %c0_73 = arith.constant 0 : index
    %c0_74 = arith.constant 0 : index
    %160 = vector.load %arg8[%c0_73, %c0_74] : memref<64x384xf32, #tpu.memory_space<vmem>>, vector<64x384xf32>
    %161 = arith.truncf %159 : vector<64x64xf32> to vector<64x64xbf16>
    %c320 = arith.constant 320 : index
    %c0_75 = arith.constant 0 : index
    %162 = vector.load %arg5[%c320, %c0_75] : memref<384x384xbf16, #tpu.memory_space<vmem>>, vector<64x384xbf16>
    %cst_76 = arith.constant dense<0.000000e+00> : vector<64x384xf32>
    %163 = tpu.matmul %161, %162, %cst_76 {dimension_numbers = #tpu.dot_dimension_numbers<[1], [0], [0], [1], [0, 0, 1, 1], [], []>} : vector<64x64xbf16>, vector<64x384xbf16>, vector<64x384xf32> -> vector<64x384xf32>
    %164 = arith.addf %160, %163 : vector<64x384xf32>
    %c0_77 = arith.constant 0 : index
    %c0_78 = arith.constant 0 : index
    %165 = vector.load %arg8[%c0_77, %c0_78] : memref<64x384xf32, #tpu.memory_space<vmem>>, vector<64x384xf32>
    tpu.vector_store %arg8[%c0_77, %c0_78], %164 {strides = array<i32>} : memref<64x384xf32, #tpu.memory_space<vmem>>, vector<64x384xf32>,
    %c0_79 = arith.constant 0 : index
    %c0_80 = arith.constant 0 : index
    %166 = vector.load %arg8[%c0_79, %c0_80] : memref<64x384xf32, #tpu.memory_space<vmem>>, vector<64x384xf32>
    %c0_81 = arith.constant 0 : index
    %c0_82 = arith.constant 0 : index
    %167 = vector.load %arg6[%c0_81, %c0_82] : memref<1x384xf32, #tpu.memory_space<vmem>>, vector<1x384xf32>
    %168 = vector.broadcast %167 : vector<1x384xf32> to vector<64x384xf32>
    %169 = arith.addf %166, %168 : vector<64x384xf32>
    %170 = arith.truncf %169 : vector<64x384xf32> to vector<64x384xbf16>
    %c0_83 = arith.constant 0 : index
    %c0_84 = arith.constant 0 : index
    %c0_85 = arith.constant 0 : index
    %171 = vector.load %arg7[%c0_83, %c0_84, %c0_85] : memref<1x64x384xbf16, #tpu.memory_space<vmem>>, vector<1x64x384xbf16>
    %172 = vector.shape_cast %171 : vector<1x64x384xbf16> to vector<64x384xbf16>
    %173 = vector.shape_cast %170 : vector<64x384xbf16> to vector<1x64x384xbf16>
    tpu.vector_store %arg7[%c0_83, %c0_84, %c0_85], %173 {strides = array<i32>} : memref<1x64x384xbf16, #tpu.memory_space<vmem>>, vector<1x64x384xbf16>,
    return
  }
  func.func @transform_0(%arg0: i32, %arg1: i32) -> (i32, i32, i32) {
    %c0_i32 = arith.constant 0 : i32
    %c0_i32_0 = arith.constant 0 : i32
    %c0_i32_1 = arith.constant 0 : i32
    return %arg0, %c0_i32, %c0_i32_0 : i32, i32, i32
  }
  func.func @transform_1(%arg0: i32, %arg1: i32) -> (i32, i32) {
    %c0_i32 = arith.constant 0 : i32
    %c0_i32_0 = arith.constant 0 : i32
    %c0_i32_1 = arith.constant 0 : i32
    return %c0_i32, %c0_i32_0 : i32, i32
  }
  func.func @transform_2(%arg0: i32, %arg1: i32) -> (i32, i32) {
    %c0_i32 = arith.constant 0 : i32
    %c0_i32_0 = arith.constant 0 : i32
    %c0_i32_1 = arith.constant 0 : i32
    return %c0_i32, %c0_i32_0 : i32, i32
  }
  func.func @transform_3(%arg0: i32, %arg1: i32) -> (i32, i32) {
    %c0_i32 = arith.constant 0 : i32
    %c0_i32_0 = arith.constant 0 : i32
    %c0_i32_1 = arith.constant 0 : i32
    return %c0_i32, %c0_i32_0 : i32, i32
  }
  func.func @transform_4(%arg0: i32, %arg1: i32) -> (i32, i32) {
    %c0_i32 = arith.constant 0 : i32
    %c0_i32_0 = arith.constant 0 : i32
    %c0_i32_1 = arith.constant 0 : i32
    return %c0_i32, %c0_i32_0 : i32, i32
  }
  func.func @transform_5(%arg0: i32, %arg1: i32) -> (i32, i32, i32) {
    %c0_i32 = arith.constant 0 : i32
    %c0_i32_0 = arith.constant 0 : i32
    return %arg0, %arg1, %c0_i32 : i32, i32, i32
  }
}

</mosaic_0001>

<llo_original>
// kernel: tpu_custom_call.1
$region0: #{tpu_custom_call.1}
  #allocation0 [shape = 'u32[]', space=smem, size = 0x4, offset = 0x4, fixed_abs, tag = 'smem constant byte address 0x4 - core index']
  #allocation1 [shape = 'u32[144,128]{1,0:T(1,128)}', space=vmem, size = 0x12000, scoped, tag = 'internal scratch']
  #allocation2 [shape = 'f32[64,384]{1,0:T(8,128)}', space=vmem, size = 0x18000, scoped, tag = 'scratch operand']
  %s0 = inlined_call_operand.hbm [shape: f32[2,128,384], index: 0, kind: input, shape index: {}]
  %s1 = inlined_call_operand.hbm [shape: bf16[384,384], index: 1, kind: input, shape index: {}]
  %s2 = inlined_call_operand.hbm [shape: bf16[384,768], index: 2, kind: input, shape index: {}]
  %s3 = inlined_call_operand.hbm [shape: bf16[384,384], index: 3, kind: input, shape index: {}]
  %s4 = inlined_call_operand.vmem [shape: f32[1,384], index: 4, kind: input, shape index: {}]
  %s5 = inlined_call_operand.hbm [shape: bf16[2,128,384], index: 5, kind: output, shape index: {}]
  %s6 = sld [smem:[#allocation0]]
  $region69: #{tpu_custom_call.1} parent=0
    _
  %s8 = ssub.s32 1, %s6
  %s9 = scalar_select 0, %s8, %s6
  $region1: #{tpu_custom_call.1} parent=0
    #allocation3 [shape = 'u8[393216]{0}', space=vmem, size = 0x60000, scoped, tag = 'input window, operand 0']
    #allocation4 [shape = 's32[2]{0}', space=sflag, size = 0x8, scoped, tag = 'scoped memory for tpu_custom_call.1']
    #allocation5 [shape = 's32[2]{0}', space=sflag, size = 0x8, scoped, tag = 'scoped memory for tpu_custom_call.1']
    #allocation6 [shape = 'u8[294912]{0}', space=vmem, size = 0x48000, scoped, tag = 'input window, operand 1, single buffered']
    #allocation7 [shape = 's32[1]{0}', space=sflag, size = 0x4, scoped, tag = 'scoped memory for tpu_custom_call.1']
    #allocation8 [shape = 'u8[589824]{0}', space=vmem, size = 0x90000, scoped, tag = 'input window, operand 2, single buffered']
    #allocation9 [shape = 'u8[294912]{0}', space=vmem, size = 0x48000, scoped, tag = 'input window, operand 3, single buffered']
    #allocation10 [shape = 's32[1]{0}', space=sflag, size = 0x4, scoped, tag = 'scoped memory for tpu_custom_call.1']
    #allocation11 [shape = 'u8[98304]{0}', space=vmem, size = 0x18000, scoped, tag = 'output window, operand 0']
    %10 = vsyncpa [#allocation4], 0
    %s11 = scalar_lea.sflag [#allocation4], 1
    %12 = vsyncpa %s11, 0
    %13 = vsyncpa [#allocation7], 0
    %14 = vsyncpa [#allocation10], 0
    %15 = vsyncpa [#allocation5], 0
    %s16 = scalar_lea.sflag [#allocation5], 1
    %17 = vsyncpa %s16, 0
    loop: start=0, step=1, limit=6
    $region2: #{tpu_custom_call.1} parent=1 // loop_pre_header
      _
    $region3: #{tpu_custom_call.1} parent=1 // loop_header
      %s19 = sphi 0, %s23
      %p20 = scmp.ge.s32.totalorder %s19, 6
      %s26 = sphi 0, %s38
      %s27 = sphi 0, %s34
      %s28 = sphi 0, %s26
      %s29 = sphi 0, %s27
      %s30 = sphi 0, %s28
      %s31 = sphi 0, %s29
      %s41 = sphi 0, %s43
      %s44 = sphi 0, %s41
      %s45 = sphi 0, %s44
      %s61 = sphi 0, %s45
      %s65 = sphi 0, %s65
      %s67 = sphi 0, %s65
      %s68 = sphi 0, %s67
      %s82 = sphi 0, %s68
      %s86 = sphi 0, %s86
      %s88 = sphi 0, %s86
      %s89 = sphi 0, %s88
      %s103 = sphi 0, %s89
      %s107 = sphi 0, %s107
      %s109 = sphi 0, %s107
      %s110 = sphi 0, %s109
      %s124 = sphi 0, %s110
      %s128 = sphi 0, %s128
      %s130 = sphi 0, %s128
      %s131 = sphi 0, %s130
      %s145 = sphi 0, %s131
      %s153 = sphi 0, %s155
      %s156 = sphi 0, %s153
      %s157 = sphi 0, %s156
      %s173 = sphi 0, %s157
    $region4: #{tpu_custom_call.1} parent=1 // loop_header_branch
      %22 = sbr.rel (%p20) target = $region8
    $region5: #{tpu_custom_call.1} parent=1 // loop_body
      %s24 = ssub.s32 %s19, 1
      %s25 = ssub.s32 %s19, 2
      %s32 = sadd.s32 1, %s27
      %p33 = scmp.ge.s32.totalorder %s32, 2
      %s34 = scalar_select %p33, 0, %s32
      %s35 = sadd.s32 1, %s26
      %s36 = scalar_select %p33, %s35, %s26
      %p37 = scmp.ge.s32.totalorder %s36, 2
      %s38 = scalar_select %p37, 0, %s36
      %s39 = ssub.s32 %s26, %s38
      %p40 = scmp.eq.s32.totalorder %s39, 0
      %s42 = sadd.s32 %s41, 1
      %s43 = scalar_select %p40, %s41, %s42
      %p46 = pneg %p40
      %p47 = scmp.eq.s32.totalorder %s19, 3
      %p48 = por %p46, %p47
      %p49 = scmp.ne.s32.totalorder %s41, %s44
      %p50 = scmp.eq.s32.totalorder %s19, 0
      %p51 = por %p49, %p50
      %p52 = scmp.ne.s32.totalorder %s41, %s44
      %p53 = scmp.eq.s32.totalorder %s24, 3
      %p54 = por %p52, %p53
      %p55 = scmp.ne.s32.totalorder %s44, %s45
      %p56 = scmp.eq.s32.totalorder %s24, 0
      %p57 = por %p55, %p56
      %p58 = scmp.ne.s32.totalorder %s44, %s45
      %p59 = scmp.eq.s32.totalorder %s25, 3
      %p60 = por %p58, %p59
      %p62 = scmp.ne.s32.totalorder %s45, %s61
      %p63 = scmp.eq.s32.totalorder %s25, 0
      %p64 = por %p62, %p63
      %s66 = sadd.s32 %s65, 1
      %p69 = scmp.eq.s32.totalorder %s19, 3
      %p70 = scmp.ne.s32.totalorder %s65, %s67
      %p71 = scmp.eq.s32.totalorder %s19, 0
      %p72 = por %p70, %p71
      %p73 = scmp.ne.s32.totalorder %s65, %s67
      %p74 = scmp.eq.s32.totalorder %s24, 3
      %p75 = por %p73, %p74
      %p76 = scmp.ne.s32.totalorder %s67, %s68
      %p77 = scmp.eq.s32.totalorder %s24, 0
      %p78 = por %p76, %p77
      %p79 = scmp.ne.s32.totalorder %s67, %s68
      %p80 = scmp.eq.s32.totalorder %s25, 3
      %p81 = por %p79, %p80
      %p83 = scmp.ne.s32.totalorder %s68, %s82
      %p84 = scmp.eq.s32.totalorder %s25, 0
      %p85 = por %p83, %p84
      %s87 = sadd.s32 %s86, 1
      %p90 = scmp.eq.s32.totalorder %s19, 3
      %p91 = scmp.ne.s32.totalorder %s86, %s88
      %p92 = scmp.eq.s32.totalorder %s19, 0
      %p93 = por %p91, %p92
      %p94 = scmp.ne.s32.totalorder %s86, %s88
      %p95 = scmp.eq.s32.totalorder %s24, 3
      %p96 = por %p94, %p95
      %p97 = scmp.ne.s32.totalorder %s88, %s89
      %p98 = scmp.eq.s32.totalorder %s24, 0
      %p99 = por %p97, %p98
      %p100 = scmp.ne.s32.totalorder %s88, %s89
      %p101 = scmp.eq.s32.totalorder %s25, 3
      %p102 = por %p100, %p101
      %p104 = scmp.ne.s32.totalorder %s89, %s103
      %p105 = scmp.eq.s32.totalorder %s25, 0
      %p106 = por %p104, %p105
      %s108 = sadd.s32 %s107, 1
      %p111 = scmp.eq.s32.totalorder %s19, 3
      %p112 = scmp.ne.s32.totalorder %s107, %s109
      %p113 = scmp.eq.s32.totalorder %s19, 0
      %p114 = por %p112, %p113
      %p115 = scmp.ne.s32.totalorder %s107, %s109
      %p116 = scmp.eq.s32.totalorder %s24, 3
      %p117 = por %p115, %p116
      %p118 = scmp.ne.s32.totalorder %s109, %s110
      %p119 = scmp.eq.s32.totalorder %s24, 0
      %p120 = por %p118, %p119
      %p121 = scmp.ne.s32.totalorder %s109, %s110
      %p122 = scmp.eq.s32.totalorder %s25, 3
      %p123 = por %p121, %p122
      %p125 = scmp.ne.s32.totalorder %s110, %s124
      %p126 = scmp.eq.s32.totalorder %s25, 0
      %p127 = por %p125, %p126
      %s129 = sadd.s32 %s128, 1
      %p132 = scmp.eq.s32.totalorder %s19, 3
      %p133 = scmp.ne.s32.totalorder %s128, %s130
      %p134 = scmp.eq.s32.totalorder %s19, 0
      %p135 = por %p133, %p134
      %p136 = scmp.ne.s32.totalorder %s128, %s130
      %p137 = scmp.eq.s32.totalorder %s24, 3
      %p138 = por %p136, %p137
      %p139 = scmp.ne.s32.totalorder %s130, %s131
      %p140 = scmp.eq.s32.totalorder %s24, 0
      %p141 = por %p139, %p140
      %p142 = scmp.ne.s32.totalorder %s130, %s131
      %p143 = scmp.eq.s32.totalorder %s25, 3
      %p144 = por %p142, %p143
      %p146 = scmp.ne.s32.totalorder %s131, %s145
      %p147 = scmp.eq.s32.totalorder %s25, 0
      %p148 = por %p146, %p147
      %s149 = ssub.s32 %s26, %s38
      %s150 = ssub.s32 %s27, %s34
      %s151 = sor.u32 %s149, %s150
      %p152 = scmp.eq.s32.totalorder %s151, 0
      %s154 = sadd.s32 %s153, 1
      %s155 = scalar_select %p152, %s153, %s154
      %p158 = pneg %p152
      %p159 = scmp.eq.s32.totalorder %s19, 3
      %p160 = por %p158, %p159
      %p161 = scmp.ne.s32.totalorder %s153, %s156
      %p162 = scmp.eq.s32.totalorder %s19, 0
      %p163 = por %p161, %p162
      %p164 = scmp.ne.s32.totalorder %s153, %s156
      %p165 = scmp.eq.s32.totalorder %s24, 3
      %p166 = por %p164, %p165
      %p167 = scmp.ne.s32.totalorder %s156, %s157
      %p168 = scmp.eq.s32.totalorder %s24, 0
      %p169 = por %p167, %p168
      %p170 = scmp.ne.s32.totalorder %s156, %s157
      %p171 = scmp.eq.s32.totalorder %s25, 3
      %p172 = por %p170, %p171
      %p174 = scmp.ne.s32.totalorder %s157, %s173
      %p175 = scmp.eq.s32.totalorder %s25, 0
      %p176 = por %p174, %p175
      %p177 = scmp.le.s32.totalorder 1, %s19
      %p178 = scmp.lt.s32.totalorder %s19, 5
      %p179 = pnand %p177, %p178
      %p180 = pneg %p179
      // Predicated region
      $region9: #{tpu_custom_call.1} parent=5 // pred_check
        _
      $region10: #{tpu_custom_call.1} parent=5 // pred_check_branch
        %182 = sbr.rel (%p179) target = $region12
      $region11: #{tpu_custom_call.1} parent=5 // pred_region
        %s183 = ssub.s32 %s19, 1
        // Predicated region
        $region13: #{tpu_custom_call.1} parent=11 // pred_check
          %p184 = pneg %p78
        $region14: #{tpu_custom_call.1} parent=11 // pred_check_branch
          %186 = sbr.rel (%p184) target = $region16
        $region15: #{tpu_custom_call.1} parent=11 // pred_region
          %s188 = ssub.s32 9216, 9216
          %189 = vsyncadd [#allocation7], %s188
          %s190 = sshll.u32 [#allocation6], 4
          %s191 = int_to_ptr.vmem [resolvable:$true] %s190
          %196 = dma.hbm_to_vmem [thread:$0]  %s1, 9216, %s191, [#allocation7], 192, 192, 12
        $region16: #{tpu_custom_call.1} parent=11 // pred_fallthru
          _
        // Predicated region
        $region17: #{tpu_custom_call.1} parent=11 // pred_check
          %p197 = pneg %p99
        $region18: #{tpu_custom_call.1} parent=11 // pred_check_branch
          %199 = sbr.rel (%p197) target = $region20
        $region19: #{tpu_custom_call.1} parent=11 // pred_region
          %s201 = ssub.s32 18432, 18432
          %202 = vsyncadd [#allocation7], %s201
          %s203 = sshll.u32 [#allocation8], 4
          %s204 = int_to_ptr.vmem [resolvable:$true] %s203
          %209 = dma.hbm_to_vmem [thread:$0]  %s2, 18432, %s204, [#allocation7], 384, 384, 24
        $region20: #{tpu_custom_call.1} parent=11 // pred_fallthru
          _
        // Predicated region
        $region21: #{tpu_custom_call.1} parent=11 // pred_check
          %p210 = pneg %p120
        $region22: #{tpu_custom_call.1} parent=11 // pred_check_branch
          %212 = sbr.rel (%p210) target = $region24
        $region23: #{tpu_custom_call.1} parent=11 // pred_region
          %s214 = ssub.s32 9216, 9216
          %215 = vsyncadd [#allocation10], %s214
          %s216 = sshll.u32 [#allocation9], 4
          %s217 = int_to_ptr.vmem [resolvable:$true] %s216
          %222 = dma.hbm_to_vmem [thread:$0]  %s3, 9216, %s217, [#allocation10], 192, 192, 12
        $region24: #{tpu_custom_call.1} parent=11 // pred_fallthru
          _
        // Predicated region
        $region25: #{tpu_custom_call.1} parent=11 // pred_check
          %p223 = pneg %p141
        $region26: #{tpu_custom_call.1} parent=11 // pred_check_branch
          %225 = sbr.rel (%p223) target = $region28
        $region27: #{tpu_custom_call.1} parent=11 // pred_region
          _
        $region28: #{tpu_custom_call.1} parent=11 // pred_fallthru
          _
      $region12: #{tpu_custom_call.1} parent=5 // pred_fallthru
        _
      %p226 = scmp.lt.s32.totalorder %s19, 4
      // Predicated region
      $region29: #{tpu_custom_call.1} parent=5 // pred_check
        %p227 = pneg %p226
      $region30: #{tpu_custom_call.1} parent=5 // pred_check_branch
        %229 = sbr.rel (%p227) target = $region32
      $region31: #{tpu_custom_call.1} parent=5 // pred_region
        // Predicated region
        $region33: #{tpu_custom_call.1} parent=31 // pred_check
          %p230 = pneg %p51
        $region34: #{tpu_custom_call.1} parent=31 // pred_check_branch
          %232 = sbr.rel (%p230) target = $region36
        $region35: #{tpu_custom_call.1} parent=31 // pred_region
          %s233 = sand.u32 %s41, 1
          %s234 = scalar_lea.sflag [#allocation4], %s233
          %s235 = sand.u32 %s41, 1
          %s236 = smul.addr %s235, 384
          %s237 = scalar_lea.vmem [#allocation3], %s236
          %s239 = ssub.s32 6144, 6144
          %240 = vsyncadd %s234, %s239
          %s241 = smul.addr %s26, 48
          %s242 = smul.addr %s241, 128
          %s243 = scalar_lea.hbm %s0, %s242
          %s244 = sshll.u32 %s237, 4
          %s245 = int_to_ptr.vmem [resolvable:$true] %s244
          %250 = dma.hbm_to_vmem [thread:$0]  %s243, 6144, %s245, %s234, 384, 384, 24
        $region36: #{tpu_custom_call.1} parent=31 // pred_fallthru
          _
      $region32: #{tpu_custom_call.1} parent=5 // pred_fallthru
        _
      %p251 = scmp.le.s32.totalorder 1, %s19
      %p252 = scmp.lt.s32.totalorder %s19, 5
      %p253 = pnand %p251, %p252
      %p254 = pneg %p253
      // Predicated region
      $region37: #{tpu_custom_call.1} parent=5 // pred_check
        _
      $region38: #{tpu_custom_call.1} parent=5 // pred_check_branch
        %256 = sbr.rel (%p253) target = $region40
      $region39: #{tpu_custom_call.1} parent=5 // pred_region
        %s257 = ssub.s32 %s19, 1
        %s258 = sand.u32 %s44, 1
        %s259 = scalar_lea.sflag [#allocation4], %s258
        %s260 = sand.u32 %s44, 1
        %s261 = smul.addr %s260, 384
        %s262 = scalar_lea.vmem [#allocation3], %s261
        // Predicated region
        $region41: #{tpu_custom_call.1} parent=39 // pred_check
          %p263 = pneg %p57
        $region42: #{tpu_custom_call.1} parent=39 // pred_check_branch
          %265 = sbr.rel (%p263) target = $region44
        $region43: #{tpu_custom_call.1} parent=39 // pred_region
          %266 = dma.done %s259, 6144
        $region44: #{tpu_custom_call.1} parent=39 // pred_fallthru
          _
        // Predicated region
        $region45: #{tpu_custom_call.1} parent=39 // pred_check
          %p267 = pneg %p78
        $region46: #{tpu_custom_call.1} parent=39 // pred_check_branch
          %269 = sbr.rel (%p267) target = $region48
        $region47: #{tpu_custom_call.1} parent=39 // pred_region
          %270 = dma.done [#allocation7], 9216
        $region48: #{tpu_custom_call.1} parent=39 // pred_fallthru
          _
        // Predicated region
        $region49: #{tpu_custom_call.1} parent=39 // pred_check
          %p271 = pneg %p99
        $region50: #{tpu_custom_call.1} parent=39 // pred_check_branch
          %273 = sbr.rel (%p271) target = $region52
        $region51: #{tpu_custom_call.1} parent=39 // pred_region
          %274 = dma.done [#allocation7], 18432
        $region52: #{tpu_custom_call.1} parent=39 // pred_fallthru
          _
        // Predicated region
        $region53: #{tpu_custom_call.1} parent=39 // pred_check
          %p275 = pneg %p120
        $region54: #{tpu_custom_call.1} parent=39 // pred_check_branch
          %277 = sbr.rel (%p275) target = $region56
        $region55: #{tpu_custom_call.1} parent=39 // pred_region
          %278 = dma.done [#allocation10], 9216
        $region56: #{tpu_custom_call.1} parent=39 // pred_fallthru
          _
        %s279 = sand.u32 %s44, 1
        %s280 = scalar_lea.sflag [#allocation4], %s279
        %s281 = sand.u32 %s44, 1
        %s282 = smul.addr %s281, 384
        %s283 = scalar_lea.vmem [#allocation3], %s282
        %p284 = pneg %p57
        %p285 = pneg %p54
        %p286 = pneg %p78
        %p287 = pneg %p75
        %p288 = pneg %p99
        %p289 = pneg %p96
        %p290 = pneg %p120
        %p291 = pneg %p117
        %p292 = pneg %p141
        %p293 = pneg %p138
        %p294 = pneg %p169
        %p295 = pneg %p166
        %s296 = sand.u32 %s156, 1
        %s297 = scalar_lea.sflag [#allocation5], %s296
        %s298 = sand.u32 %s156, 1
        %s299 = smul.addr %s298, 96
        %s300 = scalar_lea.vmem [#allocation11], %s299
        %s301 = smul.u32 8, %s29
        %s303 = smul.u32 %s29, 64
        %v304 = vld [vmem:[%s262] sm:$0xff]
        %v305 = vld [vmem:[%s262 + $0x8] sm:$0xff]
        %v306 = vld [vmem:[%s262 + $0x10] sm:$0xff]
        %v307 = vld [vmem:[%s262 + $0x18] sm:$0xff]
        %v308 = vld [vmem:[%s262 + $0x20] sm:$0xff]
        %v309 = vld [vmem:[%s262 + $0x28] sm:$0xff]
        %v310 = vld [vmem:[%s262 + $0x30] sm:$0xff]
        %v311 = vld [vmem:[%s262 + $0x38] sm:$0xff]
        %v312 = vld [vmem:[%s262 + $0x40] sm:$0xff]
        %v313 = vld [vmem:[%s262 + $0x48] sm:$0xff]
        %v314 = vld [vmem:[%s262 + $0x50] sm:$0xff]
        %v315 = vld [vmem:[%s262 + $0x58] sm:$0xff]
        %v316 = vld [vmem:[%s262 + $0x60] sm:$0xff]
        %v317 = vld [vmem:[%s262 + $0x68] sm:$0xff]
        %v318 = vld [vmem:[%s262 + $0x70] sm:$0xff]
        %v319 = vld [vmem:[%s262 + $0x78] sm:$0xff]
        %v320 = vld [vmem:[%s262 + $0x80] sm:$0xff]
        %v321 = vld [vmem:[%s262 + $0x88] sm:$0xff]
        %v322 = vld [vmem:[%s262 + $0x90] sm:$0xff]
        %v323 = vld [vmem:[%s262 + $0x98] sm:$0xff]
        %v324 = vld [vmem:[%s262 + $0xa0] sm:$0xff]
        %v325 = vld [vmem:[%s262 + $0xa8] sm:$0xff]
        %v326 = vld [vmem:[%s262 + $0xb0] sm:$0xff]
        %v327 = vld [vmem:[%s262 + $0xb8] sm:$0xff]
        %v328 = vld [vmem:[%s262 + $0xc0] sm:$0xff]
        %v329 = vld [vmem:[%s262 + $0xc8] sm:$0xff]
        %v330 = vld [vmem:[%s262 + $0xd0] sm:$0xff]
        %v331 = vld [vmem:[%s262 + $0xd8] sm:$0xff]
        %v332 = vld [vmem:[%s262 + $0xe0] sm:$0xff]
        %v333 = vld [vmem:[%s262 + $0xe8] sm:$0xff]
        %v334 = vld [vmem:[%s262 + $0xf0] sm:$0xff]
        %v335 = vld [vmem:[%s262 + $0xf8] sm:$0xff]
        %v336 = vld [vmem:[%s262 + $0x100] sm:$0xff]
        %v337 = vld [vmem:[%s262 + $0x108] sm:$0xff]
        %v338 = vld [vmem:[%s262 + $0x110] sm:$0xff]
        %v339 = vld [vmem:[%s262 + $0x118] sm:$0xff]
        %v340 = vld [vmem:[%s262 + $0x120] sm:$0xff]
        %v341 = vld [vmem:[%s262 + $0x128] sm:$0xff]
        %v342 = vld [vmem:[%s262 + $0x130] sm:$0xff]
        %v343 = vld [vmem:[%s262 + $0x138] sm:$0xff]
        %v344 = vld [vmem:[%s262 + $0x140] sm:$0xff]
        %v345 = vld [vmem:[%s262 + $0x148] sm:$0xff]
        %v346 = vld [vmem:[%s262 + $0x150] sm:$0xff]
        %v347 = vld [vmem:[%s262 + $0x158] sm:$0xff]
        %v348 = vld [vmem:[%s262 + $0x160] sm:$0xff]
        %v349 = vld [vmem:[%s262 + $0x168] sm:$0xff]
        %v350 = vld [vmem:[%s262 + $0x170] sm:$0xff]
        %v351 = vld [vmem:[%s262 + $0x178] sm:$0xff]
        %v352 = vpack.c.bf16 %v307, %v304
        %v353 = vpack.c.bf16 %v308, %v305
        %v354 = vpack.c.bf16 %v309, %v306
        %v355 = vpack.c.bf16 %v313, %v310
        %v356 = vpack.c.bf16 %v314, %v311
        %v357 = vpack.c.bf16 %v315, %v312
        %v358 = vpack.c.bf16 %v319, %v316
        %v359 = vpack.c.bf16 %v320, %v317
        %v360 = vpack.c.bf16 %v321, %v318
        %v361 = vpack.c.bf16 %v325, %v322
        %v362 = vpack.c.bf16 %v326, %v323
        %v363 = vpack.c.bf16 %v327, %v324
        %v364 = vpack.c.bf16 %v331, %v328
        %v365 = vpack.c.bf16 %v332, %v329
        %v366 = vpack.c.bf16 %v333, %v330
        %v367 = vpack.c.bf16 %v337, %v334
        %v368 = vpack.c.bf16 %v338, %v335
        %v369 = vpack.c.bf16 %v339, %v336
        %v370 = vpack.c.bf16 %v343, %v340
        %v371 = vpack.c.bf16 %v344, %v341
        %v372 = vpack.c.bf16 %v345, %v342
        %v373 = vpack.c.bf16 %v349, %v346
        %v374 = vpack.c.bf16 %v350, %v347
        %v375 = vpack.c.bf16 %v351, %v348
        %s376 = sshra.s32 %s303, 3
        %s377 = sand.u32 %s303, 7
        %s378 = smul.u32 %s376, 3
        %s379 = smul.addr %s378, 8
        %s380 = scalar_lea.vmem %s262, %s379 [#allocation3]
        %v381 = vld [vmem:[%s380] sm:$0xff]
        %v382 = vld [vmem:[%s380 + $0x8] sm:$0xff]
        %v383 = vld [vmem:[%s380 + $0x10] sm:$0xff]
        %v384 = vld [vmem:[%s380 + $0x18] sm:$0xff]
        %v385 = vld [vmem:[%s380 + $0x20] sm:$0xff]
        %v386 = vld [vmem:[%s380 + $0x28] sm:$0xff]
        %v387 = vld [vmem:[%s380 + $0x30] sm:$0xff]
        %v388 = vld [vmem:[%s380 + $0x38] sm:$0xff]
        %v389 = vld [vmem:[%s380 + $0x40] sm:$0xff]
        %v390 = vld [vmem:[%s380 + $0x48] sm:$0xff]
        %v391 = vld [vmem:[%s380 + $0x50] sm:$0xff]
        %v392 = vld [vmem:[%s380 + $0x58] sm:$0xff]
        %v393 = vld [vmem:[%s380 + $0x60] sm:$0xff]
        %v394 = vld [vmem:[%s380 + $0x68] sm:$0xff]
        %v395 = vld [vmem:[%s380 + $0x70] sm:$0xff]
        %v396 = vld [vmem:[%s380 + $0x78] sm:$0xff]
        %v397 = vld [vmem:[%s380 + $0x80] sm:$0xff]
        %v398 = vld [vmem:[%s380 + $0x88] sm:$0xff]
        %v399 = vld [vmem:[%s380 + $0x90] sm:$0xff]
        %v400 = vld [vmem:[%s380 + $0x98] sm:$0xff]
        %v401 = vld [vmem:[%s380 + $0xa0] sm:$0xff]
        %v402 = vld [vmem:[%s380 + $0xa8] sm:$0xff]
        %v403 = vld [vmem:[%s380 + $0xb0] sm:$0xff]
        %v404 = vld [vmem:[%s380 + $0xb8] sm:$0xff]
        %v405 = vpack.c.bf16 %v384, %v381
        %v406 = vpack.c.bf16 %v385, %v382
        %v407 = vpack.c.bf16 %v386, %v383
        %v408 = vpack.c.bf16 %v390, %v387
        %v409 = vpack.c.bf16 %v391, %v388
        %v410 = vpack.c.bf16 %v392, %v389
        %v411 = vpack.c.bf16 %v396, %v393
        %v412 = vpack.c.bf16 %v397, %v394
        %v413 = vpack.c.bf16 %v398, %v395
        %v414 = vpack.c.bf16 %v402, %v399
        %v415 = vpack.c.bf16 %v403, %v400
        %v416 = vpack.c.bf16 %v404, %v401
        %v417 = vld [vmem:[#allocation8] sm:$0xff]
        %v418 = vld [vmem:[#allocation8 + $0x8] sm:$0xff]
        %v419 = vld [vmem:[#allocation8 + $0x10] sm:$0xff]
        %v420 = vld [vmem:[#allocation8 + $0x18] sm:$0xff]
        %v421 = vld [vmem:[#allocation8 + $0x20] sm:$0xff]
        %v422 = vld [vmem:[#allocation8 + $0x28] sm:$0xff]
        %v423 = vld [vmem:[#allocation8 + $0x30] sm:$0xff]
        %v424 = vld [vmem:[#allocation8 + $0x38] sm:$0xff]
        %v425 = vld [vmem:[#allocation8 + $0x40] sm:$0xff]
        %v426 = vld [vmem:[#allocation8 + $0x48] sm:$0xff]
        %v427 = vld [vmem:[#allocation8 + $0x50] sm:$0xff]
        %v428 = vld [vmem:[#allocation8 + $0x58] sm:$0xff]
        %v429 = vld [vmem:[#allocation8 + $0x60] sm:$0xff]
        %v430 = vld [vmem:[#allocation8 + $0x68] sm:$0xff]
        %v431 = vld [vmem:[#allocation8 + $0x70] sm:$0xff]
        %v432 = vld [vmem:[#allocation8 + $0x78] sm:$0xff]
        %v433 = vld [vmem:[#allocation8 + $0x80] sm:$0xff]
        %v434 = vld [vmem:[#allocation8 + $0x88] sm:$0xff]
        %v435 = vld [vmem:[#allocation8 + $0x90] sm:$0xff]
        %v436 = vld [vmem:[#allocation8 + $0x98] sm:$0xff]
        %v437 = vld [vmem:[#allocation8 + $0xa0] sm:$0xff]
        %v438 = vld [vmem:[#allocation8 + $0xa8] sm:$0xff]
        %v439 = vld [vmem:[#allocation8 + $0xb0] sm:$0xff]
        %v440 = vld [vmem:[#allocation8 + $0xb8] sm:$0xff]
        %v441 = vld [vmem:[#allocation8 + $0xc0] sm:$0xff]
        %v442 = vld [vmem:[#allocation8 + $0xc8] sm:$0xff]
        %v443 = vld [vmem:[#allocation8 + $0xd0] sm:$0xff]
        %v444 = vld [vmem:[#allocation8 + $0xd8] sm:$0xff]
        %v445 = vld [vmem:[#allocation8 + $0xe0] sm:$0xff]
        %v446 = vld [vmem:[#allocation8 + $0xe8] sm:$0xff]
        %v447 = vld [vmem:[#allocation8 + $0xf0] sm:$0xff]
        %v448 = vld [vmem:[#allocation8 + $0xf8] sm:$0xff]
        %v449 = vld [vmem:[#allocation8 + $0x100] sm:$0xff]
        %v450 = vld [vmem:[#allocation8 + $0x108] sm:$0xff]
        %v451 = vld [vmem:[#allocation8 + $0x110] sm:$0xff]
        %v452 = vld [vmem:[#allocation8 + $0x118] sm:$0xff]
        %v453 = vld [vmem:[#allocation8 + $0x120] sm:$0xff]
        %v454 = vld [vmem:[#allocation8 + $0x128] sm:$0xff]
        %v455 = vld [vmem:[#allocation8 + $0x130] sm:$0xff]
        %v456 = vld [vmem:[#allocation8 + $0x138] sm:$0xff]
        %v457 = vld [vmem:[#allocation8 + $0x140] sm:$0xff]
        %v458 = vld [vmem:[#allocation8 + $0x148] sm:$0xff]
        %v459 = vld [vmem:[#allocation8 + $0x150] sm:$0xff]
        %v460 = vld [vmem:[#allocation8 + $0x158] sm:$0xff]
        %v461 = vld [vmem:[#allocation8 + $0x160] sm:$0xff]
        %v462 = vld [vmem:[#allocation8 + $0x168] sm:$0xff]
        %v463 = vld [vmem:[#allocation8 + $0x170] sm:$0xff]
        %v464 = vld [vmem:[#allocation8 + $0x178] sm:$0xff]
        %v465 = vld [vmem:[#allocation8 + $0x180] sm:$0xff]
        %v466 = vld [vmem:[#allocation8 + $0x188] sm:$0xff]
        %v467 = vld [vmem:[#allocation8 + $0x190] sm:$0xff]
        %v468 = vld [vmem:[#allocation8 + $0x198] sm:$0xff]
        %v469 = vld [vmem:[#allocation8 + $0x1a0] sm:$0xff]
        %v470 = vld [vmem:[#allocation8 + $0x1a8] sm:$0xff]
        %v471 = vld [vmem:[#allocation8 + $0x1b0] sm:$0xff]
        %v472 = vld [vmem:[#allocation8 + $0x1b8] sm:$0xff]
        %v473 = vld [vmem:[#allocation8 + $0x1c0] sm:$0xff]
        %v474 = vld [vmem:[#allocation8 + $0x1c8] sm:$0xff]
        %v475 = vld [vmem:[#allocation8 + $0x1d0] sm:$0xff]
        %v476 = vld [vmem:[#allocation8 + $0x1d8] sm:$0xff]
        %v477 = vld [vmem:[#allocation8 + $0x1e0] sm:$0xff]
        %v478 = vld [vmem:[#allocation8 + $0x1e8] sm:$0xff]
        %v479 = vld [vmem:[#allocation8 + $0x1f0] sm:$0xff]
        %v480 = vld [vmem:[#allocation8 + $0x1f8] sm:$0xff]
        %v481 = vld [vmem:[#allocation8 + $0x200] sm:$0xff]
        %v482 = vld [vmem:[#allocation8 + $0x208] sm:$0xff]
        %v483 = vld [vmem:[#allocation8 + $0x210] sm:$0xff]
        %v484 = vld [vmem:[#allocation8 + $0x218] sm:$0xff]
        %v485 = vld [vmem:[#allocation8 + $0x220] sm:$0xff]
        %v486 = vld [vmem:[#allocation8 + $0x228] sm:$0xff]
        %v487 = vld [vmem:[#allocation8 + $0x230] sm:$0xff]
        %v488 = vld [vmem:[#allocation8 + $0x238] sm:$0xff]
        %v489 = vld [vmem:[#allocation8 + $0x240] sm:$0xff]
        %v490 = vld [vmem:[#allocation8 + $0x248] sm:$0xff]
        %v491 = vld [vmem:[#allocation8 + $0x250] sm:$0xff]
        %v492 = vld [vmem:[#allocation8 + $0x258] sm:$0xff]
        %v493 = vld [vmem:[#allocation8 + $0x260] sm:$0xff]
        %v494 = vld [vmem:[#allocation8 + $0x268] sm:$0xff]
        %v495 = vld [vmem:[#allocation8 + $0x270] sm:$0xff]
        %v496 = vld [vmem:[#allocation8 + $0x278] sm:$0xff]
        %v497 = vld [vmem:[#allocation8 + $0x280] sm:$0xff]
        %v498 = vld [vmem:[#allocation8 + $0x288] sm:$0xff]
        %v499 = vld [vmem:[#allocation8 + $0x290] sm:$0xff]
        %v500 = vld [vmem:[#allocation8 + $0x298] sm:$0xff]
        %v501 = vld [vmem:[#allocation8 + $0x2a0] sm:$0xff]
        %v502 = vld [vmem:[#allocation8 + $0x2a8] sm:$0xff]
        %v503 = vld [vmem:[#allocation8 + $0x2b0] sm:$0xff]
        %v504 = vld [vmem:[#allocation8 + $0x2b8] sm:$0xff]
        %v505 = vld [vmem:[#allocation8 + $0x2c0] sm:$0xff]
        %v506 = vld [vmem:[#allocation8 + $0x2c8] sm:$0xff]
        %v507 = vld [vmem:[#allocation8 + $0x2d0] sm:$0xff]
        %v508 = vld [vmem:[#allocation8 + $0x2d8] sm:$0xff]
        %v509 = vld [vmem:[#allocation8 + $0x2e0] sm:$0xff]
        %v510 = vld [vmem:[#allocation8 + $0x2e8] sm:$0xff]
        %v511 = vld [vmem:[#allocation8 + $0x2f0] sm:$0xff]
        %v512 = vld [vmem:[#allocation8 + $0x2f8] sm:$0xff]
        %v513 = vld [vmem:[#allocation8 + $0x300] sm:$0xff]
        %v514 = vld [vmem:[#allocation8 + $0x308] sm:$0xff]
        %v515 = vld [vmem:[#allocation8 + $0x310] sm:$0xff]
        %v516 = vld [vmem:[#allocation8 + $0x318] sm:$0xff]
        %v517 = vld [vmem:[#allocation8 + $0x320] sm:$0xff]
        %v518 = vld [vmem:[#allocation8 + $0x328] sm:$0xff]
        %v519 = vld [vmem:[#allocation8 + $0x330] sm:$0xff]
        %v520 = vld [vmem:[#allocation8 + $0x338] sm:$0xff]
        %v521 = vld [vmem:[#allocation8 + $0x340] sm:$0xff]
        %v522 = vld [vmem:[#allocation8 + $0x348] sm:$0xff]
        %v523 = vld [vmem:[#allocation8 + $0x350] sm:$0xff]
        %v524 = vld [vmem:[#allocation8 + $0x358] sm:$0xff]
        %v525 = vld [vmem:[#allocation8 + $0x360] sm:$0xff]
        %v526 = vld [vmem:[#allocation8 + $0x368] sm:$0xff]
        %v527 = vld [vmem:[#allocation8 + $0x370] sm:$0xff]
        %v528 = vld [vmem:[#allocation8 + $0x378] sm:$0xff]
        %v529 = vld [vmem:[#allocation8 + $0x380] sm:$0xff]
        %v530 = vld [vmem:[#allocation8 + $0x388] sm:$0xff]
        %v531 = vld [vmem:[#allocation8 + $0x390] sm:$0xff]
        %v532 = vld [vmem:[#allocation8 + $0x398] sm:$0xff]
        %v533 = vld [vmem:[#allocation8 + $0x3a0] sm:$0xff]
        %v534 = vld [vmem:[#allocation8 + $0x3a8] sm:$0xff]
        %v535 = vld [vmem:[#allocation8 + $0x3b0] sm:$0xff]
        %v536 = vld [vmem:[#allocation8 + $0x3b8] sm:$0xff]
        %v537 = vld [vmem:[#allocation8 + $0x3c0] sm:$0xff]
        %v538 = vld [vmem:[#allocation8 + $0x3c8] sm:$0xff]
        %v539 = vld [vmem:[#allocation8 + $0x3d0] sm:$0xff]
        %v540 = vld [vmem:[#allocation8 + $0x3d8] sm:$0xff]
        %v541 = vld [vmem:[#allocation8 + $0x3e0] sm:$0xff]
        %v542 = vld [vmem:[#allocation8 + $0x3e8] sm:$0xff]
        %v543 = vld [vmem:[#allocation8 + $0x3f0] sm:$0xff]
        %v544 = vld [vmem:[#allocation8 + $0x3f8] sm:$0xff]
        %v545 = vld [vmem:[#allocation8 + $0x400] sm:$0xff]
        %v546 = vld [vmem:[#allocation8 + $0x408] sm:$0xff]
        %v547 = vld [vmem:[#allocation8 + $0x410] sm:$0xff]
        %v548 = vld [vmem:[#allocation8 + $0x418] sm:$0xff]
        %v549 = vld [vmem:[#allocation8 + $0x420] sm:$0xff]
        %v550 = vld [vmem:[#allocation8 + $0x428] sm:$0xff]
        %v551 = vld [vmem:[#allocation8 + $0x430] sm:$0xff]
        %v552 = vld [vmem:[#allocation8 + $0x438] sm:$0xff]
        %v553 = vld [vmem:[#allocation8 + $0x440] sm:$0xff]
        %v554 = vld [vmem:[#allocation8 + $0x448] sm:$0xff]
        %v555 = vld [vmem:[#allocation8 + $0x450] sm:$0xff]
        %v556 = vld [vmem:[#allocation8 + $0x458] sm:$0xff]
        %v557 = vld [vmem:[#allocation8 + $0x460] sm:$0xff]
        %v558 = vld [vmem:[#allocation8 + $0x468] sm:$0xff]
        %v559 = vld [vmem:[#allocation8 + $0x470] sm:$0xff]
        %v560 = vld [vmem:[#allocation8 + $0x478] sm:$0xff]
        %v705 = vunpack.c.l.b16 %v417
        %v706 = vunpack.c.h.b16 %v417
        %v707 = vunpack.c.l.b16 %v418
        %v708 = vunpack.c.h.b16 %v418
        %v709 = vunpack.c.l.b16 %v419
        %v710 = vunpack.c.h.b16 %v419
        %v711 = vunpack.c.l.b16 %v420
        %v712 = vunpack.c.h.b16 %v420
        %v713 = vunpack.c.l.b16 %v421
        %v714 = vunpack.c.h.b16 %v421
        %v715 = vunpack.c.l.b16 %v422
        %v716 = vunpack.c.h.b16 %v422
        %v717 = vunpack.c.l.b16 %v423
        %v718 = vunpack.c.h.b16 %v423
        %v719 = vunpack.c.l.b16 %v424
        %v720 = vunpack.c.h.b16 %v424
        %v721 = vunpack.c.l.b16 %v425
        %v722 = vunpack.c.h.b16 %v425
        %v723 = vunpack.c.l.b16 %v426
        %v724 = vunpack.c.h.b16 %v426
        %v725 = vunpack.c.l.b16 %v427
        %v726 = vunpack.c.h.b16 %v427
        %v727 = vunpack.c.l.b16 %v428
        %v728 = vunpack.c.h.b16 %v428
        %v729 = vunpack.c.l.b16 %v429
        %v730 = vunpack.c.h.b16 %v429
        %v731 = vunpack.c.l.b16 %v430
        %v732 = vunpack.c.h.b16 %v430
        %v733 = vunpack.c.l.b16 %v431
        %v734 = vunpack.c.h.b16 %v431
        %v735 = vunpack.c.l.b16 %v432
        %v736 = vunpack.c.h.b16 %v432
        %v737 = vunpack.c.l.b16 %v433
        %v738 = vunpack.c.h.b16 %v433
        %v739 = vunpack.c.l.b16 %v434
        %v740 = vunpack.c.h.b16 %v434
        %v741 = vunpack.c.l.b16 %v435
        %v742 = vunpack.c.h.b16 %v435
        %v743 = vunpack.c.l.b16 %v436
        %v744 = vunpack.c.h.b16 %v436
        %v745 = vunpack.c.l.b16 %v437
        %v746 = vunpack.c.h.b16 %v437
        %v747 = vunpack.c.l.b16 %v438
        %v748 = vunpack.c.h.b16 %v438
        %v749 = vunpack.c.l.b16 %v439
        %v750 = vunpack.c.h.b16 %v439
        %v751 = vunpack.c.l.b16 %v440
        %v752 = vunpack.c.h.b16 %v440
        %v753 = vunpack.c.l.b16 %v441
        %v754 = vunpack.c.h.b16 %v441
        %v755 = vunpack.c.l.b16 %v442
        %v756 = vunpack.c.h.b16 %v442
        %v757 = vunpack.c.l.b16 %v443
        %v758 = vunpack.c.h.b16 %v443
        %v759 = vunpack.c.l.b16 %v444
        %v760 = vunpack.c.h.b16 %v444
        %v761 = vunpack.c.l.b16 %v445
        %v762 = vunpack.c.h.b16 %v445
        %v763 = vunpack.c.l.b16 %v446
        %v764 = vunpack.c.h.b16 %v446
        %v765 = vunpack.c.l.b16 %v447
        %v766 = vunpack.c.h.b16 %v447
        %v767 = vunpack.c.l.b16 %v448
        %v768 = vunpack.c.h.b16 %v448
        %v769 = vunpack.c.l.b16 %v449
        %v770 = vunpack.c.h.b16 %v449
        %v771 = vunpack.c.l.b16 %v450
        %v772 = vunpack.c.h.b16 %v450
        %v773 = vunpack.c.l.b16 %v451
        %v774 = vunpack.c.h.b16 %v451
        %v775 = vunpack.c.l.b16 %v452
        %v776 = vunpack.c.h.b16 %v452
        %v777 = vunpack.c.l.b16 %v453
        %v778 = vunpack.c.h.b16 %v453
        %v779 = vunpack.c.l.b16 %v454
        %v780 = vunpack.c.h.b16 %v454
        %v781 = vunpack.c.l.b16 %v455
        %v782 = vunpack.c.h.b16 %v455
        %v783 = vunpack.c.l.b16 %v456
        %v784 = vunpack.c.h.b16 %v456
        %v785 = vunpack.c.l.b16 %v457
        %v786 = vunpack.c.h.b16 %v457
        %v787 = vunpack.c.l.b16 %v458
        %v788 = vunpack.c.h.b16 %v458
        %v789 = vunpack.c.l.b16 %v459
        %v790 = vunpack.c.h.b16 %v459
        %v791 = vunpack.c.l.b16 %v460
        %v792 = vunpack.c.h.b16 %v460
        %v793 = vunpack.c.l.b16 %v461
        %v794 = vunpack.c.h.b16 %v461
        %v795 = vunpack.c.l.b16 %v462
        %v796 = vunpack.c.h.b16 %v462
        %v797 = vunpack.c.l.b16 %v463
        %v798 = vunpack.c.h.b16 %v463
        %v799 = vunpack.c.l.b16 %v464
        %v800 = vunpack.c.h.b16 %v464
        %v801 = vunpack.c.l.b16 %v465
        %v802 = vunpack.c.h.b16 %v465
        %v803 = vunpack.c.l.b16 %v466
        %v804 = vunpack.c.h.b16 %v466
        %v805 = vunpack.c.l.b16 %v467
        %v806 = vunpack.c.h.b16 %v467
        %v807 = vunpack.c.l.b16 %v468
        %v808 = vunpack.c.h.b16 %v468
        %v809 = vunpack.c.l.b16 %v469
        %v810 = vunpack.c.h.b16 %v469
        %v811 = vunpack.c.l.b16 %v470
        %v812 = vunpack.c.h.b16 %v470
        %v813 = vunpack.c.l.b16 %v471
        %v814 = vunpack.c.h.b16 %v471
        %v815 = vunpack.c.l.b16 %v472
        %v816 = vunpack.c.h.b16 %v472
        %v817 = vunpack.c.l.b16 %v473
        %v818 = vunpack.c.h.b16 %v473
        %v819 = vunpack.c.l.b16 %v474
        %v820 = vunpack.c.h.b16 %v474
        %v821 = vunpack.c.l.b16 %v475
        %v822 = vunpack.c.h.b16 %v475
        %v823 = vunpack.c.l.b16 %v476
        %v824 = vunpack.c.h.b16 %v476
        %v825 = vunpack.c.l.b16 %v477
        %v826 = vunpack.c.h.b16 %v477
        %v827 = vunpack.c.l.b16 %v478
        %v828 = vunpack.c.h.b16 %v478
        %v829 = vunpack.c.l.b16 %v479
        %v830 = vunpack.c.h.b16 %v479
        %v831 = vunpack.c.l.b16 %v480
        %v832 = vunpack.c.h.b16 %v480
        %v833 = vunpack.c.l.b16 %v481
        %v834 = vunpack.c.h.b16 %v481
        %v835 = vunpack.c.l.b16 %v482
        %v836 = vunpack.c.h.b16 %v482
        %v837 = vunpack.c.l.b16 %v483
        %v838 = vunpack.c.h.b16 %v483
        %v839 = vunpack.c.l.b16 %v484
        %v840 = vunpack.c.h.b16 %v484
        %v841 = vunpack.c.l.b16 %v485
        %v842 = vunpack.c.h.b16 %v485
        %v843 = vunpack.c.l.b16 %v486
        %v844 = vunpack.c.h.b16 %v486
        %v845 = vunpack.c.l.b16 %v487
        %v846 = vunpack.c.h.b16 %v487
        %v847 = vunpack.c.l.b16 %v488
        %v848 = vunpack.c.h.b16 %v488
        %v849 = vunpack.c.l.b16 %v489
        %v850 = vunpack.c.h.b16 %v489
        %v851 = vunpack.c.l.b16 %v490
        %v852 = vunpack.c.h.b16 %v490
        %v853 = vunpack.c.l.b16 %v491
        %v854 = vunpack.c.h.b16 %v491
        %v855 = vunpack.c.l.b16 %v492
        %v856 = vunpack.c.h.b16 %v492
        %v857 = vunpack.c.l.b16 %v493
        %v858 = vunpack.c.h.b16 %v493
        %v859 = vunpack.c.l.b16 %v494
        %v860 = vunpack.c.h.b16 %v494
        %v861 = vunpack.c.l.b16 %v495
        %v862 = vunpack.c.h.b16 %v495
        %v863 = vunpack.c.l.b16 %v496
        %v864 = vunpack.c.h.b16 %v496
        %v865 = vunpack.c.l.b16 %v497
        %v866 = vunpack.c.h.b16 %v497
        %v867 = vunpack.c.l.b16 %v498
        %v868 = vunpack.c.h.b16 %v498
        %v869 = vunpack.c.l.b16 %v499
        %v870 = vunpack.c.h.b16 %v499
        %v871 = vunpack.c.l.b16 %v500
        %v872 = vunpack.c.h.b16 %v500
        %v873 = vunpack.c.l.b16 %v501
        %v874 = vunpack.c.h.b16 %v501
        %v875 = vunpack.c.l.b16 %v502
        %v876 = vunpack.c.h.b16 %v502
        %v877 = vunpack.c.l.b16 %v503
        %v878 = vunpack.c.h.b16 %v503
        %v879 = vunpack.c.l.b16 %v504
        %v880 = vunpack.c.h.b16 %v504
        %v881 = vunpack.c.l.b16 %v505
        %v882 = vunpack.c.h.b16 %v505
        %v883 = vunpack.c.l.b16 %v506
        %v884 = vunpack.c.h.b16 %v506
        %v885 = vunpack.c.l.b16 %v507
        %v886 = vunpack.c.h.b16 %v507
        %v887 = vunpack.c.l.b16 %v508
        %v888 = vunpack.c.h.b16 %v508
        %v889 = vunpack.c.l.b16 %v509
        %v890 = vunpack.c.h.b16 %v509
        %v891 = vunpack.c.l.b16 %v510
        %v892 = vunpack.c.h.b16 %v510
        %v893 = vunpack.c.l.b16 %v511
        %v894 = vunpack.c.h.b16 %v511
        %v895 = vunpack.c.l.b16 %v512
        %v896 = vunpack.c.h.b16 %v512
        %v897 = vunpack.c.l.b16 %v513
        %v898 = vunpack.c.h.b16 %v513
        %v899 = vunpack.c.l.b16 %v514
        %v900 = vunpack.c.h.b16 %v514
        %v901 = vunpack.c.l.b16 %v515
        %v902 = vunpack.c.h.b16 %v515
        %v903 = vunpack.c.l.b16 %v516
        %v904 = vunpack.c.h.b16 %v516
        %v905 = vunpack.c.l.b16 %v517
        %v906 = vunpack.c.h.b16 %v517
        %v907 = vunpack.c.l.b16 %v518
        %v908 = vunpack.c.h.b16 %v518
        %v909 = vunpack.c.l.b16 %v519
        %v910 = vunpack.c.h.b16 %v519
        %v911 = vunpack.c.l.b16 %v520
        %v912 = vunpack.c.h.b16 %v520
        %v913 = vunpack.c.l.b16 %v521
        %v914 = vunpack.c.h.b16 %v521
        %v915 = vunpack.c.l.b16 %v522
        %v916 = vunpack.c.h.b16 %v522
        %v917 = vunpack.c.l.b16 %v523
        %v918 = vunpack.c.h.b16 %v523
        %v919 = vunpack.c.l.b16 %v524
        %v920 = vunpack.c.h.b16 %v524
        %v921 = vunpack.c.l.b16 %v525
        %v922 = vunpack.c.h.b16 %v525
        %v923 = vunpack.c.l.b16 %v526
        %v924 = vunpack.c.h.b16 %v526
        %v925 = vunpack.c.l.b16 %v527
        %v926 = vunpack.c.h.b16 %v527
        %v927 = vunpack.c.l.b16 %v528
        %v928 = vunpack.c.h.b16 %v528
        %v929 = vunpack.c.l.b16 %v529
        %v930 = vunpack.c.h.b16 %v529
        %v931 = vunpack.c.l.b16 %v530
        %v932 = vunpack.c.h.b16 %v530
        %v933 = vunpack.c.l.b16 %v531
        %v934 = vunpack.c.h.b16 %v531
        %v935 = vunpack.c.l.b16 %v532
        %v936 = vunpack.c.h.b16 %v532
        %v937 = vunpack.c.l.b16 %v533
        %v938 = vunpack.c.h.b16 %v533
        %v939 = vunpack.c.l.b16 %v534
        %v940 = vunpack.c.h.b16 %v534
        %v941 = vunpack.c.l.b16 %v535
        %v942 = vunpack.c.h.b16 %v535
        %v943 = vunpack.c.l.b16 %v536
        %v944 = vunpack.c.h.b16 %v536
        %v945 = vunpack.c.l.b16 %v537
        %v946 = vunpack.c.h.b16 %v537
        %v947 = vunpack.c.l.b16 %v538
        %v948 = vunpack.c.h.b16 %v538
        %v949 = vunpack.c.l.b16 %v539
        %v950 = vunpack.c.h.b16 %v539
        %v951 = vunpack.c.l.b16 %v540
        %v952 = vunpack.c.h.b16 %v540
        %v953 = vunpack.c.l.b16 %v541
        %v954 = vunpack.c.h.b16 %v541
        %v955 = vunpack.c.l.b16 %v542
        %v956 = vunpack.c.h.b16 %v542
        %v957 = vunpack.c.l.b16 %v543
        %v958 = vunpack.c.h.b16 %v543
        %v959 = vunpack.c.l.b16 %v544
        %v960 = vunpack.c.h.b16 %v544
        %v961 = vunpack.c.l.b16 %v545
        %v962 = vunpack.c.h.b16 %v545
        %v963 = vunpack.c.l.b16 %v546
        %v964 = vunpack.c.h.b16 %v546
        %v965 = vunpack.c.l.b16 %v547
        %v966 = vunpack.c.h.b16 %v547
        %v967 = vunpack.c.l.b16 %v548
        %v968 = vunpack.c.h.b16 %v548
        %v969 = vunpack.c.l.b16 %v549
        %v970 = vunpack.c.h.b16 %v549
        %v971 = vunpack.c.l.b16 %v550
        %v972 = vunpack.c.h.b16 %v550
        %v973 = vunpack.c.l.b16 %v551
        %v974 = vunpack.c.h.b16 %v551
        %v975 = vunpack.c.l.b16 %v552
        %v976 = vunpack.c.h.b16 %v552
        %v977 = vunpack.c.l.b16 %v553
        %v978 = vunpack.c.h.b16 %v553
        %v979 = vunpack.c.l.b16 %v554
        %v980 = vunpack.c.h.b16 %v554
        %v981 = vunpack.c.l.b16 %v555
        %v982 = vunpack.c.h.b16 %v555
        %v983 = vunpack.c.l.b16 %v556
        %v984 = vunpack.c.h.b16 %v556
        %v985 = vunpack.c.l.b16 %v557
        %v986 = vunpack.c.h.b16 %v557
        %v987 = vunpack.c.l.b16 %v558
        %v988 = vunpack.c.h.b16 %v558
        %v989 = vunpack.c.l.b16 %v559
        %v990 = vunpack.c.h.b16 %v559
        %v991 = vunpack.c.l.b16 %v560
        %v992 = vunpack.c.h.b16 %v560
        %v993 = vpack.c.b16 %v711, %v705
        %v994 = vpack.c.b16 %v712, %v706
        %v995 = vpack.c.b16 %v713, %v707
        %v996 = vpack.c.b16 %v714, %v708
        %v997 = vpack.c.b16 %v715, %v709
        %v998 = vpack.c.b16 %v716, %v710
        %v999 = vpack.c.b16 %v723, %v717
        %v1000 = vpack.c.b16 %v724, %v718
        %v1001 = vpack.c.b16 %v725, %v719
        %v1002 = vpack.c.b16 %v726, %v720
        %v1003 = vpack.c.b16 %v727, %v721
        %v1004 = vpack.c.b16 %v728, %v722
        %v1005 = vpack.c.b16 %v735, %v729
        %v1006 = vpack.c.b16 %v736, %v730
        %v1007 = vpack.c.b16 %v737, %v731
        %v1008 = vpack.c.b16 %v738, %v732
        %v1009 = vpack.c.b16 %v739, %v733
        %v1010 = vpack.c.b16 %v740, %v734
        %v1011 = vpack.c.b16 %v747, %v741
        %v1012 = vpack.c.b16 %v748, %v742
        %v1013 = vpack.c.b16 %v749, %v743
        %v1014 = vpack.c.b16 %v750, %v744
        %v1015 = vpack.c.b16 %v751, %v745
        %v1016 = vpack.c.b16 %v752, %v746
        %v1017 = vpack.c.b16 %v759, %v753
        %v1018 = vpack.c.b16 %v760, %v754
        %v1019 = vpack.c.b16 %v761, %v755
        %v1020 = vpack.c.b16 %v762, %v756
        %v1021 = vpack.c.b16 %v763, %v757
        %v1022 = vpack.c.b16 %v764, %v758
        %v1023 = vpack.c.b16 %v771, %v765
        %v1024 = vpack.c.b16 %v772, %v766
        %v1025 = vpack.c.b16 %v773, %v767
        %v1026 = vpack.c.b16 %v774, %v768
        %v1027 = vpack.c.b16 %v775, %v769
        %v1028 = vpack.c.b16 %v776, %v770
        %v1029 = vpack.c.b16 %v783, %v777
        %v1030 = vpack.c.b16 %v784, %v778
        %v1031 = vpack.c.b16 %v785, %v779
        %v1032 = vpack.c.b16 %v786, %v780
        %v1033 = vpack.c.b16 %v787, %v781
        %v1034 = vpack.c.b16 %v788, %v782
        %v1035 = vpack.c.b16 %v795, %v789
        %v1036 = vpack.c.b16 %v796, %v790
        %v1037 = vpack.c.b16 %v797, %v791
        %v1038 = vpack.c.b16 %v798, %v792
        %v1039 = vpack.c.b16 %v799, %v793
        %v1040 = vpack.c.b16 %v800, %v794
        %v1041 = vpack.c.b16 %v807, %v801
        %v1042 = vpack.c.b16 %v808, %v802
        %v1043 = vpack.c.b16 %v809, %v803
        %v1044 = vpack.c.b16 %v810, %v804
        %v1045 = vpack.c.b16 %v811, %v805
        %v1046 = vpack.c.b16 %v812, %v806
        %v1047 = vpack.c.b16 %v819, %v813
        %v1048 = vpack.c.b16 %v820, %v814
        %v1049 = vpack.c.b16 %v821, %v815
        %v1050 = vpack.c.b16 %v822, %v816
        %v1051 = vpack.c.b16 %v823, %v817
        %v1052 = vpack.c.b16 %v824, %v818
        %v1053 = vpack.c.b16 %v831, %v825
        %v1054 = vpack.c.b16 %v832, %v826
        %v1055 = vpack.c.b16 %v833, %v827
        %v1056 = vpack.c.b16 %v834, %v828
        %v1057 = vpack.c.b16 %v835, %v829
        %v1058 = vpack.c.b16 %v836, %v830
        %v1059 = vpack.c.b16 %v843, %v837
        %v1060 = vpack.c.b16 %v844, %v838
        %v1061 = vpack.c.b16 %v845, %v839
        %v1062 = vpack.c.b16 %v846, %v840
        %v1063 = vpack.c.b16 %v847, %v841
        %v1064 = vpack.c.b16 %v848, %v842
        %v1065 = vpack.c.b16 %v855, %v849
        %v1066 = vpack.c.b16 %v856, %v850
        %v1067 = vpack.c.b16 %v857, %v851
        %v1068 = vpack.c.b16 %v858, %v852
        %v1069 = vpack.c.b16 %v859, %v853
        %v1070 = vpack.c.b16 %v860, %v854
        %v1071 = vpack.c.b16 %v867, %v861
        %v1072 = vpack.c.b16 %v868, %v862
        %v1073 = vpack.c.b16 %v869, %v863
        %v1074 = vpack.c.b16 %v870, %v864
        %v1075 = vpack.c.b16 %v871, %v865
        %v1076 = vpack.c.b16 %v872, %v866
        %v1077 = vpack.c.b16 %v879, %v873
        %v1078 = vpack.c.b16 %v880, %v874
        %v1079 = vpack.c.b16 %v881, %v875
        %v1080 = vpack.c.b16 %v882, %v876
        %v1081 = vpack.c.b16 %v883, %v877
        %v1082 = vpack.c.b16 %v884, %v878
        %v1083 = vpack.c.b16 %v891, %v885
        %v1084 = vpack.c.b16 %v892, %v886
        %v1085 = vpack.c.b16 %v893, %v887
        %v1086 = vpack.c.b16 %v894, %v888
        %v1087 = vpack.c.b16 %v895, %v889
        %v1088 = vpack.c.b16 %v896, %v890
        %v1089 = vpack.c.b16 %v903, %v897
        %v1090 = vpack.c.b16 %v904, %v898
        %v1091 = vpack.c.b16 %v905, %v899
        %v1092 = vpack.c.b16 %v906, %v900
        %v1093 = vpack.c.b16 %v907, %v901
        %v1094 = vpack.c.b16 %v908, %v902
        %v1095 = vpack.c.b16 %v915, %v909
        %v1096 = vpack.c.b16 %v916, %v910
        %v1097 = vpack.c.b16 %v917, %v911
        %v1098 = vpack.c.b16 %v918, %v912
        %v1099 = vpack.c.b16 %v919, %v913
        %v1100 = vpack.c.b16 %v920, %v914
        %v1101 = vpack.c.b16 %v927, %v921
        %v1102 = vpack.c.b16 %v928, %v922
        %v1103 = vpack.c.b16 %v929, %v923
        %v1104 = vpack.c.b16 %v930, %v924
        %v1105 = vpack.c.b16 %v931, %v925
        %v1106 = vpack.c.b16 %v932, %v926
        %v1107 = vpack.c.b16 %v939, %v933
        %v1108 = vpack.c.b16 %v940, %v934
        %v1109 = vpack.c.b16 %v941, %v935
        %v1110 = vpack.c.b16 %v942, %v936
        %v1111 = vpack.c.b16 %v943, %v937
        %v1112 = vpack.c.b16 %v944, %v938
        %v1113 = vpack.c.b16 %v951, %v945
        %v1114 = vpack.c.b16 %v952, %v946
        %v1115 = vpack.c.b16 %v953, %v947
        %v1116 = vpack.c.b16 %v954, %v948
        %v1117 = vpack.c.b16 %v955, %v949
        %v1118 = vpack.c.b16 %v956, %v950
        %v1119 = vpack.c.b16 %v963, %v957
        %v1120 = vpack.c.b16 %v964, %v958
        %v1121 = vpack.c.b16 %v965, %v959
        %v1122 = vpack.c.b16 %v966, %v960
        %v1123 = vpack.c.b16 %v967, %v961
        %v1124 = vpack.c.b16 %v968, %v962
        %v1125 = vpack.c.b16 %v975, %v969
        %v1126 = vpack.c.b16 %v976, %v970
        %v1127 = vpack.c.b16 %v977, %v971
        %v1128 = vpack.c.b16 %v978, %v972
        %v1129 = vpack.c.b16 %v979, %v973
        %v1130 = vpack.c.b16 %v980, %v974
        %v1131 = vpack.c.b16 %v987, %v981
        %v1132 = vpack.c.b16 %v988, %v982
        %v1133 = vpack.c.b16 %v989, %v983
        %v1134 = vpack.c.b16 %v990, %v984
        %v1135 = vpack.c.b16 %v991, %v985
        %v1136 = vpack.c.b16 %v992, %v986
        %1281 = vmatprep.subr.bf16.mxu0 %v1036
        %1282 = vmatpush1.bf16.msra.mxu0 %v1035
        %1283 = vmatprep.subr.bf16.mxu0 %v1030
        %1284 = vmatpush1.bf16.msra.mxu0 %v1029
        %1285 = vmatprep.subr.bf16.mxu0 %v1024
        %1286 = vmatpush1.bf16.msra.mxu0 %v1023
        %1287 = vmatprep.subr.bf16.mxu0 %v1018
        %1288 = vmatpush1.bf16.msra.mxu0 %v1017
        %1289 = vmatprep.subr.bf16.mxu0 %v1012
        %1290 = vmatpush1.bf16.msra.mxu0 %v1011
        %1291 = vmatprep.subr.bf16.mxu0 %v1006
        %1292 = vmatpush1.bf16.msra.mxu0 %v1005
        %1293 = vmatprep.subr.bf16.mxu0 %v1000
        %1294 = vmatpush1.bf16.msra.mxu0 %v999
        %1295 = vmatprep.subr.bf16.mxu0 %v994
        %1296 = vmatpush1.bf16.msra.mxu0 %v993
        %1297 = vmatprep.subr.bf16.mxu0 %v1084
        %1298 = vmatpush2.bf16.msra.mxu0 %v1083
        %1299 = vmatprep.subr.bf16.mxu0 %v1078
        %1300 = vmatpush2.bf16.msra.mxu0 %v1077
        %1301 = vmatprep.subr.bf16.mxu0 %v1072
        %1302 = vmatpush2.bf16.msra.mxu0 %v1071
        %1303 = vmatprep.subr.bf16.mxu0 %v1066
        %1304 = vmatpush2.bf16.msra.mxu0 %v1065
        %1305 = vmatprep.subr.bf16.mxu0 %v1060
        %1306 = vmatpush2.bf16.msra.mxu0 %v1059
        %1307 = vmatprep.subr.bf16.mxu0 %v1054
        %1308 = vmatpush2.bf16.msra.mxu0 %v1053
        %1309 = vmatprep.subr.bf16.mxu0 %v1048
        %1310 = vmatpush2.bf16.msra.mxu0 %v1047
        %1311 = vmatprep.subr.bf16.mxu0 %v1042
        %1312 = vmatpush2.bf16.msra.mxu0 %v1041
        %1313 = vmatprep.mubr.bf16.mxu0 %v353
        %1314 = vmatmul.mubr.bf16.gmra.mxu0 %v352
        %v1315 = vpop.f32.mrf.mxu0
        %v1316 = vadd.f32 0.0, %v1315
        %v1317 = vpop.f32.mrf.mxu0
        %v1318 = vadd.f32 0.0, %v1317
        %v1319 = vpop.f32.mrf.mxu0
        %v1320 = vadd.f32 0.0, %v1319
        %v1321 = vpop.f32.mrf.mxu0
        %v1322 = vadd.f32 0.0, %v1321
        %1323 = vmatprep.mubr.bf16.mxu0 %v356
        %1324 = vmatmul.mubr.bf16.gmra.mxu0 %v355
        %v1325 = vpop.f32.mrf.mxu0
        %v1326 = vadd.f32 0.0, %v1325
        %v1327 = vpop.f32.mrf.mxu0
        %v1328 = vadd.f32 0.0, %v1327
        %v1329 = vpop.f32.mrf.mxu0
        %v1330 = vadd.f32 0.0, %v1329
        %v1331 = vpop.f32.mrf.mxu0
        %v1332 = vadd.f32 0.0, %v1331
        %1333 = vmatprep.mubr.bf16.mxu0 %v359
        %1334 = vmatmul.mubr.bf16.gmra.mxu0 %v358
        %v1335 = vpop.f32.mrf.mxu0
        %v1336 = vadd.f32 0.0, %v1335
        %v1337 = vpop.f32.mrf.mxu0
        %v1338 = vadd.f32 0.0, %v1337
        %v1339 = vpop.f32.mrf.mxu0
        %v1340 = vadd.f32 0.0, %v1339
        %v1341 = vpop.f32.mrf.mxu0
        %v1342 = vadd.f32 0.0, %v1341
        %1343 = vmatprep.mubr.bf16.mxu0 %v362
        %1344 = vmatmul.mubr.bf16.gmra.mxu0 %v361
        %v1345 = vpop.f32.mrf.mxu0
        %v1346 = vadd.f32 0.0, %v1345
        %v1347 = vpop.f32.mrf.mxu0
        %v1348 = vadd.f32 0.0, %v1347
        %v1349 = vpop.f32.mrf.mxu0
        %v1350 = vadd.f32 0.0, %v1349
        %v1351 = vpop.f32.mrf.mxu0
        %v1352 = vadd.f32 0.0, %v1351
        %1353 = vmatprep.mubr.bf16.mxu0 %v365
        %1354 = vmatmul.mubr.bf16.gmra.mxu0 %v364
        %v1355 = vpop.f32.mrf.mxu0
        %v1356 = vadd.f32 0.0, %v1355
        %v1357 = vpop.f32.mrf.mxu0
        %v1358 = vadd.f32 0.0, %v1357
        %v1359 = vpop.f32.mrf.mxu0
        %v1360 = vadd.f32 0.0, %v1359
        %v1361 = vpop.f32.mrf.mxu0
        %v1362 = vadd.f32 0.0, %v1361
        %1363 = vmatprep.mubr.bf16.mxu0 %v368
        %1364 = vmatmul.mubr.bf16.gmra.mxu0 %v367
        %v1365 = vpop.f32.mrf.mxu0
        %v1366 = vadd.f32 0.0, %v1365
        %v1367 = vpop.f32.mrf.mxu0
        %v1368 = vadd.f32 0.0, %v1367
        %v1369 = vpop.f32.mrf.mxu0
        %v1370 = vadd.f32 0.0, %v1369
        %v1371 = vpop.f32.mrf.mxu0
        %v1372 = vadd.f32 0.0, %v1371
        %1373 = vmatprep.mubr.bf16.mxu0 %v371
        %1374 = vmatmul.mubr.bf16.gmra.mxu0 %v370
        %v1375 = vpop.f32.mrf.mxu0
        %v1376 = vadd.f32 0.0, %v1375
        %v1377 = vpop.f32.mrf.mxu0
        %v1378 = vadd.f32 0.0, %v1377
        %v1379 = vpop.f32.mrf.mxu0
        %v1380 = vadd.f32 0.0, %v1379
        %v1381 = vpop.f32.mrf.mxu0
        %v1382 = vadd.f32 0.0, %v1381
        %1383 = vmatprep.mubr.bf16.mxu0 %v374
        %1384 = vmatmul.mubr.bf16.gmra.mxu0 %v373
        %v1385 = vpop.f32.mrf.mxu0
        %v1386 = vadd.f32 0.0, %v1385
        %v1387 = vpop.f32.mrf.mxu0
        %v1388 = vadd.f32 0.0, %v1387
        %v1389 = vpop.f32.mrf.mxu0
        %v1390 = vadd.f32 0.0, %v1389
        %v1391 = vpop.f32.mrf.mxu0
        %v1392 = vadd.f32 0.0, %v1391
        %1393 = vdwg.mxu0
        %1394 = vmatprep.subr.bf16.mxu0 %v1132
        %1395 = vmatpush1.bf16.msra.mxu0 %v1131
        %1396 = vmatprep.subr.bf16.mxu0 %v1126
        %1397 = vmatpush1.bf16.msra.mxu0 %v1125
        %1398 = vmatprep.subr.bf16.mxu0 %v1120
        %1399 = vmatpush1.bf16.msra.mxu0 %v1119
        %1400 = vmatprep.subr.bf16.mxu0 %v1114
        %1401 = vmatpush1.bf16.msra.mxu0 %v1113
        %1402 = vmatprep.subr.bf16.mxu0 %v1108
        %1403 = vmatpush1.bf16.msra.mxu0 %v1107
        %1404 = vmatprep.subr.bf16.mxu0 %v1102
        %1405 = vmatpush1.bf16.msra.mxu0 %v1101
        %1406 = vmatprep.subr.bf16.mxu0 %v1096
        %1407 = vmatpush1.bf16.msra.mxu0 %v1095
        %1408 = vmatprep.subr.bf16.mxu0 %v1090
        %1409 = vmatpush1.bf16.msra.mxu0 %v1089
        %1410 = vmatprep.subr.bf16.mxu0 0
        %1411 = vmatpush2.bf16.msra.mxu0 0
        %1412 = vmatprep.subr.bf16.mxu0 0
        %1413 = vmatpush2.bf16.msra.mxu0 0
        %1414 = vmatprep.subr.bf16.mxu0 0
        %1415 = vmatpush2.bf16.msra.mxu0 0
        %1416 = vmatprep.subr.bf16.mxu0 0
        %1417 = vmatpush2.bf16.msra.mxu0 0
        %1418 = vmatprep.subr.bf16.mxu0 0
        %1419 = vmatpush2.bf16.msra.mxu0 0
        %1420 = vmatprep.subr.bf16.mxu0 0
        %1421 = vmatpush2.bf16.msra.mxu0 0
        %1422 = vmatprep.subr.bf16.mxu0 0
        %1423 = vmatpush2.bf16.msra.mxu0 0
        %1424 = vmatprep.subr.bf16.mxu0 0
        %1425 = vmatpush2.bf16.msra.mxu0 0
        %1426 = vmatprep.mubr.bf16.mxu0 0
        %1427 = vmatmul.mubr.bf16.gmra.mxu0 %v354
        %v1428 = vpop.f32.mrf.mxu0
        %v1429 = vadd.f32 %v1316, %v1428
        %v1430 = vpop.f32.mrf.mxu0
        %v1431 = vadd.f32 %v1318, %v1430
        %v1432 = vpop.f32.mrf.mxu0
        %v1433 = vadd.f32 %v1320, %v1432
        %v1434 = vpop.f32.mrf.mxu0
        %v1435 = vadd.f32 %v1322, %v1434
        %1436 = vmatprep.mubr.bf16.mxu0 0
        %1437 = vmatmul.mubr.bf16.gmra.mxu0 %v357
        %v1438 = vpop.f32.mrf.mxu0
        %v1439 = vadd.f32 %v1326, %v1438
        %v1440 = vpop.f32.mrf.mxu0
        %v1441 = vadd.f32 %v1328, %v1440
        %v1442 = vpop.f32.mrf.mxu0
        %v1443 = vadd.f32 %v1330, %v1442
        %v1444 = vpop.f32.mrf.mxu0
        %v1445 = vadd.f32 %v1332, %v1444
        %1446 = vmatprep.mubr.bf16.mxu0 0
        %1447 = vmatmul.mubr.bf16.gmra.mxu0 %v360
        %v1448 = vpop.f32.mrf.mxu0
        %v1449 = vadd.f32 %v1336, %v1448
        %v1450 = vpop.f32.mrf.mxu0
        %v1451 = vadd.f32 %v1338, %v1450
        %v1452 = vpop.f32.mrf.mxu0
        %v1453 = vadd.f32 %v1340, %v1452
        %v1454 = vpop.f32.mrf.mxu0
        %v1455 = vadd.f32 %v1342, %v1454
        %1456 = vmatprep.mubr.bf16.mxu0 0
        %1457 = vmatmul.mubr.bf16.gmra.mxu0 %v363
        %v1458 = vpop.f32.mrf.mxu0
        %v1459 = vadd.f32 %v1346, %v1458
        %v1460 = vpop.f32.mrf.mxu0
        %v1461 = vadd.f32 %v1348, %v1460
        %v1462 = vpop.f32.mrf.mxu0
        %v1463 = vadd.f32 %v1350, %v1462
        %v1464 = vpop.f32.mrf.mxu0
        %v1465 = vadd.f32 %v1352, %v1464
        %1466 = vmatprep.mubr.bf16.mxu0 0
        %1467 = vmatmul.mubr.bf16.gmra.mxu0 %v366
        %v1468 = vpop.f32.mrf.mxu0
        %v1469 = vadd.f32 %v1356, %v1468
        %v1470 = vpop.f32.mrf.mxu0
        %v1471 = vadd.f32 %v1358, %v1470
        %v1472 = vpop.f32.mrf.mxu0
        %v1473 = vadd.f32 %v1360, %v1472
        %v1474 = vpop.f32.mrf.mxu0
        %v1475 = vadd.f32 %v1362, %v1474
        %1476 = vmatprep.mubr.bf16.mxu0 0
        %1477 = vmatmul.mubr.bf16.gmra.mxu0 %v369
        %v1478 = vpop.f32.mrf.mxu0
        %v1479 = vadd.f32 %v1366, %v1478
        %v1480 = vpop.f32.mrf.mxu0
        %v1481 = vadd.f32 %v1368, %v1480
        %v1482 = vpop.f32.mrf.mxu0
        %v1483 = vadd.f32 %v1370, %v1482
        %v1484 = vpop.f32.mrf.mxu0
        %v1485 = vadd.f32 %v1372, %v1484
        %1486 = vmatprep.mubr.bf16.mxu0 0
        %1487 = vmatmul.mubr.bf16.gmra.mxu0 %v372
        %v1488 = vpop.f32.mrf.mxu0
        %v1489 = vadd.f32 %v1376, %v1488
        %v1490 = vpop.f32.mrf.mxu0
        %v1491 = vadd.f32 %v1378, %v1490
        %v1492 = vpop.f32.mrf.mxu0
        %v1493 = vadd.f32 %v1380, %v1492
        %v1494 = vpop.f32.mrf.mxu0
        %v1495 = vadd.f32 %v1382, %v1494
        %1496 = vmatprep.mubr.bf16.mxu0 0
        %1497 = vmatmul.mubr.bf16.gmra.mxu0 %v375
        %v1498 = vpop.f32.mrf.mxu0
        %v1499 = vadd.f32 %v1386, %v1498
        %v1500 = vpop.f32.mrf.mxu0
        %v1501 = vadd.f32 %v1388, %v1500
        %v1502 = vpop.f32.mrf.mxu0
        %v1503 = vadd.f32 %v1390, %v1502
        %v1504 = vpop.f32.mrf.mxu0
        %v1505 = vadd.f32 %v1392, %v1504
        %1506 = vdwg.mxu0
        %1507 = vmatprep.subr.bf16.mxu0 %v1038
        %1508 = vmatpush1.bf16.msra.mxu0 %v1037
        %1509 = vmatprep.subr.bf16.mxu0 %v1032
        %1510 = vmatpush1.bf16.msra.mxu0 %v1031
        %1511 = vmatprep.subr.bf16.mxu0 %v1026
        %1512 = vmatpush1.bf16.msra.mxu0 %v1025
        %1513 = vmatprep.subr.bf16.mxu0 %v1020
        %1514 = vmatpush1.bf16.msra.mxu0 %v1019
        %1515 = vmatprep.subr.bf16.mxu0 %v1014
        %1516 = vmatpush1.bf16.msra.mxu0 %v1013
        %1517 = vmatprep.subr.bf16.mxu0 %v1008
        %1518 = vmatpush1.bf16.msra.mxu0 %v1007
        %1519 = vmatprep.subr.bf16.mxu0 %v1002
        %1520 = vmatpush1.bf16.msra.mxu0 %v1001
        %1521 = vmatprep.subr.bf16.mxu0 %v996
        %1522 = vmatpush1.bf16.msra.mxu0 %v995
        %1523 = vmatprep.subr.bf16.mxu0 %v1086
        %1524 = vmatpush2.bf16.msra.mxu0 %v1085
        %1525 = vmatprep.subr.bf16.mxu0 %v1080
        %1526 = vmatpush2.bf16.msra.mxu0 %v1079
        %1527 = vmatprep.subr.bf16.mxu0 %v1074
        %1528 = vmatpush2.bf16.msra.mxu0 %v1073
        %1529 = vmatprep.subr.bf16.mxu0 %v1068
        %1530 = vmatpush2.bf16.msra.mxu0 %v1067
        %1531 = vmatprep.subr.bf16.mxu0 %v1062
        %1532 = vmatpush2.bf16.msra.mxu0 %v1061
        %1533 = vmatprep.subr.bf16.mxu0 %v1056
        %1534 = vmatpush2.bf16.msra.mxu0 %v1055
        %1535 = vmatprep.subr.bf16.mxu0 %v1050
        %1536 = vmatpush2.bf16.msra.mxu0 %v1049
        %1537 = vmatprep.subr.bf16.mxu0 %v1044
        %1538 = vmatpush2.bf16.msra.mxu0 %v1043
        %1539 = vmatprep.mubr.bf16.mxu0 %v353
        %1540 = vmatmul.mubr.bf16.gmra.mxu0 %v352
        %v1541 = vpop.f32.mrf.mxu0
        %v1542 = vadd.f32 0.0, %v1541
        %v1543 = vpop.f32.mrf.mxu0
        %v1544 = vadd.f32 0.0, %v1543
        %v1545 = vpop.f32.mrf.mxu0
        %v1546 = vadd.f32 0.0, %v1545
        %v1547 = vpop.f32.mrf.mxu0
        %v1548 = vadd.f32 0.0, %v1547
        %1549 = vmatprep.mubr.bf16.mxu0 %v356
        %1550 = vmatmul.mubr.bf16.gmra.mxu0 %v355
        %v1551 = vpop.f32.mrf.mxu0
        %v1552 = vadd.f32 0.0, %v1551
        %v1553 = vpop.f32.mrf.mxu0
        %v1554 = vadd.f32 0.0, %v1553
        %v1555 = vpop.f32.mrf.mxu0
        %v1556 = vadd.f32 0.0, %v1555
        %v1557 = vpop.f32.mrf.mxu0
        %v1558 = vadd.f32 0.0, %v1557
        %1559 = vmatprep.mubr.bf16.mxu0 %v359
        %1560 = vmatmul.mubr.bf16.gmra.mxu0 %v358
        %v1561 = vpop.f32.mrf.mxu0
        %v1562 = vadd.f32 0.0, %v1561
        %v1563 = vpop.f32.mrf.mxu0
        %v1564 = vadd.f32 0.0, %v1563
        %v1565 = vpop.f32.mrf.mxu0
        %v1566 = vadd.f32 0.0, %v1565
        %v1567 = vpop.f32.mrf.mxu0
        %v1568 = vadd.f32 0.0, %v1567
        %1569 = vmatprep.mubr.bf16.mxu0 %v362
        %1570 = vmatmul.mubr.bf16.gmra.mxu0 %v361
        %v1571 = vpop.f32.mrf.mxu0
        %v1572 = vadd.f32 0.0, %v1571
        %v1573 = vpop.f32.mrf.mxu0
        %v1574 = vadd.f32 0.0, %v1573
        %v1575 = vpop.f32.mrf.mxu0
        %v1576 = vadd.f32 0.0, %v1575
        %v1577 = vpop.f32.mrf.mxu0
        %v1578 = vadd.f32 0.0, %v1577
        %1579 = vmatprep.mubr.bf16.mxu0 %v365
        %1580 = vmatmul.mubr.bf16.gmra.mxu0 %v364
        %v1581 = vpop.f32.mrf.mxu0
        %v1582 = vadd.f32 0.0, %v1581
        %v1583 = vpop.f32.mrf.mxu0
        %v1584 = vadd.f32 0.0, %v1583
        %v1585 = vpop.f32.mrf.mxu0
        %v1586 = vadd.f32 0.0, %v1585
        %v1587 = vpop.f32.mrf.mxu0
        %v1588 = vadd.f32 0.0, %v1587
        %1589 = vmatprep.mubr.bf16.mxu0 %v368
        %1590 = vmatmul.mubr.bf16.gmra.mxu0 %v367
        %v1591 = vpop.f32.mrf.mxu0
        %v1592 = vadd.f32 0.0, %v1591
        %v1593 = vpop.f32.mrf.mxu0
        %v1594 = vadd.f32 0.0, %v1593
        %v1595 = vpop.f32.mrf.mxu0
        %v1596 = vadd.f32 0.0, %v1595
        %v1597 = vpop.f32.mrf.mxu0
        %v1598 = vadd.f32 0.0, %v1597
        %1599 = vmatprep.mubr.bf16.mxu0 %v371
        %1600 = vmatmul.mubr.bf16.gmra.mxu0 %v370
        %v1601 = vpop.f32.mrf.mxu0
        %v1602 = vadd.f32 0.0, %v1601
        %v1603 = vpop.f32.mrf.mxu0
        %v1604 = vadd.f32 0.0, %v1603
        %v1605 = vpop.f32.mrf.mxu0
        %v1606 = vadd.f32 0.0, %v1605
        %v1607 = vpop.f32.mrf.mxu0
        %v1608 = vadd.f32 0.0, %v1607
        %1609 = vmatprep.mubr.bf16.mxu0 %v374
        %1610 = vmatmul.mubr.bf16.gmra.mxu0 %v373
        %v1611 = vpop.f32.mrf.mxu0
        %v1612 = vadd.f32 0.0, %v1611
        %v1613 = vpop.f32.mrf.mxu0
        %v1614 = vadd.f32 0.0, %v1613
        %v1615 = vpop.f32.mrf.mxu0
        %v1616 = vadd.f32 0.0, %v1615
        %v1617 = vpop.f32.mrf.mxu0
        %v1618 = vadd.f32 0.0, %v1617
        %1619 = vdwg.mxu0
        %1620 = vmatprep.subr.bf16.mxu0 %v1134
        %1621 = vmatpush1.bf16.msra.mxu0 %v1133
        %1622 = vmatprep.subr.bf16.mxu0 %v1128
        %1623 = vmatpush1.bf16.msra.mxu0 %v1127
        %1624 = vmatprep.subr.bf16.mxu0 %v1122
        %1625 = vmatpush1.bf16.msra.mxu0 %v1121
        %1626 = vmatprep.subr.bf16.mxu0 %v1116
        %1627 = vmatpush1.bf16.msra.mxu0 %v1115
        %1628 = vmatprep.subr.bf16.mxu0 %v1110
        %1629 = vmatpush1.bf16.msra.mxu0 %v1109
        %1630 = vmatprep.subr.bf16.mxu0 %v1104
        %1631 = vmatpush1.bf16.msra.mxu0 %v1103
        %1632 = vmatprep.subr.bf16.mxu0 %v1098
        %1633 = vmatpush1.bf16.msra.mxu0 %v1097
        %1634 = vmatprep.subr.bf16.mxu0 %v1092
        %1635 = vmatpush1.bf16.msra.mxu0 %v1091
        %1636 = vmatprep.subr.bf16.mxu0 0
        %1637 = vmatpush2.bf16.msra.mxu0 0
        %1638 = vmatprep.subr.bf16.mxu0 0
        %1639 = vmatpush2.bf16.msra.mxu0 0
        %1640 = vmatprep.subr.bf16.mxu0 0
        %1641 = vmatpush2.bf16.msra.mxu0 0
        %1642 = vmatprep.subr.bf16.mxu0 0
        %1643 = vmatpush2.bf16.msra.mxu0 0
        %1644 = vmatprep.subr.bf16.mxu0 0
        %1645 = vmatpush2.bf16.msra.mxu0 0
        %1646 = vmatprep.subr.bf16.mxu0 0
        %1647 = vmatpush2.bf16.msra.mxu0 0
        %1648 = vmatprep.subr.bf16.mxu0 0
        %1649 = vmatpush2.bf16.msra.mxu0 0
        %1650 = vmatprep.subr.bf16.mxu0 0
        %1651 = vmatpush2.bf16.msra.mxu0 0
        %1652 = vmatprep.mubr.bf16.mxu0 0
        %1653 = vmatmul.mubr.bf16.gmra.mxu0 %v354
        %v1654 = vpop.f32.mrf.mxu0
        %v1655 = vadd.f32 %v1542, %v1654
        %v1656 = vpop.f32.mrf.mxu0
        %v1657 = vadd.f32 %v1544, %v1656
        %v1658 = vpop.f32.mrf.mxu0
        %v1659 = vadd.f32 %v1546, %v1658
        %v1660 = vpop.f32.mrf.mxu0
        %v1661 = vadd.f32 %v1548, %v1660
        %1662 = vmatprep.mubr.bf16.mxu0 0
        %1663 = vmatmul.mubr.bf16.gmra.mxu0 %v357
        %v1664 = vpop.f32.mrf.mxu0
        %v1665 = vadd.f32 %v1552, %v1664
        %v1666 = vpop.f32.mrf.mxu0
        %v1667 = vadd.f32 %v1554, %v1666
        %v1668 = vpop.f32.mrf.mxu0
        %v1669 = vadd.f32 %v1556, %v1668
        %v1670 = vpop.f32.mrf.mxu0
        %v1671 = vadd.f32 %v1558, %v1670
        %1672 = vmatprep.mubr.bf16.mxu0 0
        %1673 = vmatmul.mubr.bf16.gmra.mxu0 %v360
        %v1674 = vpop.f32.mrf.mxu0
        %v1675 = vadd.f32 %v1562, %v1674
        %v1676 = vpop.f32.mrf.mxu0
        %v1677 = vadd.f32 %v1564, %v1676
        %v1678 = vpop.f32.mrf.mxu0
        %v1679 = vadd.f32 %v1566, %v1678
        %v1680 = vpop.f32.mrf.mxu0
        %v1681 = vadd.f32 %v1568, %v1680
        %1682 = vmatprep.mubr.bf16.mxu0 0
        %1683 = vmatmul.mubr.bf16.gmra.mxu0 %v363
        %v1684 = vpop.f32.mrf.mxu0
        %v1685 = vadd.f32 %v1572, %v1684
        %v1686 = vpop.f32.mrf.mxu0
        %v1687 = vadd.f32 %v1574, %v1686
        %v1688 = vpop.f32.mrf.mxu0
        %v1689 = vadd.f32 %v1576, %v1688
        %v1690 = vpop.f32.mrf.mxu0
        %v1691 = vadd.f32 %v1578, %v1690
        %1692 = vmatprep.mubr.bf16.mxu0 0
        %1693 = vmatmul.mubr.bf16.gmra.mxu0 %v366
        %v1694 = vpop.f32.mrf.mxu0
        %v1695 = vadd.f32 %v1582, %v1694
        %v1696 = vpop.f32.mrf.mxu0
        %v1697 = vadd.f32 %v1584, %v1696
        %v1698 = vpop.f32.mrf.mxu0
        %v1699 = vadd.f32 %v1586, %v1698
        %v1700 = vpop.f32.mrf.mxu0
        %v1701 = vadd.f32 %v1588, %v1700
        %1702 = vmatprep.mubr.bf16.mxu0 0
        %1703 = vmatmul.mubr.bf16.gmra.mxu0 %v369
        %v1704 = vpop.f32.mrf.mxu0
        %v1705 = vadd.f32 %v1592, %v1704
        %v1706 = vpop.f32.mrf.mxu0
        %v1707 = vadd.f32 %v1594, %v1706
        %v1708 = vpop.f32.mrf.mxu0
        %v1709 = vadd.f32 %v1596, %v1708
        %v1710 = vpop.f32.mrf.mxu0
        %v1711 = vadd.f32 %v1598, %v1710
        %1712 = vmatprep.mubr.bf16.mxu0 0
        %1713 = vmatmul.mubr.bf16.gmra.mxu0 %v372
        %v1714 = vpop.f32.mrf.mxu0
        %v1715 = vadd.f32 %v1602, %v1714
        %v1716 = vpop.f32.mrf.mxu0
        %v1717 = vadd.f32 %v1604, %v1716
        %v1718 = vpop.f32.mrf.mxu0
        %v1719 = vadd.f32 %v1606, %v1718
        %v1720 = vpop.f32.mrf.mxu0
        %v1721 = vadd.f32 %v1608, %v1720
        %1722 = vmatprep.mubr.bf16.mxu0 0
        %1723 = vmatmul.mubr.bf16.gmra.mxu0 %v375
        %v1724 = vpop.f32.mrf.mxu0
        %v1725 = vadd.f32 %v1612, %v1724
        %v1726 = vpop.f32.mrf.mxu0
        %v1727 = vadd.f32 %v1614, %v1726
        %v1728 = vpop.f32.mrf.mxu0
        %v1729 = vadd.f32 %v1616, %v1728
        %v1730 = vpop.f32.mrf.mxu0
        %v1731 = vadd.f32 %v1618, %v1730
        %1732 = vdwg.mxu0
        %1733 = vmatprep.subr.bf16.mxu0 %v1040
        %1734 = vmatpush1.bf16.msra.mxu0 %v1039
        %1735 = vmatprep.subr.bf16.mxu0 %v1034
        %1736 = vmatpush1.bf16.msra.mxu0 %v1033
        %1737 = vmatprep.subr.bf16.mxu0 %v1028
        %1738 = vmatpush1.bf16.msra.mxu0 %v1027
        %1739 = vmatprep.subr.bf16.mxu0 %v1022
        %1740 = vmatpush1.bf16.msra.mxu0 %v1021
        %1741 = vmatprep.subr.bf16.mxu0 %v1016
        %1742 = vmatpush1.bf16.msra.mxu0 %v1015
        %1743 = vmatprep.subr.bf16.mxu0 %v1010
        %1744 = vmatpush1.bf16.msra.mxu0 %v1009
        %1745 = vmatprep.subr.bf16.mxu0 %v1004
        %1746 = vmatpush1.bf16.msra.mxu0 %v1003
        %1747 = vmatprep.subr.bf16.mxu0 %v998
        %1748 = vmatpush1.bf16.msra.mxu0 %v997
        %1749 = vmatprep.subr.bf16.mxu0 %v1088
        %1750 = vmatpush2.bf16.msra.mxu0 %v1087
        %1751 = vmatprep.subr.bf16.mxu0 %v1082
        %1752 = vmatpush2.bf16.msra.mxu0 %v1081
        %1753 = vmatprep.subr.bf16.mxu0 %v1076
        %1754 = vmatpush2.bf16.msra.mxu0 %v1075
        %1755 = vmatprep.subr.bf16.mxu0 %v1070
        %1756 = vmatpush2.bf16.msra.mxu0 %v1069
        %1757 = vmatprep.subr.bf16.mxu0 %v1064
        %1758 = vmatpush2.bf16.msra.mxu0 %v1063
        %1759 = vmatprep.subr.bf16.mxu0 %v1058
        %1760 = vmatpush2.bf16.msra.mxu0 %v1057
        %1761 = vmatprep.subr.bf16.mxu0 %v1052
        %1762 = vmatpush2.bf16.msra.mxu0 %v1051
        %1763 = vmatprep.subr.bf16.mxu0 %v1046
        %1764 = vmatpush2.bf16.msra.mxu0 %v1045
        %1765 = vmatprep.mubr.bf16.mxu0 %v353
        %1766 = vmatmul.mubr.bf16.gmra.mxu0 %v352
        %v1767 = vpop.f32.mrf.mxu0
        %v1768 = vadd.f32 0.0, %v1767
        %v1769 = vpop.f32.mrf.mxu0
        %v1770 = vadd.f32 0.0, %v1769
        %v1771 = vpop.f32.mrf.mxu0
        %v1772 = vadd.f32 0.0, %v1771
        %v1773 = vpop.f32.mrf.mxu0
        %v1774 = vadd.f32 0.0, %v1773
        %1775 = vmatprep.mubr.bf16.mxu0 %v356
        %1776 = vmatmul.mubr.bf16.gmra.mxu0 %v355
        %v1777 = vpop.f32.mrf.mxu0
        %v1778 = vadd.f32 0.0, %v1777
        %v1779 = vpop.f32.mrf.mxu0
        %v1780 = vadd.f32 0.0, %v1779
        %v1781 = vpop.f32.mrf.mxu0
        %v1782 = vadd.f32 0.0, %v1781
        %v1783 = vpop.f32.mrf.mxu0
        %v1784 = vadd.f32 0.0, %v1783
        %1785 = vmatprep.mubr.bf16.mxu0 %v359
        %1786 = vmatmul.mubr.bf16.gmra.mxu0 %v358
        %v1787 = vpop.f32.mrf.mxu0
        %v1788 = vadd.f32 0.0, %v1787
        %v1789 = vpop.f32.mrf.mxu0
        %v1790 = vadd.f32 0.0, %v1789
        %v1791 = vpop.f32.mrf.mxu0
        %v1792 = vadd.f32 0.0, %v1791
        %v1793 = vpop.f32.mrf.mxu0
        %v1794 = vadd.f32 0.0, %v1793
        %1795 = vmatprep.mubr.bf16.mxu0 %v362
        %1796 = vmatmul.mubr.bf16.gmra.mxu0 %v361
        %v1797 = vpop.f32.mrf.mxu0
        %v1798 = vadd.f32 0.0, %v1797
        %v1799 = vpop.f32.mrf.mxu0
        %v1800 = vadd.f32 0.0, %v1799
        %v1801 = vpop.f32.mrf.mxu0
        %v1802 = vadd.f32 0.0, %v1801
        %v1803 = vpop.f32.mrf.mxu0
        %v1804 = vadd.f32 0.0, %v1803
        %1805 = vmatprep.mubr.bf16.mxu0 %v365
        %1806 = vmatmul.mubr.bf16.gmra.mxu0 %v364
        %v1807 = vpop.f32.mrf.mxu0
        %v1808 = vadd.f32 0.0, %v1807
        %v1809 = vpop.f32.mrf.mxu0
        %v1810 = vadd.f32 0.0, %v1809
        %v1811 = vpop.f32.mrf.mxu0
        %v1812 = vadd.f32 0.0, %v1811
        %v1813 = vpop.f32.mrf.mxu0
        %v1814 = vadd.f32 0.0, %v1813
        %1815 = vmatprep.mubr.bf16.mxu0 %v368
        %1816 = vmatmul.mubr.bf16.gmra.mxu0 %v367
        %v1817 = vpop.f32.mrf.mxu0
        %v1818 = vadd.f32 0.0, %v1817
        %v1819 = vpop.f32.mrf.mxu0
        %v1820 = vadd.f32 0.0, %v1819
        %v1821 = vpop.f32.mrf.mxu0
        %v1822 = vadd.f32 0.0, %v1821
        %v1823 = vpop.f32.mrf.mxu0
        %v1824 = vadd.f32 0.0, %v1823
        %1825 = vmatprep.mubr.bf16.mxu0 %v371
        %1826 = vmatmul.mubr.bf16.gmra.mxu0 %v370
        %v1827 = vpop.f32.mrf.mxu0
        %v1828 = vadd.f32 0.0, %v1827
        %v1829 = vpop.f32.mrf.mxu0
        %v1830 = vadd.f32 0.0, %v1829
        %v1831 = vpop.f32.mrf.mxu0
        %v1832 = vadd.f32 0.0, %v1831
        %v1833 = vpop.f32.mrf.mxu0
        %v1834 = vadd.f32 0.0, %v1833
        %1835 = vmatprep.mubr.bf16.mxu0 %v374
        %1836 = vmatmul.mubr.bf16.gmra.mxu0 %v373
        %v1837 = vpop.f32.mrf.mxu0
        %v1838 = vadd.f32 0.0, %v1837
        %v1839 = vpop.f32.mrf.mxu0
        %v1840 = vadd.f32 0.0, %v1839
        %v1841 = vpop.f32.mrf.mxu0
        %v1842 = vadd.f32 0.0, %v1841
        %v1843 = vpop.f32.mrf.mxu0
        %v1844 = vadd.f32 0.0, %v1843
        %1845 = vdwg.mxu0
        %1846 = vmatprep.subr.bf16.mxu0 %v1136
        %1847 = vmatpush1.bf16.msra.mxu0 %v1135
        %1848 = vmatprep.subr.bf16.mxu0 %v1130
        %1849 = vmatpush1.bf16.msra.mxu0 %v1129
        %1850 = vmatprep.subr.bf16.mxu0 %v1124
        %1851 = vmatpush1.bf16.msra.mxu0 %v1123
        %1852 = vmatprep.subr.bf16.mxu0 %v1118
        %1853 = vmatpush1.bf16.msra.mxu0 %v1117
        %1854 = vmatprep.subr.bf16.mxu0 %v1112
        %1855 = vmatpush1.bf16.msra.mxu0 %v1111
        %1856 = vmatprep.subr.bf16.mxu0 %v1106
        %1857 = vmatpush1.bf16.msra.mxu0 %v1105
        %1858 = vmatprep.subr.bf16.mxu0 %v1100
        %1859 = vmatpush1.bf16.msra.mxu0 %v1099
        %1860 = vmatprep.subr.bf16.mxu0 %v1094
        %1861 = vmatpush1.bf16.msra.mxu0 %v1093
        %1862 = vmatprep.subr.bf16.mxu0 0
        %1863 = vmatpush2.bf16.msra.mxu0 0
        %1864 = vmatprep.subr.bf16.mxu0 0
        %1865 = vmatpush2.bf16.msra.mxu0 0
        %1866 = vmatprep.subr.bf16.mxu0 0
        %1867 = vmatpush2.bf16.msra.mxu0 0
        %1868 = vmatprep.subr.bf16.mxu0 0
        %1869 = vmatpush2.bf16.msra.mxu0 0
        %1870 = vmatprep.subr.bf16.mxu0 0
        %1871 = vmatpush2.bf16.msra.mxu0 0
        %1872 = vmatprep.subr.bf16.mxu0 0
        %1873 = vmatpush2.bf16.msra.mxu0 0
        %1874 = vmatprep.subr.bf16.mxu0 0
        %1875 = vmatpush2.bf16.msra.mxu0 0
        %1876 = vmatprep.subr.bf16.mxu0 0
        %1877 = vmatpush2.bf16.msra.mxu0 0
        %1878 = vmatprep.mubr.bf16.mxu0 0
        %1879 = vmatmul.mubr.bf16.gmra.mxu0 %v354
        %v1880 = vpop.f32.mrf.mxu0
        %v1881 = vadd.f32 %v1768, %v1880
        %v1882 = vpop.f32.mrf.mxu0
        %v1883 = vadd.f32 %v1770, %v1882
        %v1884 = vpop.f32.mrf.mxu0
        %v1885 = vadd.f32 %v1772, %v1884
        %v1886 = vpop.f32.mrf.mxu0
        %v1887 = vadd.f32 %v1774, %v1886
        %1888 = vmatprep.mubr.bf16.mxu0 0
        %1889 = vmatmul.mubr.bf16.gmra.mxu0 %v357
        %v1890 = vpop.f32.mrf.mxu0
        %v1891 = vadd.f32 %v1778, %v1890
        %v1892 = vpop.f32.mrf.mxu0
        %v1893 = vadd.f32 %v1780, %v1892
        %v1894 = vpop.f32.mrf.mxu0
        %v1895 = vadd.f32 %v1782, %v1894
        %v1896 = vpop.f32.mrf.mxu0
        %v1897 = vadd.f32 %v1784, %v1896
        %1898 = vmatprep.mubr.bf16.mxu0 0
        %1899 = vmatmul.mubr.bf16.gmra.mxu0 %v360
        %v1900 = vpop.f32.mrf.mxu0
        %v1901 = vadd.f32 %v1788, %v1900
        %v1902 = vpop.f32.mrf.mxu0
        %v1903 = vadd.f32 %v1790, %v1902
        %v1904 = vpop.f32.mrf.mxu0
        %v1905 = vadd.f32 %v1792, %v1904
        %v1906 = vpop.f32.mrf.mxu0
        %v1907 = vadd.f32 %v1794, %v1906
        %1908 = vmatprep.mubr.bf16.mxu0 0
        %1909 = vmatmul.mubr.bf16.gmra.mxu0 %v363
        %v1910 = vpop.f32.mrf.mxu0
        %v1911 = vadd.f32 %v1798, %v1910
        %v1912 = vpop.f32.mrf.mxu0
        %v1913 = vadd.f32 %v1800, %v1912
        %v1914 = vpop.f32.mrf.mxu0
        %v1915 = vadd.f32 %v1802, %v1914
        %v1916 = vpop.f32.mrf.mxu0
        %v1917 = vadd.f32 %v1804, %v1916
        %1918 = vmatprep.mubr.bf16.mxu0 0
        %1919 = vmatmul.mubr.bf16.gmra.mxu0 %v366
        %v1920 = vpop.f32.mrf.mxu0
        %v1921 = vadd.f32 %v1808, %v1920
        %v1922 = vpop.f32.mrf.mxu0
        %v1923 = vadd.f32 %v1810, %v1922
        %v1924 = vpop.f32.mrf.mxu0
        %v1925 = vadd.f32 %v1812, %v1924
        %v1926 = vpop.f32.mrf.mxu0
        %v1927 = vadd.f32 %v1814, %v1926
        %1928 = vmatprep.mubr.bf16.mxu0 0
        %1929 = vmatmul.mubr.bf16.gmra.mxu0 %v369
        %v1930 = vpop.f32.mrf.mxu0
        %v1931 = vadd.f32 %v1818, %v1930
        %v1932 = vpop.f32.mrf.mxu0
        %v1933 = vadd.f32 %v1820, %v1932
        %v1934 = vpop.f32.mrf.mxu0
        %v1935 = vadd.f32 %v1822, %v1934
        %v1936 = vpop.f32.mrf.mxu0
        %v1937 = vadd.f32 %v1824, %v1936
        %1938 = vmatprep.mubr.bf16.mxu0 0
        %1939 = vmatmul.mubr.bf16.gmra.mxu0 %v372
        %v1940 = vpop.f32.mrf.mxu0
        %v1941 = vadd.f32 %v1828, %v1940
        %v1942 = vpop.f32.mrf.mxu0
        %v1943 = vadd.f32 %v1830, %v1942
        %v1944 = vpop.f32.mrf.mxu0
        %v1945 = vadd.f32 %v1832, %v1944
        %v1946 = vpop.f32.mrf.mxu0
        %v1947 = vadd.f32 %v1834, %v1946
        %1948 = vmatprep.mubr.bf16.mxu0 0
        %1949 = vmatmul.mubr.bf16.gmra.mxu0 %v375
        %v1950 = vpop.f32.mrf.mxu0
        %v1951 = vadd.f32 %v1838, %v1950
        %v1952 = vpop.f32.mrf.mxu0
        %v1953 = vadd.f32 %v1840, %v1952
        %v1954 = vpop.f32.mrf.mxu0
        %v1955 = vadd.f32 %v1842, %v1954
        %v1956 = vpop.f32.mrf.mxu0
        %v1957 = vadd.f32 %v1844, %v1956
        %1958 = vdwg.mxu0
        %v1959 = vpack.c.bf16 %v1433, %v1429
        %v1960 = vpack.c.bf16 %v1435, %v1431
        %v1961 = vpack.c.bf16 %v1659, %v1655
        %v1962 = vpack.c.bf16 %v1661, %v1657
        %v1963 = vpack.c.bf16 %v1885, %v1881
        %v1964 = vpack.c.bf16 %v1887, %v1883
        %v1965 = vpack.c.bf16 %v1443, %v1439
        %v1966 = vpack.c.bf16 %v1445, %v1441
        %v1967 = vpack.c.bf16 %v1669, %v1665
        %v1968 = vpack.c.bf16 %v1671, %v1667
        %v1969 = vpack.c.bf16 %v1895, %v1891
        %v1970 = vpack.c.bf16 %v1897, %v1893
        %v1971 = vpack.c.bf16 %v1453, %v1449
        %v1972 = vpack.c.bf16 %v1455, %v1451
        %v1973 = vpack.c.bf16 %v1679, %v1675
        %v1974 = vpack.c.bf16 %v1681, %v1677
        %v1975 = vpack.c.bf16 %v1905, %v1901
        %v1976 = vpack.c.bf16 %v1907, %v1903
        %v1977 = vpack.c.bf16 %v1463, %v1459
        %v1978 = vpack.c.bf16 %v1465, %v1461
        %v1979 = vpack.c.bf16 %v1689, %v1685
        %v1980 = vpack.c.bf16 %v1691, %v1687
        %v1981 = vpack.c.bf16 %v1915, %v1911
        %v1982 = vpack.c.bf16 %v1917, %v1913
        %v1983 = vpack.c.bf16 %v1473, %v1469
        %v1984 = vpack.c.bf16 %v1475, %v1471
        %v1985 = vpack.c.bf16 %v1699, %v1695
        %v1986 = vpack.c.bf16 %v1701, %v1697
        %v1987 = vpack.c.bf16 %v1925, %v1921
        %v1988 = vpack.c.bf16 %v1927, %v1923
        %v1989 = vpack.c.bf16 %v1483, %v1479
        %v1990 = vpack.c.bf16 %v1485, %v1481
        %v1991 = vpack.c.bf16 %v1709, %v1705
        %v1992 = vpack.c.bf16 %v1711, %v1707
        %v1993 = vpack.c.bf16 %v1935, %v1931
        %v1994 = vpack.c.bf16 %v1937, %v1933
        %v1995 = vpack.c.bf16 %v1493, %v1489
        %v1996 = vpack.c.bf16 %v1495, %v1491
        %v1997 = vpack.c.bf16 %v1719, %v1715
        %v1998 = vpack.c.bf16 %v1721, %v1717
        %v1999 = vpack.c.bf16 %v1945, %v1941
        %v2000 = vpack.c.bf16 %v1947, %v1943
        %v2001 = vpack.c.bf16 %v1503, %v1499
        %v2002 = vpack.c.bf16 %v1505, %v1501
        %v2003 = vpack.c.bf16 %v1729, %v1725
        %v2004 = vpack.c.bf16 %v1731, %v1727
        %v2005 = vpack.c.bf16 %v1955, %v1951
        %v2006 = vpack.c.bf16 %v1957, %v1953
        %v2007 = vld [vmem:[#allocation6] sm:$0xff]
        %v2008 = vld [vmem:[#allocation6 + $0x8] sm:$0xf]
        %v2009 = vld [vmem:[#allocation6 + $0xc] sm:$0xff]
        %v2010 = vld [vmem:[#allocation6 + $0x14] sm:$0xf]
        %v2011 = vld [vmem:[#allocation6 + $0x18] sm:$0xff]
        %v2012 = vld [vmem:[#allocation6 + $0x20] sm:$0xf]
        %v2013 = vld [vmem:[#allocation6 + $0x24] sm:$0xff]
        %v2014 = vld [vmem:[#allocation6 + $0x2c] sm:$0xf]
        %v2015 = vld [vmem:[#allocation6 + $0x30] sm:$0xff]
        %v2016 = vld [vmem:[#allocation6 + $0x38] sm:$0xf]
        %v2017 = vld [vmem:[#allocation6 + $0x3c] sm:$0xff]
        %v2018 = vld [vmem:[#allocation6 + $0x44] sm:$0xf]
        %v2019 = vld [vmem:[#allocation6 + $0x48] sm:$0xff]
        %v2020 = vld [vmem:[#allocation6 + $0x50] sm:$0xf]
        %v2021 = vld [vmem:[#allocation6 + $0x54] sm:$0xff]
        %v2022 = vld [vmem:[#allocation6 + $0x5c] sm:$0xf]
        %v2023 = vld [vmem:[#allocation6 + $0x60] sm:$0xff]
        %v2024 = vld [vmem:[#allocation6 + $0x68] sm:$0xf]
        %v2025 = vld [vmem:[#allocation6 + $0x6c] sm:$0xff]
        %v2026 = vld [vmem:[#allocation6 + $0x74] sm:$0xf]
        %v2027 = vld [vmem:[#allocation6 + $0x78] sm:$0xff]
        %v2028 = vld [vmem:[#allocation6 + $0x80] sm:$0xf]
        %v2029 = vld [vmem:[#allocation6 + $0x84] sm:$0xff]
        %v2030 = vld [vmem:[#allocation6 + $0x8c] sm:$0xf]
        %v2031 = vld [vmem:[#allocation6 + $0x90] sm:$0xff]
        %v2032 = vld [vmem:[#allocation6 + $0x98] sm:$0xf]
        %v2033 = vld [vmem:[#allocation6 + $0x9c] sm:$0xff]
        %v2034 = vld [vmem:[#allocation6 + $0xa4] sm:$0xf]
        %v2035 = vld [vmem:[#allocation6 + $0xa8] sm:$0xff]
        %v2036 = vld [vmem:[#allocation6 + $0xb0] sm:$0xf]
        %v2037 = vld [vmem:[#allocation6 + $0xb4] sm:$0xff]
        %v2038 = vld [vmem:[#allocation6 + $0xbc] sm:$0xf]
        %v2039 = vld [vmem:[#allocation6 + $0xc0] sm:$0xff]
        %v2040 = vld [vmem:[#allocation6 + $0xc8] sm:$0xf]
        %v2041 = vld [vmem:[#allocation6 + $0xcc] sm:$0xff]
        %v2042 = vld [vmem:[#allocation6 + $0xd4] sm:$0xf]
        %v2043 = vld [vmem:[#allocation6 + $0xd8] sm:$0xff]
        %v2044 = vld [vmem:[#allocation6 + $0xe0] sm:$0xf]
        %v2045 = vld [vmem:[#allocation6 + $0xe4] sm:$0xff]
        %v2046 = vld [vmem:[#allocation6 + $0xec] sm:$0xf]
        %v2047 = vld [vmem:[#allocation6 + $0xf0] sm:$0xff]
        %v2048 = vld [vmem:[#allocation6 + $0xf8] sm:$0xf]
        %v2049 = vld [vmem:[#allocation6 + $0xfc] sm:$0xff]
        %v2050 = vld [vmem:[#allocation6 + $0x104] sm:$0xf]
        %v2051 = vld [vmem:[#allocation6 + $0x108] sm:$0xff]
        %v2052 = vld [vmem:[#allocation6 + $0x110] sm:$0xf]
        %v2053 = vld [vmem:[#allocation6 + $0x114] sm:$0xff]
        %v2054 = vld [vmem:[#allocation6 + $0x11c] sm:$0xf]
        %v2055 = vld [vmem:[#allocation6 + $0x120] sm:$0xff]
        %v2056 = vld [vmem:[#allocation6 + $0x128] sm:$0xf]
        %v2057 = vld [vmem:[#allocation6 + $0x12c] sm:$0xff]
        %v2058 = vld [vmem:[#allocation6 + $0x134] sm:$0xf]
        %v2059 = vld [vmem:[#allocation6 + $0x138] sm:$0xff]
        %v2060 = vld [vmem:[#allocation6 + $0x140] sm:$0xf]
        %v2061 = vld [vmem:[#allocation6 + $0x144] sm:$0xff]
        %v2062 = vld [vmem:[#allocation6 + $0x14c] sm:$0xf]
        %v2063 = vld [vmem:[#allocation6 + $0x150] sm:$0xff]
        %v2064 = vld [vmem:[#allocation6 + $0x158] sm:$0xf]
        %v2065 = vld [vmem:[#allocation6 + $0x15c] sm:$0xff]
        %v2066 = vld [vmem:[#allocation6 + $0x164] sm:$0xf]
        %v2067 = vld [vmem:[#allocation6 + $0x168] sm:$0xff]
        %v2068 = vld [vmem:[#allocation6 + $0x170] sm:$0xf]
        %v2069 = vld [vmem:[#allocation6 + $0x174] sm:$0xff]
        %v2070 = vld [vmem:[#allocation6 + $0x17c] sm:$0xf]
        %v2071 = vld [vmem:[#allocation6 + $0x180] sm:$0xff]
        %v2072 = vld [vmem:[#allocation6 + $0x188] sm:$0xf]
        %v2073 = vld [vmem:[#allocation6 + $0x18c] sm:$0xff]
        %v2074 = vld [vmem:[#allocation6 + $0x194] sm:$0xf]
        %v2075 = vld [vmem:[#allocation6 + $0x198] sm:$0xff]
        %v2076 = vld [vmem:[#allocation6 + $0x1a0] sm:$0xf]
        %v2077 = vld [vmem:[#allocation6 + $0x1a4] sm:$0xff]
        %v2078 = vld [vmem:[#allocation6 + $0x1ac] sm:$0xf]
        %v2079 = vld [vmem:[#allocation6 + $0x1b0] sm:$0xff]
        %v2080 = vld [vmem:[#allocation6 + $0x1b8] sm:$0xf]
        %v2081 = vld [vmem:[#allocation6 + $0x1bc] sm:$0xff]
        %v2082 = vld [vmem:[#allocation6 + $0x1c4] sm:$0xf]
        %v2083 = vld [vmem:[#allocation6 + $0x1c8] sm:$0xff]
        %v2084 = vld [vmem:[#allocation6 + $0x1d0] sm:$0xf]
        %v2085 = vld [vmem:[#allocation6 + $0x1d4] sm:$0xff]
        %v2086 = vld [vmem:[#allocation6 + $0x1dc] sm:$0xf]
        %v2087 = vld [vmem:[#allocation6 + $0x1e0] sm:$0xff]
        %v2088 = vld [vmem:[#allocation6 + $0x1e8] sm:$0xf]
        %v2089 = vld [vmem:[#allocation6 + $0x1ec] sm:$0xff]
        %v2090 = vld [vmem:[#allocation6 + $0x1f4] sm:$0xf]
        %v2091 = vld [vmem:[#allocation6 + $0x1f8] sm:$0xff]
        %v2092 = vld [vmem:[#allocation6 + $0x200] sm:$0xf]
        %v2093 = vld [vmem:[#allocation6 + $0x204] sm:$0xff]
        %v2094 = vld [vmem:[#allocation6 + $0x20c] sm:$0xf]
        %v2095 = vld [vmem:[#allocation6 + $0x210] sm:$0xff]
        %v2096 = vld [vmem:[#allocation6 + $0x218] sm:$0xf]
        %v2097 = vld [vmem:[#allocation6 + $0x21c] sm:$0xff]
        %v2098 = vld [vmem:[#allocation6 + $0x224] sm:$0xf]
        %v2099 = vld [vmem:[#allocation6 + $0x228] sm:$0xff]
        %v2100 = vld [vmem:[#allocation6 + $0x230] sm:$0xf]
        %v2101 = vld [vmem:[#allocation6 + $0x234] sm:$0xff]
        %v2102 = vld [vmem:[#allocation6 + $0x23c] sm:$0xf]
        %v2199 = vunpack.c.l.b16 %v2007
        %v2200 = vunpack.c.h.b16 %v2007
        %v2201 = vunpack.c.l.b16 %v2008
        %v2202 = vunpack.c.l.b16 %v2009
        %v2203 = vunpack.c.h.b16 %v2009
        %v2204 = vunpack.c.l.b16 %v2010
        %v2205 = vunpack.c.l.b16 %v2011
        %v2206 = vunpack.c.h.b16 %v2011
        %v2207 = vunpack.c.l.b16 %v2012
        %v2208 = vunpack.c.l.b16 %v2013
        %v2209 = vunpack.c.h.b16 %v2013
        %v2210 = vunpack.c.l.b16 %v2014
        %v2211 = vunpack.c.l.b16 %v2015
        %v2212 = vunpack.c.h.b16 %v2015
        %v2213 = vunpack.c.l.b16 %v2016
        %v2214 = vunpack.c.l.b16 %v2017
        %v2215 = vunpack.c.h.b16 %v2017
        %v2216 = vunpack.c.l.b16 %v2018
        %v2217 = vunpack.c.l.b16 %v2019
        %v2218 = vunpack.c.h.b16 %v2019
        %v2219 = vunpack.c.l.b16 %v2020
        %v2220 = vunpack.c.l.b16 %v2021
        %v2221 = vunpack.c.h.b16 %v2021
        %v2222 = vunpack.c.l.b16 %v2022
        %v2223 = vunpack.c.l.b16 %v2023
        %v2224 = vunpack.c.h.b16 %v2023
        %v2225 = vunpack.c.l.b16 %v2024
        %v2226 = vunpack.c.l.b16 %v2025
        %v2227 = vunpack.c.h.b16 %v2025
        %v2228 = vunpack.c.l.b16 %v2026
        %v2229 = vunpack.c.l.b16 %v2027
        %v2230 = vunpack.c.h.b16 %v2027
        %v2231 = vunpack.c.l.b16 %v2028
        %v2232 = vunpack.c.l.b16 %v2029
        %v2233 = vunpack.c.h.b16 %v2029
        %v2234 = vunpack.c.l.b16 %v2030
        %v2235 = vunpack.c.l.b16 %v2031
        %v2236 = vunpack.c.h.b16 %v2031
        %v2237 = vunpack.c.l.b16 %v2032
        %v2238 = vunpack.c.l.b16 %v2033
        %v2239 = vunpack.c.h.b16 %v2033
        %v2240 = vunpack.c.l.b16 %v2034
        %v2241 = vunpack.c.l.b16 %v2035
        %v2242 = vunpack.c.h.b16 %v2035
        %v2243 = vunpack.c.l.b16 %v2036
        %v2244 = vunpack.c.l.b16 %v2037
        %v2245 = vunpack.c.h.b16 %v2037
        %v2246 = vunpack.c.l.b16 %v2038
        %v2247 = vunpack.c.l.b16 %v2039
        %v2248 = vunpack.c.h.b16 %v2039
        %v2249 = vunpack.c.l.b16 %v2040
        %v2250 = vunpack.c.l.b16 %v2041
        %v2251 = vunpack.c.h.b16 %v2041
        %v2252 = vunpack.c.l.b16 %v2042
        %v2253 = vunpack.c.l.b16 %v2043
        %v2254 = vunpack.c.h.b16 %v2043
        %v2255 = vunpack.c.l.b16 %v2044
        %v2256 = vunpack.c.l.b16 %v2045
        %v2257 = vunpack.c.h.b16 %v2045
        %v2258 = vunpack.c.l.b16 %v2046
        %v2259 = vunpack.c.l.b16 %v2047
        %v2260 = vunpack.c.h.b16 %v2047
        %v2261 = vunpack.c.l.b16 %v2048
        %v2262 = vunpack.c.l.b16 %v2049
        %v2263 = vunpack.c.h.b16 %v2049
        %v2264 = vunpack.c.l.b16 %v2050
        %v2265 = vunpack.c.l.b16 %v2051
        %v2266 = vunpack.c.h.b16 %v2051
        %v2267 = vunpack.c.l.b16 %v2052
        %v2268 = vunpack.c.l.b16 %v2053
        %v2269 = vunpack.c.h.b16 %v2053
        %v2270 = vunpack.c.l.b16 %v2054
        %v2271 = vunpack.c.l.b16 %v2055
        %v2272 = vunpack.c.h.b16 %v2055
        %v2273 = vunpack.c.l.b16 %v2056
        %v2274 = vunpack.c.l.b16 %v2057
        %v2275 = vunpack.c.h.b16 %v2057
        %v2276 = vunpack.c.l.b16 %v2058
        %v2277 = vunpack.c.l.b16 %v2059
        %v2278 = vunpack.c.h.b16 %v2059
        %v2279 = vunpack.c.l.b16 %v2060
        %v2280 = vunpack.c.l.b16 %v2061
        %v2281 = vunpack.c.h.b16 %v2061
        %v2282 = vunpack.c.l.b16 %v2062
        %v2283 = vunpack.c.l.b16 %v2063
        %v2284 = vunpack.c.h.b16 %v2063
        %v2285 = vunpack.c.l.b16 %v2064
        %v2286 = vunpack.c.l.b16 %v2065
        %v2287 = vunpack.c.h.b16 %v2065
        %v2288 = vunpack.c.l.b16 %v2066
        %v2289 = vunpack.c.l.b16 %v2067
        %v2290 = vunpack.c.h.b16 %v2067
        %v2291 = vunpack.c.l.b16 %v2068
        %v2292 = vunpack.c.l.b16 %v2069
        %v2293 = vunpack.c.h.b16 %v2069
        %v2294 = vunpack.c.l.b16 %v2070
        %v2295 = vunpack.c.l.b16 %v2071
        %v2296 = vunpack.c.h.b16 %v2071
        %v2297 = vunpack.c.l.b16 %v2072
        %v2298 = vunpack.c.l.b16 %v2073
        %v2299 = vunpack.c.h.b16 %v2073
        %v2300 = vunpack.c.l.b16 %v2074
        %v2301 = vunpack.c.l.b16 %v2075
        %v2302 = vunpack.c.h.b16 %v2075
        %v2303 = vunpack.c.l.b16 %v2076
        %v2304 = vunpack.c.l.b16 %v2077
        %v2305 = vunpack.c.h.b16 %v2077
        %v2306 = vunpack.c.l.b16 %v2078
        %v2307 = vunpack.c.l.b16 %v2079
        %v2308 = vunpack.c.h.b16 %v2079
        %v2309 = vunpack.c.l.b16 %v2080
        %v2310 = vunpack.c.l.b16 %v2081
        %v2311 = vunpack.c.h.b16 %v2081
        %v2312 = vunpack.c.l.b16 %v2082
        %v2313 = vunpack.c.l.b16 %v2083
        %v2314 = vunpack.c.h.b16 %v2083
        %v2315 = vunpack.c.l.b16 %v2084
        %v2316 = vunpack.c.l.b16 %v2085
        %v2317 = vunpack.c.h.b16 %v2085
        %v2318 = vunpack.c.l.b16 %v2086
        %v2319 = vunpack.c.l.b16 %v2087
        %v2320 = vunpack.c.h.b16 %v2087
        %v2321 = vunpack.c.l.b16 %v2088
        %v2322 = vunpack.c.l.b16 %v2089
        %v2323 = vunpack.c.h.b16 %v2089
        %v2324 = vunpack.c.l.b16 %v2090
        %v2325 = vunpack.c.l.b16 %v2091
        %v2326 = vunpack.c.h.b16 %v2091
        %v2327 = vunpack.c.l.b16 %v2092
        %v2328 = vunpack.c.l.b16 %v2093
        %v2329 = vunpack.c.h.b16 %v2093
        %v2330 = vunpack.c.l.b16 %v2094
        %v2331 = vunpack.c.l.b16 %v2095
        %v2332 = vunpack.c.h.b16 %v2095
        %v2333 = vunpack.c.l.b16 %v2096
        %v2334 = vunpack.c.l.b16 %v2097
        %v2335 = vunpack.c.h.b16 %v2097
        %v2336 = vunpack.c.l.b16 %v2098
        %v2337 = vunpack.c.l.b16 %v2099
        %v2338 = vunpack.c.h.b16 %v2099
        %v2339 = vunpack.c.l.b16 %v2100
        %v2340 = vunpack.c.l.b16 %v2101
        %v2341 = vunpack.c.h.b16 %v2101
        %v2342 = vunpack.c.l.b16 %v2102
        %v2343 = vpack.c.b16 %v2202, %v2199
        %v2344 = vpack.c.b16 %v2203, %v2200
        %v2345 = vpack.c.b16 %v2204, %v2201
        %v2346 = vpack.c.b16 %v2208, %v2205
        %v2347 = vpack.c.b16 %v2209, %v2206
        %v2348 = vpack.c.b16 %v2210, %v2207
        %v2349 = vpack.c.b16 %v2214, %v2211
        %v2350 = vpack.c.b16 %v2215, %v2212
        %v2351 = vpack.c.b16 %v2216, %v2213
        %v2352 = vpack.c.b16 %v2220, %v2217
        %v2353 = vpack.c.b16 %v2221, %v2218
        %v2354 = vpack.c.b16 %v2222, %v2219
        %v2355 = vpack.c.b16 %v2226, %v2223
        %v2356 = vpack.c.b16 %v2227, %v2224
        %v2357 = vpack.c.b16 %v2228, %v2225
        %v2358 = vpack.c.b16 %v2232, %v2229
        %v2359 = vpack.c.b16 %v2233, %v2230
        %v2360 = vpack.c.b16 %v2234, %v2231
        %v2361 = vpack.c.b16 %v2238, %v2235
        %v2362 = vpack.c.b16 %v2239, %v2236
        %v2363 = vpack.c.b16 %v2240, %v2237
        %v2364 = vpack.c.b16 %v2244, %v2241
        %v2365 = vpack.c.b16 %v2245, %v2242
        %v2366 = vpack.c.b16 %v2246, %v2243
        %v2367 = vpack.c.b16 %v2250, %v2247
        %v2368 = vpack.c.b16 %v2251, %v2248
        %v2369 = vpack.c.b16 %v2252, %v2249
        %v2370 = vpack.c.b16 %v2256, %v2253
        %v2371 = vpack.c.b16 %v2257, %v2254
        %v2372 = vpack.c.b16 %v2258, %v2255
        %v2373 = vpack.c.b16 %v2262, %v2259
        %v2374 = vpack.c.b16 %v2263, %v2260
        %v2375 = vpack.c.b16 %v2264, %v2261
        %v2376 = vpack.c.b16 %v2268, %v2265
        %v2377 = vpack.c.b16 %v2269, %v2266
        %v2378 = vpack.c.b16 %v2270, %v2267
        %v2379 = vpack.c.b16 %v2274, %v2271
        %v2380 = vpack.c.b16 %v2275, %v2272
        %v2381 = vpack.c.b16 %v2276, %v2273
        %v2382 = vpack.c.b16 %v2280, %v2277
        %v2383 = vpack.c.b16 %v2281, %v2278
        %v2384 = vpack.c.b16 %v2282, %v2279
        %v2385 = vpack.c.b16 %v2286, %v2283
        %v2386 = vpack.c.b16 %v2287, %v2284
        %v2387 = vpack.c.b16 %v2288, %v2285
        %v2388 = vpack.c.b16 %v2292, %v2289
        %v2389 = vpack.c.b16 %v2293, %v2290
        %v2390 = vpack.c.b16 %v2294, %v2291
        %v2391 = vpack.c.b16 %v2298, %v2295
        %v2392 = vpack.c.b16 %v2299, %v2296
        %v2393 = vpack.c.b16 %v2300, %v2297
        %v2394 = vpack.c.b16 %v2304, %v2301
        %v2395 = vpack.c.b16 %v2305, %v2302
        %v2396 = vpack.c.b16 %v2306, %v2303
        %v2397 = vpack.c.b16 %v2310, %v2307
        %v2398 = vpack.c.b16 %v2311, %v2308
        %v2399 = vpack.c.b16 %v2312, %v2309
        %v2400 = vpack.c.b16 %v2316, %v2313
        %v2401 = vpack.c.b16 %v2317, %v2314
        %v2402 = vpack.c.b16 %v2318, %v2315
        %v2403 = vpack.c.b16 %v2322, %v2319
        %v2404 = vpack.c.b16 %v2323, %v2320
        %v2405 = vpack.c.b16 %v2324, %v2321
        %v2406 = vpack.c.b16 %v2328, %v2325
        %v2407 = vpack.c.b16 %v2329, %v2326
        %v2408 = vpack.c.b16 %v2330, %v2327
        %v2409 = vpack.c.b16 %v2334, %v2331
        %v2410 = vpack.c.b16 %v2335, %v2332
        %v2411 = vpack.c.b16 %v2336, %v2333
        %v2412 = vpack.c.b16 %v2340, %v2337
        %v2413 = vpack.c.b16 %v2341, %v2338
        %v2414 = vpack.c.b16 %v2342, %v2339
        %2487 = vmatprep.subr.bf16.mxu0 %v2365
        %2488 = vmatpush1.bf16.msra.mxu0 %v2364
        %2489 = vmatprep.subr.bf16.mxu0 %v2362
        %2490 = vmatpush1.bf16.msra.mxu0 %v2361
        %2491 = vmatprep.subr.bf16.mxu0 %v2359
        %2492 = vmatpush1.bf16.msra.mxu0 %v2358
        %2493 = vmatprep.subr.bf16.mxu0 %v2356
        %2494 = vmatpush1.bf16.msra.mxu0 %v2355
        %2495 = vmatprep.subr.bf16.mxu0 %v2353
        %2496 = vmatpush1.bf16.msra.mxu0 %v2352
        %2497 = vmatprep.subr.bf16.mxu0 %v2350
        %2498 = vmatpush1.bf16.msra.mxu0 %v2349
        %2499 = vmatprep.subr.bf16.mxu0 %v2347
        %2500 = vmatpush1.bf16.msra.mxu0 %v2346
        %2501 = vmatprep.subr.bf16.mxu0 %v2344
        %2502 = vmatpush1.bf16.msra.mxu0 %v2343
        %2503 = vmatprep.subr.bf16.mxu0 %v2389
        %2504 = vmatpush2.bf16.msra.mxu0 %v2388
        %2505 = vmatprep.subr.bf16.mxu0 %v2386
        %2506 = vmatpush2.bf16.msra.mxu0 %v2385
        %2507 = vmatprep.subr.bf16.mxu0 %v2383
        %2508 = vmatpush2.bf16.msra.mxu0 %v2382
        %2509 = vmatprep.subr.bf16.mxu0 %v2380
        %2510 = vmatpush2.bf16.msra.mxu0 %v2379
        %2511 = vmatprep.subr.bf16.mxu0 %v2377
        %2512 = vmatpush2.bf16.msra.mxu0 %v2376
        %2513 = vmatprep.subr.bf16.mxu0 %v2374
        %2514 = vmatpush2.bf16.msra.mxu0 %v2373
        %2515 = vmatprep.subr.bf16.mxu0 %v2371
        %2516 = vmatpush2.bf16.msra.mxu0 %v2370
        %2517 = vmatprep.subr.bf16.mxu0 %v2368
        %2518 = vmatpush2.bf16.msra.mxu0 %v2367
        %2519 = vmatprep.mubr.bf16.mxu0 %v406
        %2520 = vmatmul.mubr.bf16.gmra.mxu0 %v405
        %v2521 = vpop.f32.mrf.mxu0
        %v2522 = vadd.f32 0.0, %v2521
        %v2523 = vpop.f32.mrf.mxu0
        %v2524 = vadd.f32 0.0, %v2523
        %v2525 = vpop.f32.mrf.mxu0
        %v2526 = vadd.f32 0.0, %v2525
        %v2527 = vpop.f32.mrf.mxu0
        %v2528 = vadd.f32 0.0, %v2527
        %2529 = vmatprep.mubr.bf16.mxu0 %v409
        %2530 = vmatmul.mubr.bf16.gmra.mxu0 %v408
        %v2531 = vpop.f32.mrf.mxu0
        %v2532 = vadd.f32 0.0, %v2531
        %v2533 = vpop.f32.mrf.mxu0
        %v2534 = vadd.f32 0.0, %v2533
        %v2535 = vpop.f32.mrf.mxu0
        %v2536 = vadd.f32 0.0, %v2535
        %v2537 = vpop.f32.mrf.mxu0
        %v2538 = vadd.f32 0.0, %v2537
        %2539 = vmatprep.mubr.bf16.mxu0 %v412
        %2540 = vmatmul.mubr.bf16.gmra.mxu0 %v411
        %v2541 = vpop.f32.mrf.mxu0
        %v2542 = vadd.f32 0.0, %v2541
        %v2543 = vpop.f32.mrf.mxu0
        %v2544 = vadd.f32 0.0, %v2543
        %v2545 = vpop.f32.mrf.mxu0
        %v2546 = vadd.f32 0.0, %v2545
        %v2547 = vpop.f32.mrf.mxu0
        %v2548 = vadd.f32 0.0, %v2547
        %2549 = vmatprep.mubr.bf16.mxu0 %v415
        %2550 = vmatmul.mubr.bf16.gmra.mxu0 %v414
        %v2551 = vpop.f32.mrf.mxu0
        %v2552 = vadd.f32 0.0, %v2551
        %v2553 = vpop.f32.mrf.mxu0
        %v2554 = vadd.f32 0.0, %v2553
        %v2555 = vpop.f32.mrf.mxu0
        %v2556 = vadd.f32 0.0, %v2555
        %v2557 = vpop.f32.mrf.mxu0
        %v2558 = vadd.f32 0.0, %v2557
        %2559 = vdwg.mxu0
        %2560 = vmatprep.subr.bf16.mxu0 %v2413
        %2561 = vmatpush1.bf16.msra.mxu0 %v2412
        %2562 = vmatprep.subr.bf16.mxu0 %v2410
        %2563 = vmatpush1.bf16.msra.mxu0 %v2409
        %2564 = vmatprep.subr.bf16.mxu0 %v2407
        %2565 = vmatpush1.bf16.msra.mxu0 %v2406
        %2566 = vmatprep.subr.bf16.mxu0 %v2404
        %2567 = vmatpush1.bf16.msra.mxu0 %v2403
        %2568 = vmatprep.subr.bf16.mxu0 %v2401
        %2569 = vmatpush1.bf16.msra.mxu0 %v2400
        %2570 = vmatprep.subr.bf16.mxu0 %v2398
        %2571 = vmatpush1.bf16.msra.mxu0 %v2397
        %2572 = vmatprep.subr.bf16.mxu0 %v2395
        %2573 = vmatpush1.bf16.msra.mxu0 %v2394
        %2574 = vmatprep.subr.bf16.mxu0 %v2392
        %2575 = vmatpush1.bf16.msra.mxu0 %v2391
        %2576 = vmatprep.subr.bf16.mxu0 0
        %2577 = vmatpush2.bf16.msra.mxu0 0
        %2578 = vmatprep.subr.bf16.mxu0 0
        %2579 = vmatpush2.bf16.msra.mxu0 0
        %2580 = vmatprep.subr.bf16.mxu0 0
        %2581 = vmatpush2.bf16.msra.mxu0 0
        %2582 = vmatprep.subr.bf16.mxu0 0
        %2583 = vmatpush2.bf16.msra.mxu0 0
        %2584 = vmatprep.subr.bf16.mxu0 0
        %2585 = vmatpush2.bf16.msra.mxu0 0
        %2586 = vmatprep.subr.bf16.mxu0 0
        %2587 = vmatpush2.bf16.msra.mxu0 0
        %2588 = vmatprep.subr.bf16.mxu0 0
        %2589 = vmatpush2.bf16.msra.mxu0 0
        %2590 = vmatprep.subr.bf16.mxu0 0
        %2591 = vmatpush2.bf16.msra.mxu0 0
        %2592 = vmatprep.mubr.bf16.mxu0 0
        %2593 = vmatmul.mubr.bf16.gmra.mxu0 %v407
        %v2594 = vpop.f32.mrf.mxu0
        %v2595 = vadd.f32 %v2522, %v2594
        %v2596 = vpop.f32.mrf.mxu0
        %v2597 = vadd.f32 %v2524, %v2596
        %v2598 = vpop.f32.mrf.mxu0
        %v2599 = vadd.f32 %v2526, %v2598
        %v2600 = vpop.f32.mrf.mxu0
        %v2601 = vadd.f32 %v2528, %v2600
        %2602 = vmatprep.mubr.bf16.mxu0 0
        %2603 = vmatmul.mubr.bf16.gmra.mxu0 %v410
        %v2604 = vpop.f32.mrf.mxu0
        %v2605 = vadd.f32 %v2532, %v2604
        %v2606 = vpop.f32.mrf.mxu0
        %v2607 = vadd.f32 %v2534, %v2606
        %v2608 = vpop.f32.mrf.mxu0
        %v2609 = vadd.f32 %v2536, %v2608
        %v2610 = vpop.f32.mrf.mxu0
        %v2611 = vadd.f32 %v2538, %v2610
        %2612 = vmatprep.mubr.bf16.mxu0 0
        %2613 = vmatmul.mubr.bf16.gmra.mxu0 %v413
        %v2614 = vpop.f32.mrf.mxu0
        %v2615 = vadd.f32 %v2542, %v2614
        %v2616 = vpop.f32.mrf.mxu0
        %v2617 = vadd.f32 %v2544, %v2616
        %v2618 = vpop.f32.mrf.mxu0
        %v2619 = vadd.f32 %v2546, %v2618
        %v2620 = vpop.f32.mrf.mxu0
        %v2621 = vadd.f32 %v2548, %v2620
        %2622 = vmatprep.mubr.bf16.mxu0 0
        %2623 = vmatmul.mubr.bf16.gmra.mxu0 %v416
        %v2624 = vpop.f32.mrf.mxu0
        %v2625 = vadd.f32 %v2552, %v2624
        %v2626 = vpop.f32.mrf.mxu0
        %v2627 = vadd.f32 %v2554, %v2626
        %v2628 = vpop.f32.mrf.mxu0
        %v2629 = vadd.f32 %v2556, %v2628
        %v2630 = vpop.f32.mrf.mxu0
        %v2631 = vadd.f32 %v2558, %v2630
        %2632 = vdwg.mxu0
        %2633 = vmatprep.subr.bf16.mxu0 0
        %2634 = vmatpush1.bf16.msra.mxu0 %v2366
        %2635 = vmatprep.subr.bf16.mxu0 0
        %2636 = vmatpush1.bf16.msra.mxu0 %v2363
        %2637 = vmatprep.subr.bf16.mxu0 0
        %2638 = vmatpush1.bf16.msra.mxu0 %v2360
        %2639 = vmatprep.subr.bf16.mxu0 0
        %2640 = vmatpush1.bf16.msra.mxu0 %v2357
        %2641 = vmatprep.subr.bf16.mxu0 0
        %2642 = vmatpush1.bf16.msra.mxu0 %v2354
        %2643 = vmatprep.subr.bf16.mxu0 0
        %2644 = vmatpush1.bf16.msra.mxu0 %v2351
        %2645 = vmatprep.subr.bf16.mxu0 0
        %2646 = vmatpush1.bf16.msra.mxu0 %v2348
        %2647 = vmatprep.subr.bf16.mxu0 0
        %2648 = vmatpush1.bf16.msra.mxu0 %v2345
        %2649 = vmatprep.subr.bf16.mxu0 0
        %2650 = vmatpush2.bf16.msra.mxu0 %v2390
        %2651 = vmatprep.subr.bf16.mxu0 0
        %2652 = vmatpush2.bf16.msra.mxu0 %v2387
        %2653 = vmatprep.subr.bf16.mxu0 0
        %2654 = vmatpush2.bf16.msra.mxu0 %v2384
        %2655 = vmatprep.subr.bf16.mxu0 0
        %2656 = vmatpush2.bf16.msra.mxu0 %v2381
        %2657 = vmatprep.subr.bf16.mxu0 0
        %2658 = vmatpush2.bf16.msra.mxu0 %v2378
        %2659 = vmatprep.subr.bf16.mxu0 0
        %2660 = vmatpush2.bf16.msra.mxu0 %v2375
        %2661 = vmatprep.subr.bf16.mxu0 0
        %2662 = vmatpush2.bf16.msra.mxu0 %v2372
        %2663 = vmatprep.subr.bf16.mxu0 0
        %2664 = vmatpush2.bf16.msra.mxu0 %v2369
        %2665 = vmatprep.mubr.bf16.mxu0 %v406
        %2666 = vmatmul.mubr.bf16.gmra.mxu0 %v405
        %v2667 = vpop.f32.mrf.mxu0
        %v2668 = vadd.f32 0.0, %v2667
        %v2669 = vpop.f32.mrf.mxu0
        %v2670 = vpop.f32.mrf.mxu0
        %v2671 = vadd.f32 0.0, %v2670
        %v2672 = vpop.f32.mrf.mxu0
        %2673 = vmatprep.mubr.bf16.mxu0 %v409
        %2674 = vmatmul.mubr.bf16.gmra.mxu0 %v408
        %v2675 = vpop.f32.mrf.mxu0
        %v2676 = vadd.f32 0.0, %v2675
        %v2677 = vpop.f32.mrf.mxu0
        %v2678 = vpop.f32.mrf.mxu0
        %v2679 = vadd.f32 0.0, %v2678
        %v2680 = vpop.f32.mrf.mxu0
        %2681 = vmatprep.mubr.bf16.mxu0 %v412
        %2682 = vmatmul.mubr.bf16.gmra.mxu0 %v411
        %v2683 = vpop.f32.mrf.mxu0
        %v2684 = vadd.f32 0.0, %v2683
        %v2685 = vpop.f32.mrf.mxu0
        %v2686 = vpop.f32.mrf.mxu0
        %v2687 = vadd.f32 0.0, %v2686
        %v2688 = vpop.f32.mrf.mxu0
        %2689 = vmatprep.mubr.bf16.mxu0 %v415
        %2690 = vmatmul.mubr.bf16.gmra.mxu0 %v414
        %v2691 = vpop.f32.mrf.mxu0
        %v2692 = vadd.f32 0.0, %v2691
        %v2693 = vpop.f32.mrf.mxu0
        %v2694 = vpop.f32.mrf.mxu0
        %v2695 = vadd.f32 0.0, %v2694
        %v2696 = vpop.f32.mrf.mxu0
        %2697 = vdwg.mxu0
        %2698 = vmatprep.subr.bf16.mxu0 0
        %2699 = vmatpush1.bf16.msra.mxu0 %v2414
        %2700 = vmatprep.subr.bf16.mxu0 0
        %2701 = vmatpush1.bf16.msra.mxu0 %v2411
        %2702 = vmatprep.subr.bf16.mxu0 0
        %2703 = vmatpush1.bf16.msra.mxu0 %v2408
        %2704 = vmatprep.subr.bf16.mxu0 0
        %2705 = vmatpush1.bf16.msra.mxu0 %v2405
        %2706 = vmatprep.subr.bf16.mxu0 0
        %2707 = vmatpush1.bf16.msra.mxu0 %v2402
        %2708 = vmatprep.subr.bf16.mxu0 0
        %2709 = vmatpush1.bf16.msra.mxu0 %v2399
        %2710 = vmatprep.subr.bf16.mxu0 0
        %2711 = vmatpush1.bf16.msra.mxu0 %v2396
        %2712 = vmatprep.subr.bf16.mxu0 0
        %2713 = vmatpush1.bf16.msra.mxu0 %v2393
        %2714 = vmatprep.subr.bf16.mxu0 0
        %2715 = vmatpush2.bf16.msra.mxu0 0
        %2716 = vmatprep.subr.bf16.mxu0 0
        %2717 = vmatpush2.bf16.msra.mxu0 0
        %2718 = vmatprep.subr.bf16.mxu0 0
        %2719 = vmatpush2.bf16.msra.mxu0 0
        %2720 = vmatprep.subr.bf16.mxu0 0
        %2721 = vmatpush2.bf16.msra.mxu0 0
        %2722 = vmatprep.subr.bf16.mxu0 0
        %2723 = vmatpush2.bf16.msra.mxu0 0
        %2724 = vmatprep.subr.bf16.mxu0 0
        %2725 = vmatpush2.bf16.msra.mxu0 0
        %2726 = vmatprep.subr.bf16.mxu0 0
        %2727 = vmatpush2.bf16.msra.mxu0 0
        %2728 = vmatprep.subr.bf16.mxu0 0
        %2729 = vmatpush2.bf16.msra.mxu0 0
        %2730 = vmatprep.mubr.bf16.mxu0 0
        %2731 = vmatmul.mubr.bf16.gmra.mxu0 %v407
        %v2732 = vpop.f32.mrf.mxu0
        %v2733 = vadd.f32 %v2668, %v2732
        %v2734 = vpop.f32.mrf.mxu0
        %v2735 = vpop.f32.mrf.mxu0
        %v2736 = vadd.f32 %v2671, %v2735
        %v2737 = vpop.f32.mrf.mxu0
        %2738 = vmatprep.mubr.bf16.mxu0 0
        %2739 = vmatmul.mubr.bf16.gmra.mxu0 %v410
        %v2740 = vpop.f32.mrf.mxu0
        %v2741 = vadd.f32 %v2676, %v2740
        %v2742 = vpop.f32.mrf.mxu0
        %v2743 = vpop.f32.mrf.mxu0
        %v2744 = vadd.f32 %v2679, %v2743
        %v2745 = vpop.f32.mrf.mxu0
        %2746 = vmatprep.mubr.bf16.mxu0 0
        %2747 = vmatmul.mubr.bf16.gmra.mxu0 %v413
        %v2748 = vpop.f32.mrf.mxu0
        %v2749 = vadd.f32 %v2684, %v2748
        %v2750 = vpop.f32.mrf.mxu0
        %v2751 = vpop.f32.mrf.mxu0
        %v2752 = vadd.f32 %v2687, %v2751
        %v2753 = vpop.f32.mrf.mxu0
        %2754 = vmatprep.mubr.bf16.mxu0 0
        %2755 = vmatmul.mubr.bf16.gmra.mxu0 %v416
        %v2756 = vpop.f32.mrf.mxu0
        %v2757 = vadd.f32 %v2692, %v2756
        %v2758 = vpop.f32.mrf.mxu0
        %v2759 = vpop.f32.mrf.mxu0
        %v2760 = vadd.f32 %v2695, %v2759
        %v2761 = vpop.f32.mrf.mxu0
        %2762 = vdwg.mxu0
        %v2763 = vpack.c.bf16 %v2599, %v2595
        %v2764 = vpack.c.bf16 %v2601, %v2597
        %v2765 = vpack.c.bf16 %v2736, %v2733
        %v2766 = vpack.c.bf16 %v2609, %v2605
        %v2767 = vpack.c.bf16 %v2611, %v2607
        %v2768 = vpack.c.bf16 %v2744, %v2741
        %v2769 = vpack.c.bf16 %v2619, %v2615
        %v2770 = vpack.c.bf16 %v2621, %v2617
        %v2771 = vpack.c.bf16 %v2752, %v2749
        %v2772 = vpack.c.bf16 %v2629, %v2625
        %v2773 = vpack.c.bf16 %v2631, %v2627
        %v2774 = vpack.c.bf16 %v2760, %v2757
        %v2775 = vlaneseq
        %v2776 = vshrl.u32 %v2775, 7
        %v2777 = vadd.s32 %v2776, 8
        %v2778 = vadd.s32 %v2776, 16
        %v2779 = vadd.s32 %v2776, 24
        %v2780 = vadd.s32 %v2776, 32
        %v2781 = vadd.s32 %v2776, 40
        %v2782 = vadd.s32 %v2776, 48
        %v2783 = vadd.s32 %v2776, 56
        %v2784 = vstv %s303
        %v2785 = vadd.s32 %v2776, %v2784
        %v2786 = vadd.s32 %v2777, %v2784
        %v2787 = vadd.s32 %v2778, %v2784
        %v2788 = vadd.s32 %v2779, %v2784
        %v2789 = vadd.s32 %v2780, %v2784
        %v2790 = vadd.s32 %v2781, %v2784
        %v2791 = vadd.s32 %v2782, %v2784
        %v2792 = vadd.s32 %v2783, %v2784
        %v2793 = vlaneseq
        %v2794 = vand.u32 %v2793, 127
        %vm2795 = vcmp.le.s32.totalorder %v2794, %v2785
        %vm2796 = vcmp.le.s32.totalorder %v2794, %v2786
        %vm2797 = vcmp.le.s32.totalorder %v2794, %v2787
        %vm2798 = vcmp.le.s32.totalorder %v2794, %v2788
        %vm2799 = vcmp.le.s32.totalorder %v2794, %v2789
        %vm2800 = vcmp.le.s32.totalorder %v2794, %v2790
        %vm2801 = vcmp.le.s32.totalorder %v2794, %v2791
        %vm2802 = vcmp.le.s32.totalorder %v2794, %v2792
        %2803 = vst [vmem:[#allocation2] sm:$0xff] 0.0
        %2804 = vst [vmem:[#allocation2 + $0x8] sm:$0xff] 0.0
        %2805 = vst [vmem:[#allocation2 + $0x10] sm:$0xff] 0.0
        %2806 = vst [vmem:[#allocation2 + $0x18] sm:$0xff] 0.0
        %2807 = vst [vmem:[#allocation2 + $0x20] sm:$0xff] 0.0
        %2808 = vst [vmem:[#allocation2 + $0x28] sm:$0xff] 0.0
        %2809 = vst [vmem:[#allocation2 + $0x30] sm:$0xff] 0.0
        %2810 = vst [vmem:[#allocation2 + $0x38] sm:$0xff] 0.0
        %2811 = vst [vmem:[#allocation2 + $0x40] sm:$0xff] 0.0
        %2812 = vst [vmem:[#allocation2 + $0x48] sm:$0xff] 0.0
        %2813 = vst [vmem:[#allocation2 + $0x50] sm:$0xff] 0.0
        %2814 = vst [vmem:[#allocation2 + $0x58] sm:$0xff] 0.0
        %2815 = vst [vmem:[#allocation2 + $0x60] sm:$0xff] 0.0
        %2816 = vst [vmem:[#allocation2 + $0x68] sm:$0xff] 0.0
        %2817 = vst [vmem:[#allocation2 + $0x70] sm:$0xff] 0.0
        %2818 = vst [vmem:[#allocation2 + $0x78] sm:$0xff] 0.0
        %2819 = vst [vmem:[#allocation2 + $0x80] sm:$0xff] 0.0
        %2820 = vst [vmem:[#allocation2 + $0x88] sm:$0xff] 0.0
        %2821 = vst [vmem:[#allocation2 + $0x90] sm:$0xff] 0.0
        %2822 = vst [vmem:[#allocation2 + $0x98] sm:$0xff] 0.0
        %2823 = vst [vmem:[#allocation2 + $0xa0] sm:$0xff] 0.0
        %2824 = vst [vmem:[#allocation2 + $0xa8] sm:$0xff] 0.0
        %2825 = vst [vmem:[#allocation2 + $0xb0] sm:$0xff] 0.0
        %2826 = vst [vmem:[#allocation2 + $0xb8] sm:$0xff] 0.0
        %vm2827 = vcmask 523264
        %v2829 = vsel %vm2827, %v2763, 0
        %v2832 = vsel %vm2827, %v2766, 0
        %v2835 = vsel %vm2827, %v2769, 0
        %v2838 = vsel %vm2827, %v2772, 0
        %v2841 = vsel %vm2827, %v1959, 0
        %v2844 = vsel %vm2827, %v1965, 0
        %v2847 = vsel %vm2827, %v1971, 0
        %v2850 = vsel %vm2827, %v1977, 0
        %v2853 = vsel %vm2827, %v1983, 0
        %v2856 = vsel %vm2827, %v1989, 0
        %v2859 = vsel %vm2827, %v1995, 0
        %v2862 = vsel %vm2827, %v2001, 0
        %2864 = vmatprep.subr.bf16.mxu0 0
        %2865 = vmatpush1.bf16.xpose.msra.mxu0 %v2862
        %2866 = vmatprep.subr.bf16.mxu0 0
        %2867 = vmatpush1.bf16.xpose.msra.mxu0 %v2859
        %2868 = vmatprep.subr.bf16.mxu0 0
        %2869 = vmatpush1.bf16.xpose.msra.mxu0 %v2856
        %2870 = vmatprep.subr.bf16.mxu0 0
        %2871 = vmatpush1.bf16.xpose.msra.mxu0 %v2853
        %2872 = vmatprep.subr.bf16.mxu0 0
        %2873 = vmatpush1.bf16.xpose.msra.mxu0 %v2850
        %2874 = vmatprep.subr.bf16.mxu0 0
        %2875 = vmatpush1.bf16.xpose.msra.mxu0 %v2847
        %2876 = vmatprep.subr.bf16.mxu0 0
        %2877 = vmatpush1.bf16.xpose.msra.mxu0 %v2844
        %2878 = vmatprep.subr.bf16.mxu0 0
        %2879 = vmatpush1.bf16.xpose.msra.mxu0 %v2841
        %2880 = vmatprep.subr.bf16.mxu0 0
        %2881 = vmatpush2.bf16.xpose.msra.mxu0 0
        %2882 = vmatprep.subr.bf16.mxu0 0
        %2883 = vmatpush2.bf16.xpose.msra.mxu0 0
        %2884 = vmatprep.subr.bf16.mxu0 0
        %2885 = vmatpush2.bf16.xpose.msra.mxu0 0
        %2886 = vmatprep.subr.bf16.mxu0 0
        %2887 = vmatpush2.bf16.xpose.msra.mxu0 0
        %2888 = vmatprep.subr.bf16.mxu0 0
        %2889 = vmatpush2.bf16.xpose.msra.mxu0 0
        %2890 = vmatprep.subr.bf16.mxu0 0
        %2891 = vmatpush2.bf16.xpose.msra.mxu0 0
        %2892 = vmatprep.subr.bf16.mxu0 0
        %2893 = vmatpush2.bf16.xpose.msra.mxu0 0
        %2894 = vmatprep.subr.bf16.mxu0 0
        %2895 = vmatpush2.bf16.xpose.msra.mxu0 0
        %2896 = vmatprep.mubr.bf16.mxu0 0
        %2897 = vmatmul.mubr.bf16.gmra.mxu0 %v2829
        %v2898 = vpop.f32.mrf.mxu0
        %v2899 = vadd.f32 0.0, %v2898
        %v2900 = vpop.f32.mrf.mxu0
        %v2901 = vpop.f32.mrf.mxu0
        %v2902 = vadd.f32 0.0, %v2901
        %v2903 = vpop.f32.mrf.mxu0
        %2904 = vmatprep.mubr.bf16.mxu0 0
        %2905 = vmatmul.mubr.bf16.gmra.mxu0 %v2832
        %v2906 = vpop.f32.mrf.mxu0
        %v2907 = vadd.f32 0.0, %v2906
        %v2908 = vpop.f32.mrf.mxu0
        %v2909 = vpop.f32.mrf.mxu0
        %v2910 = vadd.f32 0.0, %v2909
        %v2911 = vpop.f32.mrf.mxu0
        %2912 = vmatprep.mubr.bf16.mxu0 0
        %2913 = vmatmul.mubr.bf16.gmra.mxu0 %v2835
        %v2914 = vpop.f32.mrf.mxu0
        %v2915 = vadd.f32 0.0, %v2914
        %v2916 = vpop.f32.mrf.mxu0
        %v2917 = vpop.f32.mrf.mxu0
        %v2918 = vadd.f32 0.0, %v2917
        %v2919 = vpop.f32.mrf.mxu0
        %2920 = vmatprep.mubr.bf16.mxu0 0
        %2921 = vmatmul.mubr.bf16.gmra.mxu0 %v2838
        %v2922 = vpop.f32.mrf.mxu0
        %v2923 = vadd.f32 0.0, %v2922
        %v2924 = vpop.f32.mrf.mxu0
        %v2925 = vpop.f32.mrf.mxu0
        %v2926 = vadd.f32 0.0, %v2925
        %v2927 = vpop.f32.mrf.mxu0
        %2928 = vdwg.mxu0
        %v2929 = vsel %vm2795, %v2899, -1e+30
        %v2930 = vsel %vm2796, %v2902, -1e+30
        %v2931 = vsel %vm2797, %v2907, -1e+30
        %v2932 = vsel %vm2798, %v2910, -1e+30
        %v2933 = vsel %vm2799, %v2915, -1e+30
        %v2934 = vsel %vm2800, %v2918, -1e+30
        %v2935 = vsel %vm2801, %v2923, -1e+30
        %v2936 = vsel %vm2802, %v2926, -1e+30
        %2937 = vmax.xlane.f32.xlu0 %v2929
        %v2938 = vpop.xlane.xlu0 %2937
        %2939 = vmax.xlane.f32.xlu0 %v2930
        %v2940 = vpop.xlane.xlu0 %2939
        %2941 = vmax.xlane.f32.xlu0 %v2931
        %v2942 = vpop.xlane.xlu0 %2941
        %2943 = vmax.xlane.f32.xlu0 %v2932
        %v2944 = vpop.xlane.xlu0 %2943
        %2945 = vmax.xlane.f32.xlu0 %v2933
        %v2946 = vpop.xlane.xlu0 %2945
        %2947 = vmax.xlane.f32.xlu0 %v2934
        %v2948 = vpop.xlane.xlu0 %2947
        %2949 = vmax.xlane.f32.xlu0 %v2935
        %v2950 = vpop.xlane.xlu0 %2949
        %2951 = vmax.xlane.f32.xlu0 %v2936
        %v2952 = vpop.xlane.xlu0 %2951
        %v2953 = vsub.f32 %v2929, %v2938
        %v2954 = vsub.f32 %v2930, %v2940
        %v2955 = vsub.f32 %v2931, %v2942
        %v2956 = vsub.f32 %v2932, %v2944
        %v2957 = vsub.f32 %v2933, %v2946
        %v2958 = vsub.f32 %v2934, %v2948
        %v2959 = vsub.f32 %v2935, %v2950
        %v2960 = vsub.f32 %v2936, %v2952
        %v2961 = vmul.f32 %v2953, 1.442695
        %v2962 = vpow.pop %v2961
        %v2963 = vmul.f32 %v2954, 1.442695
        %v2964 = vpow.pop %v2963
        %v2965 = vmul.f32 %v2955, 1.442695
        %v2966 = vpow.pop %v2965
        %v2967 = vmul.f32 %v2956, 1.442695
        %v2968 = vpow.pop %v2967
        %v2969 = vmul.f32 %v2957, 1.442695
        %v2970 = vpow.pop %v2969
        %v2971 = vmul.f32 %v2958, 1.442695
        %v2972 = vpow.pop %v2971
        %v2973 = vmul.f32 %v2959, 1.442695
        %v2974 = vpow.pop %v2973
        %v2975 = vmul.f32 %v2960, 1.442695
        %v2976 = vpow.pop %v2975
        %2977 = vadd.xlane.f32.xlu0 %v2962
        %v2978 = vpop.xlane.xlu0 %2977
        %2979 = vadd.xlane.f32.xlu0 %v2964
        %v2980 = vpop.xlane.xlu0 %2979
        %2981 = vadd.xlane.f32.xlu0 %v2966
        %v2982 = vpop.xlane.xlu0 %2981
        %2983 = vadd.xlane.f32.xlu0 %v2968
        %v2984 = vpop.xlane.xlu0 %2983
        %2985 = vadd.xlane.f32.xlu0 %v2970
        %v2986 = vpop.xlane.xlu0 %2985
        %2987 = vadd.xlane.f32.xlu0 %v2972
        %v2988 = vpop.xlane.xlu0 %2987
        %2989 = vadd.xlane.f32.xlu0 %v2974
        %v2990 = vpop.xlane.xlu0 %2989
        %2991 = vadd.xlane.f32.xlu0 %v2976
        %v2992 = vpop.xlane.xlu0 %2991
        %v2993 = vrcp.pop %v2978
        %v2994 = vrcp.pop %v2980
        %v2995 = vrcp.pop %v2982
        %v2996 = vrcp.pop %v2984
        %v2997 = vrcp.pop %v2986
        %v2998 = vrcp.pop %v2988
        %v2999 = vrcp.pop %v2990
        %v3000 = vrcp.pop %v2992
        %v3001 = vmul.f32 %v2962, %v2993
        %v3002 = vmul.f32 %v2964, %v2994
        %v3003 = vmul.f32 %v2966, %v2995
        %v3004 = vmul.f32 %v2968, %v2996
        %v3005 = vmul.f32 %v2970, %v2997
        %v3006 = vmul.f32 %v2972, %v2998
        %v3007 = vmul.f32 %v2974, %v2999
        %v3008 = vmul.f32 %v2976, %v3000
        %v3009 = vpack.c.bf16 %v3002, %v3001
        %v3010 = vpack.c.bf16 %v3004, %v3003
        %v3011 = vpack.c.bf16 %v3006, %v3005
        %v3012 = vpack.c.bf16 %v3008, %v3007
        %3013 = vmatprep.subr.bf16.mxu0 0
        %3014 = vmatpush1.bf16.msra.mxu0 %v2004
        %3015 = vmatprep.subr.bf16.mxu0 0
        %3016 = vmatpush1.bf16.msra.mxu0 %v1998
        %3017 = vmatprep.subr.bf16.mxu0 0
        %3018 = vmatpush1.bf16.msra.mxu0 %v1992
        %3019 = vmatprep.subr.bf16.mxu0 0
        %3020 = vmatpush1.bf16.msra.mxu0 %v1986
        %3021 = vmatprep.subr.bf16.mxu0 0
        %3022 = vmatpush1.bf16.msra.mxu0 %v1980
        %3023 = vmatprep.subr.bf16.mxu0 0
        %3024 = vmatpush1.bf16.msra.mxu0 %v1974
        %3025 = vmatprep.subr.bf16.mxu0 0
        %3026 = vmatpush1.bf16.msra.mxu0 %v1968
        %3027 = vmatprep.subr.bf16.mxu0 0
        %3028 = vmatpush1.bf16.msra.mxu0 %v1962
        %3029 = vmatprep.subr.bf16.mxu0 0
        %3030 = vmatpush2.bf16.msra.mxu0 0
        %3031 = vmatprep.subr.bf16.mxu0 0
        %3032 = vmatpush2.bf16.msra.mxu0 0
        %3033 = vmatprep.subr.bf16.mxu0 0
        %3034 = vmatpush2.bf16.msra.mxu0 0
        %3035 = vmatprep.subr.bf16.mxu0 0
        %3036 = vmatpush2.bf16.msra.mxu0 0
        %3037 = vmatprep.subr.bf16.mxu0 0
        %3038 = vmatpush2.bf16.msra.mxu0 0
        %3039 = vmatprep.subr.bf16.mxu0 0
        %3040 = vmatpush2.bf16.msra.mxu0 0
        %3041 = vmatprep.subr.bf16.mxu0 0
        %3042 = vmatpush2.bf16.msra.mxu0 0
        %3043 = vmatprep.subr.bf16.mxu0 0
        %3044 = vmatpush2.bf16.msra.mxu0 0
        %3045 = vmatprep.mubr.bf16.mxu0 0
        %3046 = vmatmul.mubr.bf16.gmra.mxu0 %v3009
        %v3047 = vpop.f32.mrf.mxu0
        %v3048 = vadd.f32 0.0, %v3047
        %v3049 = vpop.f32.mrf.mxu0
        %v3050 = vpop.f32.mrf.mxu0
        %v3051 = vadd.f32 0.0, %v3050
        %v3052 = vpop.f32.mrf.mxu0
        %3053 = vmatprep.mubr.bf16.mxu0 0
        %3054 = vmatmul.mubr.bf16.gmra.mxu0 %v3010
        %v3055 = vpop.f32.mrf.mxu0
        %v3056 = vadd.f32 0.0, %v3055
        %v3057 = vpop.f32.mrf.mxu0
        %v3058 = vpop.f32.mrf.mxu0
        %v3059 = vadd.f32 0.0, %v3058
        %v3060 = vpop.f32.mrf.mxu0
        %3061 = vmatprep.mubr.bf16.mxu0 0
        %3062 = vmatmul.mubr.bf16.gmra.mxu0 %v3011
        %v3063 = vpop.f32.mrf.mxu0
        %v3064 = vadd.f32 0.0, %v3063
        %v3065 = vpop.f32.mrf.mxu0
        %v3066 = vpop.f32.mrf.mxu0
        %v3067 = vadd.f32 0.0, %v3066
        %v3068 = vpop.f32.mrf.mxu0
        %3069 = vmatprep.mubr.bf16.mxu0 0
        %3070 = vmatmul.mubr.bf16.gmra.mxu0 %v3012
        %v3071 = vpop.f32.mrf.mxu0
        %v3072 = vadd.f32 0.0, %v3071
        %v3073 = vpop.f32.mrf.mxu0
        %v3074 = vpop.f32.mrf.mxu0
        %v3075 = vadd.f32 0.0, %v3074
        %v3076 = vpop.f32.mrf.mxu0
        %3077 = vdwg.mxu0
        %v3078 = vld [vmem:[#allocation2] sm:$0xff]
        %v3079 = vld [vmem:[#allocation2 + $0x8] sm:$0xff]
        %v3080 = vld [vmem:[#allocation2 + $0x10] sm:$0xff]
        %v3081 = vld [vmem:[#allocation2 + $0x18] sm:$0xff]
        %v3082 = vld [vmem:[#allocation2 + $0x20] sm:$0xff]
        %v3083 = vld [vmem:[#allocation2 + $0x28] sm:$0xff]
        %v3084 = vld [vmem:[#allocation2 + $0x30] sm:$0xff]
        %v3085 = vld [vmem:[#allocation2 + $0x38] sm:$0xff]
        %v3086 = vld [vmem:[#allocation2 + $0x40] sm:$0xff]
        %v3087 = vld [vmem:[#allocation2 + $0x48] sm:$0xff]
        %v3088 = vld [vmem:[#allocation2 + $0x50] sm:$0xff]
        %v3089 = vld [vmem:[#allocation2 + $0x58] sm:$0xff]
        %v3090 = vld [vmem:[#allocation2 + $0x60] sm:$0xff]
        %v3091 = vld [vmem:[#allocation2 + $0x68] sm:$0xff]
        %v3092 = vld [vmem:[#allocation2 + $0x70] sm:$0xff]
        %v3093 = vld [vmem:[#allocation2 + $0x78] sm:$0xff]
        %v3094 = vld [vmem:[#allocation2 + $0x80] sm:$0xff]
        %v3095 = vld [vmem:[#allocation2 + $0x88] sm:$0xff]
        %v3096 = vld [vmem:[#allocation2 + $0x90] sm:$0xff]
        %v3097 = vld [vmem:[#allocation2 + $0x98] sm:$0xff]
        %v3098 = vld [vmem:[#allocation2 + $0xa0] sm:$0xff]
        %v3099 = vld [vmem:[#allocation2 + $0xa8] sm:$0xff]
        %v3100 = vld [vmem:[#allocation2 + $0xb0] sm:$0xff]
        %v3101 = vld [vmem:[#allocation2 + $0xb8] sm:$0xff]
        %v3102 = vpack.c.bf16 %v3051, %v3048
        %v3103 = vpack.c.bf16 %v3059, %v3056
        %v3104 = vpack.c.bf16 %v3067, %v3064
        %v3105 = vpack.c.bf16 %v3075, %v3072
        %v3106 = vld [vmem:[#allocation9] sm:$0xff]
        %v3107 = vld [vmem:[#allocation9 + $0x8] sm:$0xf]
        %v3108 = vld [vmem:[#allocation9 + $0xc] sm:$0xff]
        %v3109 = vld [vmem:[#allocation9 + $0x14] sm:$0xf]
        %v3110 = vld [vmem:[#allocation9 + $0x18] sm:$0xff]
        %v3111 = vld [vmem:[#allocation9 + $0x20] sm:$0xf]
        %v3112 = vld [vmem:[#allocation9 + $0x24] sm:$0xff]
        %v3113 = vld [vmem:[#allocation9 + $0x2c] sm:$0xf]
        %v3114 = vld [vmem:[#allocation9 + $0x30] sm:$0xff]
        %v3115 = vld [vmem:[#allocation9 + $0x38] sm:$0xf]
        %v3116 = vld [vmem:[#allocation9 + $0x3c] sm:$0xff]
        %v3117 = vld [vmem:[#allocation9 + $0x44] sm:$0xf]
        %v3118 = vld [vmem:[#allocation9 + $0x48] sm:$0xff]
        %v3119 = vld [vmem:[#allocation9 + $0x50] sm:$0xf]
        %v3120 = vld [vmem:[#allocation9 + $0x54] sm:$0xff]
        %v3121 = vld [vmem:[#allocation9 + $0x5c] sm:$0xf]
        %v3138 = vunpack.c.l.b16 %v3106
        %v3139 = vunpack.c.h.b16 %v3106
        %v3140 = vunpack.c.l.b16 %v3107
        %v3141 = vunpack.c.l.b16 %v3108
        %v3142 = vunpack.c.h.b16 %v3108
        %v3143 = vunpack.c.l.b16 %v3109
        %v3144 = vunpack.c.l.b16 %v3110
        %v3145 = vunpack.c.h.b16 %v3110
        %v3146 = vunpack.c.l.b16 %v3111
        %v3147 = vunpack.c.l.b16 %v3112
        %v3148 = vunpack.c.h.b16 %v3112
        %v3149 = vunpack.c.l.b16 %v3113
        %v3150 = vunpack.c.l.b16 %v3114
        %v3151 = vunpack.c.h.b16 %v3114
        %v3152 = vunpack.c.l.b16 %v3115
        %v3153 = vunpack.c.l.b16 %v3116
        %v3154 = vunpack.c.h.b16 %v3116
        %v3155 = vunpack.c.l.b16 %v3117
        %v3156 = vunpack.c.l.b16 %v3118
        %v3157 = vunpack.c.h.b16 %v3118
        %v3158 = vunpack.c.l.b16 %v3119
        %v3159 = vunpack.c.l.b16 %v3120
        %v3160 = vunpack.c.h.b16 %v3120
        %v3161 = vunpack.c.l.b16 %v3121
        %v3162 = vpack.c.b16 %v3141, %v3138
        %v3163 = vpack.c.b16 %v3142, %v3139
        %v3164 = vpack.c.b16 %v3143, %v3140
        %v3165 = vpack.c.b16 %v3147, %v3144
        %v3166 = vpack.c.b16 %v3148, %v3145
        %v3167 = vpack.c.b16 %v3149, %v3146
        %v3168 = vpack.c.b16 %v3153, %v3150
        %v3169 = vpack.c.b16 %v3154, %v3151
        %v3170 = vpack.c.b16 %v3155, %v3152
        %v3171 = vpack.c.b16 %v3159, %v3156
        %v3172 = vpack.c.b16 %v3160, %v3157
        %v3173 = vpack.c.b16 %v3161, %v3158
        %v3187 = vsel %vm2827, %v3102, 0
        %v3190 = vsel %vm2827, %v3103, 0
        %v3193 = vsel %vm2827, %v3104, 0
        %v3196 = vsel %vm2827, %v3105, 0
        %3198 = vmatprep.subr.bf16.mxu0 0
        %3199 = vmatpush1.bf16.msra.mxu0 0
        %3200 = vmatprep.subr.bf16.mxu0 0
        %3201 = vmatpush1.bf16.msra.mxu0 0
        %3202 = vmatprep.subr.bf16.mxu0 0
        %3203 = vmatpush1.bf16.msra.mxu0 0
        %3204 = vmatprep.subr.bf16.mxu0 0
        %3205 = vmatpush1.bf16.msra.mxu0 0
        %3206 = vmatprep.subr.bf16.mxu0 %v3172
        %3207 = vmatpush1.bf16.msra.mxu0 %v3171
        %3208 = vmatprep.subr.bf16.mxu0 %v3169
        %3209 = vmatpush1.bf16.msra.mxu0 %v3168
        %3210 = vmatprep.subr.bf16.mxu0 %v3166
        %3211 = vmatpush1.bf16.msra.mxu0 %v3165
        %3212 = vmatprep.subr.bf16.mxu0 %v3163
        %3213 = vmatpush1.bf16.msra.mxu0 %v3162
        %3214 = vmatprep.subr.bf16.mxu0 0
        %3215 = vmatpush2.bf16.msra.mxu0 0
        %3216 = vmatprep.subr.bf16.mxu0 0
        %3217 = vmatpush2.bf16.msra.mxu0 0
        %3218 = vmatprep.subr.bf16.mxu0 0
        %3219 = vmatpush2.bf16.msra.mxu0 0
        %3220 = vmatprep.subr.bf16.mxu0 0
        %3221 = vmatpush2.bf16.msra.mxu0 0
        %3222 = vmatprep.subr.bf16.mxu0 0
        %3223 = vmatpush2.bf16.msra.mxu0 0
        %3224 = vmatprep.subr.bf16.mxu0 0
        %3225 = vmatpush2.bf16.msra.mxu0 0
        %3226 = vmatprep.subr.bf16.mxu0 0
        %3227 = vmatpush2.bf16.msra.mxu0 0
        %3228 = vmatprep.subr.bf16.mxu0 0
        %3229 = vmatpush2.bf16.msra.mxu0 0
        %3230 = vmatprep.mubr.bf16.mxu0 0
        %3231 = vmatmul.mubr.bf16.gmra.mxu0 %v3187
        %v3232 = vpop.f32.mrf.mxu0
        %v3233 = vadd.f32 0.0, %v3232
        %v3234 = vpop.f32.mrf.mxu0
        %v3235 = vadd.f32 0.0, %v3234
        %v3236 = vpop.f32.mrf.mxu0
        %v3237 = vadd.f32 0.0, %v3236
        %v3238 = vpop.f32.mrf.mxu0
        %v3239 = vadd.f32 0.0, %v3238
        %3240 = vmatprep.mubr.bf16.mxu0 0
        %3241 = vmatmul.mubr.bf16.gmra.mxu0 %v3190
        %v3242 = vpop.f32.mrf.mxu0
        %v3243 = vadd.f32 0.0, %v3242
        %v3244 = vpop.f32.mrf.mxu0
        %v3245 = vadd.f32 0.0, %v3244
        %v3246 = vpop.f32.mrf.mxu0
        %v3247 = vadd.f32 0.0, %v3246
        %v3248 = vpop.f32.mrf.mxu0
        %v3249 = vadd.f32 0.0, %v3248
        %3250 = vmatprep.mubr.bf16.mxu0 0
        %3251 = vmatmul.mubr.bf16.gmra.mxu0 %v3193
        %v3252 = vpop.f32.mrf.mxu0
        %v3253 = vadd.f32 0.0, %v3252
        %v3254 = vpop.f32.mrf.mxu0
        %v3255 = vadd.f32 0.0, %v3254
        %v3256 = vpop.f32.mrf.mxu0
        %v3257 = vadd.f32 0.0, %v3256
        %v3258 = vpop.f32.mrf.mxu0
        %v3259 = vadd.f32 0.0, %v3258
        %3260 = vmatprep.mubr.bf16.mxu0 0
        %3261 = vmatmul.mubr.bf16.gmra.mxu0 %v3196
        %v3262 = vpop.f32.mrf.mxu0
        %v3263 = vadd.f32 0.0, %v3262
        %v3264 = vpop.f32.mrf.mxu0
        %v3265 = vadd.f32 0.0, %v3264
        %v3266 = vpop.f32.mrf.mxu0
        %v3267 = vadd.f32 0.0, %v3266
        %v3268 = vpop.f32.mrf.mxu0
        %v3269 = vadd.f32 0.0, %v3268
        %3270 = vdwg.mxu0
        %3271 = vmatprep.subr.bf16.mxu0 0
        %3272 = vmatpush1.bf16.msra.mxu0 0
        %3273 = vmatprep.subr.bf16.mxu0 0
        %3274 = vmatpush1.bf16.msra.mxu0 0
        %3275 = vmatprep.subr.bf16.mxu0 0
        %3276 = vmatpush1.bf16.msra.mxu0 0
        %3277 = vmatprep.subr.bf16.mxu0 0
        %3278 = vmatpush1.bf16.msra.mxu0 0
        %3279 = vmatprep.subr.bf16.mxu0 0
        %3280 = vmatpush1.bf16.msra.mxu0 %v3173
        %3281 = vmatprep.subr.bf16.mxu0 0
        %3282 = vmatpush1.bf16.msra.mxu0 %v3170
        %3283 = vmatprep.subr.bf16.mxu0 0
        %3284 = vmatpush1.bf16.msra.mxu0 %v3167
        %3285 = vmatprep.subr.bf16.mxu0 0
        %3286 = vmatpush1.bf16.msra.mxu0 %v3164
        %3287 = vmatprep.subr.bf16.mxu0 0
        %3288 = vmatpush2.bf16.msra.mxu0 0
        %3289 = vmatprep.subr.bf16.mxu0 0
        %3290 = vmatpush2.bf16.msra.mxu0 0
        %3291 = vmatprep.subr.bf16.mxu0 0
        %3292 = vmatpush2.bf16.msra.mxu0 0
        %3293 = vmatprep.subr.bf16.mxu0 0
        %3294 = vmatpush2.bf16.msra.mxu0 0
        %3295 = vmatprep.subr.bf16.mxu0 0
        %3296 = vmatpush2.bf16.msra.mxu0 0
        %3297 = vmatprep.subr.bf16.mxu0 0
        %3298 = vmatpush2.bf16.msra.mxu0 0
        %3299 = vmatprep.subr.bf16.mxu0 0
        %3300 = vmatpush2.bf16.msra.mxu0 0
        %3301 = vmatprep.subr.bf16.mxu0 0
        %3302 = vmatpush2.bf16.msra.mxu0 0
        %3303 = vmatprep.mubr.bf16.mxu0 0
        %3304 = vmatmul.mubr.bf16.gmra.mxu0 %v3187
        %v3305 = vpop.f32.mrf.mxu0
        %v3306 = vadd.f32 0.0, %v3305
        %v3307 = vpop.f32.mrf.mxu0
        %v3308 = vpop.f32.mrf.mxu0
        %v3309 = vadd.f32 0.0, %v3308
        %v3310 = vpop.f32.mrf.mxu0
        %3311 = vmatprep.mubr.bf16.mxu0 0
        %3312 = vmatmul.mubr.bf16.gmra.mxu0 %v3190
        %v3313 = vpop.f32.mrf.mxu0
        %v3314 = vadd.f32 0.0, %v3313
        %v3315 = vpop.f32.mrf.mxu0
        %v3316 = vpop.f32.mrf.mxu0
        %v3317 = vadd.f32 0.0, %v3316
        %v3318 = vpop.f32.mrf.mxu0
        %3319 = vmatprep.mubr.bf16.mxu0 0
        %3320 = vmatmul.mubr.bf16.gmra.mxu0 %v3193
        %v3321 = vpop.f32.mrf.mxu0
        %v3322 = vadd.f32 0.0, %v3321
        %v3323 = vpop.f32.mrf.mxu0
        %v3324 = vpop.f32.mrf.mxu0
        %v3325 = vadd.f32 0.0, %v3324
        %v3326 = vpop.f32.mrf.mxu0
        %3327 = vmatprep.mubr.bf16.mxu0 0
        %3328 = vmatmul.mubr.bf16.gmra.mxu0 %v3196
        %v3329 = vpop.f32.mrf.mxu0
        %v3330 = vadd.f32 0.0, %v3329
        %v3331 = vpop.f32.mrf.mxu0
        %v3332 = vpop.f32.mrf.mxu0
        %v3333 = vadd.f32 0.0, %v3332
        %v3334 = vpop.f32.mrf.mxu0
        %3335 = vdwg.mxu0
        %v3336 = vadd.f32 %v3078, %v3233
        %v3337 = vadd.f32 %v3079, %v3235
        %v3338 = vadd.f32 %v3080, %v3306
        %v3339 = vadd.f32 %v3081, %v3237
        %v3340 = vadd.f32 %v3082, %v3239
        %v3341 = vadd.f32 %v3083, %v3309
        %v3342 = vadd.f32 %v3084, %v3243
        %v3343 = vadd.f32 %v3085, %v3245
        %v3344 = vadd.f32 %v3086, %v3314
        %v3345 = vadd.f32 %v3087, %v3247
        %v3346 = vadd.f32 %v3088, %v3249
        %v3347 = vadd.f32 %v3089, %v3317
        %v3348 = vadd.f32 %v3090, %v3253
        %v3349 = vadd.f32 %v3091, %v3255
        %v3350 = vadd.f32 %v3092, %v3322
        %v3351 = vadd.f32 %v3093, %v3257
        %v3352 = vadd.f32 %v3094, %v3259
        %v3353 = vadd.f32 %v3095, %v3325
        %v3354 = vadd.f32 %v3096, %v3263
        %v3355 = vadd.f32 %v3097, %v3265
        %v3356 = vadd.f32 %v3098, %v3330
        %v3357 = vadd.f32 %v3099, %v3267
        %v3358 = vadd.f32 %v3100, %v3269
        %v3359 = vadd.f32 %v3101, %v3333
        %3360 = vst [vmem:[#allocation2] sm:$0xff] %v3336
        %3361 = vst [vmem:[#allocation2 + $0x8] sm:$0xff] %v3337
        %3362 = vst [vmem:[#allocation2 + $0x10] sm:$0xff] %v3338
        %3363 = vst [vmem:[#allocation2 + $0x18] sm:$0xff] %v3339
        %3364 = vst [vmem:[#allocation2 + $0x20] sm:$0xff] %v3340
        %3365 = vst [vmem:[#allocation2 + $0x28] sm:$0xff] %v3341
        %3366 = vst [vmem:[#allocation2 + $0x30] sm:$0xff] %v3342
        %3367 = vst [vmem:[#allocation2 + $0x38] sm:$0xff] %v3343
        %3368 = vst [vmem:[#allocation2 + $0x40] sm:$0xff] %v3344
        %3369 = vst [vmem:[#allocation2 + $0x48] sm:$0xff] %v3345
        %3370 = vst [vmem:[#allocation2 + $0x50] sm:$0xff] %v3346
        %3371 = vst [vmem:[#allocation2 + $0x58] sm:$0xff] %v3347
        %3372 = vst [vmem:[#allocation2 + $0x60] sm:$0xff] %v3348
        %3373 = vst [vmem:[#allocation2 + $0x68] sm:$0xff] %v3349
        %3374 = vst [vmem:[#allocation2 + $0x70] sm:$0xff] %v3350
        %3375 = vst [vmem:[#allocation2 + $0x78] sm:$0xff] %v3351
        %3376 = vst [vmem:[#allocation2 + $0x80] sm:$0xff] %v3352
        %3377 = vst [vmem:[#allocation2 + $0x88] sm:$0xff] %v3353
        %3378 = vst [vmem:[#allocation2 + $0x90] sm:$0xff] %v3354
        %3379 = vst [vmem:[#allocation2 + $0x98] sm:$0xff] %v3355
        %3380 = vst [vmem:[#allocation2 + $0xa0] sm:$0xff] %v3356
        %3381 = vst [vmem:[#allocation2 + $0xa8] sm:$0xff] %v3357
        %3382 = vst [vmem:[#allocation2 + $0xb0] sm:$0xff] %v3358
        %3383 = vst [vmem:[#allocation2 + $0xb8] sm:$0xff] %v3359
        %3388 = vrot.lane.b32.xlu0 %v2763, 64
        %v3389 = vpop.permute.xlu0 %3388
        %3390 = vrot.lane.b32.xlu0 %v2766, 64
        %v3391 = vpop.permute.xlu0 %3390
        %3392 = vrot.lane.b32.xlu0 %v2769, 64
        %v3393 = vpop.permute.xlu0 %3392
        %3394 = vrot.lane.b32.xlu0 %v2772, 64
        %v3395 = vpop.permute.xlu0 %3394
        %3404 = vrot.lane.b32.xlu0 %v1959, 64
        %v3405 = vpop.permute.xlu0 %3404
        %3406 = vrot.lane.b32.xlu0 %v1965, 64
        %v3407 = vpop.permute.xlu0 %3406
        %3408 = vrot.lane.b32.xlu0 %v1971, 64
        %v3409 = vpop.permute.xlu0 %3408
        %3410 = vrot.lane.b32.xlu0 %v1977, 64
        %v3411 = vpop.permute.xlu0 %3410
        %3412 = vrot.lane.b32.xlu0 %v1983, 64
        %v3413 = vpop.permute.xlu0 %3412
        %3414 = vrot.lane.b32.xlu0 %v1989, 64
        %v3415 = vpop.permute.xlu0 %3414
        %3416 = vrot.lane.b32.xlu0 %v1995, 64
        %v3417 = vpop.permute.xlu0 %3416
        %3418 = vrot.lane.b32.xlu0 %v2001, 64
        %v3419 = vpop.permute.xlu0 %3418
        %v3421 = vsel %vm2827, %v3389, 0
        %v3424 = vsel %vm2827, %v3391, 0
        %v3427 = vsel %vm2827, %v3393, 0
        %v3430 = vsel %vm2827, %v3395, 0
        %v3433 = vsel %vm2827, %v3405, 0
        %v3436 = vsel %vm2827, %v3407, 0
        %v3439 = vsel %vm2827, %v3409, 0
        %v3442 = vsel %vm2827, %v3411, 0
        %v3445 = vsel %vm2827, %v3413, 0
        %v3448 = vsel %vm2827, %v3415, 0
        %v3451 = vsel %vm2827, %v3417, 0
        %v3454 = vsel %vm2827, %v3419, 0
        %3456 = vmatprep.subr.bf16.mxu0 0
        %3457 = vmatpush1.bf16.xpose.msra.mxu0 %v3454
        %3458 = vmatprep.subr.bf16.mxu0 0
        %3459 = vmatpush1.bf16.xpose.msra.mxu0 %v3451
        %3460 = vmatprep.subr.bf16.mxu0 0
        %3461 = vmatpush1.bf16.xpose.msra.mxu0 %v3448
        %3462 = vmatprep.subr.bf16.mxu0 0
        %3463 = vmatpush1.bf16.xpose.msra.mxu0 %v3445
        %3464 = vmatprep.subr.bf16.mxu0 0
        %3465 = vmatpush1.bf16.xpose.msra.mxu0 %v3442
        %3466 = vmatprep.subr.bf16.mxu0 0
        %3467 = vmatpush1.bf16.xpose.msra.mxu0 %v3439
        %3468 = vmatprep.subr.bf16.mxu0 0
        %3469 = vmatpush1.bf16.xpose.msra.mxu0 %v3436
        %3470 = vmatprep.subr.bf16.mxu0 0
        %3471 = vmatpush1.bf16.xpose.msra.mxu0 %v3433
        %3472 = vmatprep.subr.bf16.mxu0 0
        %3473 = vmatpush2.bf16.xpose.msra.mxu0 0
        %3474 = vmatprep.subr.bf16.mxu0 0
        %3475 = vmatpush2.bf16.xpose.msra.mxu0 0
        %3476 = vmatprep.subr.bf16.mxu0 0
        %3477 = vmatpush2.bf16.xpose.msra.mxu0 0
        %3478 = vmatprep.subr.bf16.mxu0 0
        %3479 = vmatpush2.bf16.xpose.msra.mxu0 0
        %3480 = vmatprep.subr.bf16.mxu0 0
        %3481 = vmatpush2.bf16.xpose.msra.mxu0 0
        %3482 = vmatprep.subr.bf16.mxu0 0
        %3483 = vmatpush2.bf16.xpose.msra.mxu0 0
        %3484 = vmatprep.subr.bf16.mxu0 0
        %3485 = vmatpush2.bf16.xpose.msra.mxu0 0
        %3486 = vmatprep.subr.bf16.mxu0 0
        %3487 = vmatpush2.bf16.xpose.msra.mxu0 0
        %3488 = vmatprep.mubr.bf16.mxu0 0
        %3489 = vmatmul.mubr.bf16.gmra.mxu0 %v3421
        %v3490 = vpop.f32.mrf.mxu0
        %v3491 = vadd.f32 0.0, %v3490
        %v3492 = vpop.f32.mrf.mxu0
        %v3493 = vpop.f32.mrf.mxu0
        %v3494 = vadd.f32 0.0, %v3493
        %v3495 = vpop.f32.mrf.mxu0
        %3496 = vmatprep.mubr.bf16.mxu0 0
        %3497 = vmatmul.mubr.bf16.gmra.mxu0 %v3424
        %v3498 = vpop.f32.mrf.mxu0
        %v3499 = vadd.f32 0.0, %v3498
        %v3500 = vpop.f32.mrf.mxu0
        %v3501 = vpop.f32.mrf.mxu0
        %v3502 = vadd.f32 0.0, %v3501
        %v3503 = vpop.f32.mrf.mxu0
        %3504 = vmatprep.mubr.bf16.mxu0 0
        %3505 = vmatmul.mubr.bf16.gmra.mxu0 %v3427
        %v3506 = vpop.f32.mrf.mxu0
        %v3507 = vadd.f32 0.0, %v3506
        %v3508 = vpop.f32.mrf.mxu0
        %v3509 = vpop.f32.mrf.mxu0
        %v3510 = vadd.f32 0.0, %v3509
        %v3511 = vpop.f32.mrf.mxu0
        %3512 = vmatprep.mubr.bf16.mxu0 0
        %3513 = vmatmul.mubr.bf16.gmra.mxu0 %v3430
        %v3514 = vpop.f32.mrf.mxu0
        %v3515 = vadd.f32 0.0, %v3514
        %v3516 = vpop.f32.mrf.mxu0
        %v3517 = vpop.f32.mrf.mxu0
        %v3518 = vadd.f32 0.0, %v3517
        %v3519 = vpop.f32.mrf.mxu0
        %3520 = vdwg.mxu0
        %v3521 = vsel %vm2795, %v3491, -1e+30
        %v3522 = vsel %vm2796, %v3494, -1e+30
        %v3523 = vsel %vm2797, %v3499, -1e+30
        %v3524 = vsel %vm2798, %v3502, -1e+30
        %v3525 = vsel %vm2799, %v3507, -1e+30
        %v3526 = vsel %vm2800, %v3510, -1e+30
        %v3527 = vsel %vm2801, %v3515, -1e+30
        %v3528 = vsel %vm2802, %v3518, -1e+30
        %3529 = vmax.xlane.f32.xlu0 %v3521
        %v3530 = vpop.xlane.xlu0 %3529
        %3531 = vmax.xlane.f32.xlu0 %v3522
        %v3532 = vpop.xlane.xlu0 %3531
        %3533 = vmax.xlane.f32.xlu0 %v3523
        %v3534 = vpop.xlane.xlu0 %3533
        %3535 = vmax.xlane.f32.xlu0 %v3524
        %v3536 = vpop.xlane.xlu0 %3535
        %3537 = vmax.xlane.f32.xlu0 %v3525
        %v3538 = vpop.xlane.xlu0 %3537
        %3539 = vmax.xlane.f32.xlu0 %v3526
        %v3540 = vpop.xlane.xlu0 %3539
        %3541 = vmax.xlane.f32.xlu0 %v3527
        %v3542 = vpop.xlane.xlu0 %3541
        %3543 = vmax.xlane.f32.xlu0 %v3528
        %v3544 = vpop.xlane.xlu0 %3543
        %v3545 = vsub.f32 %v3521, %v3530
        %v3546 = vsub.f32 %v3522, %v3532
        %v3547 = vsub.f32 %v3523, %v3534
        %v3548 = vsub.f32 %v3524, %v3536
        %v3549 = vsub.f32 %v3525, %v3538
        %v3550 = vsub.f32 %v3526, %v3540
        %v3551 = vsub.f32 %v3527, %v3542
        %v3552 = vsub.f32 %v3528, %v3544
        %v3553 = vmul.f32 %v3545, 1.442695
        %v3554 = vpow.pop %v3553
        %v3555 = vmul.f32 %v3546, 1.442695
        %v3556 = vpow.pop %v3555
        %v3557 = vmul.f32 %v3547, 1.442695
        %v3558 = vpow.pop %v3557
        %v3559 = vmul.f32 %v3548, 1.442695
        %v3560 = vpow.pop %v3559
        %v3561 = vmul.f32 %v3549, 1.442695
        %v3562 = vpow.pop %v3561
        %v3563 = vmul.f32 %v3550, 1.442695
        %v3564 = vpow.pop %v3563
        %v3565 = vmul.f32 %v3551, 1.442695
        %v3566 = vpow.pop %v3565
        %v3567 = vmul.f32 %v3552, 1.442695
        %v3568 = vpow.pop %v3567
        %3569 = vadd.xlane.f32.xlu0 %v3554
        %v3570 = vpop.xlane.xlu0 %3569
        %3571 = vadd.xlane.f32.xlu0 %v3556
        %v3572 = vpop.xlane.xlu0 %3571
        %3573 = vadd.xlane.f32.xlu0 %v3558
        %v3574 = vpop.xlane.xlu0 %3573
        %3575 = vadd.xlane.f32.xlu0 %v3560
        %v3576 = vpop.xlane.xlu0 %3575
        %3577 = vadd.xlane.f32.xlu0 %v3562
        %v3578 = vpop.xlane.xlu0 %3577
        %3579 = vadd.xlane.f32.xlu0 %v3564
        %v3580 = vpop.xlane.xlu0 %3579
        %3581 = vadd.xlane.f32.xlu0 %v3566
        %v3582 = vpop.xlane.xlu0 %3581
        %3583 = vadd.xlane.f32.xlu0 %v3568
        %v3584 = vpop.xlane.xlu0 %3583
        %v3585 = vrcp.pop %v3570
        %v3586 = vrcp.pop %v3572
        %v3587 = vrcp.pop %v3574
        %v3588 = vrcp.pop %v3576
        %v3589 = vrcp.pop %v3578
        %v3590 = vrcp.pop %v3580
        %v3591 = vrcp.pop %v3582
        %v3592 = vrcp.pop %v3584
        %v3593 = vmul.f32 %v3554, %v3585
        %v3594 = vmul.f32 %v3556, %v3586
        %v3595 = vmul.f32 %v3558, %v3587
        %v3596 = vmul.f32 %v3560, %v3588
        %v3597 = vmul.f32 %v3562, %v3589
        %v3598 = vmul.f32 %v3564, %v3590
        %v3599 = vmul.f32 %v3566, %v3591
        %v3600 = vmul.f32 %v3568, %v3592
        %v3601 = vpack.c.bf16 %v3594, %v3593
        %v3602 = vpack.c.bf16 %v3596, %v3595
        %v3603 = vpack.c.bf16 %v3598, %v3597
        %v3604 = vpack.c.bf16 %v3600, %v3599
        %3613 = vrot.lane.b32.xlu0 %v1962, 64
        %v3614 = vpop.permute.xlu0 %3613
        %3615 = vrot.lane.b32.xlu0 %v1968, 64
        %v3616 = vpop.permute.xlu0 %3615
        %3617 = vrot.lane.b32.xlu0 %v1974, 64
        %v3618 = vpop.permute.xlu0 %3617
        %3619 = vrot.lane.b32.xlu0 %v1980, 64
        %v3620 = vpop.permute.xlu0 %3619
        %3621 = vrot.lane.b32.xlu0 %v1986, 64
        %v3622 = vpop.permute.xlu0 %3621
        %3623 = vrot.lane.b32.xlu0 %v1992, 64
        %v3624 = vpop.permute.xlu0 %3623
        %3625 = vrot.lane.b32.xlu0 %v1998, 64
        %v3626 = vpop.permute.xlu0 %3625
        %3627 = vrot.lane.b32.xlu0 %v2004, 64
        %v3628 = vpop.permute.xlu0 %3627
        %3637 = vmatprep.subr.bf16.mxu0 0
        %3638 = vmatpush1.bf16.msra.mxu0 %v3628
        %3639 = vmatprep.subr.bf16.mxu0 0
        %3640 = vmatpush1.bf16.msra.mxu0 %v3626
        %3641 = vmatprep.subr.bf16.mxu0 0
        %3642 = vmatpush1.bf16.msra.mxu0 %v3624
        %3643 = vmatprep.subr.bf16.mxu0 0
        %3644 = vmatpush1.bf16.msra.mxu0 %v3622
        %3645 = vmatprep.subr.bf16.mxu0 0
        %3646 = vmatpush1.bf16.msra.mxu0 %v3620
        %3647 = vmatprep.subr.bf16.mxu0 0
        %3648 = vmatpush1.bf16.msra.mxu0 %v3618
        %3649 = vmatprep.subr.bf16.mxu0 0
        %3650 = vmatpush1.bf16.msra.mxu0 %v3616
        %3651 = vmatprep.subr.bf16.mxu0 0
        %3652 = vmatpush1.bf16.msra.mxu0 %v3614
        %3653 = vmatprep.subr.bf16.mxu0 0
        %3654 = vmatpush2.bf16.msra.mxu0 0
        %3655 = vmatprep.subr.bf16.mxu0 0
        %3656 = vmatpush2.bf16.msra.mxu0 0
        %3657 = vmatprep.subr.bf16.mxu0 0
        %3658 = vmatpush2.bf16.msra.mxu0 0
        %3659 = vmatprep.subr.bf16.mxu0 0
        %3660 = vmatpush2.bf16.msra.mxu0 0
        %3661 = vmatprep.subr.bf16.mxu0 0
        %3662 = vmatpush2.bf16.msra.mxu0 0
        %3663 = vmatprep.subr.bf16.mxu0 0
        %3664 = vmatpush2.bf16.msra.mxu0 0
        %3665 = vmatprep.subr.bf16.mxu0 0
        %3666 = vmatpush2.bf16.msra.mxu0 0
        %3667 = vmatprep.subr.bf16.mxu0 0
        %3668 = vmatpush2.bf16.msra.mxu0 0
        %3669 = vmatprep.mubr.bf16.mxu0 0
        %3670 = vmatmul.mubr.bf16.gmra.mxu0 %v3601
        %v3671 = vpop.f32.mrf.mxu0
        %v3672 = vadd.f32 0.0, %v3671
        %v3673 = vpop.f32.mrf.mxu0
        %v3674 = vpop.f32.mrf.mxu0
        %v3675 = vadd.f32 0.0, %v3674
        %v3676 = vpop.f32.mrf.mxu0
        %3677 = vmatprep.mubr.bf16.mxu0 0
        %3678 = vmatmul.mubr.bf16.gmra.mxu0 %v3602
        %v3679 = vpop.f32.mrf.mxu0
        %v3680 = vadd.f32 0.0, %v3679
        %v3681 = vpop.f32.mrf.mxu0
        %v3682 = vpop.f32.mrf.mxu0
        %v3683 = vadd.f32 0.0, %v3682
        %v3684 = vpop.f32.mrf.mxu0
        %3685 = vmatprep.mubr.bf16.mxu0 0
        %3686 = vmatmul.mubr.bf16.gmra.mxu0 %v3603
        %v3687 = vpop.f32.mrf.mxu0
        %v3688 = vadd.f32 0.0, %v3687
        %v3689 = vpop.f32.mrf.mxu0
        %v3690 = vpop.f32.mrf.mxu0
        %v3691 = vadd.f32 0.0, %v3690
        %v3692 = vpop.f32.mrf.mxu0
        %3693 = vmatprep.mubr.bf16.mxu0 0
        %3694 = vmatmul.mubr.bf16.gmra.mxu0 %v3604
        %v3695 = vpop.f32.mrf.mxu0
        %v3696 = vadd.f32 0.0, %v3695
        %v3697 = vpop.f32.mrf.mxu0
        %v3698 = vpop.f32.mrf.mxu0
        %v3699 = vadd.f32 0.0, %v3698
        %v3700 = vpop.f32.mrf.mxu0
        %3701 = vdwg.mxu0
        %v3702 = vld [vmem:[#allocation2] sm:$0xff]
        %v3703 = vld [vmem:[#allocation2 + $0x8] sm:$0xff]
        %v3704 = vld [vmem:[#allocation2 + $0x10] sm:$0xff]
        %v3705 = vld [vmem:[#allocation2 + $0x18] sm:$0xff]
        %v3706 = vld [vmem:[#allocation2 + $0x20] sm:$0xff]
        %v3707 = vld [vmem:[#allocation2 + $0x28] sm:$0xff]
        %v3708 = vld [vmem:[#allocation2 + $0x30] sm:$0xff]
        %v3709 = vld [vmem:[#allocation2 + $0x38] sm:$0xff]
        %v3710 = vld [vmem:[#allocation2 + $0x40] sm:$0xff]
        %v3711 = vld [vmem:[#allocation2 + $0x48] sm:$0xff]
        %v3712 = vld [vmem:[#allocation2 + $0x50] sm:$0xff]
        %v3713 = vld [vmem:[#allocation2 + $0x58] sm:$0xff]
        %v3714 = vld [vmem:[#allocation2 + $0x60] sm:$0xff]
        %v3715 = vld [vmem:[#allocation2 + $0x68] sm:$0xff]
        %v3716 = vld [vmem:[#allocation2 + $0x70] sm:$0xff]
        %v3717 = vld [vmem:[#allocation2 + $0x78] sm:$0xff]
        %v3718 = vld [vmem:[#allocation2 + $0x80] sm:$0xff]
        %v3719 = vld [vmem:[#allocation2 + $0x88] sm:$0xff]
        %v3720 = vld [vmem:[#allocation2 + $0x90] sm:$0xff]
        %v3721 = vld [vmem:[#allocation2 + $0x98] sm:$0xff]
        %v3722 = vld [vmem:[#allocation2 + $0xa0] sm:$0xff]
        %v3723 = vld [vmem:[#allocation2 + $0xa8] sm:$0xff]
        %v3724 = vld [vmem:[#allocation2 + $0xb0] sm:$0xff]
        %v3725 = vld [vmem:[#allocation2 + $0xb8] sm:$0xff]
        %v3726 = vpack.c.bf16 %v3675, %v3672
        %v3727 = vpack.c.bf16 %v3683, %v3680
        %v3728 = vpack.c.bf16 %v3691, %v3688
        %v3729 = vpack.c.bf16 %v3699, %v3696
        %v3730 = vld [vmem:[#allocation9 + $0x60] sm:$0xff]
        %v3731 = vld [vmem:[#allocation9 + $0x68] sm:$0xf]
        %v3732 = vld [vmem:[#allocation9 + $0x6c] sm:$0xff]
        %v3733 = vld [vmem:[#allocation9 + $0x74] sm:$0xf]
        %v3734 = vld [vmem:[#allocation9 + $0x78] sm:$0xff]
        %v3735 = vld [vmem:[#allocation9 + $0x80] sm:$0xf]
        %v3736 = vld [vmem:[#allocation9 + $0x84] sm:$0xff]
        %v3737 = vld [vmem:[#allocation9 + $0x8c] sm:$0xf]
        %v3738 = vld [vmem:[#allocation9 + $0x90] sm:$0xff]
        %v3739 = vld [vmem:[#allocation9 + $0x98] sm:$0xf]
        %v3740 = vld [vmem:[#allocation9 + $0x9c] sm:$0xff]
        %v3741 = vld [vmem:[#allocation9 + $0xa4] sm:$0xf]
        %v3742 = vld [vmem:[#allocation9 + $0xa8] sm:$0xff]
        %v3743 = vld [vmem:[#allocation9 + $0xb0] sm:$0xf]
        %v3744 = vld [vmem:[#allocation9 + $0xb4] sm:$0xff]
        %v3745 = vld [vmem:[#allocation9 + $0xbc] sm:$0xf]
        %v3762 = vunpack.c.l.b16 %v3730
        %v3763 = vunpack.c.h.b16 %v3730
        %v3764 = vunpack.c.l.b16 %v3731
        %v3765 = vunpack.c.l.b16 %v3732
        %v3766 = vunpack.c.h.b16 %v3732
        %v3767 = vunpack.c.l.b16 %v3733
        %v3768 = vunpack.c.l.b16 %v3734
        %v3769 = vunpack.c.h.b16 %v3734
        %v3770 = vunpack.c.l.b16 %v3735
        %v3771 = vunpack.c.l.b16 %v3736
        %v3772 = vunpack.c.h.b16 %v3736
        %v3773 = vunpack.c.l.b16 %v3737
        %v3774 = vunpack.c.l.b16 %v3738
        %v3775 = vunpack.c.h.b16 %v3738
        %v3776 = vunpack.c.l.b16 %v3739
        %v3777 = vunpack.c.l.b16 %v3740
        %v3778 = vunpack.c.h.b16 %v3740
        %v3779 = vunpack.c.l.b16 %v3741
        %v3780 = vunpack.c.l.b16 %v3742
        %v3781 = vunpack.c.h.b16 %v3742
        %v3782 = vunpack.c.l.b16 %v3743
        %v3783 = vunpack.c.l.b16 %v3744
        %v3784 = vunpack.c.h.b16 %v3744
        %v3785 = vunpack.c.l.b16 %v3745
        %v3786 = vpack.c.b16 %v3765, %v3762
        %v3787 = vpack.c.b16 %v3766, %v3763
        %v3788 = vpack.c.b16 %v3767, %v3764
        %v3789 = vpack.c.b16 %v3771, %v3768
        %v3790 = vpack.c.b16 %v3772, %v3769
        %v3791 = vpack.c.b16 %v3773, %v3770
        %v3792 = vpack.c.b16 %v3777, %v3774
        %v3793 = vpack.c.b16 %v3778, %v3775
        %v3794 = vpack.c.b16 %v3779, %v3776
        %v3795 = vpack.c.b16 %v3783, %v3780
        %v3796 = vpack.c.b16 %v3784, %v3781
        %v3797 = vpack.c.b16 %v3785, %v3782
        %v3811 = vsel %vm2827, %v3726, 0
        %v3814 = vsel %vm2827, %v3727, 0
        %v3817 = vsel %vm2827, %v3728, 0
        %v3820 = vsel %vm2827, %v3729, 0
        %3822 = vmatprep.subr.bf16.mxu0 0
        %3823 = vmatpush1.bf16.msra.mxu0 0
        %3824 = vmatprep.subr.bf16.mxu0 0
        %3825 = vmatpush1.bf16.msra.mxu0 0
        %3826 = vmatprep.subr.bf16.mxu0 0
        %3827 = vmatpush1.bf16.msra.mxu0 0
        %3828 = vmatprep.subr.bf16.mxu0 0
        %3829 = vmatpush1.bf16.msra.mxu0 0
        %3830 = vmatprep.subr.bf16.mxu0 %v3796
        %3831 = vmatpush1.bf16.msra.mxu0 %v3795
        %3832 = vmatprep.subr.bf16.mxu0 %v3793
        %3833 = vmatpush1.bf16.msra.mxu0 %v3792
        %3834 = vmatprep.subr.bf16.mxu0 %v3790
        %3835 = vmatpush1.bf16.msra.mxu0 %v3789
        %3836 = vmatprep.subr.bf16.mxu0 %v3787
        %3837 = vmatpush1.bf16.msra.mxu0 %v3786
        %3838 = vmatprep.subr.bf16.mxu0 0
        %3839 = vmatpush2.bf16.msra.mxu0 0
        %3840 = vmatprep.subr.bf16.mxu0 0
        %3841 = vmatpush2.bf16.msra.mxu0 0
        %3842 = vmatprep.subr.bf16.mxu0 0
        %3843 = vmatpush2.bf16.msra.mxu0 0
        %3844 = vmatprep.subr.bf16.mxu0 0
        %3845 = vmatpush2.bf16.msra.mxu0 0
        %3846 = vmatprep.subr.bf16.mxu0 0
        %3847 = vmatpush2.bf16.msra.mxu0 0
        %3848 = vmatprep.subr.bf16.mxu0 0
        %3849 = vmatpush2.bf16.msra.mxu0 0
        %3850 = vmatprep.subr.bf16.mxu0 0
        %3851 = vmatpush2.bf16.msra.mxu0 0
        %3852 = vmatprep.subr.bf16.mxu0 0
        %3853 = vmatpush2.bf16.msra.mxu0 0
        %3854 = vmatprep.mubr.bf16.mxu0 0
        %3855 = vmatmul.mubr.bf16.gmra.mxu0 %v3811
        %v3856 = vpop.f32.mrf.mxu0
        %v3857 = vadd.f32 0.0, %v3856
        %v3858 = vpop.f32.mrf.mxu0
        %v3859 = vadd.f32 0.0, %v3858
        %v3860 = vpop.f32.mrf.mxu0
        %v3861 = vadd.f32 0.0, %v3860
        %v3862 = vpop.f32.mrf.mxu0
        %v3863 = vadd.f32 0.0, %v3862
        %3864 = vmatprep.mubr.bf16.mxu0 0
        %3865 = vmatmul.mubr.bf16.gmra.mxu0 %v3814
        %v3866 = vpop.f32.mrf.mxu0
        %v3867 = vadd.f32 0.0, %v3866
        %v3868 = vpop.f32.mrf.mxu0
        %v3869 = vadd.f32 0.0, %v3868
        %v3870 = vpop.f32.mrf.mxu0
        %v3871 = vadd.f32 0.0, %v3870
        %v3872 = vpop.f32.mrf.mxu0
        %v3873 = vadd.f32 0.0, %v3872
        %3874 = vmatprep.mubr.bf16.mxu0 0
        %3875 = vmatmul.mubr.bf16.gmra.mxu0 %v3817
        %v3876 = vpop.f32.mrf.mxu0
        %v3877 = vadd.f32 0.0, %v3876
        %v3878 = vpop.f32.mrf.mxu0
        %v3879 = vadd.f32 0.0, %v3878
        %v3880 = vpop.f32.mrf.mxu0
        %v3881 = vadd.f32 0.0, %v3880
        %v3882 = vpop.f32.mrf.mxu0
        %v3883 = vadd.f32 0.0, %v3882
        %3884 = vmatprep.mubr.bf16.mxu0 0
        %3885 = vmatmul.mubr.bf16.gmra.mxu0 %v3820
        %v3886 = vpop.f32.mrf.mxu0
        %v3887 = vadd.f32 0.0, %v3886
        %v3888 = vpop.f32.mrf.mxu0
        %v3889 = vadd.f32 0.0, %v3888
        %v3890 = vpop.f32.mrf.mxu0
        %v3891 = vadd.f32 0.0, %v3890
        %v3892 = vpop.f32.mrf.mxu0
        %v3893 = vadd.f32 0.0, %v3892
        %3894 = vdwg.mxu0
        %3895 = vmatprep.subr.bf16.mxu0 0
        %3896 = vmatpush1.bf16.msra.mxu0 0
        %3897 = vmatprep.subr.bf16.mxu0 0
        %3898 = vmatpush1.bf16.msra.mxu0 0
        %3899 = vmatprep.subr.bf16.mxu0 0
        %3900 = vmatpush1.bf16.msra.mxu0 0
        %3901 = vmatprep.subr.bf16.mxu0 0
        %3902 = vmatpush1.bf16.msra.mxu0 0
        %3903 = vmatprep.subr.bf16.mxu0 0
        %3904 = vmatpush1.bf16.msra.mxu0 %v3797
        %3905 = vmatprep.subr.bf16.mxu0 0
        %3906 = vmatpush1.bf16.msra.mxu0 %v3794
        %3907 = vmatprep.subr.bf16.mxu0 0
        %3908 = vmatpush1.bf16.msra.mxu0 %v3791
        %3909 = vmatprep.subr.bf16.mxu0 0
        %3910 = vmatpush1.bf16.msra.mxu0 %v3788
        %3911 = vmatprep.subr.bf16.mxu0 0
        %3912 = vmatpush2.bf16.msra.mxu0 0
        %3913 = vmatprep.subr.bf16.mxu0 0
        %3914 = vmatpush2.bf16.msra.mxu0 0
        %3915 = vmatprep.subr.bf16.mxu0 0
        %3916 = vmatpush2.bf16.msra.mxu0 0
        %3917 = vmatprep.subr.bf16.mxu0 0
        %3918 = vmatpush2.bf16.msra.mxu0 0
        %3919 = vmatprep.subr.bf16.mxu0 0
        %3920 = vmatpush2.bf16.msra.mxu0 0
        %3921 = vmatprep.subr.bf16.mxu0 0
        %3922 = vmatpush2.bf16.msra.mxu0 0
        %3923 = vmatprep.subr.bf16.mxu0 0
        %3924 = vmatpush2.bf16.msra.mxu0 0
        %3925 = vmatprep.subr.bf16.mxu0 0
        %3926 = vmatpush2.bf16.msra.mxu0 0
        %3927 = vmatprep.mubr.bf16.mxu0 0
        %3928 = vmatmul.mubr.bf16.gmra.mxu0 %v3811
        %v3929 = vpop.f32.mrf.mxu0
        %v3930 = vadd.f32 0.0, %v3929
        %v3931 = vpop.f32.mrf.mxu0
        %v3932 = vpop.f32.mrf.mxu0
        %v3933 = vadd.f32 0.0, %v3932
        %v3934 = vpop.f32.mrf.mxu0
        %3935 = vmatprep.mubr.bf16.mxu0 0
        %3936 = vmatmul.mubr.bf16.gmra.mxu0 %v3814
        %v3937 = vpop.f32.mrf.mxu0
        %v3938 = vadd.f32 0.0, %v3937
        %v3939 = vpop.f32.mrf.mxu0
        %v3940 = vpop.f32.mrf.mxu0
        %v3941 = vadd.f32 0.0, %v3940
        %v3942 = vpop.f32.mrf.mxu0
        %3943 = vmatprep.mubr.bf16.mxu0 0
        %3944 = vmatmul.mubr.bf16.gmra.mxu0 %v3817
        %v3945 = vpop.f32.mrf.mxu0
        %v3946 = vadd.f32 0.0, %v3945
        %v3947 = vpop.f32.mrf.mxu0
        %v3948 = vpop.f32.mrf.mxu0
        %v3949 = vadd.f32 0.0, %v3948
        %v3950 = vpop.f32.mrf.mxu0
        %3951 = vmatprep.mubr.bf16.mxu0 0
        %3952 = vmatmul.mubr.bf16.gmra.mxu0 %v3820
        %v3953 = vpop.f32.mrf.mxu0
        %v3954 = vadd.f32 0.0, %v3953
        %v3955 = vpop.f32.mrf.mxu0
        %v3956 = vpop.f32.mrf.mxu0
        %v3957 = vadd.f32 0.0, %v3956
        %v3958 = vpop.f32.mrf.mxu0
        %3959 = vdwg.mxu0
        %v3960 = vadd.f32 %v3702, %v3857
        %v3961 = vadd.f32 %v3703, %v3859
        %v3962 = vadd.f32 %v3704, %v3930
        %v3963 = vadd.f32 %v3705, %v3861
        %v3964 = vadd.f32 %v3706, %v3863
        %v3965 = vadd.f32 %v3707, %v3933
        %v3966 = vadd.f32 %v3708, %v3867
        %v3967 = vadd.f32 %v3709, %v3869
        %v3968 = vadd.f32 %v3710, %v3938
        %v3969 = vadd.f32 %v3711, %v3871
        %v3970 = vadd.f32 %v3712, %v3873
        %v3971 = vadd.f32 %v3713, %v3941
        %v3972 = vadd.f32 %v3714, %v3877
        %v3973 = vadd.f32 %v3715, %v3879
        %v3974 = vadd.f32 %v3716, %v3946
        %v3975 = vadd.f32 %v3717, %v3881
        %v3976 = vadd.f32 %v3718, %v3883
        %v3977 = vadd.f32 %v3719, %v3949
        %v3978 = vadd.f32 %v3720, %v3887
        %v3979 = vadd.f32 %v3721, %v3889
        %v3980 = vadd.f32 %v3722, %v3954
        %v3981 = vadd.f32 %v3723, %v3891
        %v3982 = vadd.f32 %v3724, %v3893
        %v3983 = vadd.f32 %v3725, %v3957
        %3984 = vst [vmem:[#allocation2] sm:$0xff] %v3960
        %3985 = vst [vmem:[#allocation2 + $0x8] sm:$0xff] %v3961
        %3986 = vst [vmem:[#allocation2 + $0x10] sm:$0xff] %v3962
        %3987 = vst [vmem:[#allocation2 + $0x18] sm:$0xff] %v3963
        %3988 = vst [vmem:[#allocation2 + $0x20] sm:$0xff] %v3964
        %3989 = vst [vmem:[#allocation2 + $0x28] sm:$0xff] %v3965
        %3990 = vst [vmem:[#allocation2 + $0x30] sm:$0xff] %v3966
        %3991 = vst [vmem:[#allocation2 + $0x38] sm:$0xff] %v3967
        %3992 = vst [vmem:[#allocation2 + $0x40] sm:$0xff] %v3968
        %3993 = vst [vmem:[#allocation2 + $0x48] sm:$0xff] %v3969
        %3994 = vst [vmem:[#allocation2 + $0x50] sm:$0xff] %v3970
        %3995 = vst [vmem:[#allocation2 + $0x58] sm:$0xff] %v3971
        %3996 = vst [vmem:[#allocation2 + $0x60] sm:$0xff] %v3972
        %3997 = vst [vmem:[#allocation2 + $0x68] sm:$0xff] %v3973
        %3998 = vst [vmem:[#allocation2 + $0x70] sm:$0xff] %v3974
        %3999 = vst [vmem:[#allocation2 + $0x78] sm:$0xff] %v3975
        %4000 = vst [vmem:[#allocation2 + $0x80] sm:$0xff] %v3976
        %4001 = vst [vmem:[#allocation2 + $0x88] sm:$0xff] %v3977
        %4002 = vst [vmem:[#allocation2 + $0x90] sm:$0xff] %v3978
        %4003 = vst [vmem:[#allocation2 + $0x98] sm:$0xff] %v3979
        %4004 = vst [vmem:[#allocation2 + $0xa0] sm:$0xff] %v3980
        %4005 = vst [vmem:[#allocation2 + $0xa8] sm:$0xff] %v3981
        %4006 = vst [vmem:[#allocation2 + $0xb0] sm:$0xff] %v3982
        %4007 = vst [vmem:[#allocation2 + $0xb8] sm:$0xff] %v3983
        %v4009 = vsel %vm2827, %v2764, 0
        %v4012 = vsel %vm2827, %v2767, 0
        %v4015 = vsel %vm2827, %v2770, 0
        %v4018 = vsel %vm2827, %v2773, 0
        %v4021 = vsel %vm2827, %v1960, 0
        %v4024 = vsel %vm2827, %v1966, 0
        %v4027 = vsel %vm2827, %v1972, 0
        %v4030 = vsel %vm2827, %v1978, 0
        %v4033 = vsel %vm2827, %v1984, 0
        %v4036 = vsel %vm2827, %v1990, 0
        %v4039 = vsel %vm2827, %v1996, 0
        %v4042 = vsel %vm2827, %v2002, 0
        %4044 = vmatprep.subr.bf16.mxu0 0
        %4045 = vmatpush1.bf16.xpose.msra.mxu0 %v4042
        %4046 = vmatprep.subr.bf16.mxu0 0
        %4047 = vmatpush1.bf16.xpose.msra.mxu0 %v4039
        %4048 = vmatprep.subr.bf16.mxu0 0
        %4049 = vmatpush1.bf16.xpose.msra.mxu0 %v4036
        %4050 = vmatprep.subr.bf16.mxu0 0
        %4051 = vmatpush1.bf16.xpose.msra.mxu0 %v4033
        %4052 = vmatprep.subr.bf16.mxu0 0
        %4053 = vmatpush1.bf16.xpose.msra.mxu0 %v4030
        %4054 = vmatprep.subr.bf16.mxu0 0
        %4055 = vmatpush1.bf16.xpose.msra.mxu0 %v4027
        %4056 = vmatprep.subr.bf16.mxu0 0
        %4057 = vmatpush1.bf16.xpose.msra.mxu0 %v4024
        %4058 = vmatprep.subr.bf16.mxu0 0
        %4059 = vmatpush1.bf16.xpose.msra.mxu0 %v4021
        %4060 = vmatprep.subr.bf16.mxu0 0
        %4061 = vmatpush2.bf16.xpose.msra.mxu0 0
        %4062 = vmatprep.subr.bf16.mxu0 0
        %4063 = vmatpush2.bf16.xpose.msra.mxu0 0
        %4064 = vmatprep.subr.bf16.mxu0 0
        %4065 = vmatpush2.bf16.xpose.msra.mxu0 0
        %4066 = vmatprep.subr.bf16.mxu0 0
        %4067 = vmatpush2.bf16.xpose.msra.mxu0 0
        %4068 = vmatprep.subr.bf16.mxu0 0
        %4069 = vmatpush2.bf16.xpose.msra.mxu0 0
        %4070 = vmatprep.subr.bf16.mxu0 0
        %4071 = vmatpush2.bf16.xpose.msra.mxu0 0
        %4072 = vmatprep.subr.bf16.mxu0 0
        %4073 = vmatpush2.bf16.xpose.msra.mxu0 0
        %4074 = vmatprep.subr.bf16.mxu0 0
        %4075 = vmatpush2.bf16.xpose.msra.mxu0 0
        %4076 = vmatprep.mubr.bf16.mxu0 0
        %4077 = vmatmul.mubr.bf16.gmra.mxu0 %v4009
        %v4078 = vpop.f32.mrf.mxu0
        %v4079 = vadd.f32 0.0, %v4078
        %v4080 = vpop.f32.mrf.mxu0
        %v4081 = vpop.f32.mrf.mxu0
        %v4082 = vadd.f32 0.0, %v4081
        %v4083 = vpop.f32.mrf.mxu0
        %4084 = vmatprep.mubr.bf16.mxu0 0
        %4085 = vmatmul.mubr.bf16.gmra.mxu0 %v4012
        %v4086 = vpop.f32.mrf.mxu0
        %v4087 = vadd.f32 0.0, %v4086
        %v4088 = vpop.f32.mrf.mxu0
        %v4089 = vpop.f32.mrf.mxu0
        %v4090 = vadd.f32 0.0, %v4089
        %v4091 = vpop.f32.mrf.mxu0
        %4092 = vmatprep.mubr.bf16.mxu0 0
        %4093 = vmatmul.mubr.bf16.gmra.mxu0 %v4015
        %v4094 = vpop.f32.mrf.mxu0
        %v4095 = vadd.f32 0.0, %v4094
        %v4096 = vpop.f32.mrf.mxu0
        %v4097 = vpop.f32.mrf.mxu0
        %v4098 = vadd.f32 0.0, %v4097
        %v4099 = vpop.f32.mrf.mxu0
        %4100 = vmatprep.mubr.bf16.mxu0 0
        %4101 = vmatmul.mubr.bf16.gmra.mxu0 %v4018
        %v4102 = vpop.f32.mrf.mxu0
        %v4103 = vadd.f32 0.0, %v4102
        %v4104 = vpop.f32.mrf.mxu0
        %v4105 = vpop.f32.mrf.mxu0
        %v4106 = vadd.f32 0.0, %v4105
        %v4107 = vpop.f32.mrf.mxu0
        %4108 = vdwg.mxu0
        %v4109 = vsel %vm2795, %v4079, -1e+30
        %v4110 = vsel %vm2796, %v4082, -1e+30
        %v4111 = vsel %vm2797, %v4087, -1e+30
        %v4112 = vsel %vm2798, %v4090, -1e+30
        %v4113 = vsel %vm2799, %v4095, -1e+30
        %v4114 = vsel %vm2800, %v4098, -1e+30
        %v4115 = vsel %vm2801, %v4103, -1e+30
        %v4116 = vsel %vm2802, %v4106, -1e+30
        %4117 = vmax.xlane.f32.xlu0 %v4109
        %v4118 = vpop.xlane.xlu0 %4117
        %4119 = vmax.xlane.f32.xlu0 %v4110
        %v4120 = vpop.xlane.xlu0 %4119
        %4121 = vmax.xlane.f32.xlu0 %v4111
        %v4122 = vpop.xlane.xlu0 %4121
        %4123 = vmax.xlane.f32.xlu0 %v4112
        %v4124 = vpop.xlane.xlu0 %4123
        %4125 = vmax.xlane.f32.xlu0 %v4113
        %v4126 = vpop.xlane.xlu0 %4125
        %4127 = vmax.xlane.f32.xlu0 %v4114
        %v4128 = vpop.xlane.xlu0 %4127
        %4129 = vmax.xlane.f32.xlu0 %v4115
        %v4130 = vpop.xlane.xlu0 %4129
        %4131 = vmax.xlane.f32.xlu0 %v4116
        %v4132 = vpop.xlane.xlu0 %4131
        %v4133 = vsub.f32 %v4109, %v4118
        %v4134 = vsub.f32 %v4110, %v4120
        %v4135 = vsub.f32 %v4111, %v4122
        %v4136 = vsub.f32 %v4112, %v4124
        %v4137 = vsub.f32 %v4113, %v4126
        %v4138 = vsub.f32 %v4114, %v4128
        %v4139 = vsub.f32 %v4115, %v4130
        %v4140 = vsub.f32 %v4116, %v4132
        %v4141 = vmul.f32 %v4133, 1.442695
        %v4142 = vpow.pop %v4141
        %v4143 = vmul.f32 %v4134, 1.442695
        %v4144 = vpow.pop %v4143
        %v4145 = vmul.f32 %v4135, 1.442695
        %v4146 = vpow.pop %v4145
        %v4147 = vmul.f32 %v4136, 1.442695
        %v4148 = vpow.pop %v4147
        %v4149 = vmul.f32 %v4137, 1.442695
        %v4150 = vpow.pop %v4149
        %v4151 = vmul.f32 %v4138, 1.442695
        %v4152 = vpow.pop %v4151
        %v4153 = vmul.f32 %v4139, 1.442695
        %v4154 = vpow.pop %v4153
        %v4155 = vmul.f32 %v4140, 1.442695
        %v4156 = vpow.pop %v4155
        %4157 = vadd.xlane.f32.xlu0 %v4142
        %v4158 = vpop.xlane.xlu0 %4157
        %4159 = vadd.xlane.f32.xlu0 %v4144
        %v4160 = vpop.xlane.xlu0 %4159
        %4161 = vadd.xlane.f32.xlu0 %v4146
        %v4162 = vpop.xlane.xlu0 %4161
        %4163 = vadd.xlane.f32.xlu0 %v4148
        %v4164 = vpop.xlane.xlu0 %4163
        %4165 = vadd.xlane.f32.xlu0 %v4150
        %v4166 = vpop.xlane.xlu0 %4165
        %4167 = vadd.xlane.f32.xlu0 %v4152
        %v4168 = vpop.xlane.xlu0 %4167
        %4169 = vadd.xlane.f32.xlu0 %v4154
        %v4170 = vpop.xlane.xlu0 %4169
        %4171 = vadd.xlane.f32.xlu0 %v4156
        %v4172 = vpop.xlane.xlu0 %4171
        %v4173 = vrcp.pop %v4158
        %v4174 = vrcp.pop %v4160
        %v4175 = vrcp.pop %v4162
        %v4176 = vrcp.pop %v4164
        %v4177 = vrcp.pop %v4166
        %v4178 = vrcp.pop %v4168
        %v4179 = vrcp.pop %v4170
        %v4180 = vrcp.pop %v4172
        %v4181 = vmul.f32 %v4142, %v4173
        %v4182 = vmul.f32 %v4144, %v4174
        %v4183 = vmul.f32 %v4146, %v4175
        %v4184 = vmul.f32 %v4148, %v4176
        %v4185 = vmul.f32 %v4150, %v4177
        %v4186 = vmul.f32 %v4152, %v4178
        %v4187 = vmul.f32 %v4154, %v4179
        %v4188 = vmul.f32 %v4156, %v4180
        %v4189 = vpack.c.bf16 %v4182, %v4181
        %v4190 = vpack.c.bf16 %v4184, %v4183
        %v4191 = vpack.c.bf16 %v4186, %v4185
        %v4192 = vpack.c.bf16 %v4188, %v4187
        %4193 = vmatprep.subr.bf16.mxu0 0
        %4194 = vmatpush1.bf16.msra.mxu0 %v2005
        %4195 = vmatprep.subr.bf16.mxu0 0
        %4196 = vmatpush1.bf16.msra.mxu0 %v1999
        %4197 = vmatprep.subr.bf16.mxu0 0
        %4198 = vmatpush1.bf16.msra.mxu0 %v1993
        %4199 = vmatprep.subr.bf16.mxu0 0
        %4200 = vmatpush1.bf16.msra.mxu0 %v1987
        %4201 = vmatprep.subr.bf16.mxu0 0
        %4202 = vmatpush1.bf16.msra.mxu0 %v1981
        %4203 = vmatprep.subr.bf16.mxu0 0
        %4204 = vmatpush1.bf16.msra.mxu0 %v1975
        %4205 = vmatprep.subr.bf16.mxu0 0
        %4206 = vmatpush1.bf16.msra.mxu0 %v1969
        %4207 = vmatprep.subr.bf16.mxu0 0
        %4208 = vmatpush1.bf16.msra.mxu0 %v1963
        %4209 = vmatprep.subr.bf16.mxu0 0
        %4210 = vmatpush2.bf16.msra.mxu0 0
        %4211 = vmatprep.subr.bf16.mxu0 0
        %4212 = vmatpush2.bf16.msra.mxu0 0
        %4213 = vmatprep.subr.bf16.mxu0 0
        %4214 = vmatpush2.bf16.msra.mxu0 0
        %4215 = vmatprep.subr.bf16.mxu0 0
        %4216 = vmatpush2.bf16.msra.mxu0 0
        %4217 = vmatprep.subr.bf16.mxu0 0
        %4218 = vmatpush2.bf16.msra.mxu0 0
        %4219 = vmatprep.subr.bf16.mxu0 0
        %4220 = vmatpush2.bf16.msra.mxu0 0
        %4221 = vmatprep.subr.bf16.mxu0 0
        %4222 = vmatpush2.bf16.msra.mxu0 0
        %4223 = vmatprep.subr.bf16.mxu0 0
        %4224 = vmatpush2.bf16.msra.mxu0 0
        %4225 = vmatprep.mubr.bf16.mxu0 0
        %4226 = vmatmul.mubr.bf16.gmra.mxu0 %v4189
        %v4227 = vpop.f32.mrf.mxu0
        %v4228 = vadd.f32 0.0, %v4227
        %v4229 = vpop.f32.mrf.mxu0
        %v4230 = vpop.f32.mrf.mxu0
        %v4231 = vadd.f32 0.0, %v4230
        %v4232 = vpop.f32.mrf.mxu0
        %4233 = vmatprep.mubr.bf16.mxu0 0
        %4234 = vmatmul.mubr.bf16.gmra.mxu0 %v4190
        %v4235 = vpop.f32.mrf.mxu0
        %v4236 = vadd.f32 0.0, %v4235
        %v4237 = vpop.f32.mrf.mxu0
        %v4238 = vpop.f32.mrf.mxu0
        %v4239 = vadd.f32 0.0, %v4238
        %v4240 = vpop.f32.mrf.mxu0
        %4241 = vmatprep.mubr.bf16.mxu0 0
        %4242 = vmatmul.mubr.bf16.gmra.mxu0 %v4191
        %v4243 = vpop.f32.mrf.mxu0
        %v4244 = vadd.f32 0.0, %v4243
        %v4245 = vpop.f32.mrf.mxu0
        %v4246 = vpop.f32.mrf.mxu0
        %v4247 = vadd.f32 0.0, %v4246
        %v4248 = vpop.f32.mrf.mxu0
        %4249 = vmatprep.mubr.bf16.mxu0 0
        %4250 = vmatmul.mubr.bf16.gmra.mxu0 %v4192
        %v4251 = vpop.f32.mrf.mxu0
        %v4252 = vadd.f32 0.0, %v4251
        %v4253 = vpop.f32.mrf.mxu0
        %v4254 = vpop.f32.mrf.mxu0
        %v4255 = vadd.f32 0.0, %v4254
        %v4256 = vpop.f32.mrf.mxu0
        %4257 = vdwg.mxu0
        %v4258 = vld [vmem:[#allocation2] sm:$0xff]
        %v4259 = vld [vmem:[#allocation2 + $0x8] sm:$0xff]
        %v4260 = vld [vmem:[#allocation2 + $0x10] sm:$0xff]
        %v4261 = vld [vmem:[#allocation2 + $0x18] sm:$0xff]
        %v4262 = vld [vmem:[#allocation2 + $0x20] sm:$0xff]
        %v4263 = vld [vmem:[#allocation2 + $0x28] sm:$0xff]
        %v4264 = vld [vmem:[#allocation2 + $0x30] sm:$0xff]
        %v4265 = vld [vmem:[#allocation2 + $0x38] sm:$0xff]
        %v4266 = vld [vmem:[#allocation2 + $0x40] sm:$0xff]
        %v4267 = vld [vmem:[#allocation2 + $0x48] sm:$0xff]
        %v4268 = vld [vmem:[#allocation2 + $0x50] sm:$0xff]
        %v4269 = vld [vmem:[#allocation2 + $0x58] sm:$0xff]
        %v4270 = vld [vmem:[#allocation2 + $0x60] sm:$0xff]
        %v4271 = vld [vmem:[#allocation2 + $0x68] sm:$0xff]
        %v4272 = vld [vmem:[#allocation2 + $0x70] sm:$0xff]
        %v4273 = vld [vmem:[#allocation2 + $0x78] sm:$0xff]
        %v4274 = vld [vmem:[#allocation2 + $0x80] sm:$0xff]
        %v4275 = vld [vmem:[#allocation2 + $0x88] sm:$0xff]
        %v4276 = vld [vmem:[#allocation2 + $0x90] sm:$0xff]
        %v4277 = vld [vmem:[#allocation2 + $0x98] sm:$0xff]
        %v4278 = vld [vmem:[#allocation2 + $0xa0] sm:$0xff]
        %v4279 = vld [vmem:[#allocation2 + $0xa8] sm:$0xff]
        %v4280 = vld [vmem:[#allocation2 + $0xb0] sm:$0xff]
        %v4281 = vld [vmem:[#allocation2 + $0xb8] sm:$0xff]
        %v4282 = vpack.c.bf16 %v4231, %v4228
        %v4283 = vpack.c.bf16 %v4239, %v4236
        %v4284 = vpack.c.bf16 %v4247, %v4244
        %v4285 = vpack.c.bf16 %v4255, %v4252
        %v4286 = vld [vmem:[#allocation9 + $0xc0] sm:$0xff]
        %v4287 = vld [vmem:[#allocation9 + $0xc8] sm:$0xf]
        %v4288 = vld [vmem:[#allocation9 + $0xcc] sm:$0xff]
        %v4289 = vld [vmem:[#allocation9 + $0xd4] sm:$0xf]
        %v4290 = vld [vmem:[#allocation9 + $0xd8] sm:$0xff]
        %v4291 = vld [vmem:[#allocation9 + $0xe0] sm:$0xf]
        %v4292 = vld [vmem:[#allocation9 + $0xe4] sm:$0xff]
        %v4293 = vld [vmem:[#allocation9 + $0xec] sm:$0xf]
        %v4294 = vld [vmem:[#allocation9 + $0xf0] sm:$0xff]
        %v4295 = vld [vmem:[#allocation9 + $0xf8] sm:$0xf]
        %v4296 = vld [vmem:[#allocation9 + $0xfc] sm:$0xff]
        %v4297 = vld [vmem:[#allocation9 + $0x104] sm:$0xf]
        %v4298 = vld [vmem:[#allocation9 + $0x108] sm:$0xff]
        %v4299 = vld [vmem:[#allocation9 + $0x110] sm:$0xf]
        %v4300 = vld [vmem:[#allocation9 + $0x114] sm:$0xff]
        %v4301 = vld [vmem:[#allocation9 + $0x11c] sm:$0xf]
        %v4318 = vunpack.c.l.b16 %v4286
        %v4319 = vunpack.c.h.b16 %v4286
        %v4320 = vunpack.c.l.b16 %v4287
        %v4321 = vunpack.c.l.b16 %v4288
        %v4322 = vunpack.c.h.b16 %v4288
        %v4323 = vunpack.c.l.b16 %v4289
        %v4324 = vunpack.c.l.b16 %v4290
        %v4325 = vunpack.c.h.b16 %v4290
        %v4326 = vunpack.c.l.b16 %v4291
        %v4327 = vunpack.c.l.b16 %v4292
        %v4328 = vunpack.c.h.b16 %v4292
        %v4329 = vunpack.c.l.b16 %v4293
        %v4330 = vunpack.c.l.b16 %v4294
        %v4331 = vunpack.c.h.b16 %v4294
        %v4332 = vunpack.c.l.b16 %v4295
        %v4333 = vunpack.c.l.b16 %v4296
        %v4334 = vunpack.c.h.b16 %v4296
        %v4335 = vunpack.c.l.b16 %v4297
        %v4336 = vunpack.c.l.b16 %v4298
        %v4337 = vunpack.c.h.b16 %v4298
        %v4338 = vunpack.c.l.b16 %v4299
        %v4339 = vunpack.c.l.b16 %v4300
        %v4340 = vunpack.c.h.b16 %v4300
        %v4341 = vunpack.c.l.b16 %v4301
        %v4342 = vpack.c.b16 %v4321, %v4318
        %v4343 = vpack.c.b16 %v4322, %v4319
        %v4344 = vpack.c.b16 %v4323, %v4320
        %v4345 = vpack.c.b16 %v4327, %v4324
        %v4346 = vpack.c.b16 %v4328, %v4325
        %v4347 = vpack.c.b16 %v4329, %v4326
        %v4348 = vpack.c.b16 %v4333, %v4330
        %v4349 = vpack.c.b16 %v4334, %v4331
        %v4350 = vpack.c.b16 %v4335, %v4332
        %v4351 = vpack.c.b16 %v4339, %v4336
        %v4352 = vpack.c.b16 %v4340, %v4337
        %v4353 = vpack.c.b16 %v4341, %v4338
        %v4367 = vsel %vm2827, %v4282, 0
        %v4370 = vsel %vm2827, %v4283, 0
        %v4373 = vsel %vm2827, %v4284, 0
        %v4376 = vsel %vm2827, %v4285, 0
        %4378 = vmatprep.subr.bf16.mxu0 0
        %4379 = vmatpush1.bf16.msra.mxu0 0
        %4380 = vmatprep.subr.bf16.mxu0 0
        %4381 = vmatpush1.bf16.msra.mxu0 0
        %4382 = vmatprep.subr.bf16.mxu0 0
        %4383 = vmatpush1.bf16.msra.mxu0 0
        %4384 = vmatprep.subr.bf16.mxu0 0
        %4385 = vmatpush1.bf16.msra.mxu0 0
        %4386 = vmatprep.subr.bf16.mxu0 %v4352
        %4387 = vmatpush1.bf16.msra.mxu0 %v4351
        %4388 = vmatprep.subr.bf16.mxu0 %v4349
        %4389 = vmatpush1.bf16.msra.mxu0 %v4348
        %4390 = vmatprep.subr.bf16.mxu0 %v4346
        %4391 = vmatpush1.bf16.msra.mxu0 %v4345
        %4392 = vmatprep.subr.bf16.mxu0 %v4343
        %4393 = vmatpush1.bf16.msra.mxu0 %v4342
        %4394 = vmatprep.subr.bf16.mxu0 0
        %4395 = vmatpush2.bf16.msra.mxu0 0
        %4396 = vmatprep.subr.bf16.mxu0 0
        %4397 = vmatpush2.bf16.msra.mxu0 0
        %4398 = vmatprep.subr.bf16.mxu0 0
        %4399 = vmatpush2.bf16.msra.mxu0 0
        %4400 = vmatprep.subr.bf16.mxu0 0
        %4401 = vmatpush2.bf16.msra.mxu0 0
        %4402 = vmatprep.subr.bf16.mxu0 0
        %4403 = vmatpush2.bf16.msra.mxu0 0
        %4404 = vmatprep.subr.bf16.mxu0 0
        %4405 = vmatpush2.bf16.msra.mxu0 0
        %4406 = vmatprep.subr.bf16.mxu0 0
        %4407 = vmatpush2.bf16.msra.mxu0 0
        %4408 = vmatprep.subr.bf16.mxu0 0
        %4409 = vmatpush2.bf16.msra.mxu0 0
        %4410 = vmatprep.mubr.bf16.mxu0 0
        %4411 = vmatmul.mubr.bf16.gmra.mxu0 %v4367
        %v4412 = vpop.f32.mrf.mxu0
        %v4413 = vadd.f32 0.0, %v4412
        %v4414 = vpop.f32.mrf.mxu0
        %v4415 = vadd.f32 0.0, %v4414
        %v4416 = vpop.f32.mrf.mxu0
        %v4417 = vadd.f32 0.0, %v4416
        %v4418 = vpop.f32.mrf.mxu0
        %v4419 = vadd.f32 0.0, %v4418
        %4420 = vmatprep.mubr.bf16.mxu0 0
        %4421 = vmatmul.mubr.bf16.gmra.mxu0 %v4370
        %v4422 = vpop.f32.mrf.mxu0
        %v4423 = vadd.f32 0.0, %v4422
        %v4424 = vpop.f32.mrf.mxu0
        %v4425 = vadd.f32 0.0, %v4424
        %v4426 = vpop.f32.mrf.mxu0
        %v4427 = vadd.f32 0.0, %v4426
        %v4428 = vpop.f32.mrf.mxu0
        %v4429 = vadd.f32 0.0, %v4428
        %4430 = vmatprep.mubr.bf16.mxu0 0
        %4431 = vmatmul.mubr.bf16.gmra.mxu0 %v4373
        %v4432 = vpop.f32.mrf.mxu0
        %v4433 = vadd.f32 0.0, %v4432
        %v4434 = vpop.f32.mrf.mxu0
        %v4435 = vadd.f32 0.0, %v4434
        %v4436 = vpop.f32.mrf.mxu0
        %v4437 = vadd.f32 0.0, %v4436
        %v4438 = vpop.f32.mrf.mxu0
        %v4439 = vadd.f32 0.0, %v4438
        %4440 = vmatprep.mubr.bf16.mxu0 0
        %4441 = vmatmul.mubr.bf16.gmra.mxu0 %v4376
        %v4442 = vpop.f32.mrf.mxu0
        %v4443 = vadd.f32 0.0, %v4442
        %v4444 = vpop.f32.mrf.mxu0
        %v4445 = vadd.f32 0.0, %v4444
        %v4446 = vpop.f32.mrf.mxu0
        %v4447 = vadd.f32 0.0, %v4446
        %v4448 = vpop.f32.mrf.mxu0
        %v4449 = vadd.f32 0.0, %v4448
        %4450 = vdwg.mxu0
        %4451 = vmatprep.subr.bf16.mxu0 0
        %4452 = vmatpush1.bf16.msra.mxu0 0
        %4453 = vmatprep.subr.bf16.mxu0 0
        %4454 = vmatpush1.bf16.msra.mxu0 0
        %4455 = vmatprep.subr.bf16.mxu0 0
        %4456 = vmatpush1.bf16.msra.mxu0 0
        %4457 = vmatprep.subr.bf16.mxu0 0
        %4458 = vmatpush1.bf16.msra.mxu0 0
        %4459 = vmatprep.subr.bf16.mxu0 0
        %4460 = vmatpush1.bf16.msra.mxu0 %v4353
        %4461 = vmatprep.subr.bf16.mxu0 0
        %4462 = vmatpush1.bf16.msra.mxu0 %v4350
        %4463 = vmatprep.subr.bf16.mxu0 0
        %4464 = vmatpush1.bf16.msra.mxu0 %v4347
        %4465 = vmatprep.subr.bf16.mxu0 0
        %4466 = vmatpush1.bf16.msra.mxu0 %v4344
        %4467 = vmatprep.subr.bf16.mxu0 0
        %4468 = vmatpush2.bf16.msra.mxu0 0
        %4469 = vmatprep.subr.bf16.mxu0 0
        %4470 = vmatpush2.bf16.msra.mxu0 0
        %4471 = vmatprep.subr.bf16.mxu0 0
        %4472 = vmatpush2.bf16.msra.mxu0 0
        %4473 = vmatprep.subr.bf16.mxu0 0
        %4474 = vmatpush2.bf16.msra.mxu0 0
        %4475 = vmatprep.subr.bf16.mxu0 0
        %4476 = vmatpush2.bf16.msra.mxu0 0
        %4477 = vmatprep.subr.bf16.mxu0 0
        %4478 = vmatpush2.bf16.msra.mxu0 0
        %4479 = vmatprep.subr.bf16.mxu0 0
        %4480 = vmatpush2.bf16.msra.mxu0 0
        %4481 = vmatprep.subr.bf16.mxu0 0
        %4482 = vmatpush2.bf16.msra.mxu0 0
        %4483 = vmatprep.mubr.bf16.mxu0 0
        %4484 = vmatmul.mubr.bf16.gmra.mxu0 %v4367
        %v4485 = vpop.f32.mrf.mxu0
        %v4486 = vadd.f32 0.0, %v4485
        %v4487 = vpop.f32.mrf.mxu0
        %v4488 = vpop.f32.mrf.mxu0
        %v4489 = vadd.f32 0.0, %v4488
        %v4490 = vpop.f32.mrf.mxu0
        %4491 = vmatprep.mubr.bf16.mxu0 0
        %4492 = vmatmul.mubr.bf16.gmra.mxu0 %v4370
        %v4493 = vpop.f32.mrf.mxu0
        %v4494 = vadd.f32 0.0, %v4493
        %v4495 = vpop.f32.mrf.mxu0
        %v4496 = vpop.f32.mrf.mxu0
        %v4497 = vadd.f32 0.0, %v4496
        %v4498 = vpop.f32.mrf.mxu0
        %4499 = vmatprep.mubr.bf16.mxu0 0
        %4500 = vmatmul.mubr.bf16.gmra.mxu0 %v4373
        %v4501 = vpop.f32.mrf.mxu0
        %v4502 = vadd.f32 0.0, %v4501
        %v4503 = vpop.f32.mrf.mxu0
        %v4504 = vpop.f32.mrf.mxu0
        %v4505 = vadd.f32 0.0, %v4504
        %v4506 = vpop.f32.mrf.mxu0
        %4507 = vmatprep.mubr.bf16.mxu0 0
        %4508 = vmatmul.mubr.bf16.gmra.mxu0 %v4376
        %v4509 = vpop.f32.mrf.mxu0
        %v4510 = vadd.f32 0.0, %v4509
        %v4511 = vpop.f32.mrf.mxu0
        %v4512 = vpop.f32.mrf.mxu0
        %v4513 = vadd.f32 0.0, %v4512
        %v4514 = vpop.f32.mrf.mxu0
        %4515 = vdwg.mxu0
        %v4516 = vadd.f32 %v4258, %v4413
        %v4517 = vadd.f32 %v4259, %v4415
        %v4518 = vadd.f32 %v4260, %v4486
        %v4519 = vadd.f32 %v4261, %v4417
        %v4520 = vadd.f32 %v4262, %v4419
        %v4521 = vadd.f32 %v4263, %v4489
        %v4522 = vadd.f32 %v4264, %v4423
        %v4523 = vadd.f32 %v4265, %v4425
        %v4524 = vadd.f32 %v4266, %v4494
        %v4525 = vadd.f32 %v4267, %v4427
        %v4526 = vadd.f32 %v4268, %v4429
        %v4527 = vadd.f32 %v4269, %v4497
        %v4528 = vadd.f32 %v4270, %v4433
        %v4529 = vadd.f32 %v4271, %v4435
        %v4530 = vadd.f32 %v4272, %v4502
        %v4531 = vadd.f32 %v4273, %v4437
        %v4532 = vadd.f32 %v4274, %v4439
        %v4533 = vadd.f32 %v4275, %v4505
        %v4534 = vadd.f32 %v4276, %v4443
        %v4535 = vadd.f32 %v4277, %v4445
        %v4536 = vadd.f32 %v4278, %v4510
        %v4537 = vadd.f32 %v4279, %v4447
        %v4538 = vadd.f32 %v4280, %v4449
        %v4539 = vadd.f32 %v4281, %v4513
        %4540 = vst [vmem:[#allocation2] sm:$0xff] %v4516
        %4541 = vst [vmem:[#allocation2 + $0x8] sm:$0xff] %v4517
        %4542 = vst [vmem:[#allocation2 + $0x10] sm:$0xff] %v4518
        %4543 = vst [vmem:[#allocation2 + $0x18] sm:$0xff] %v4519
        %4544 = vst [vmem:[#allocation2 + $0x20] sm:$0xff] %v4520
        %4545 = vst [vmem:[#allocation2 + $0x28] sm:$0xff] %v4521
        %4546 = vst [vmem:[#allocation2 + $0x30] sm:$0xff] %v4522
        %4547 = vst [vmem:[#allocation2 + $0x38] sm:$0xff] %v4523
        %4548 = vst [vmem:[#allocation2 + $0x40] sm:$0xff] %v4524
        %4549 = vst [vmem:[#allocation2 + $0x48] sm:$0xff] %v4525
        %4550 = vst [vmem:[#allocation2 + $0x50] sm:$0xff] %v4526
        %4551 = vst [vmem:[#allocation2 + $0x58] sm:$0xff] %v4527
        %4552 = vst [vmem:[#allocation2 + $0x60] sm:$0xff] %v4528
        %4553 = vst [vmem:[#allocation2 + $0x68] sm:$0xff] %v4529
        %4554 = vst [vmem:[#allocation2 + $0x70] sm:$0xff] %v4530
        %4555 = vst [vmem:[#allocation2 + $0x78] sm:$0xff] %v4531
        %4556 = vst [vmem:[#allocation2 + $0x80] sm:$0xff] %v4532
        %4557 = vst [vmem:[#allocation2 + $0x88] sm:$0xff] %v4533
        %4558 = vst [vmem:[#allocation2 + $0x90] sm:$0xff] %v4534
        %4559 = vst [vmem:[#allocation2 + $0x98] sm:$0xff] %v4535
        %4560 = vst [vmem:[#allocation2 + $0xa0] sm:$0xff] %v4536
        %4561 = vst [vmem:[#allocation2 + $0xa8] sm:$0xff] %v4537
        %4562 = vst [vmem:[#allocation2 + $0xb0] sm:$0xff] %v4538
        %4563 = vst [vmem:[#allocation2 + $0xb8] sm:$0xff] %v4539
        %4568 = vrot.lane.b32.xlu0 %v2764, 64
        %v4569 = vpop.permute.xlu0 %4568
        %4570 = vrot.lane.b32.xlu0 %v2767, 64
        %v4571 = vpop.permute.xlu0 %4570
        %4572 = vrot.lane.b32.xlu0 %v2770, 64
        %v4573 = vpop.permute.xlu0 %4572
        %4574 = vrot.lane.b32.xlu0 %v2773, 64
        %v4575 = vpop.permute.xlu0 %4574
        %4584 = vrot.lane.b32.xlu0 %v1960, 64
        %v4585 = vpop.permute.xlu0 %4584
        %4586 = vrot.lane.b32.xlu0 %v1966, 64
        %v4587 = vpop.permute.xlu0 %4586
        %4588 = vrot.lane.b32.xlu0 %v1972, 64
        %v4589 = vpop.permute.xlu0 %4588
        %4590 = vrot.lane.b32.xlu0 %v1978, 64
        %v4591 = vpop.permute.xlu0 %4590
        %4592 = vrot.lane.b32.xlu0 %v1984, 64
        %v4593 = vpop.permute.xlu0 %4592
        %4594 = vrot.lane.b32.xlu0 %v1990, 64
        %v4595 = vpop.permute.xlu0 %4594
        %4596 = vrot.lane.b32.xlu0 %v1996, 64
        %v4597 = vpop.permute.xlu0 %4596
        %4598 = vrot.lane.b32.xlu0 %v2002, 64
        %v4599 = vpop.permute.xlu0 %4598
        %v4601 = vsel %vm2827, %v4569, 0
        %v4604 = vsel %vm2827, %v4571, 0
        %v4607 = vsel %vm2827, %v4573, 0
        %v4610 = vsel %vm2827, %v4575, 0
        %v4613 = vsel %vm2827, %v4585, 0
        %v4616 = vsel %vm2827, %v4587, 0
        %v4619 = vsel %vm2827, %v4589, 0
        %v4622 = vsel %vm2827, %v4591, 0
        %v4625 = vsel %vm2827, %v4593, 0
        %v4628 = vsel %vm2827, %v4595, 0
        %v4631 = vsel %vm2827, %v4597, 0
        %v4634 = vsel %vm2827, %v4599, 0
        %4636 = vmatprep.subr.bf16.mxu0 0
        %4637 = vmatpush1.bf16.xpose.msra.mxu0 %v4634
        %4638 = vmatprep.subr.bf16.mxu0 0
        %4639 = vmatpush1.bf16.xpose.msra.mxu0 %v4631
        %4640 = vmatprep.subr.bf16.mxu0 0
        %4641 = vmatpush1.bf16.xpose.msra.mxu0 %v4628
        %4642 = vmatprep.subr.bf16.mxu0 0
        %4643 = vmatpush1.bf16.xpose.msra.mxu0 %v4625
        %4644 = vmatprep.subr.bf16.mxu0 0
        %4645 = vmatpush1.bf16.xpose.msra.mxu0 %v4622
        %4646 = vmatprep.subr.bf16.mxu0 0
        %4647 = vmatpush1.bf16.xpose.msra.mxu0 %v4619
        %4648 = vmatprep.subr.bf16.mxu0 0
        %4649 = vmatpush1.bf16.xpose.msra.mxu0 %v4616
        %4650 = vmatprep.subr.bf16.mxu0 0
        %4651 = vmatpush1.bf16.xpose.msra.mxu0 %v4613
        %4652 = vmatprep.subr.bf16.mxu0 0
        %4653 = vmatpush2.bf16.xpose.msra.mxu0 0
        %4654 = vmatprep.subr.bf16.mxu0 0
        %4655 = vmatpush2.bf16.xpose.msra.mxu0 0
        %4656 = vmatprep.subr.bf16.mxu0 0
        %4657 = vmatpush2.bf16.xpose.msra.mxu0 0
        %4658 = vmatprep.subr.bf16.mxu0 0
        %4659 = vmatpush2.bf16.xpose.msra.mxu0 0
        %4660 = vmatprep.subr.bf16.mxu0 0
        %4661 = vmatpush2.bf16.xpose.msra.mxu0 0
        %4662 = vmatprep.subr.bf16.mxu0 0
        %4663 = vmatpush2.bf16.xpose.msra.mxu0 0
        %4664 = vmatprep.subr.bf16.mxu0 0
        %4665 = vmatpush2.bf16.xpose.msra.mxu0 0
        %4666 = vmatprep.subr.bf16.mxu0 0
        %4667 = vmatpush2.bf16.xpose.msra.mxu0 0
        %4668 = vmatprep.mubr.bf16.mxu0 0
        %4669 = vmatmul.mubr.bf16.gmra.mxu0 %v4601
        %v4670 = vpop.f32.mrf.mxu0
        %v4671 = vadd.f32 0.0, %v4670
        %v4672 = vpop.f32.mrf.mxu0
        %v4673 = vpop.f32.mrf.mxu0
        %v4674 = vadd.f32 0.0, %v4673
        %v4675 = vpop.f32.mrf.mxu0
        %4676 = vmatprep.mubr.bf16.mxu0 0
        %4677 = vmatmul.mubr.bf16.gmra.mxu0 %v4604
        %v4678 = vpop.f32.mrf.mxu0
        %v4679 = vadd.f32 0.0, %v4678
        %v4680 = vpop.f32.mrf.mxu0
        %v4681 = vpop.f32.mrf.mxu0
        %v4682 = vadd.f32 0.0, %v4681
        %v4683 = vpop.f32.mrf.mxu0
        %4684 = vmatprep.mubr.bf16.mxu0 0
        %4685 = vmatmul.mubr.bf16.gmra.mxu0 %v4607
        %v4686 = vpop.f32.mrf.mxu0
        %v4687 = vadd.f32 0.0, %v4686
        %v4688 = vpop.f32.mrf.mxu0
        %v4689 = vpop.f32.mrf.mxu0
        %v4690 = vadd.f32 0.0, %v4689
        %v4691 = vpop.f32.mrf.mxu0
        %4692 = vmatprep.mubr.bf16.mxu0 0
        %4693 = vmatmul.mubr.bf16.gmra.mxu0 %v4610
        %v4694 = vpop.f32.mrf.mxu0
        %v4695 = vadd.f32 0.0, %v4694
        %v4696 = vpop.f32.mrf.mxu0
        %v4697 = vpop.f32.mrf.mxu0
        %v4698 = vadd.f32 0.0, %v4697
        %v4699 = vpop.f32.mrf.mxu0
        %4700 = vdwg.mxu0
        %v4701 = vsel %vm2795, %v4671, -1e+30
        %v4702 = vsel %vm2796, %v4674, -1e+30
        %v4703 = vsel %vm2797, %v4679, -1e+30
        %v4704 = vsel %vm2798, %v4682, -1e+30
        %v4705 = vsel %vm2799, %v4687, -1e+30
        %v4706 = vsel %vm2800, %v4690, -1e+30
        %v4707 = vsel %vm2801, %v4695, -1e+30
        %v4708 = vsel %vm2802, %v4698, -1e+30
        %4709 = vmax.xlane.f32.xlu0 %v4701
        %v4710 = vpop.xlane.xlu0 %4709
        %4711 = vmax.xlane.f32.xlu0 %v4702
        %v4712 = vpop.xlane.xlu0 %4711
        %4713 = vmax.xlane.f32.xlu0 %v4703
        %v4714 = vpop.xlane.xlu0 %4713
        %4715 = vmax.xlane.f32.xlu0 %v4704
        %v4716 = vpop.xlane.xlu0 %4715
        %4717 = vmax.xlane.f32.xlu0 %v4705
        %v4718 = vpop.xlane.xlu0 %4717
        %4719 = vmax.xlane.f32.xlu0 %v4706
        %v4720 = vpop.xlane.xlu0 %4719
        %4721 = vmax.xlane.f32.xlu0 %v4707
        %v4722 = vpop.xlane.xlu0 %4721
        %4723 = vmax.xlane.f32.xlu0 %v4708
        %v4724 = vpop.xlane.xlu0 %4723
        %v4725 = vsub.f32 %v4701, %v4710
        %v4726 = vsub.f32 %v4702, %v4712
        %v4727 = vsub.f32 %v4703, %v4714
        %v4728 = vsub.f32 %v4704, %v4716
        %v4729 = vsub.f32 %v4705, %v4718
        %v4730 = vsub.f32 %v4706, %v4720
        %v4731 = vsub.f32 %v4707, %v4722
        %v4732 = vsub.f32 %v4708, %v4724
        %v4733 = vmul.f32 %v4725, 1.442695
        %v4734 = vpow.pop %v4733
        %v4735 = vmul.f32 %v4726, 1.442695
        %v4736 = vpow.pop %v4735
        %v4737 = vmul.f32 %v4727, 1.442695
        %v4738 = vpow.pop %v4737
        %v4739 = vmul.f32 %v4728, 1.442695
        %v4740 = vpow.pop %v4739
        %v4741 = vmul.f32 %v4729, 1.442695
        %v4742 = vpow.pop %v4741
        %v4743 = vmul.f32 %v4730, 1.442695
        %v4744 = vpow.pop %v4743
        %v4745 = vmul.f32 %v4731, 1.442695
        %v4746 = vpow.pop %v4745
        %v4747 = vmul.f32 %v4732, 1.442695
        %v4748 = vpow.pop %v4747
        %4749 = vadd.xlane.f32.xlu0 %v4734
        %v4750 = vpop.xlane.xlu0 %4749
        %4751 = vadd.xlane.f32.xlu0 %v4736
        %v4752 = vpop.xlane.xlu0 %4751
        %4753 = vadd.xlane.f32.xlu0 %v4738
        %v4754 = vpop.xlane.xlu0 %4753
        %4755 = vadd.xlane.f32.xlu0 %v4740
        %v4756 = vpop.xlane.xlu0 %4755
        %4757 = vadd.xlane.f32.xlu0 %v4742
        %v4758 = vpop.xlane.xlu0 %4757
        %4759 = vadd.xlane.f32.xlu0 %v4744
        %v4760 = vpop.xlane.xlu0 %4759
        %4761 = vadd.xlane.f32.xlu0 %v4746
        %v4762 = vpop.xlane.xlu0 %4761
        %4763 = vadd.xlane.f32.xlu0 %v4748
        %v4764 = vpop.xlane.xlu0 %4763
        %v4765 = vrcp.pop %v4750
        %v4766 = vrcp.pop %v4752
        %v4767 = vrcp.pop %v4754
        %v4768 = vrcp.pop %v4756
        %v4769 = vrcp.pop %v4758
        %v4770 = vrcp.pop %v4760
        %v4771 = vrcp.pop %v4762
        %v4772 = vrcp.pop %v4764
        %v4773 = vmul.f32 %v4734, %v4765
        %v4774 = vmul.f32 %v4736, %v4766
        %v4775 = vmul.f32 %v4738, %v4767
        %v4776 = vmul.f32 %v4740, %v4768
        %v4777 = vmul.f32 %v4742, %v4769
        %v4778 = vmul.f32 %v4744, %v4770
        %v4779 = vmul.f32 %v4746, %v4771
        %v4780 = vmul.f32 %v4748, %v4772
        %v4781 = vpack.c.bf16 %v4774, %v4773
        %v4782 = vpack.c.bf16 %v4776, %v4775
        %v4783 = vpack.c.bf16 %v4778, %v4777
        %v4784 = vpack.c.bf16 %v4780, %v4779
        %4793 = vrot.lane.b32.xlu0 %v1963, 64
        %v4794 = vpop.permute.xlu0 %4793
        %4795 = vrot.lane.b32.xlu0 %v1969, 64
        %v4796 = vpop.permute.xlu0 %4795
        %4797 = vrot.lane.b32.xlu0 %v1975, 64
        %v4798 = vpop.permute.xlu0 %4797
        %4799 = vrot.lane.b32.xlu0 %v1981, 64
        %v4800 = vpop.permute.xlu0 %4799
        %4801 = vrot.lane.b32.xlu0 %v1987, 64
        %v4802 = vpop.permute.xlu0 %4801
        %4803 = vrot.lane.b32.xlu0 %v1993, 64
        %v4804 = vpop.permute.xlu0 %4803
        %4805 = vrot.lane.b32.xlu0 %v1999, 64
        %v4806 = vpop.permute.xlu0 %4805
        %4807 = vrot.lane.b32.xlu0 %v2005, 64
        %v4808 = vpop.permute.xlu0 %4807
        %4817 = vmatprep.subr.bf16.mxu0 0
        %4818 = vmatpush1.bf16.msra.mxu0 %v4808
        %4819 = vmatprep.subr.bf16.mxu0 0
        %4820 = vmatpush1.bf16.msra.mxu0 %v4806
        %4821 = vmatprep.subr.bf16.mxu0 0
        %4822 = vmatpush1.bf16.msra.mxu0 %v4804
        %4823 = vmatprep.subr.bf16.mxu0 0
        %4824 = vmatpush1.bf16.msra.mxu0 %v4802
        %4825 = vmatprep.subr.bf16.mxu0 0
        %4826 = vmatpush1.bf16.msra.mxu0 %v4800
        %4827 = vmatprep.subr.bf16.mxu0 0
        %4828 = vmatpush1.bf16.msra.mxu0 %v4798
        %4829 = vmatprep.subr.bf16.mxu0 0
        %4830 = vmatpush1.bf16.msra.mxu0 %v4796
        %4831 = vmatprep.subr.bf16.mxu0 0
        %4832 = vmatpush1.bf16.msra.mxu0 %v4794
        %4833 = vmatprep.subr.bf16.mxu0 0
        %4834 = vmatpush2.bf16.msra.mxu0 0
        %4835 = vmatprep.subr.bf16.mxu0 0
        %4836 = vmatpush2.bf16.msra.mxu0 0
        %4837 = vmatprep.subr.bf16.mxu0 0
        %4838 = vmatpush2.bf16.msra.mxu0 0
        %4839 = vmatprep.subr.bf16.mxu0 0
        %4840 = vmatpush2.bf16.msra.mxu0 0
        %4841 = vmatprep.subr.bf16.mxu0 0
        %4842 = vmatpush2.bf16.msra.mxu0 0
        %4843 = vmatprep.subr.bf16.mxu0 0
        %4844 = vmatpush2.bf16.msra.mxu0 0
        %4845 = vmatprep.subr.bf16.mxu0 0
        %4846 = vmatpush2.bf16.msra.mxu0 0
        %4847 = vmatprep.subr.bf16.mxu0 0
        %4848 = vmatpush2.bf16.msra.mxu0 0
        %4849 = vmatprep.mubr.bf16.mxu0 0
        %4850 = vmatmul.mubr.bf16.gmra.mxu0 %v4781
        %v4851 = vpop.f32.mrf.mxu0
        %v4852 = vadd.f32 0.0, %v4851
        %v4853 = vpop.f32.mrf.mxu0
        %v4854 = vpop.f32.mrf.mxu0
        %v4855 = vadd.f32 0.0, %v4854
        %v4856 = vpop.f32.mrf.mxu0
        %4857 = vmatprep.mubr.bf16.mxu0 0
        %4858 = vmatmul.mubr.bf16.gmra.mxu0 %v4782
        %v4859 = vpop.f32.mrf.mxu0
        %v4860 = vadd.f32 0.0, %v4859
        %v4861 = vpop.f32.mrf.mxu0
        %v4862 = vpop.f32.mrf.mxu0
        %v4863 = vadd.f32 0.0, %v4862
        %v4864 = vpop.f32.mrf.mxu0
        %4865 = vmatprep.mubr.bf16.mxu0 0
        %4866 = vmatmul.mubr.bf16.gmra.mxu0 %v4783
        %v4867 = vpop.f32.mrf.mxu0
        %v4868 = vadd.f32 0.0, %v4867
        %v4869 = vpop.f32.mrf.mxu0
        %v4870 = vpop.f32.mrf.mxu0
        %v4871 = vadd.f32 0.0, %v4870
        %v4872 = vpop.f32.mrf.mxu0
        %4873 = vmatprep.mubr.bf16.mxu0 0
        %4874 = vmatmul.mubr.bf16.gmra.mxu0 %v4784
        %v4875 = vpop.f32.mrf.mxu0
        %v4876 = vadd.f32 0.0, %v4875
        %v4877 = vpop.f32.mrf.mxu0
        %v4878 = vpop.f32.mrf.mxu0
        %v4879 = vadd.f32 0.0, %v4878
        %v4880 = vpop.f32.mrf.mxu0
        %4881 = vdwg.mxu0
        %v4882 = vld [vmem:[#allocation2] sm:$0xff]
        %v4883 = vld [vmem:[#allocation2 + $0x8] sm:$0xff]
        %v4884 = vld [vmem:[#allocation2 + $0x10] sm:$0xff]
        %v4885 = vld [vmem:[#allocation2 + $0x18] sm:$0xff]
        %v4886 = vld [vmem:[#allocation2 + $0x20] sm:$0xff]
        %v4887 = vld [vmem:[#allocation2 + $0x28] sm:$0xff]
        %v4888 = vld [vmem:[#allocation2 + $0x30] sm:$0xff]
        %v4889 = vld [vmem:[#allocation2 + $0x38] sm:$0xff]
        %v4890 = vld [vmem:[#allocation2 + $0x40] sm:$0xff]
        %v4891 = vld [vmem:[#allocation2 + $0x48] sm:$0xff]
        %v4892 = vld [vmem:[#allocation2 + $0x50] sm:$0xff]
        %v4893 = vld [vmem:[#allocation2 + $0x58] sm:$0xff]
        %v4894 = vld [vmem:[#allocation2 + $0x60] sm:$0xff]
        %v4895 = vld [vmem:[#allocation2 + $0x68] sm:$0xff]
        %v4896 = vld [vmem:[#allocation2 + $0x70] sm:$0xff]
        %v4897 = vld [vmem:[#allocation2 + $0x78] sm:$0xff]
        %v4898 = vld [vmem:[#allocation2 + $0x80] sm:$0xff]
        %v4899 = vld [vmem:[#allocation2 + $0x88] sm:$0xff]
        %v4900 = vld [vmem:[#allocation2 + $0x90] sm:$0xff]
        %v4901 = vld [vmem:[#allocation2 + $0x98] sm:$0xff]
        %v4902 = vld [vmem:[#allocation2 + $0xa0] sm:$0xff]
        %v4903 = vld [vmem:[#allocation2 + $0xa8] sm:$0xff]
        %v4904 = vld [vmem:[#allocation2 + $0xb0] sm:$0xff]
        %v4905 = vld [vmem:[#allocation2 + $0xb8] sm:$0xff]
        %v4906 = vpack.c.bf16 %v4855, %v4852
        %v4907 = vpack.c.bf16 %v4863, %v4860
        %v4908 = vpack.c.bf16 %v4871, %v4868
        %v4909 = vpack.c.bf16 %v4879, %v4876
        %v4910 = vld [vmem:[#allocation9 + $0x120] sm:$0xff]
        %v4911 = vld [vmem:[#allocation9 + $0x128] sm:$0xf]
        %v4912 = vld [vmem:[#allocation9 + $0x12c] sm:$0xff]
        %v4913 = vld [vmem:[#allocation9 + $0x134] sm:$0xf]
        %v4914 = vld [vmem:[#allocation9 + $0x138] sm:$0xff]
        %v4915 = vld [vmem:[#allocation9 + $0x140] sm:$0xf]
        %v4916 = vld [vmem:[#allocation9 + $0x144] sm:$0xff]
        %v4917 = vld [vmem:[#allocation9 + $0x14c] sm:$0xf]
        %v4918 = vld [vmem:[#allocation9 + $0x150] sm:$0xff]
        %v4919 = vld [vmem:[#allocation9 + $0x158] sm:$0xf]
        %v4920 = vld [vmem:[#allocation9 + $0x15c] sm:$0xff]
        %v4921 = vld [vmem:[#allocation9 + $0x164] sm:$0xf]
        %v4922 = vld [vmem:[#allocation9 + $0x168] sm:$0xff]
        %v4923 = vld [vmem:[#allocation9 + $0x170] sm:$0xf]
        %v4924 = vld [vmem:[#allocation9 + $0x174] sm:$0xff]
        %v4925 = vld [vmem:[#allocation9 + $0x17c] sm:$0xf]
        %v4942 = vunpack.c.l.b16 %v4910
        %v4943 = vunpack.c.h.b16 %v4910
        %v4944 = vunpack.c.l.b16 %v4911
        %v4945 = vunpack.c.l.b16 %v4912
        %v4946 = vunpack.c.h.b16 %v4912
        %v4947 = vunpack.c.l.b16 %v4913
        %v4948 = vunpack.c.l.b16 %v4914
        %v4949 = vunpack.c.h.b16 %v4914
        %v4950 = vunpack.c.l.b16 %v4915
        %v4951 = vunpack.c.l.b16 %v4916
        %v4952 = vunpack.c.h.b16 %v4916
        %v4953 = vunpack.c.l.b16 %v4917
        %v4954 = vunpack.c.l.b16 %v4918
        %v4955 = vunpack.c.h.b16 %v4918
        %v4956 = vunpack.c.l.b16 %v4919
        %v4957 = vunpack.c.l.b16 %v4920
        %v4958 = vunpack.c.h.b16 %v4920
        %v4959 = vunpack.c.l.b16 %v4921
        %v4960 = vunpack.c.l.b16 %v4922
        %v4961 = vunpack.c.h.b16 %v4922
        %v4962 = vunpack.c.l.b16 %v4923
        %v4963 = vunpack.c.l.b16 %v4924
        %v4964 = vunpack.c.h.b16 %v4924
        %v4965 = vunpack.c.l.b16 %v4925
        %v4966 = vpack.c.b16 %v4945, %v4942
        %v4967 = vpack.c.b16 %v4946, %v4943
        %v4968 = vpack.c.b16 %v4947, %v4944
        %v4969 = vpack.c.b16 %v4951, %v4948
        %v4970 = vpack.c.b16 %v4952, %v4949
        %v4971 = vpack.c.b16 %v4953, %v4950
        %v4972 = vpack.c.b16 %v4957, %v4954
        %v4973 = vpack.c.b16 %v4958, %v4955
        %v4974 = vpack.c.b16 %v4959, %v4956
        %v4975 = vpack.c.b16 %v4963, %v4960
        %v4976 = vpack.c.b16 %v4964, %v4961
        %v4977 = vpack.c.b16 %v4965, %v4962
        %v4991 = vsel %vm2827, %v4906, 0
        %v4994 = vsel %vm2827, %v4907, 0
        %v4997 = vsel %vm2827, %v4908, 0
        %v5000 = vsel %vm2827, %v4909, 0
        %5002 = vmatprep.subr.bf16.mxu0 0
        %5003 = vmatpush1.bf16.msra.mxu0 0
        %5004 = vmatprep.subr.bf16.mxu0 0
        %5005 = vmatpush1.bf16.msra.mxu0 0
        %5006 = vmatprep.subr.bf16.mxu0 0
        %5007 = vmatpush1.bf16.msra.mxu0 0
        %5008 = vmatprep.subr.bf16.mxu0 0
        %5009 = vmatpush1.bf16.msra.mxu0 0
        %5010 = vmatprep.subr.bf16.mxu0 %v4976
        %5011 = vmatpush1.bf16.msra.mxu0 %v4975
        %5012 = vmatprep.subr.bf16.mxu0 %v4973
        %5013 = vmatpush1.bf16.msra.mxu0 %v4972
        %5014 = vmatprep.subr.bf16.mxu0 %v4970
        %5015 = vmatpush1.bf16.msra.mxu0 %v4969
        %5016 = vmatprep.subr.bf16.mxu0 %v4967
        %5017 = vmatpush1.bf16.msra.mxu0 %v4966
        %5018 = vmatprep.subr.bf16.mxu0 0
        %5019 = vmatpush2.bf16.msra.mxu0 0
        %5020 = vmatprep.subr.bf16.mxu0 0
        %5021 = vmatpush2.bf16.msra.mxu0 0
        %5022 = vmatprep.subr.bf16.mxu0 0
        %5023 = vmatpush2.bf16.msra.mxu0 0
        %5024 = vmatprep.subr.bf16.mxu0 0
        %5025 = vmatpush2.bf16.msra.mxu0 0
        %5026 = vmatprep.subr.bf16.mxu0 0
        %5027 = vmatpush2.bf16.msra.mxu0 0
        %5028 = vmatprep.subr.bf16.mxu0 0
        %5029 = vmatpush2.bf16.msra.mxu0 0
        %5030 = vmatprep.subr.bf16.mxu0 0
        %5031 = vmatpush2.bf16.msra.mxu0 0
        %5032 = vmatprep.subr.bf16.mxu0 0
        %5033 = vmatpush2.bf16.msra.mxu0 0
        %5034 = vmatprep.mubr.bf16.mxu0 0
        %5035 = vmatmul.mubr.bf16.gmra.mxu0 %v4991
        %v5036 = vpop.f32.mrf.mxu0
        %v5037 = vadd.f32 0.0, %v5036
        %v5038 = vpop.f32.mrf.mxu0
        %v5039 = vadd.f32 0.0, %v5038
        %v5040 = vpop.f32.mrf.mxu0
        %v5041 = vadd.f32 0.0, %v5040
        %v5042 = vpop.f32.mrf.mxu0
        %v5043 = vadd.f32 0.0, %v5042
        %5044 = vmatprep.mubr.bf16.mxu0 0
        %5045 = vmatmul.mubr.bf16.gmra.mxu0 %v4994
        %v5046 = vpop.f32.mrf.mxu0
        %v5047 = vadd.f32 0.0, %v5046
        %v5048 = vpop.f32.mrf.mxu0
        %v5049 = vadd.f32 0.0, %v5048
        %v5050 = vpop.f32.mrf.mxu0
        %v5051 = vadd.f32 0.0, %v5050
        %v5052 = vpop.f32.mrf.mxu0
        %v5053 = vadd.f32 0.0, %v5052
        %5054 = vmatprep.mubr.bf16.mxu0 0
        %5055 = vmatmul.mubr.bf16.gmra.mxu0 %v4997
        %v5056 = vpop.f32.mrf.mxu0
        %v5057 = vadd.f32 0.0, %v5056
        %v5058 = vpop.f32.mrf.mxu0
        %v5059 = vadd.f32 0.0, %v5058
        %v5060 = vpop.f32.mrf.mxu0
        %v5061 = vadd.f32 0.0, %v5060
        %v5062 = vpop.f32.mrf.mxu0
        %v5063 = vadd.f32 0.0, %v5062
        %5064 = vmatprep.mubr.bf16.mxu0 0
        %5065 = vmatmul.mubr.bf16.gmra.mxu0 %v5000
        %v5066 = vpop.f32.mrf.mxu0
        %v5067 = vadd.f32 0.0, %v5066
        %v5068 = vpop.f32.mrf.mxu0
        %v5069 = vadd.f32 0.0, %v5068
        %v5070 = vpop.f32.mrf.mxu0
        %v5071 = vadd.f32 0.0, %v5070
        %v5072 = vpop.f32.mrf.mxu0
        %v5073 = vadd.f32 0.0, %v5072
        %5074 = vdwg.mxu0
        %5075 = vmatprep.subr.bf16.mxu0 0
        %5076 = vmatpush1.bf16.msra.mxu0 0
        %5077 = vmatprep.subr.bf16.mxu0 0
        %5078 = vmatpush1.bf16.msra.mxu0 0
        %5079 = vmatprep.subr.bf16.mxu0 0
        %5080 = vmatpush1.bf16.msra.mxu0 0
        %5081 = vmatprep.subr.bf16.mxu0 0
        %5082 = vmatpush1.bf16.msra.mxu0 0
        %5083 = vmatprep.subr.bf16.mxu0 0
        %5084 = vmatpush1.bf16.msra.mxu0 %v4977
        %5085 = vmatprep.subr.bf16.mxu0 0
        %5086 = vmatpush1.bf16.msra.mxu0 %v4974
        %5087 = vmatprep.subr.bf16.mxu0 0
        %5088 = vmatpush1.bf16.msra.mxu0 %v4971
        %5089 = vmatprep.subr.bf16.mxu0 0
        %5090 = vmatpush1.bf16.msra.mxu0 %v4968
        %5091 = vmatprep.subr.bf16.mxu0 0
        %5092 = vmatpush2.bf16.msra.mxu0 0
        %5093 = vmatprep.subr.bf16.mxu0 0
        %5094 = vmatpush2.bf16.msra.mxu0 0
        %5095 = vmatprep.subr.bf16.mxu0 0
        %5096 = vmatpush2.bf16.msra.mxu0 0
        %5097 = vmatprep.subr.bf16.mxu0 0
        %5098 = vmatpush2.bf16.msra.mxu0 0
        %5099 = vmatprep.subr.bf16.mxu0 0
        %5100 = vmatpush2.bf16.msra.mxu0 0
        %5101 = vmatprep.subr.bf16.mxu0 0
        %5102 = vmatpush2.bf16.msra.mxu0 0
        %5103 = vmatprep.subr.bf16.mxu0 0
        %5104 = vmatpush2.bf16.msra.mxu0 0
        %5105 = vmatprep.subr.bf16.mxu0 0
        %5106 = vmatpush2.bf16.msra.mxu0 0
        %5107 = vmatprep.mubr.bf16.mxu0 0
        %5108 = vmatmul.mubr.bf16.gmra.mxu0 %v4991
        %v5109 = vpop.f32.mrf.mxu0
        %v5110 = vadd.f32 0.0, %v5109
        %v5111 = vpop.f32.mrf.mxu0
        %v5112 = vpop.f32.mrf.mxu0
        %v5113 = vadd.f32 0.0, %v5112
        %v5114 = vpop.f32.mrf.mxu0
        %5115 = vmatprep.mubr.bf16.mxu0 0
        %5116 = vmatmul.mubr.bf16.gmra.mxu0 %v4994
        %v5117 = vpop.f32.mrf.mxu0
        %v5118 = vadd.f32 0.0, %v5117
        %v5119 = vpop.f32.mrf.mxu0
        %v5120 = vpop.f32.mrf.mxu0
        %v5121 = vadd.f32 0.0, %v5120
        %v5122 = vpop.f32.mrf.mxu0
        %5123 = vmatprep.mubr.bf16.mxu0 0
        %5124 = vmatmul.mubr.bf16.gmra.mxu0 %v4997
        %v5125 = vpop.f32.mrf.mxu0
        %v5126 = vadd.f32 0.0, %v5125
        %v5127 = vpop.f32.mrf.mxu0
        %v5128 = vpop.f32.mrf.mxu0
        %v5129 = vadd.f32 0.0, %v5128
        %v5130 = vpop.f32.mrf.mxu0
        %5131 = vmatprep.mubr.bf16.mxu0 0
        %5132 = vmatmul.mubr.bf16.gmra.mxu0 %v5000
        %v5133 = vpop.f32.mrf.mxu0
        %v5134 = vadd.f32 0.0, %v5133
        %v5135 = vpop.f32.mrf.mxu0
        %v5136 = vpop.f32.mrf.mxu0
        %v5137 = vadd.f32 0.0, %v5136
        %v5138 = vpop.f32.mrf.mxu0
        %5139 = vdwg.mxu0
        %v5140 = vadd.f32 %v4882, %v5037
        %v5141 = vadd.f32 %v4883, %v5039
        %v5142 = vadd.f32 %v4884, %v5110
        %v5143 = vadd.f32 %v4885, %v5041
        %v5144 = vadd.f32 %v4886, %v5043
        %v5145 = vadd.f32 %v4887, %v5113
        %v5146 = vadd.f32 %v4888, %v5047
        %v5147 = vadd.f32 %v4889, %v5049
        %v5148 = vadd.f32 %v4890, %v5118
        %v5149 = vadd.f32 %v4891, %v5051
        %v5150 = vadd.f32 %v4892, %v5053
        %v5151 = vadd.f32 %v4893, %v5121
        %v5152 = vadd.f32 %v4894, %v5057
        %v5153 = vadd.f32 %v4895, %v5059
        %v5154 = vadd.f32 %v4896, %v5126
        %v5155 = vadd.f32 %v4897, %v5061
        %v5156 = vadd.f32 %v4898, %v5063
        %v5157 = vadd.f32 %v4899, %v5129
        %v5158 = vadd.f32 %v4900, %v5067
        %v5159 = vadd.f32 %v4901, %v5069
        %v5160 = vadd.f32 %v4902, %v5134
        %v5161 = vadd.f32 %v4903, %v5071
        %v5162 = vadd.f32 %v4904, %v5073
        %v5163 = vadd.f32 %v4905, %v5137
        %5164 = vst [vmem:[#allocation2] sm:$0xff] %v5140
        %5165 = vst [vmem:[#allocation2 + $0x8] sm:$0xff] %v5141
        %5166 = vst [vmem:[#allocation2 + $0x10] sm:$0xff] %v5142
        %5167 = vst [vmem:[#allocation2 + $0x18] sm:$0xff] %v5143
        %5168 = vst [vmem:[#allocation2 + $0x20] sm:$0xff] %v5144
        %5169 = vst [vmem:[#allocation2 + $0x28] sm:$0xff] %v5145
        %5170 = vst [vmem:[#allocation2 + $0x30] sm:$0xff] %v5146
        %5171 = vst [vmem:[#allocation2 + $0x38] sm:$0xff] %v5147
        %5172 = vst [vmem:[#allocation2 + $0x40] sm:$0xff] %v5148
        %5173 = vst [vmem:[#allocation2 + $0x48] sm:$0xff] %v5149
        %5174 = vst [vmem:[#allocation2 + $0x50] sm:$0xff] %v5150
        %5175 = vst [vmem:[#allocation2 + $0x58] sm:$0xff] %v5151
        %5176 = vst [vmem:[#allocation2 + $0x60] sm:$0xff] %v5152
        %5177 = vst [vmem:[#allocation2 + $0x68] sm:$0xff] %v5153
        %5178 = vst [vmem:[#allocation2 + $0x70] sm:$0xff] %v5154
        %5179 = vst [vmem:[#allocation2 + $0x78] sm:$0xff] %v5155
        %5180 = vst [vmem:[#allocation2 + $0x80] sm:$0xff] %v5156
        %5181 = vst [vmem:[#allocation2 + $0x88] sm:$0xff] %v5157
        %5182 = vst [vmem:[#allocation2 + $0x90] sm:$0xff] %v5158
        %5183 = vst [vmem:[#allocation2 + $0x98] sm:$0xff] %v5159
        %5184 = vst [vmem:[#allocation2 + $0xa0] sm:$0xff] %v5160
        %5185 = vst [vmem:[#allocation2 + $0xa8] sm:$0xff] %v5161
        %5186 = vst [vmem:[#allocation2 + $0xb0] sm:$0xff] %v5162
        %5187 = vst [vmem:[#allocation2 + $0xb8] sm:$0xff] %v5163
        %v5189 = vsel %vm2827, %v2765, 0
        %v5192 = vsel %vm2827, %v2768, 0
        %v5195 = vsel %vm2827, %v2771, 0
        %v5198 = vsel %vm2827, %v2774, 0
        %v5201 = vsel %vm2827, %v1961, 0
        %v5204 = vsel %vm2827, %v1967, 0
        %v5207 = vsel %vm2827, %v1973, 0
        %v5210 = vsel %vm2827, %v1979, 0
        %v5213 = vsel %vm2827, %v1985, 0
        %v5216 = vsel %vm2827, %v1991, 0
        %v5219 = vsel %vm2827, %v1997, 0
        %v5222 = vsel %vm2827, %v2003, 0
        %5224 = vmatprep.subr.bf16.mxu0 0
        %5225 = vmatpush1.bf16.xpose.msra.mxu0 %v5222
        %5226 = vmatprep.subr.bf16.mxu0 0
        %5227 = vmatpush1.bf16.xpose.msra.mxu0 %v5219
        %5228 = vmatprep.subr.bf16.mxu0 0
        %5229 = vmatpush1.bf16.xpose.msra.mxu0 %v5216
        %5230 = vmatprep.subr.bf16.mxu0 0
        %5231 = vmatpush1.bf16.xpose.msra.mxu0 %v5213
        %5232 = vmatprep.subr.bf16.mxu0 0
        %5233 = vmatpush1.bf16.xpose.msra.mxu0 %v5210
        %5234 = vmatprep.subr.bf16.mxu0 0
        %5235 = vmatpush1.bf16.xpose.msra.mxu0 %v5207
        %5236 = vmatprep.subr.bf16.mxu0 0
        %5237 = vmatpush1.bf16.xpose.msra.mxu0 %v5204
        %5238 = vmatprep.subr.bf16.mxu0 0
        %5239 = vmatpush1.bf16.xpose.msra.mxu0 %v5201
        %5240 = vmatprep.subr.bf16.mxu0 0
        %5241 = vmatpush2.bf16.xpose.msra.mxu0 0
        %5242 = vmatprep.subr.bf16.mxu0 0
        %5243 = vmatpush2.bf16.xpose.msra.mxu0 0
        %5244 = vmatprep.subr.bf16.mxu0 0
        %5245 = vmatpush2.bf16.xpose.msra.mxu0 0
        %5246 = vmatprep.subr.bf16.mxu0 0
        %5247 = vmatpush2.bf16.xpose.msra.mxu0 0
        %5248 = vmatprep.subr.bf16.mxu0 0
        %5249 = vmatpush2.bf16.xpose.msra.mxu0 0
        %5250 = vmatprep.subr.bf16.mxu0 0
        %5251 = vmatpush2.bf16.xpose.msra.mxu0 0
        %5252 = vmatprep.subr.bf16.mxu0 0
        %5253 = vmatpush2.bf16.xpose.msra.mxu0 0
        %5254 = vmatprep.subr.bf16.mxu0 0
        %5255 = vmatpush2.bf16.xpose.msra.mxu0 0
        %5256 = vmatprep.mubr.bf16.mxu0 0
        %5257 = vmatmul.mubr.bf16.gmra.mxu0 %v5189
        %v5258 = vpop.f32.mrf.mxu0
        %v5259 = vadd.f32 0.0, %v5258
        %v5260 = vpop.f32.mrf.mxu0
        %v5261 = vpop.f32.mrf.mxu0
        %v5262 = vadd.f32 0.0, %v5261
        %v5263 = vpop.f32.mrf.mxu0
        %5264 = vmatprep.mubr.bf16.mxu0 0
        %5265 = vmatmul.mubr.bf16.gmra.mxu0 %v5192
        %v5266 = vpop.f32.mrf.mxu0
        %v5267 = vadd.f32 0.0, %v5266
        %v5268 = vpop.f32.mrf.mxu0
        %v5269 = vpop.f32.mrf.mxu0
        %v5270 = vadd.f32 0.0, %v5269
        %v5271 = vpop.f32.mrf.mxu0
        %5272 = vmatprep.mubr.bf16.mxu0 0
        %5273 = vmatmul.mubr.bf16.gmra.mxu0 %v5195
        %v5274 = vpop.f32.mrf.mxu0
        %v5275 = vadd.f32 0.0, %v5274
        %v5276 = vpop.f32.mrf.mxu0
        %v5277 = vpop.f32.mrf.mxu0
        %v5278 = vadd.f32 0.0, %v5277
        %v5279 = vpop.f32.mrf.mxu0
        %5280 = vmatprep.mubr.bf16.mxu0 0
        %5281 = vmatmul.mubr.bf16.gmra.mxu0 %v5198
        %v5282 = vpop.f32.mrf.mxu0
        %v5283 = vadd.f32 0.0, %v5282
        %v5284 = vpop.f32.mrf.mxu0
        %v5285 = vpop.f32.mrf.mxu0
        %v5286 = vadd.f32 0.0, %v5285
        %v5287 = vpop.f32.mrf.mxu0
        %5288 = vdwg.mxu0
        %v5289 = vsel %vm2795, %v5259, -1e+30
        %v5290 = vsel %vm2796, %v5262, -1e+30
        %v5291 = vsel %vm2797, %v5267, -1e+30
        %v5292 = vsel %vm2798, %v5270, -1e+30
        %v5293 = vsel %vm2799, %v5275, -1e+30
        %v5294 = vsel %vm2800, %v5278, -1e+30
        %v5295 = vsel %vm2801, %v5283, -1e+30
        %v5296 = vsel %vm2802, %v5286, -1e+30
        %5297 = vmax.xlane.f32.xlu0 %v5289
        %v5298 = vpop.xlane.xlu0 %5297
        %5299 = vmax.xlane.f32.xlu0 %v5290
        %v5300 = vpop.xlane.xlu0 %5299
        %5301 = vmax.xlane.f32.xlu0 %v5291
        %v5302 = vpop.xlane.xlu0 %5301
        %5303 = vmax.xlane.f32.xlu0 %v5292
        %v5304 = vpop.xlane.xlu0 %5303
        %5305 = vmax.xlane.f32.xlu0 %v5293
        %v5306 = vpop.xlane.xlu0 %5305
        %5307 = vmax.xlane.f32.xlu0 %v5294
        %v5308 = vpop.xlane.xlu0 %5307
        %5309 = vmax.xlane.f32.xlu0 %v5295
        %v5310 = vpop.xlane.xlu0 %5309
        %5311 = vmax.xlane.f32.xlu0 %v5296
        %v5312 = vpop.xlane.xlu0 %5311
        %v5313 = vsub.f32 %v5289, %v5298
        %v5314 = vsub.f32 %v5290, %v5300
        %v5315 = vsub.f32 %v5291, %v5302
        %v5316 = vsub.f32 %v5292, %v5304
        %v5317 = vsub.f32 %v5293, %v5306
        %v5318 = vsub.f32 %v5294, %v5308
        %v5319 = vsub.f32 %v5295, %v5310
        %v5320 = vsub.f32 %v5296, %v5312
        %v5321 = vmul.f32 %v5313, 1.442695
        %v5322 = vpow.pop %v5321
        %v5323 = vmul.f32 %v5314, 1.442695
        %v5324 = vpow.pop %v5323
        %v5325 = vmul.f32 %v5315, 1.442695
        %v5326 = vpow.pop %v5325
        %v5327 = vmul.f32 %v5316, 1.442695
        %v5328 = vpow.pop %v5327
        %v5329 = vmul.f32 %v5317, 1.442695
        %v5330 = vpow.pop %v5329
        %v5331 = vmul.f32 %v5318, 1.442695
        %v5332 = vpow.pop %v5331
        %v5333 = vmul.f32 %v5319, 1.442695
        %v5334 = vpow.pop %v5333
        %v5335 = vmul.f32 %v5320, 1.442695
        %v5336 = vpow.pop %v5335
        %5337 = vadd.xlane.f32.xlu0 %v5322
        %v5338 = vpop.xlane.xlu0 %5337
        %5339 = vadd.xlane.f32.xlu0 %v5324
        %v5340 = vpop.xlane.xlu0 %5339
        %5341 = vadd.xlane.f32.xlu0 %v5326
        %v5342 = vpop.xlane.xlu0 %5341
        %5343 = vadd.xlane.f32.xlu0 %v5328
        %v5344 = vpop.xlane.xlu0 %5343
        %5345 = vadd.xlane.f32.xlu0 %v5330
        %v5346 = vpop.xlane.xlu0 %5345
        %5347 = vadd.xlane.f32.xlu0 %v5332
        %v5348 = vpop.xlane.xlu0 %5347
        %5349 = vadd.xlane.f32.xlu0 %v5334
        %v5350 = vpop.xlane.xlu0 %5349
        %5351 = vadd.xlane.f32.xlu0 %v5336
        %v5352 = vpop.xlane.xlu0 %5351
        %v5353 = vrcp.pop %v5338
        %v5354 = vrcp.pop %v5340
        %v5355 = vrcp.pop %v5342
        %v5356 = vrcp.pop %v5344
        %v5357 = vrcp.pop %v5346
        %v5358 = vrcp.pop %v5348
        %v5359 = vrcp.pop %v5350
        %v5360 = vrcp.pop %v5352
        %v5361 = vmul.f32 %v5322, %v5353
        %v5362 = vmul.f32 %v5324, %v5354
        %v5363 = vmul.f32 %v5326, %v5355
        %v5364 = vmul.f32 %v5328, %v5356
        %v5365 = vmul.f32 %v5330, %v5357
        %v5366 = vmul.f32 %v5332, %v5358
        %v5367 = vmul.f32 %v5334, %v5359
        %v5368 = vmul.f32 %v5336, %v5360
        %v5369 = vpack.c.bf16 %v5362, %v5361
        %v5370 = vpack.c.bf16 %v5364, %v5363
        %v5371 = vpack.c.bf16 %v5366, %v5365
        %v5372 = vpack.c.bf16 %v5368, %v5367
        %5373 = vmatprep.subr.bf16.mxu0 0
        %5374 = vmatpush1.bf16.msra.mxu0 %v2006
        %5375 = vmatprep.subr.bf16.mxu0 0
        %5376 = vmatpush1.bf16.msra.mxu0 %v2000
        %5377 = vmatprep.subr.bf16.mxu0 0
        %5378 = vmatpush1.bf16.msra.mxu0 %v1994
        %5379 = vmatprep.subr.bf16.mxu0 0
        %5380 = vmatpush1.bf16.msra.mxu0 %v1988
        %5381 = vmatprep.subr.bf16.mxu0 0
        %5382 = vmatpush1.bf16.msra.mxu0 %v1982
        %5383 = vmatprep.subr.bf16.mxu0 0
        %5384 = vmatpush1.bf16.msra.mxu0 %v1976
        %5385 = vmatprep.subr.bf16.mxu0 0
        %5386 = vmatpush1.bf16.msra.mxu0 %v1970
        %5387 = vmatprep.subr.bf16.mxu0 0
        %5388 = vmatpush1.bf16.msra.mxu0 %v1964
        %5389 = vmatprep.subr.bf16.mxu0 0
        %5390 = vmatpush2.bf16.msra.mxu0 0
        %5391 = vmatprep.subr.bf16.mxu0 0
        %5392 = vmatpush2.bf16.msra.mxu0 0
        %5393 = vmatprep.subr.bf16.mxu0 0
        %5394 = vmatpush2.bf16.msra.mxu0 0
        %5395 = vmatprep.subr.bf16.mxu0 0
        %5396 = vmatpush2.bf16.msra.mxu0 0
        %5397 = vmatprep.subr.bf16.mxu0 0
        %5398 = vmatpush2.bf16.msra.mxu0 0
        %5399 = vmatprep.subr.bf16.mxu0 0
        %5400 = vmatpush2.bf16.msra.mxu0 0
        %5401 = vmatprep.subr.bf16.mxu0 0
        %5402 = vmatpush2.bf16.msra.mxu0 0
        %5403 = vmatprep.subr.bf16.mxu0 0
        %5404 = vmatpush2.bf16.msra.mxu0 0
        %5405 = vmatprep.mubr.bf16.mxu0 0
        %5406 = vmatmul.mubr.bf16.gmra.mxu0 %v5369
        %v5407 = vpop.f32.mrf.mxu0
        %v5408 = vadd.f32 0.0, %v5407
        %v5409 = vpop.f32.mrf.mxu0
        %v5410 = vpop.f32.mrf.mxu0
        %v5411 = vadd.f32 0.0, %v5410
        %v5412 = vpop.f32.mrf.mxu0
        %5413 = vmatprep.mubr.bf16.mxu0 0
        %5414 = vmatmul.mubr.bf16.gmra.mxu0 %v5370
        %v5415 = vpop.f32.mrf.mxu0
        %v5416 = vadd.f32 0.0, %v5415
        %v5417 = vpop.f32.mrf.mxu0
        %v5418 = vpop.f32.mrf.mxu0
        %v5419 = vadd.f32 0.0, %v5418
        %v5420 = vpop.f32.mrf.mxu0
        %5421 = vmatprep.mubr.bf16.mxu0 0
        %5422 = vmatmul.mubr.bf16.gmra.mxu0 %v5371
        %v5423 = vpop.f32.mrf.mxu0
        %v5424 = vadd.f32 0.0, %v5423
        %v5425 = vpop.f32.mrf.mxu0
        %v5426 = vpop.f32.mrf.mxu0
        %v5427 = vadd.f32 0.0, %v5426
        %v5428 = vpop.f32.mrf.mxu0
        %5429 = vmatprep.mubr.bf16.mxu0 0
        %5430 = vmatmul.mubr.bf16.gmra.mxu0 %v5372
        %v5431 = vpop.f32.mrf.mxu0
        %v5432 = vadd.f32 0.0, %v5431
        %v5433 = vpop.f32.mrf.mxu0
        %v5434 = vpop.f32.mrf.mxu0
        %v5435 = vadd.f32 0.0, %v5434
        %v5436 = vpop.f32.mrf.mxu0
        %5437 = vdwg.mxu0
        %v5438 = vld [vmem:[#allocation2] sm:$0xff]
        %v5439 = vld [vmem:[#allocation2 + $0x8] sm:$0xff]
        %v5440 = vld [vmem:[#allocation2 + $0x10] sm:$0xff]
        %v5441 = vld [vmem:[#allocation2 + $0x18] sm:$0xff]
        %v5442 = vld [vmem:[#allocation2 + $0x20] sm:$0xff]
        %v5443 = vld [vmem:[#allocation2 + $0x28] sm:$0xff]
        %v5444 = vld [vmem:[#allocation2 + $0x30] sm:$0xff]
        %v5445 = vld [vmem:[#allocation2 + $0x38] sm:$0xff]
        %v5446 = vld [vmem:[#allocation2 + $0x40] sm:$0xff]
        %v5447 = vld [vmem:[#allocation2 + $0x48] sm:$0xff]
        %v5448 = vld [vmem:[#allocation2 + $0x50] sm:$0xff]
        %v5449 = vld [vmem:[#allocation2 + $0x58] sm:$0xff]
        %v5450 = vld [vmem:[#allocation2 + $0x60] sm:$0xff]
        %v5451 = vld [vmem:[#allocation2 + $0x68] sm:$0xff]
        %v5452 = vld [vmem:[#allocation2 + $0x70] sm:$0xff]
        %v5453 = vld [vmem:[#allocation2 + $0x78] sm:$0xff]
        %v5454 = vld [vmem:[#allocation2 + $0x80] sm:$0xff]
        %v5455 = vld [vmem:[#allocation2 + $0x88] sm:$0xff]
        %v5456 = vld [vmem:[#allocation2 + $0x90] sm:$0xff]
        %v5457 = vld [vmem:[#allocation2 + $0x98] sm:$0xff]
        %v5458 = vld [vmem:[#allocation2 + $0xa0] sm:$0xff]
        %v5459 = vld [vmem:[#allocation2 + $0xa8] sm:$0xff]
        %v5460 = vld [vmem:[#allocation2 + $0xb0] sm:$0xff]
        %v5461 = vld [vmem:[#allocation2 + $0xb8] sm:$0xff]
        %v5462 = vpack.c.bf16 %v5411, %v5408
        %v5463 = vpack.c.bf16 %v5419, %v5416
        %v5464 = vpack.c.bf16 %v5427, %v5424
        %v5465 = vpack.c.bf16 %v5435, %v5432
        %v5466 = vld [vmem:[#allocation9 + $0x180] sm:$0xff]
        %v5467 = vld [vmem:[#allocation9 + $0x188] sm:$0xf]
        %v5468 = vld [vmem:[#allocation9 + $0x18c] sm:$0xff]
        %v5469 = vld [vmem:[#allocation9 + $0x194] sm:$0xf]
        %v5470 = vld [vmem:[#allocation9 + $0x198] sm:$0xff]
        %v5471 = vld [vmem:[#allocation9 + $0x1a0] sm:$0xf]
        %v5472 = vld [vmem:[#allocation9 + $0x1a4] sm:$0xff]
        %v5473 = vld [vmem:[#allocation9 + $0x1ac] sm:$0xf]
        %v5474 = vld [vmem:[#allocation9 + $0x1b0] sm:$0xff]
        %v5475 = vld [vmem:[#allocation9 + $0x1b8] sm:$0xf]
        %v5476 = vld [vmem:[#allocation9 + $0x1bc] sm:$0xff]
        %v5477 = vld [vmem:[#allocation9 + $0x1c4] sm:$0xf]
        %v5478 = vld [vmem:[#allocation9 + $0x1c8] sm:$0xff]
        %v5479 = vld [vmem:[#allocation9 + $0x1d0] sm:$0xf]
        %v5480 = vld [vmem:[#allocation9 + $0x1d4] sm:$0xff]
        %v5481 = vld [vmem:[#allocation9 + $0x1dc] sm:$0xf]
        %v5498 = vunpack.c.l.b16 %v5466
        %v5499 = vunpack.c.h.b16 %v5466
        %v5500 = vunpack.c.l.b16 %v5467
        %v5501 = vunpack.c.l.b16 %v5468
        %v5502 = vunpack.c.h.b16 %v5468
        %v5503 = vunpack.c.l.b16 %v5469
        %v5504 = vunpack.c.l.b16 %v5470
        %v5505 = vunpack.c.h.b16 %v5470
        %v5506 = vunpack.c.l.b16 %v5471
        %v5507 = vunpack.c.l.b16 %v5472
        %v5508 = vunpack.c.h.b16 %v5472
        %v5509 = vunpack.c.l.b16 %v5473
        %v5510 = vunpack.c.l.b16 %v5474
        %v5511 = vunpack.c.h.b16 %v5474
        %v5512 = vunpack.c.l.b16 %v5475
        %v5513 = vunpack.c.l.b16 %v5476
        %v5514 = vunpack.c.h.b16 %v5476
        %v5515 = vunpack.c.l.b16 %v5477
        %v5516 = vunpack.c.l.b16 %v5478
        %v5517 = vunpack.c.h.b16 %v5478
        %v5518 = vunpack.c.l.b16 %v5479
        %v5519 = vunpack.c.l.b16 %v5480
        %v5520 = vunpack.c.h.b16 %v5480
        %v5521 = vunpack.c.l.b16 %v5481
        %v5522 = vpack.c.b16 %v5501, %v5498
        %v5523 = vpack.c.b16 %v5502, %v5499
        %v5524 = vpack.c.b16 %v5503, %v5500
        %v5525 = vpack.c.b16 %v5507, %v5504
        %v5526 = vpack.c.b16 %v5508, %v5505
        %v5527 = vpack.c.b16 %v5509, %v5506
        %v5528 = vpack.c.b16 %v5513, %v5510
        %v5529 = vpack.c.b16 %v5514, %v5511
        %v5530 = vpack.c.b16 %v5515, %v5512
        %v5531 = vpack.c.b16 %v5519, %v5516
        %v5532 = vpack.c.b16 %v5520, %v5517
        %v5533 = vpack.c.b16 %v5521, %v5518
        %v5547 = vsel %vm2827, %v5462, 0
        %v5550 = vsel %vm2827, %v5463, 0
        %v5553 = vsel %vm2827, %v5464, 0
        %v5556 = vsel %vm2827, %v5465, 0
        %5558 = vmatprep.subr.bf16.mxu0 0
        %5559 = vmatpush1.bf16.msra.mxu0 0
        %5560 = vmatprep.subr.bf16.mxu0 0
        %5561 = vmatpush1.bf16.msra.mxu0 0
        %5562 = vmatprep.subr.bf16.mxu0 0
        %5563 = vmatpush1.bf16.msra.mxu0 0
        %5564 = vmatprep.subr.bf16.mxu0 0
        %5565 = vmatpush1.bf16.msra.mxu0 0
        %5566 = vmatprep.subr.bf16.mxu0 %v5532
        %5567 = vmatpush1.bf16.msra.mxu0 %v5531
        %5568 = vmatprep.subr.bf16.mxu0 %v5529
        %5569 = vmatpush1.bf16.msra.mxu0 %v5528
        %5570 = vmatprep.subr.bf16.mxu0 %v5526
        %5571 = vmatpush1.bf16.msra.mxu0 %v5525
        %5572 = vmatprep.subr.bf16.mxu0 %v5523
        %5573 = vmatpush1.bf16.msra.mxu0 %v5522
        %5574 = vmatprep.subr.bf16.mxu0 0
        %5575 = vmatpush2.bf16.msra.mxu0 0
        %5576 = vmatprep.subr.bf16.mxu0 0
        %5577 = vmatpush2.bf16.msra.mxu0 0
        %5578 = vmatprep.subr.bf16.mxu0 0
        %5579 = vmatpush2.bf16.msra.mxu0 0
        %5580 = vmatprep.subr.bf16.mxu0 0
        %5581 = vmatpush2.bf16.msra.mxu0 0
        %5582 = vmatprep.subr.bf16.mxu0 0
        %5583 = vmatpush2.bf16.msra.mxu0 0
        %5584 = vmatprep.subr.bf16.mxu0 0
        %5585 = vmatpush2.bf16.msra.mxu0 0
        %5586 = vmatprep.subr.bf16.mxu0 0
        %5587 = vmatpush2.bf16.msra.mxu0 0
        %5588 = vmatprep.subr.bf16.mxu0 0
        %5589 = vmatpush2.bf16.msra.mxu0 0
        %5590 = vmatprep.mubr.bf16.mxu0 0
        %5591 = vmatmul.mubr.bf16.gmra.mxu0 %v5547
        %v5592 = vpop.f32.mrf.mxu0
        %v5593 = vadd.f32 0.0, %v5592
        %v5594 = vpop.f32.mrf.mxu0
        %v5595 = vadd.f32 0.0, %v5594
        %v5596 = vpop.f32.mrf.mxu0
        %v5597 = vadd.f32 0.0, %v5596
        %v5598 = vpop.f32.mrf.mxu0
        %v5599 = vadd.f32 0.0, %v5598
        %5600 = vmatprep.mubr.bf16.mxu0 0
        %5601 = vmatmul.mubr.bf16.gmra.mxu0 %v5550
        %v5602 = vpop.f32.mrf.mxu0
        %v5603 = vadd.f32 0.0, %v5602
        %v5604 = vpop.f32.mrf.mxu0
        %v5605 = vadd.f32 0.0, %v5604
        %v5606 = vpop.f32.mrf.mxu0
        %v5607 = vadd.f32 0.0, %v5606
        %v5608 = vpop.f32.mrf.mxu0
        %v5609 = vadd.f32 0.0, %v5608
        %5610 = vmatprep.mubr.bf16.mxu0 0
        %5611 = vmatmul.mubr.bf16.gmra.mxu0 %v5553
        %v5612 = vpop.f32.mrf.mxu0
        %v5613 = vadd.f32 0.0, %v5612
        %v5614 = vpop.f32.mrf.mxu0
        %v5615 = vadd.f32 0.0, %v5614
        %v5616 = vpop.f32.mrf.mxu0
        %v5617 = vadd.f32 0.0, %v5616
        %v5618 = vpop.f32.mrf.mxu0
        %v5619 = vadd.f32 0.0, %v5618
        %5620 = vmatprep.mubr.bf16.mxu0 0
        %5621 = vmatmul.mubr.bf16.gmra.mxu0 %v5556
        %v5622 = vpop.f32.mrf.mxu0
        %v5623 = vadd.f32 0.0, %v5622
        %v5624 = vpop.f32.mrf.mxu0
        %v5625 = vadd.f32 0.0, %v5624
        %v5626 = vpop.f32.mrf.mxu0
        %v5627 = vadd.f32 0.0, %v5626
        %v5628 = vpop.f32.mrf.mxu0
        %v5629 = vadd.f32 0.0, %v5628
        %5630 = vdwg.mxu0
        %5631 = vmatprep.subr.bf16.mxu0 0
        %5632 = vmatpush1.bf16.msra.mxu0 0
        %5633 = vmatprep.subr.bf16.mxu0 0
        %5634 = vmatpush1.bf16.msra.mxu0 0
        %5635 = vmatprep.subr.bf16.mxu0 0
        %5636 = vmatpush1.bf16.msra.mxu0 0
        %5637 = vmatprep.subr.bf16.mxu0 0
        %5638 = vmatpush1.bf16.msra.mxu0 0
        %5639 = vmatprep.subr.bf16.mxu0 0
        %5640 = vmatpush1.bf16.msra.mxu0 %v5533
        %5641 = vmatprep.subr.bf16.mxu0 0
        %5642 = vmatpush1.bf16.msra.mxu0 %v5530
        %5643 = vmatprep.subr.bf16.mxu0 0
        %5644 = vmatpush1.bf16.msra.mxu0 %v5527
        %5645 = vmatprep.subr.bf16.mxu0 0
        %5646 = vmatpush1.bf16.msra.mxu0 %v5524
        %5647 = vmatprep.subr.bf16.mxu0 0
        %5648 = vmatpush2.bf16.msra.mxu0 0
        %5649 = vmatprep.subr.bf16.mxu0 0
        %5650 = vmatpush2.bf16.msra.mxu0 0
        %5651 = vmatprep.subr.bf16.mxu0 0
        %5652 = vmatpush2.bf16.msra.mxu0 0
        %5653 = vmatprep.subr.bf16.mxu0 0
        %5654 = vmatpush2.bf16.msra.mxu0 0
        %5655 = vmatprep.subr.bf16.mxu0 0
        %5656 = vmatpush2.bf16.msra.mxu0 0
        %5657 = vmatprep.subr.bf16.mxu0 0
        %5658 = vmatpush2.bf16.msra.mxu0 0
        %5659 = vmatprep.subr.bf16.mxu0 0
        %5660 = vmatpush2.bf16.msra.mxu0 0
        %5661 = vmatprep.subr.bf16.mxu0 0
        %5662 = vmatpush2.bf16.msra.mxu0 0
        %5663 = vmatprep.mubr.bf16.mxu0 0
        %5664 = vmatmul.mubr.bf16.gmra.mxu0 %v5547
        %v5665 = vpop.f32.mrf.mxu0
        %v5666 = vadd.f32 0.0, %v5665
        %v5667 = vpop.f32.mrf.mxu0
        %v5668 = vpop.f32.mrf.mxu0
        %v5669 = vadd.f32 0.0, %v5668
        %v5670 = vpop.f32.mrf.mxu0
        %5671 = vmatprep.mubr.bf16.mxu0 0
        %5672 = vmatmul.mubr.bf16.gmra.mxu0 %v5550
        %v5673 = vpop.f32.mrf.mxu0
        %v5674 = vadd.f32 0.0, %v5673
        %v5675 = vpop.f32.mrf.mxu0
        %v5676 = vpop.f32.mrf.mxu0
        %v5677 = vadd.f32 0.0, %v5676
        %v5678 = vpop.f32.mrf.mxu0
        %5679 = vmatprep.mubr.bf16.mxu0 0
        %5680 = vmatmul.mubr.bf16.gmra.mxu0 %v5553
        %v5681 = vpop.f32.mrf.mxu0
        %v5682 = vadd.f32 0.0, %v5681
        %v5683 = vpop.f32.mrf.mxu0
        %v5684 = vpop.f32.mrf.mxu0
        %v5685 = vadd.f32 0.0, %v5684
        %v5686 = vpop.f32.mrf.mxu0
        %5687 = vmatprep.mubr.bf16.mxu0 0
        %5688 = vmatmul.mubr.bf16.gmra.mxu0 %v5556
        %v5689 = vpop.f32.mrf.mxu0
        %v5690 = vadd.f32 0.0, %v5689
        %v5691 = vpop.f32.mrf.mxu0
        %v5692 = vpop.f32.mrf.mxu0
        %v5693 = vadd.f32 0.0, %v5692
        %v5694 = vpop.f32.mrf.mxu0
        %5695 = vdwg.mxu0
        %v5696 = vadd.f32 %v5438, %v5593
        %v5697 = vadd.f32 %v5439, %v5595
        %v5698 = vadd.f32 %v5440, %v5666
        %v5699 = vadd.f32 %v5441, %v5597
        %v5700 = vadd.f32 %v5442, %v5599
        %v5701 = vadd.f32 %v5443, %v5669
        %v5702 = vadd.f32 %v5444, %v5603
        %v5703 = vadd.f32 %v5445, %v5605
        %v5704 = vadd.f32 %v5446, %v5674
        %v5705 = vadd.f32 %v5447, %v5607
        %v5706 = vadd.f32 %v5448, %v5609
        %v5707 = vadd.f32 %v5449, %v5677
        %v5708 = vadd.f32 %v5450, %v5613
        %v5709 = vadd.f32 %v5451, %v5615
        %v5710 = vadd.f32 %v5452, %v5682
        %v5711 = vadd.f32 %v5453, %v5617
        %v5712 = vadd.f32 %v5454, %v5619
        %v5713 = vadd.f32 %v5455, %v5685
        %v5714 = vadd.f32 %v5456, %v5623
        %v5715 = vadd.f32 %v5457, %v5625
        %v5716 = vadd.f32 %v5458, %v5690
        %v5717 = vadd.f32 %v5459, %v5627
        %v5718 = vadd.f32 %v5460, %v5629
        %v5719 = vadd.f32 %v5461, %v5693
        %5720 = vst [vmem:[#allocation2] sm:$0xff] %v5696
        %5721 = vst [vmem:[#allocation2 + $0x8] sm:$0xff] %v5697
        %5722 = vst [vmem:[#allocation2 + $0x10] sm:$0xff] %v5698
        %5723 = vst [vmem:[#allocation2 + $0x18] sm:$0xff] %v5699
        %5724 = vst [vmem:[#allocation2 + $0x20] sm:$0xff] %v5700
        %5725 = vst [vmem:[#allocation2 + $0x28] sm:$0xff] %v5701
        %5726 = vst [vmem:[#allocation2 + $0x30] sm:$0xff] %v5702
        %5727 = vst [vmem:[#allocation2 + $0x38] sm:$0xff] %v5703
        %5728 = vst [vmem:[#allocation2 + $0x40] sm:$0xff] %v5704
        %5729 = vst [vmem:[#allocation2 + $0x48] sm:$0xff] %v5705
        %5730 = vst [vmem:[#allocation2 + $0x50] sm:$0xff] %v5706
        %5731 = vst [vmem:[#allocation2 + $0x58] sm:$0xff] %v5707
        %5732 = vst [vmem:[#allocation2 + $0x60] sm:$0xff] %v5708
        %5733 = vst [vmem:[#allocation2 + $0x68] sm:$0xff] %v5709
        %5734 = vst [vmem:[#allocation2 + $0x70] sm:$0xff] %v5710
        %5735 = vst [vmem:[#allocation2 + $0x78] sm:$0xff] %v5711
        %5736 = vst [vmem:[#allocation2 + $0x80] sm:$0xff] %v5712
        %5737 = vst [vmem:[#allocation2 + $0x88] sm:$0xff] %v5713
        %5738 = vst [vmem:[#allocation2 + $0x90] sm:$0xff] %v5714
        %5739 = vst [vmem:[#allocation2 + $0x98] sm:$0xff] %v5715
        %5740 = vst [vmem:[#allocation2 + $0xa0] sm:$0xff] %v5716
        %5741 = vst [vmem:[#allocation2 + $0xa8] sm:$0xff] %v5717
        %5742 = vst [vmem:[#allocation2 + $0xb0] sm:$0xff] %v5718
        %5743 = vst [vmem:[#allocation2 + $0xb8] sm:$0xff] %v5719
        %5748 = vrot.lane.b32.xlu0 %v2765, 64
        %v5749 = vpop.permute.xlu0 %5748
        %5750 = vrot.lane.b32.xlu0 %v2768, 64
        %v5751 = vpop.permute.xlu0 %5750
        %5752 = vrot.lane.b32.xlu0 %v2771, 64
        %v5753 = vpop.permute.xlu0 %5752
        %5754 = vrot.lane.b32.xlu0 %v2774, 64
        %v5755 = vpop.permute.xlu0 %5754
        %5764 = vrot.lane.b32.xlu0 %v1961, 64
        %v5765 = vpop.permute.xlu0 %5764
        %5766 = vrot.lane.b32.xlu0 %v1967, 64
        %v5767 = vpop.permute.xlu0 %5766
        %5768 = vrot.lane.b32.xlu0 %v1973, 64
        %v5769 = vpop.permute.xlu0 %5768
        %5770 = vrot.lane.b32.xlu0 %v1979, 64
        %v5771 = vpop.permute.xlu0 %5770
        %5772 = vrot.lane.b32.xlu0 %v1985, 64
        %v5773 = vpop.permute.xlu0 %5772
        %5774 = vrot.lane.b32.xlu0 %v1991, 64
        %v5775 = vpop.permute.xlu0 %5774
        %5776 = vrot.lane.b32.xlu0 %v1997, 64
        %v5777 = vpop.permute.xlu0 %5776
        %5778 = vrot.lane.b32.xlu0 %v2003, 64
        %v5779 = vpop.permute.xlu0 %5778
        %v5781 = vsel %vm2827, %v5749, 0
        %v5784 = vsel %vm2827, %v5751, 0
        %v5787 = vsel %vm2827, %v5753, 0
        %v5790 = vsel %vm2827, %v5755, 0
        %v5793 = vsel %vm2827, %v5765, 0
        %v5796 = vsel %vm2827, %v5767, 0
        %v5799 = vsel %vm2827, %v5769, 0
        %v5802 = vsel %vm2827, %v5771, 0
        %v5805 = vsel %vm2827, %v5773, 0
        %v5808 = vsel %vm2827, %v5775, 0
        %v5811 = vsel %vm2827, %v5777, 0
        %v5814 = vsel %vm2827, %v5779, 0
        %5816 = vmatprep.subr.bf16.mxu0 0
        %5817 = vmatpush1.bf16.xpose.msra.mxu0 %v5814
        %5818 = vmatprep.subr.bf16.mxu0 0
        %5819 = vmatpush1.bf16.xpose.msra.mxu0 %v5811
        %5820 = vmatprep.subr.bf16.mxu0 0
        %5821 = vmatpush1.bf16.xpose.msra.mxu0 %v5808
        %5822 = vmatprep.subr.bf16.mxu0 0
        %5823 = vmatpush1.bf16.xpose.msra.mxu0 %v5805
        %5824 = vmatprep.subr.bf16.mxu0 0
        %5825 = vmatpush1.bf16.xpose.msra.mxu0 %v5802
        %5826 = vmatprep.subr.bf16.mxu0 0
        %5827 = vmatpush1.bf16.xpose.msra.mxu0 %v5799
        %5828 = vmatprep.subr.bf16.mxu0 0
        %5829 = vmatpush1.bf16.xpose.msra.mxu0 %v5796
        %5830 = vmatprep.subr.bf16.mxu0 0
        %5831 = vmatpush1.bf16.xpose.msra.mxu0 %v5793
        %5832 = vmatprep.subr.bf16.mxu0 0
        %5833 = vmatpush2.bf16.xpose.msra.mxu0 0
        %5834 = vmatprep.subr.bf16.mxu0 0
        %5835 = vmatpush2.bf16.xpose.msra.mxu0 0
        %5836 = vmatprep.subr.bf16.mxu0 0
        %5837 = vmatpush2.bf16.xpose.msra.mxu0 0
        %5838 = vmatprep.subr.bf16.mxu0 0
        %5839 = vmatpush2.bf16.xpose.msra.mxu0 0
        %5840 = vmatprep.subr.bf16.mxu0 0
        %5841 = vmatpush2.bf16.xpose.msra.mxu0 0
        %5842 = vmatprep.subr.bf16.mxu0 0
        %5843 = vmatpush2.bf16.xpose.msra.mxu0 0
        %5844 = vmatprep.subr.bf16.mxu0 0
        %5845 = vmatpush2.bf16.xpose.msra.mxu0 0
        %5846 = vmatprep.subr.bf16.mxu0 0
        %5847 = vmatpush2.bf16.xpose.msra.mxu0 0
        %5848 = vmatprep.mubr.bf16.mxu0 0
        %5849 = vmatmul.mubr.bf16.gmra.mxu0 %v5781
        %v5850 = vpop.f32.mrf.mxu0
        %v5851 = vadd.f32 0.0, %v5850
        %v5852 = vpop.f32.mrf.mxu0
        %v5853 = vpop.f32.mrf.mxu0
        %v5854 = vadd.f32 0.0, %v5853
        %v5855 = vpop.f32.mrf.mxu0
        %5856 = vmatprep.mubr.bf16.mxu0 0
        %5857 = vmatmul.mubr.bf16.gmra.mxu0 %v5784
        %v5858 = vpop.f32.mrf.mxu0
        %v5859 = vadd.f32 0.0, %v5858
        %v5860 = vpop.f32.mrf.mxu0
        %v5861 = vpop.f32.mrf.mxu0
        %v5862 = vadd.f32 0.0, %v5861
        %v5863 = vpop.f32.mrf.mxu0
        %5864 = vmatprep.mubr.bf16.mxu0 0
        %5865 = vmatmul.mubr.bf16.gmra.mxu0 %v5787
        %v5866 = vpop.f32.mrf.mxu0
        %v5867 = vadd.f32 0.0, %v5866
        %v5868 = vpop.f32.mrf.mxu0
        %v5869 = vpop.f32.mrf.mxu0
        %v5870 = vadd.f32 0.0, %v5869
        %v5871 = vpop.f32.mrf.mxu0
        %5872 = vmatprep.mubr.bf16.mxu0 0
        %5873 = vmatmul.mubr.bf16.gmra.mxu0 %v5790
        %v5874 = vpop.f32.mrf.mxu0
        %v5875 = vadd.f32 0.0, %v5874
        %v5876 = vpop.f32.mrf.mxu0
        %v5877 = vpop.f32.mrf.mxu0
        %v5878 = vadd.f32 0.0, %v5877
        %v5879 = vpop.f32.mrf.mxu0
        %5880 = vdwg.mxu0
        %v5881 = vsel %vm2795, %v5851, -1e+30
        %v5882 = vsel %vm2796, %v5854, -1e+30
        %v5883 = vsel %vm2797, %v5859, -1e+30
        %v5884 = vsel %vm2798, %v5862, -1e+30
        %v5885 = vsel %vm2799, %v5867, -1e+30
        %v5886 = vsel %vm2800, %v5870, -1e+30
        %v5887 = vsel %vm2801, %v5875, -1e+30
        %v5888 = vsel %vm2802, %v5878, -1e+30
        %5889 = vmax.xlane.f32.xlu0 %v5881
        %v5890 = vpop.xlane.xlu0 %5889
        %5891 = vmax.xlane.f32.xlu0 %v5882
        %v5892 = vpop.xlane.xlu0 %5891
        %5893 = vmax.xlane.f32.xlu0 %v5883
        %v5894 = vpop.xlane.xlu0 %5893
        %5895 = vmax.xlane.f32.xlu0 %v5884
        %v5896 = vpop.xlane.xlu0 %5895
        %5897 = vmax.xlane.f32.xlu0 %v5885
        %v5898 = vpop.xlane.xlu0 %5897
        %5899 = vmax.xlane.f32.xlu0 %v5886
        %v5900 = vpop.xlane.xlu0 %5899
        %5901 = vmax.xlane.f32.xlu0 %v5887
        %v5902 = vpop.xlane.xlu0 %5901
        %5903 = vmax.xlane.f32.xlu0 %v5888
        %v5904 = vpop.xlane.xlu0 %5903
        %v5905 = vsub.f32 %v5881, %v5890
        %v5906 = vsub.f32 %v5882, %v5892
        %v5907 = vsub.f32 %v5883, %v5894
        %v5908 = vsub.f32 %v5884, %v5896
        %v5909 = vsub.f32 %v5885, %v5898
        %v5910 = vsub.f32 %v5886, %v5900
        %v5911 = vsub.f32 %v5887, %v5902
        %v5912 = vsub.f32 %v5888, %v5904
        %v5913 = vmul.f32 %v5905, 1.442695
        %v5914 = vpow.pop %v5913
        %v5915 = vmul.f32 %v5906, 1.442695
        %v5916 = vpow.pop %v5915
        %v5917 = vmul.f32 %v5907, 1.442695
        %v5918 = vpow.pop %v5917
        %v5919 = vmul.f32 %v5908, 1.442695
        %v5920 = vpow.pop %v5919
        %v5921 = vmul.f32 %v5909, 1.442695
        %v5922 = vpow.pop %v5921
        %v5923 = vmul.f32 %v5910, 1.442695
        %v5924 = vpow.pop %v5923
        %v5925 = vmul.f32 %v5911, 1.442695
        %v5926 = vpow.pop %v5925
        %v5927 = vmul.f32 %v5912, 1.442695
        %v5928 = vpow.pop %v5927
        %5929 = vadd.xlane.f32.xlu0 %v5914
        %v5930 = vpop.xlane.xlu0 %5929
        %5931 = vadd.xlane.f32.xlu0 %v5916
        %v5932 = vpop.xlane.xlu0 %5931
        %5933 = vadd.xlane.f32.xlu0 %v5918
        %v5934 = vpop.xlane.xlu0 %5933
        %5935 = vadd.xlane.f32.xlu0 %v5920
        %v5936 = vpop.xlane.xlu0 %5935
        %5937 = vadd.xlane.f32.xlu0 %v5922
        %v5938 = vpop.xlane.xlu0 %5937
        %5939 = vadd.xlane.f32.xlu0 %v5924
        %v5940 = vpop.xlane.xlu0 %5939
        %5941 = vadd.xlane.f32.xlu0 %v5926
        %v5942 = vpop.xlane.xlu0 %5941
        %5943 = vadd.xlane.f32.xlu0 %v5928
        %v5944 = vpop.xlane.xlu0 %5943
        %v5945 = vrcp.pop %v5930
        %v5946 = vrcp.pop %v5932
        %v5947 = vrcp.pop %v5934
        %v5948 = vrcp.pop %v5936
        %v5949 = vrcp.pop %v5938
        %v5950 = vrcp.pop %v5940
        %v5951 = vrcp.pop %v5942
        %v5952 = vrcp.pop %v5944
        %v5953 = vmul.f32 %v5914, %v5945
        %v5954 = vmul.f32 %v5916, %v5946
        %v5955 = vmul.f32 %v5918, %v5947
        %v5956 = vmul.f32 %v5920, %v5948
        %v5957 = vmul.f32 %v5922, %v5949
        %v5958 = vmul.f32 %v5924, %v5950
        %v5959 = vmul.f32 %v5926, %v5951
        %v5960 = vmul.f32 %v5928, %v5952
        %v5961 = vpack.c.bf16 %v5954, %v5953
        %v5962 = vpack.c.bf16 %v5956, %v5955
        %v5963 = vpack.c.bf16 %v5958, %v5957
        %v5964 = vpack.c.bf16 %v5960, %v5959
        %5973 = vrot.lane.b32.xlu0 %v1964, 64
        %v5974 = vpop.permute.xlu0 %5973
        %5975 = vrot.lane.b32.xlu0 %v1970, 64
        %v5976 = vpop.permute.xlu0 %5975
        %5977 = vrot.lane.b32.xlu0 %v1976, 64
        %v5978 = vpop.permute.xlu0 %5977
        %5979 = vrot.lane.b32.xlu0 %v1982, 64
        %v5980 = vpop.permute.xlu0 %5979
        %5981 = vrot.lane.b32.xlu0 %v1988, 64
        %v5982 = vpop.permute.xlu0 %5981
        %5983 = vrot.lane.b32.xlu0 %v1994, 64
        %v5984 = vpop.permute.xlu0 %5983
        %5985 = vrot.lane.b32.xlu0 %v2000, 64
        %v5986 = vpop.permute.xlu0 %5985
        %5987 = vrot.lane.b32.xlu0 %v2006, 64
        %v5988 = vpop.permute.xlu0 %5987
        %5997 = vmatprep.subr.bf16.mxu0 0
        %5998 = vmatpush1.bf16.msra.mxu0 %v5988
        %5999 = vmatprep.subr.bf16.mxu0 0
        %6000 = vmatpush1.bf16.msra.mxu0 %v5986
        %6001 = vmatprep.subr.bf16.mxu0 0
        %6002 = vmatpush1.bf16.msra.mxu0 %v5984
        %6003 = vmatprep.subr.bf16.mxu0 0
        %6004 = vmatpush1.bf16.msra.mxu0 %v5982
        %6005 = vmatprep.subr.bf16.mxu0 0
        %6006 = vmatpush1.bf16.msra.mxu0 %v5980
        %6007 = vmatprep.subr.bf16.mxu0 0
        %6008 = vmatpush1.bf16.msra.mxu0 %v5978
        %6009 = vmatprep.subr.bf16.mxu0 0
        %6010 = vmatpush1.bf16.msra.mxu0 %v5976
        %6011 = vmatprep.subr.bf16.mxu0 0
        %6012 = vmatpush1.bf16.msra.mxu0 %v5974
        %6013 = vmatprep.subr.bf16.mxu0 0
        %6014 = vmatpush2.bf16.msra.mxu0 0
        %6015 = vmatprep.subr.bf16.mxu0 0
        %6016 = vmatpush2.bf16.msra.mxu0 0
        %6017 = vmatprep.subr.bf16.mxu0 0
        %6018 = vmatpush2.bf16.msra.mxu0 0
        %6019 = vmatprep.subr.bf16.mxu0 0
        %6020 = vmatpush2.bf16.msra.mxu0 0
        %6021 = vmatprep.subr.bf16.mxu0 0
        %6022 = vmatpush2.bf16.msra.mxu0 0
        %6023 = vmatprep.subr.bf16.mxu0 0
        %6024 = vmatpush2.bf16.msra.mxu0 0
        %6025 = vmatprep.subr.bf16.mxu0 0
        %6026 = vmatpush2.bf16.msra.mxu0 0
        %6027 = vmatprep.subr.bf16.mxu0 0
        %6028 = vmatpush2.bf16.msra.mxu0 0
        %6029 = vmatprep.mubr.bf16.mxu0 0
        %6030 = vmatmul.mubr.bf16.gmra.mxu0 %v5961
        %v6031 = vpop.f32.mrf.mxu0
        %v6032 = vadd.f32 0.0, %v6031
        %v6033 = vpop.f32.mrf.mxu0
        %v6034 = vpop.f32.mrf.mxu0
        %v6035 = vadd.f32 0.0, %v6034
        %v6036 = vpop.f32.mrf.mxu0
        %6037 = vmatprep.mubr.bf16.mxu0 0
        %6038 = vmatmul.mubr.bf16.gmra.mxu0 %v5962
        %v6039 = vpop.f32.mrf.mxu0
        %v6040 = vadd.f32 0.0, %v6039
        %v6041 = vpop.f32.mrf.mxu0
        %v6042 = vpop.f32.mrf.mxu0
        %v6043 = vadd.f32 0.0, %v6042
        %v6044 = vpop.f32.mrf.mxu0
        %6045 = vmatprep.mubr.bf16.mxu0 0
        %6046 = vmatmul.mubr.bf16.gmra.mxu0 %v5963
        %v6047 = vpop.f32.mrf.mxu0
        %v6048 = vadd.f32 0.0, %v6047
        %v6049 = vpop.f32.mrf.mxu0
        %v6050 = vpop.f32.mrf.mxu0
        %v6051 = vadd.f32 0.0, %v6050
        %v6052 = vpop.f32.mrf.mxu0
        %6053 = vmatprep.mubr.bf16.mxu0 0
        %6054 = vmatmul.mubr.bf16.gmra.mxu0 %v5964
        %v6055 = vpop.f32.mrf.mxu0
        %v6056 = vadd.f32 0.0, %v6055
        %v6057 = vpop.f32.mrf.mxu0
        %v6058 = vpop.f32.mrf.mxu0
        %v6059 = vadd.f32 0.0, %v6058
        %v6060 = vpop.f32.mrf.mxu0
        %6061 = vdwg.mxu0
        %v6062 = vld [vmem:[#allocation2] sm:$0xff]
        %v6063 = vld [vmem:[#allocation2 + $0x8] sm:$0xff]
        %v6064 = vld [vmem:[#allocation2 + $0x10] sm:$0xff]
        %v6065 = vld [vmem:[#allocation2 + $0x18] sm:$0xff]
        %v6066 = vld [vmem:[#allocation2 + $0x20] sm:$0xff]
        %v6067 = vld [vmem:[#allocation2 + $0x28] sm:$0xff]
        %v6068 = vld [vmem:[#allocation2 + $0x30] sm:$0xff]
        %v6069 = vld [vmem:[#allocation2 + $0x38] sm:$0xff]
        %v6070 = vld [vmem:[#allocation2 + $0x40] sm:$0xff]
        %v6071 = vld [vmem:[#allocation2 + $0x48] sm:$0xff]
        %v6072 = vld [vmem:[#allocation2 + $0x50] sm:$0xff]
        %v6073 = vld [vmem:[#allocation2 + $0x58] sm:$0xff]
        %v6074 = vld [vmem:[#allocation2 + $0x60] sm:$0xff]
        %v6075 = vld [vmem:[#allocation2 + $0x68] sm:$0xff]
        %v6076 = vld [vmem:[#allocation2 + $0x70] sm:$0xff]
        %v6077 = vld [vmem:[#allocation2 + $0x78] sm:$0xff]
        %v6078 = vld [vmem:[#allocation2 + $0x80] sm:$0xff]
        %v6079 = vld [vmem:[#allocation2 + $0x88] sm:$0xff]
        %v6080 = vld [vmem:[#allocation2 + $0x90] sm:$0xff]
        %v6081 = vld [vmem:[#allocation2 + $0x98] sm:$0xff]
        %v6082 = vld [vmem:[#allocation2 + $0xa0] sm:$0xff]
        %v6083 = vld [vmem:[#allocation2 + $0xa8] sm:$0xff]
        %v6084 = vld [vmem:[#allocation2 + $0xb0] sm:$0xff]
        %v6085 = vld [vmem:[#allocation2 + $0xb8] sm:$0xff]
        %v6086 = vpack.c.bf16 %v6035, %v6032
        %v6087 = vpack.c.bf16 %v6043, %v6040
        %v6088 = vpack.c.bf16 %v6051, %v6048
        %v6089 = vpack.c.bf16 %v6059, %v6056
        %v6090 = vld [vmem:[#allocation9 + $0x1e0] sm:$0xff]
        %v6091 = vld [vmem:[#allocation9 + $0x1e8] sm:$0xf]
        %v6092 = vld [vmem:[#allocation9 + $0x1ec] sm:$0xff]
        %v6093 = vld [vmem:[#allocation9 + $0x1f4] sm:$0xf]
        %v6094 = vld [vmem:[#allocation9 + $0x1f8] sm:$0xff]
        %v6095 = vld [vmem:[#allocation9 + $0x200] sm:$0xf]
        %v6096 = vld [vmem:[#allocation9 + $0x204] sm:$0xff]
        %v6097 = vld [vmem:[#allocation9 + $0x20c] sm:$0xf]
        %v6098 = vld [vmem:[#allocation9 + $0x210] sm:$0xff]
        %v6099 = vld [vmem:[#allocation9 + $0x218] sm:$0xf]
        %v6100 = vld [vmem:[#allocation9 + $0x21c] sm:$0xff]
        %v6101 = vld [vmem:[#allocation9 + $0x224] sm:$0xf]
        %v6102 = vld [vmem:[#allocation9 + $0x228] sm:$0xff]
        %v6103 = vld [vmem:[#allocation9 + $0x230] sm:$0xf]
        %v6104 = vld [vmem:[#allocation9 + $0x234] sm:$0xff]
        %v6105 = vld [vmem:[#allocation9 + $0x23c] sm:$0xf]
        %v6122 = vunpack.c.l.b16 %v6090
        %v6123 = vunpack.c.h.b16 %v6090
        %v6124 = vunpack.c.l.b16 %v6091
        %v6125 = vunpack.c.l.b16 %v6092
        %v6126 = vunpack.c.h.b16 %v6092
        %v6127 = vunpack.c.l.b16 %v6093
        %v6128 = vunpack.c.l.b16 %v6094
        %v6129 = vunpack.c.h.b16 %v6094
        %v6130 = vunpack.c.l.b16 %v6095
        %v6131 = vunpack.c.l.b16 %v6096
        %v6132 = vunpack.c.h.b16 %v6096
        %v6133 = vunpack.c.l.b16 %v6097
        %v6134 = vunpack.c.l.b16 %v6098
        %v6135 = vunpack.c.h.b16 %v6098
        %v6136 = vunpack.c.l.b16 %v6099
        %v6137 = vunpack.c.l.b16 %v6100
        %v6138 = vunpack.c.h.b16 %v6100
        %v6139 = vunpack.c.l.b16 %v6101
        %v6140 = vunpack.c.l.b16 %v6102
        %v6141 = vunpack.c.h.b16 %v6102
        %v6142 = vunpack.c.l.b16 %v6103
        %v6143 = vunpack.c.l.b16 %v6104
        %v6144 = vunpack.c.h.b16 %v6104
        %v6145 = vunpack.c.l.b16 %v6105
        %v6146 = vpack.c.b16 %v6125, %v6122
        %v6147 = vpack.c.b16 %v6126, %v6123
        %v6148 = vpack.c.b16 %v6127, %v6124
        %v6149 = vpack.c.b16 %v6131, %v6128
        %v6150 = vpack.c.b16 %v6132, %v6129
        %v6151 = vpack.c.b16 %v6133, %v6130
        %v6152 = vpack.c.b16 %v6137, %v6134
        %v6153 = vpack.c.b16 %v6138, %v6135
        %v6154 = vpack.c.b16 %v6139, %v6136
        %v6155 = vpack.c.b16 %v6143, %v6140
        %v6156 = vpack.c.b16 %v6144, %v6141
        %v6157 = vpack.c.b16 %v6145, %v6142
        %v6171 = vsel %vm2827, %v6086, 0
        %v6174 = vsel %vm2827, %v6087, 0
        %v6177 = vsel %vm2827, %v6088, 0
        %v6180 = vsel %vm2827, %v6089, 0
        %6182 = vmatprep.subr.bf16.mxu0 0
        %6183 = vmatpush1.bf16.msra.mxu0 0
        %6184 = vmatprep.subr.bf16.mxu0 0
        %6185 = vmatpush1.bf16.msra.mxu0 0
        %6186 = vmatprep.subr.bf16.mxu0 0
        %6187 = vmatpush1.bf16.msra.mxu0 0
        %6188 = vmatprep.subr.bf16.mxu0 0
        %6189 = vmatpush1.bf16.msra.mxu0 0
        %6190 = vmatprep.subr.bf16.mxu0 %v6156
        %6191 = vmatpush1.bf16.msra.mxu0 %v6155
        %6192 = vmatprep.subr.bf16.mxu0 %v6153
        %6193 = vmatpush1.bf16.msra.mxu0 %v6152
        %6194 = vmatprep.subr.bf16.mxu0 %v6150
        %6195 = vmatpush1.bf16.msra.mxu0 %v6149
        %6196 = vmatprep.subr.bf16.mxu0 %v6147
        %6197 = vmatpush1.bf16.msra.mxu0 %v6146
        %6198 = vmatprep.subr.bf16.mxu0 0
        %6199 = vmatpush2.bf16.msra.mxu0 0
        %6200 = vmatprep.subr.bf16.mxu0 0
        %6201 = vmatpush2.bf16.msra.mxu0 0
        %6202 = vmatprep.subr.bf16.mxu0 0
        %6203 = vmatpush2.bf16.msra.mxu0 0
        %6204 = vmatprep.subr.bf16.mxu0 0
        %6205 = vmatpush2.bf16.msra.mxu0 0
        %6206 = vmatprep.subr.bf16.mxu0 0
        %6207 = vmatpush2.bf16.msra.mxu0 0
        %6208 = vmatprep.subr.bf16.mxu0 0
        %6209 = vmatpush2.bf16.msra.mxu0 0
        %6210 = vmatprep.subr.bf16.mxu0 0
        %6211 = vmatpush2.bf16.msra.mxu0 0
        %6212 = vmatprep.subr.bf16.mxu0 0
        %6213 = vmatpush2.bf16.msra.mxu0 0
        %6214 = vmatprep.mubr.bf16.mxu0 0
        %6215 = vmatmul.mubr.bf16.gmra.mxu0 %v6171
        %v6216 = vpop.f32.mrf.mxu0
        %v6217 = vadd.f32 0.0, %v6216
        %v6218 = vpop.f32.mrf.mxu0
        %v6219 = vadd.f32 0.0, %v6218
        %v6220 = vpop.f32.mrf.mxu0
        %v6221 = vadd.f32 0.0, %v6220
        %v6222 = vpop.f32.mrf.mxu0
        %v6223 = vadd.f32 0.0, %v6222
        %6224 = vmatprep.mubr.bf16.mxu0 0
        %6225 = vmatmul.mubr.bf16.gmra.mxu0 %v6174
        %v6226 = vpop.f32.mrf.mxu0
        %v6227 = vadd.f32 0.0, %v6226
        %v6228 = vpop.f32.mrf.mxu0
        %v6229 = vadd.f32 0.0, %v6228
        %v6230 = vpop.f32.mrf.mxu0
        %v6231 = vadd.f32 0.0, %v6230
        %v6232 = vpop.f32.mrf.mxu0
        %v6233 = vadd.f32 0.0, %v6232
        %6234 = vmatprep.mubr.bf16.mxu0 0
        %6235 = vmatmul.mubr.bf16.gmra.mxu0 %v6177
        %v6236 = vpop.f32.mrf.mxu0
        %v6237 = vadd.f32 0.0, %v6236
        %v6238 = vpop.f32.mrf.mxu0
        %v6239 = vadd.f32 0.0, %v6238
        %v6240 = vpop.f32.mrf.mxu0
        %v6241 = vadd.f32 0.0, %v6240
        %v6242 = vpop.f32.mrf.mxu0
        %v6243 = vadd.f32 0.0, %v6242
        %6244 = vmatprep.mubr.bf16.mxu0 0
        %6245 = vmatmul.mubr.bf16.gmra.mxu0 %v6180
        %v6246 = vpop.f32.mrf.mxu0
        %v6247 = vadd.f32 0.0, %v6246
        %v6248 = vpop.f32.mrf.mxu0
        %v6249 = vadd.f32 0.0, %v6248
        %v6250 = vpop.f32.mrf.mxu0
        %v6251 = vadd.f32 0.0, %v6250
        %v6252 = vpop.f32.mrf.mxu0
        %v6253 = vadd.f32 0.0, %v6252
        %6254 = vdwg.mxu0
        %6255 = vmatprep.subr.bf16.mxu0 0
        %6256 = vmatpush1.bf16.msra.mxu0 0
        %6257 = vmatprep.subr.bf16.mxu0 0
        %6258 = vmatpush1.bf16.msra.mxu0 0
        %6259 = vmatprep.subr.bf16.mxu0 0
        %6260 = vmatpush1.bf16.msra.mxu0 0
        %6261 = vmatprep.subr.bf16.mxu0 0
        %6262 = vmatpush1.bf16.msra.mxu0 0
        %6263 = vmatprep.subr.bf16.mxu0 0
        %6264 = vmatpush1.bf16.msra.mxu0 %v6157
        %6265 = vmatprep.subr.bf16.mxu0 0
        %6266 = vmatpush1.bf16.msra.mxu0 %v6154
        %6267 = vmatprep.subr.bf16.mxu0 0
        %6268 = vmatpush1.bf16.msra.mxu0 %v6151
        %6269 = vmatprep.subr.bf16.mxu0 0
        %6270 = vmatpush1.bf16.msra.mxu0 %v6148
        %6271 = vmatprep.subr.bf16.mxu0 0
        %6272 = vmatpush2.bf16.msra.mxu0 0
        %6273 = vmatprep.subr.bf16.mxu0 0
        %6274 = vmatpush2.bf16.msra.mxu0 0
        %6275 = vmatprep.subr.bf16.mxu0 0
        %6276 = vmatpush2.bf16.msra.mxu0 0
        %6277 = vmatprep.subr.bf16.mxu0 0
        %6278 = vmatpush2.bf16.msra.mxu0 0
        %6279 = vmatprep.subr.bf16.mxu0 0
        %6280 = vmatpush2.bf16.msra.mxu0 0
        %6281 = vmatprep.subr.bf16.mxu0 0
        %6282 = vmatpush2.bf16.msra.mxu0 0
        %6283 = vmatprep.subr.bf16.mxu0 0
        %6284 = vmatpush2.bf16.msra.mxu0 0
        %6285 = vmatprep.subr.bf16.mxu0 0
        %6286 = vmatpush2.bf16.msra.mxu0 0
        %6287 = vmatprep.mubr.bf16.mxu0 0
        %6288 = vmatmul.mubr.bf16.gmra.mxu0 %v6171
        %v6289 = vpop.f32.mrf.mxu0
        %v6290 = vadd.f32 0.0, %v6289
        %v6291 = vpop.f32.mrf.mxu0
        %v6292 = vpop.f32.mrf.mxu0
        %v6293 = vadd.f32 0.0, %v6292
        %v6294 = vpop.f32.mrf.mxu0
        %6295 = vmatprep.mubr.bf16.mxu0 0
        %6296 = vmatmul.mubr.bf16.gmra.mxu0 %v6174
        %v6297 = vpop.f32.mrf.mxu0
        %v6298 = vadd.f32 0.0, %v6297
        %v6299 = vpop.f32.mrf.mxu0
        %v6300 = vpop.f32.mrf.mxu0
        %v6301 = vadd.f32 0.0, %v6300
        %v6302 = vpop.f32.mrf.mxu0
        %6303 = vmatprep.mubr.bf16.mxu0 0
        %6304 = vmatmul.mubr.bf16.gmra.mxu0 %v6177
        %v6305 = vpop.f32.mrf.mxu0
        %v6306 = vadd.f32 0.0, %v6305
        %v6307 = vpop.f32.mrf.mxu0
        %v6308 = vpop.f32.mrf.mxu0
        %v6309 = vadd.f32 0.0, %v6308
        %v6310 = vpop.f32.mrf.mxu0
        %6311 = vmatprep.mubr.bf16.mxu0 0
        %6312 = vmatmul.mubr.bf16.gmra.mxu0 %v6180
        %v6313 = vpop.f32.mrf.mxu0
        %v6314 = vadd.f32 0.0, %v6313
        %v6315 = vpop.f32.mrf.mxu0
        %v6316 = vpop.f32.mrf.mxu0
        %v6317 = vadd.f32 0.0, %v6316
        %v6318 = vpop.f32.mrf.mxu0
        %6319 = vdwg.mxu0
        %v6320 = vadd.f32 %v6062, %v6217
        %v6321 = vadd.f32 %v6063, %v6219
        %v6322 = vadd.f32 %v6064, %v6290
        %v6323 = vadd.f32 %v6065, %v6221
        %v6324 = vadd.f32 %v6066, %v6223
        %v6325 = vadd.f32 %v6067, %v6293
        %v6326 = vadd.f32 %v6068, %v6227
        %v6327 = vadd.f32 %v6069, %v6229
        %v6328 = vadd.f32 %v6070, %v6298
        %v6329 = vadd.f32 %v6071, %v6231
        %v6330 = vadd.f32 %v6072, %v6233
        %v6331 = vadd.f32 %v6073, %v6301
        %v6332 = vadd.f32 %v6074, %v6237
        %v6333 = vadd.f32 %v6075, %v6239
        %v6334 = vadd.f32 %v6076, %v6306
        %v6335 = vadd.f32 %v6077, %v6241
        %v6336 = vadd.f32 %v6078, %v6243
        %v6337 = vadd.f32 %v6079, %v6309
        %v6338 = vadd.f32 %v6080, %v6247
        %v6339 = vadd.f32 %v6081, %v6249
        %v6340 = vadd.f32 %v6082, %v6314
        %v6341 = vadd.f32 %v6083, %v6251
        %v6342 = vadd.f32 %v6084, %v6253
        %v6343 = vadd.f32 %v6085, %v6317
        %6344 = vst [vmem:[#allocation2] sm:$0xff] %v6320
        %6345 = vst [vmem:[#allocation2 + $0x8] sm:$0xff] %v6321
        %6346 = vst [vmem:[#allocation2 + $0x10] sm:$0xff] %v6322
        %6347 = vst [vmem:[#allocation2 + $0x18] sm:$0xff] %v6323
        %6348 = vst [vmem:[#allocation2 + $0x20] sm:$0xff] %v6324
        %6349 = vst [vmem:[#allocation2 + $0x28] sm:$0xff] %v6325
        %6350 = vst [vmem:[#allocation2 + $0x30] sm:$0xff] %v6326
        %6351 = vst [vmem:[#allocation2 + $0x38] sm:$0xff] %v6327
        %6352 = vst [vmem:[#allocation2 + $0x40] sm:$0xff] %v6328
        %6353 = vst [vmem:[#allocation2 + $0x48] sm:$0xff] %v6329
        %6354 = vst [vmem:[#allocation2 + $0x50] sm:$0xff] %v6330
        %6355 = vst [vmem:[#allocation2 + $0x58] sm:$0xff] %v6331
        %6356 = vst [vmem:[#allocation2 + $0x60] sm:$0xff] %v6332
        %6357 = vst [vmem:[#allocation2 + $0x68] sm:$0xff] %v6333
        %6358 = vst [vmem:[#allocation2 + $0x70] sm:$0xff] %v6334
        %6359 = vst [vmem:[#allocation2 + $0x78] sm:$0xff] %v6335
        %6360 = vst [vmem:[#allocation2 + $0x80] sm:$0xff] %v6336
        %6361 = vst [vmem:[#allocation2 + $0x88] sm:$0xff] %v6337
        %6362 = vst [vmem:[#allocation2 + $0x90] sm:$0xff] %v6338
        %6363 = vst [vmem:[#allocation2 + $0x98] sm:$0xff] %v6339
        %6364 = vst [vmem:[#allocation2 + $0xa0] sm:$0xff] %v6340
        %6365 = vst [vmem:[#allocation2 + $0xa8] sm:$0xff] %v6341
        %6366 = vst [vmem:[#allocation2 + $0xb0] sm:$0xff] %v6342
        %6367 = vst [vmem:[#allocation2 + $0xb8] sm:$0xff] %v6343
        %v6368 = vld [vmem:[#allocation2] sm:$0xff]
        %v6369 = vld [vmem:[#allocation2 + $0x8] sm:$0xff]
        %v6370 = vld [vmem:[#allocation2 + $0x10] sm:$0xff]
        %v6371 = vld [vmem:[#allocation2 + $0x18] sm:$0xff]
        %v6372 = vld [vmem:[#allocation2 + $0x20] sm:$0xff]
        %v6373 = vld [vmem:[#allocation2 + $0x28] sm:$0xff]
        %v6374 = vld [vmem:[#allocation2 + $0x30] sm:$0xff]
        %v6375 = vld [vmem:[#allocation2 + $0x38] sm:$0xff]
        %v6376 = vld [vmem:[#allocation2 + $0x40] sm:$0xff]
        %v6377 = vld [vmem:[#allocation2 + $0x48] sm:$0xff]
        %v6378 = vld [vmem:[#allocation2 + $0x50] sm:$0xff]
        %v6379 = vld [vmem:[#allocation2 + $0x58] sm:$0xff]
        %v6380 = vld [vmem:[#allocation2 + $0x60] sm:$0xff]
        %v6381 = vld [vmem:[#allocation2 + $0x68] sm:$0xff]
        %v6382 = vld [vmem:[#allocation2 + $0x70] sm:$0xff]
        %v6383 = vld [vmem:[#allocation2 + $0x78] sm:$0xff]
        %v6384 = vld [vmem:[#allocation2 + $0x80] sm:$0xff]
        %v6385 = vld [vmem:[#allocation2 + $0x88] sm:$0xff]
        %v6386 = vld [vmem:[#allocation2 + $0x90] sm:$0xff]
        %v6387 = vld [vmem:[#allocation2 + $0x98] sm:$0xff]
        %v6388 = vld [vmem:[#allocation2 + $0xa0] sm:$0xff]
        %v6389 = vld [vmem:[#allocation2 + $0xa8] sm:$0xff]
        %v6390 = vld [vmem:[#allocation2 + $0xb0] sm:$0xff]
        %v6391 = vld [vmem:[#allocation2 + $0xb8] sm:$0xff]
        %v6392 = vld [vmem:[%s4] sm:$0x7]
        %v6394 = vlaneseq
        %v6395 = vshrl.u32 %v6394, 7
        %v6396 = vsub.s32 0, %v6395
        %v6397 = vrot.slane %v6392, %v6396
        %v6398 = vlaneseq
        %v6399 = vshrl.u32 %v6398, 7
        %v6400 = vsub.s32 1, %v6399
        %v6401 = vrot.slane %v6392, %v6400
        %v6402 = vlaneseq
        %v6403 = vshrl.u32 %v6402, 7
        %v6404 = vsub.s32 2, %v6403
        %v6405 = vrot.slane %v6392, %v6404
        %v6409 = vadd.f32 %v6368, %v6397
        %v6410 = vadd.f32 %v6369, %v6401
        %v6411 = vadd.f32 %v6370, %v6405
        %v6412 = vadd.f32 %v6371, %v6397
        %v6413 = vadd.f32 %v6372, %v6401
        %v6414 = vadd.f32 %v6373, %v6405
        %v6415 = vadd.f32 %v6374, %v6397
        %v6416 = vadd.f32 %v6375, %v6401
        %v6417 = vadd.f32 %v6376, %v6405
        %v6418 = vadd.f32 %v6377, %v6397
        %v6419 = vadd.f32 %v6378, %v6401
        %v6420 = vadd.f32 %v6379, %v6405
        %v6421 = vadd.f32 %v6380, %v6397
        %v6422 = vadd.f32 %v6381, %v6401
        %v6423 = vadd.f32 %v6382, %v6405
        %v6424 = vadd.f32 %v6383, %v6397
        %v6425 = vadd.f32 %v6384, %v6401
        %v6426 = vadd.f32 %v6385, %v6405
        %v6427 = vadd.f32 %v6386, %v6397
        %v6428 = vadd.f32 %v6387, %v6401
        %v6429 = vadd.f32 %v6388, %v6405
        %v6430 = vadd.f32 %v6389, %v6397
        %v6431 = vadd.f32 %v6390, %v6401
        %v6432 = vadd.f32 %v6391, %v6405
        %v6433 = vpack.c.bf16 %v6412, %v6409
        %v6434 = vpack.c.bf16 %v6413, %v6410
        %v6435 = vpack.c.bf16 %v6414, %v6411
        %v6436 = vpack.c.bf16 %v6418, %v6415
        %v6437 = vpack.c.bf16 %v6419, %v6416
        %v6438 = vpack.c.bf16 %v6420, %v6417
        %v6439 = vpack.c.bf16 %v6424, %v6421
        %v6440 = vpack.c.bf16 %v6425, %v6422
        %v6441 = vpack.c.bf16 %v6426, %v6423
        %v6442 = vpack.c.bf16 %v6430, %v6427
        %v6443 = vpack.c.bf16 %v6431, %v6428
        %v6444 = vpack.c.bf16 %v6432, %v6429
        %v6457 = vunpack.c.l.b16 %v6433
        %v6458 = vunpack.c.l.b16 %v6434
        %v6459 = vunpack.c.l.b16 %v6435
        %v6460 = vunpack.c.h.b16 %v6433
        %v6461 = vunpack.c.h.b16 %v6434
        %v6462 = vunpack.c.h.b16 %v6435
        %v6463 = vunpack.c.l.b16 %v6436
        %v6464 = vunpack.c.l.b16 %v6437
        %v6465 = vunpack.c.l.b16 %v6438
        %v6466 = vunpack.c.h.b16 %v6436
        %v6467 = vunpack.c.h.b16 %v6437
        %v6468 = vunpack.c.h.b16 %v6438
        %v6469 = vunpack.c.l.b16 %v6439
        %v6470 = vunpack.c.l.b16 %v6440
        %v6471 = vunpack.c.l.b16 %v6441
        %v6472 = vunpack.c.h.b16 %v6439
        %v6473 = vunpack.c.h.b16 %v6440
        %v6474 = vunpack.c.h.b16 %v6441
        %v6475 = vunpack.c.l.b16 %v6442
        %v6476 = vunpack.c.l.b16 %v6443
        %v6477 = vunpack.c.l.b16 %v6444
        %v6478 = vunpack.c.h.b16 %v6442
        %v6479 = vunpack.c.h.b16 %v6443
        %v6480 = vunpack.c.h.b16 %v6444
        %v6481 = vpack.c.b16 %v6458, %v6457
        %v6482 = vpack.c.b16 %v6459, %v6459
        %v6483 = vpack.c.b16 %v6461, %v6460
        %v6484 = vpack.c.b16 %v6462, %v6462
        %v6485 = vpack.c.b16 %v6464, %v6463
        %v6486 = vpack.c.b16 %v6465, %v6465
        %v6487 = vpack.c.b16 %v6467, %v6466
        %v6488 = vpack.c.b16 %v6468, %v6468
        %v6489 = vpack.c.b16 %v6470, %v6469
        %v6490 = vpack.c.b16 %v6471, %v6471
        %v6491 = vpack.c.b16 %v6473, %v6472
        %v6492 = vpack.c.b16 %v6474, %v6474
        %v6493 = vpack.c.b16 %v6476, %v6475
        %v6494 = vpack.c.b16 %v6477, %v6477
        %v6495 = vpack.c.b16 %v6479, %v6478
        %v6496 = vpack.c.b16 %v6480, %v6480
        %6513 = vst [vmem:[%s300] sm:$0xff] %v6481
        %6514 = vst [vmem:[%s300 + $0x8] sm:$0xf] %v6482
        %6515 = vst [vmem:[%s300 + $0xc] sm:$0xff] %v6483
        %6516 = vst [vmem:[%s300 + $0x14] sm:$0xf] %v6484
        %6517 = vst [vmem:[%s300 + $0x18] sm:$0xff] %v6485
        %6518 = vst [vmem:[%s300 + $0x20] sm:$0xf] %v6486
        %6519 = vst [vmem:[%s300 + $0x24] sm:$0xff] %v6487
        %6520 = vst [vmem:[%s300 + $0x2c] sm:$0xf] %v6488
        %6521 = vst [vmem:[%s300 + $0x30] sm:$0xff] %v6489
        %6522 = vst [vmem:[%s300 + $0x38] sm:$0xf] %v6490
        %6523 = vst [vmem:[%s300 + $0x3c] sm:$0xff] %v6491
        %6524 = vst [vmem:[%s300 + $0x44] sm:$0xf] %v6492
        %6525 = vst [vmem:[%s300 + $0x48] sm:$0xff] %v6493
        %6526 = vst [vmem:[%s300 + $0x50] sm:$0xf] %v6494
        %6527 = vst [vmem:[%s300 + $0x54] sm:$0xff] %v6495
        %6528 = vst [vmem:[%s300 + $0x5c] sm:$0xf] %v6496
        %s6529 = sand.u32 %s156, 1
        %s6530 = scalar_lea.sflag [#allocation5], %s6529
        %s6531 = sand.u32 %s156, 1
        %s6532 = smul.addr %s6531, 96
        %s6533 = scalar_lea.vmem [#allocation11], %s6532
        // Predicated region
        $region57: #{tpu_custom_call.1} parent=39 // pred_check
          %p6534 = pneg %p166
        $region58: #{tpu_custom_call.1} parent=39 // pred_check_branch
          %6536 = sbr.rel (%p6534) target = $region60
        $region59: #{tpu_custom_call.1} parent=39 // pred_region
          %s6537 = smul.u32 8, %s29
          %s6539 = ssub.s32 1536, 1536
          %6540 = vsyncadd %s6530, %s6539
          %s6541 = smul.addr %s6537, 3
          %s6542 = smul.addr %s28, 48
          %s6543 = sadd.s32 %s6541, %s6542
          %s6544 = smul.addr %s6543, 64
          %s6545 = scalar_lea.hbm %s5, %s6544
          %s6546 = sshll.u32 %s6533, 4
          %s6547 = int_to_ptr.vmem [resolvable:$true] %s6546
          %6552 = dma.vmem_to_hbm [thread:$0]  %s6547, 1536, %s6545, %s6530, 192, 192, 12
        $region60: #{tpu_custom_call.1} parent=39 // pred_fallthru
          _
      $region40: #{tpu_custom_call.1} parent=5 // pred_fallthru
        _
      %p6553 = scmp.le.s32.totalorder 2, %s19
      // Predicated region
      $region61: #{tpu_custom_call.1} parent=5 // pred_check
        %p6554 = pneg %p6553
      $region62: #{tpu_custom_call.1} parent=5 // pred_check_branch
        %6556 = sbr.rel (%p6554) target = $region64
      $region63: #{tpu_custom_call.1} parent=5 // pred_region
        %s6557 = ssub.s32 %s19, 2
        // Predicated region
        $region65: #{tpu_custom_call.1} parent=63 // pred_check
          %p6558 = pneg %p172
        $region66: #{tpu_custom_call.1} parent=63 // pred_check_branch
          %6560 = sbr.rel (%p6558) target = $region68
        $region67: #{tpu_custom_call.1} parent=63 // pred_region
          %s6561 = sand.u32 %s157, 1
          %s6562 = scalar_lea.sflag [#allocation5], %s6561
          %s6563 = sand.u32 %s157, 1
          %s6564 = smul.addr %s6563, 96
          %s6565 = scalar_lea.vmem [#allocation11], %s6564
          %6566 = dma.done %s6562, 1536
        $region68: #{tpu_custom_call.1} parent=63 // pred_fallthru
          _
      $region64: #{tpu_custom_call.1} parent=5 // pred_fallthru
        _
    $region6: #{tpu_custom_call.1} parent=1 // loop_footer
      %s23 = sadd.s32 1, %s19
    $region7: #{tpu_custom_call.1} parent=1 // loop_footer_branch
      %18 = sbr.rel target = $region3
    $region8: #{tpu_custom_call.1} parent=1 // loop_exit
      _
    %6567 = vsyncpa [#allocation4], 1
    %s6568 = scalar_lea.sflag [#allocation4], 1
    %6569 = vsyncpa %s6568, 1
    %6570 = vsyncpa [#allocation7], 1
    %6571 = vsyncpa [#allocation10], 1
    %6572 = vsyncpa [#allocation5], 1
    %s6573 = scalar_lea.sflag [#allocation5], 1
    %6574 = vsyncpa %s6573, 1

</llo_original>
